<compile_context>
chip_gen: v7x
topology: tpu7x:2x2x1
jax: 0.10.0
libtpu: 0.0.40
codegen_flags: <defaults>
</compile_context>

<pallas_src>
import functools

import jax
import jax.numpy as jnp
from jax.experimental import pallas as pl
from jax.experimental.pallas import tpu as pltpu


# --------------------------------------------------------------------------
# small helpers (used inside kernels)
# --------------------------------------------------------------------------
def _round_up(x, m):
    return ((x + m - 1) // m) * m


def _mm(a, b_bf16):
    """MXU matmul: activation cast to bf16, weight already bf16, f32 accum."""
    return jnp.dot(a.astype(jnp.bfloat16), b_bf16,
                   preferred_element_type=jnp.float32)


def _ln(x, g, b, eps=1e-5):
    xf = x.astype(jnp.float32)
    mu = jnp.mean(xf, axis=-1, keepdims=True)
    var = jnp.mean(jnp.square(xf - mu), axis=-1, keepdims=True)
    return (xf - mu) * jax.lax.rsqrt(var + eps) * g + b


def _mha(q, k, v, batch, num_heads, q_len, kv_len):
    """Multi-head attention on batch-folded activations.

    q: (B*Sq, D)  k, v: (B*Sk, D)  ->  (B*Sq, D) f32 context.
    The 1/sqrt(dh) scale is already folded into the Q projection weights.
    Heads are split only here (tiny score/PV einsums with a leading batch dim);
    all projection matmuls are flat full-width dots outside this function.
    """
    D = q.shape[-1]
    dh = D // num_heads
    ctx_heads = []
    for h in range(num_heads):
        sl = slice(h * dh, (h + 1) * dh)
        qh = q[:, sl].reshape(batch, q_len, dh).astype(jnp.bfloat16)
        kh = k[:, sl].reshape(batch, kv_len, dh).astype(jnp.bfloat16)
        vh = v[:, sl].reshape(batch, kv_len, dh).astype(jnp.bfloat16)
        s = jnp.einsum("bqe,bke->bqk", qh, kh,
                       preferred_element_type=jnp.float32)
        s = s - jnp.max(s, axis=-1, keepdims=True)
        p = jnp.exp(s)
        p = p * pl.reciprocal(jnp.sum(p, axis=-1, keepdims=True), approx=True)
        ctx = jnp.einsum("bqk,bke->bqe", p.astype(jnp.bfloat16), vh,
                         preferred_element_type=jnp.float32)
        ctx_heads.append(ctx.reshape(batch * q_len, dh))
    return jnp.concatenate(ctx_heads, axis=-1)                      # (B*Sq, D)


# --------------------------------------------------------------------------
# Fused kernel: vision patch-embed + N decoder layers + final norm + fc_l1/fc_l2
# (single gridless pallas_call; all activations stay resident in VMEM)
# --------------------------------------------------------------------------
def _vqa_decoder_kernel(
        patches_ref, qembed_ref,
        patch_w_ref, patch_b_ref, vis_g_ref, vis_b_ref,
        sa_w_in_ref, sa_b_in_ref, sa_w_out_ref, sa_b_out_ref,
        ca_wq_ref, ca_bq_ref, ca_wkv_ref, ca_bkv_ref, ca_wo_ref, ca_bo_ref,
        ff_w1_ref, ff_b1_ref, ff_w2_ref, ff_b2_ref,
        ln_g_ref, ln_b_ref, dec_g_ref, dec_b_ref,
        fc1_w_ref, fc1_b_ref, fc2_w_ref, fc2_b_ref,
        out_ref, *, num_layers, num_heads, batch, q_len, kv_len):
    D = qembed_ref.shape[-1]

    # Vision stand-in (CLIP front-end): patch projection + LayerNorm -> memory.
    # TODO(synk): full pretrained CLIP ViT transformer stack is not replicated.
    mem = _mm(patches_ref[...], patch_w_ref[...]) + patch_b_ref[...]
    mem = _ln(mem, vis_g_ref[...], vis_b_ref[...])                  # (B*Sk, D)

    # Query embeddings repeated over the (folded) batch dimension.
    qe = qembed_ref[...].astype(jnp.float32)                        # (Sq, D)
    tgt = jnp.concatenate([qe] * batch, axis=0)                     # (B*Sq, D)

    # TODO(synk): at real D / dim_ff / num_layers, move this unrolled loop onto
    # an 'arbitrary' grid axis (layer-indexed BlockSpecs, tgt/mem in VMEM
    # scratch) so only ~2 layers of weights are VMEM-resident (v7x 64 MiB).
    for l in range(num_layers):
        # ---- self attention (pre-norm) ----
        t2 = _ln(tgt, ln_g_ref[l, 0], ln_b_ref[l, 0])
        qkv = _mm(t2, sa_w_in_ref[l]) + sa_b_in_ref[l]              # (M, 3D)
        q, k, v = qkv[:, :D], qkv[:, D:2 * D], qkv[:, 2 * D:]       # 128-aligned
        ctx = _mha(q, k, v, batch, num_heads, q_len, q_len)
        tgt = tgt + _mm(ctx, sa_w_out_ref[l]) + sa_b_out_ref[l]

        # ---- cross attention (pre-norm) ----
        t2 = _ln(tgt, ln_g_ref[l, 1], ln_b_ref[l, 1])
        q = _mm(t2, ca_wq_ref[l]) + ca_bq_ref[l]                    # (M, D)
        kv = _mm(mem, ca_wkv_ref[l]) + ca_bkv_ref[l]                # (B*Sk, 2D)
        k, v = kv[:, :D], kv[:, D:]                                 # 128-aligned
        ctx = _mha(q, k, v, batch, num_heads, q_len, kv_len)
        tgt = tgt + _mm(ctx, ca_wo_ref[l]) + ca_bo_ref[l]

        # ---- feed forward (pre-norm) ----
        t2 = _ln(tgt, ln_g_ref[l, 2], ln_b_ref[l, 2])
        h = jnp.maximum(_mm(t2, ff_w1_ref[l]) + ff_b1_ref[l], 0.0)
        tgt = tgt + _mm(h, ff_w2_ref[l]) + ff_b2_ref[l]

    # final decoder norm + fc_l1 -> relu -> fc_l2 (still resident in VMEM)
    tgt = _ln(tgt, dec_g_ref[...], dec_b_ref[...])
    h = jnp.maximum(_mm(tgt, fc1_w_ref[...]) + fc1_b_ref[...], 0.0)
    out = _mm(h, fc2_w_ref[...]) + fc2_b_ref[...]
    out_ref[...] = out.astype(out_ref.dtype)


def fused_vision_decoder(params, patches_flat, *, batch, num_heads):
    """patches_flat: (B*P, C*patch*patch) -> (B*Sq, hidden_dim) features."""
    Sq, _ = params["query_embed"].shape
    hidden = params["fc_l2_w"].shape[1]
    n_layers = params["sa_w_in"].shape[0]
    kv_len = patches_flat.shape[0] // batch

    weight_names = [
        "query_embed",
        "patch_w", "patch_b", "vis_ln_g", "vis_ln_b",
        "sa_w_in", "sa_b_in", "sa_w_out", "sa_b_out",
        "ca_wq", "ca_bq", "ca_wkv", "ca_bkv", "ca_wo", "ca_bo",
        "ff_w1", "ff_b1", "ff_w2", "ff_b2",
        "ln_g", "ln_b", "dec_norm_g", "dec_norm_b",
        "fc_l1_w", "fc_l1_b", "fc_l2_w", "fc_l2_b",
    ]
    weights = [params[n] for n in weight_names]

    kernel = functools.partial(
        _vqa_decoder_kernel, num_layers=n_layers, num_heads=num_heads,
        batch=batch, q_len=Sq, kv_len=kv_len)

    # Gridless call: every operand is a whole-array VMEM block (no per-batch
    # grid loop, no double-buffered weight copies).  All shapes here are tiny.
    return pl.pallas_call(
        kernel,
        out_shape=jax.ShapeDtypeStruct((batch * Sq, hidden), jnp.float32),
        compiler_params=pltpu.CompilerParams(
            vmem_limit_bytes=32 * 1024 * 1024),
    )(patches_flat, *weights)


# --------------------------------------------------------------------------
# Fused LM head + masked cross-entropy (ignore_index = -100)
# Vocab axis is tiled; per-tile logits are computed in VMEM and consumed by an
# online logsumexp, so the (M, V) f32 logits never touch HBM.
# --------------------------------------------------------------------------
def _lmhead_xent_kernel(h_ref, w_ref, b_ref, lbl_ref, loss_ref, cnt_ref,
                        m_sc, l_sc, p_sc):
    vi = pl.program_id(0)
    nv = pl.num_programs(0)
    tv = w_ref.shape[1]

    # per-tile logits (M, tv): bf16 x bf16 -> f32 accum, bias in f32
    x = jnp.dot(h_ref[...].astype(jnp.bfloat16), w_ref[...],
                preferred_element_type=jnp.float32) + b_ref[...]
    lbl = lbl_ref[...]                                              # (M, 1)

    @pl.when(vi == 0)
    def _():
        m_sc[...] = jnp.full_like(m_sc, -jnp.inf)
        l_sc[...] = jnp.zeros_like(l_sc)
        p_sc[...] = jnp.zeros_like(p_sc)

    # online logsumexp over vocab tiles
    m_prev = m_sc[...]
    m_new = jnp.maximum(m_prev, jnp.max(x, axis=-1, keepdims=True))
    alpha = jnp.exp(m_prev - m_new)
    l_sc[...] = alpha * l_sc[...] + jnp.sum(jnp.exp(x - m_new), axis=-1,
                                            keepdims=True)
    m_sc[...] = m_new

    # target logit (each valid label falls in exactly one vocab tile)
    col = jax.lax.broadcasted_iota(jnp.int32, x.shape, 1) + vi * tv
    p_sc[...] += jnp.sum(jnp.where(col == lbl, x, 0.0), axis=-1, keepdims=True)

    @pl.when(vi == nv - 1)
    def _():
        valid = (lbl != -100).astype(jnp.float32)
        per_row = (m_sc[...] + jnp.log(l_sc[...]) - p_sc[...]) * valid
        loss_ref[...] = jnp.sum(per_row, axis=0, keepdims=True)
        cnt_ref[...] = jnp.sum(valid, axis=0, keepdims=True)


def fused_lm_head_xent(hidden_states, labels, w, b):
    """hidden_states: (M, K) f32, labels: (M,) int32 (-100 = ignore),
    w: (K, V) bf16, b: (1, V) f32  ->  scalar mean cross-entropy loss."""
    M, K = hidden_states.shape
    V = w.shape[1]

    # (8, 128)-aligned tiling: pad rows to a multiple of 8 (ignored labels) and
    # the vocab to a multiple of the 128-aligned tile (bias -1e30 => prob 0).
    tv = min(512, _round_up(V, 128))
    v_pad = _round_up(V, tv)
    if v_pad > V:
        w = jnp.concatenate([w, jnp.zeros((K, v_pad - V), w.dtype)], axis=1)
        b = jnp.concatenate([b, jnp.full((1, v_pad - V), -1e30, b.dtype)],
                            axis=1)
    m_pad = _round_up(M, 8)
    if m_pad > M:
        hidden_states = jnp.concatenate(
            [hidden_states,
             jnp.zeros((m_pad - M, K), hidden_states.dtype)], axis=0)
        labels = jnp.concatenate(
            [labels, jnp.full((m_pad - M,), -100, labels.dtype)], axis=0)
    labels2d = labels.reshape(m_pad, 1).astype(jnp.int32)

    # TODO(synk): for large M add an outer 'parallel' row-tile grid axis
    # (per-tile partial sums) to enable v7x megacore sharding.
    loss_sum, cnt = pl.pallas_call(
        _lmhead_xent_kernel,
        out_shape=(jax.ShapeDtypeStruct((1, 1), jnp.float32),
                   jax.ShapeDtypeStruct((1, 1), jnp.float32)),
        grid=(v_pad // tv,),
        in_specs=[
            pl.BlockSpec((m_pad, K), lambda v: (0, 0)),
            pl.BlockSpec((K, tv), lambda v: (0, v)),
            pl.BlockSpec((1, tv), lambda v: (0, v)),
            pl.BlockSpec((m_pad, 1), lambda v: (0, 0)),
        ],
        out_specs=(pl.BlockSpec((1, 1), lambda v: (0, 0)),
                   pl.BlockSpec((1, 1), lambda v: (0, 0))),
        scratch_shapes=[pltpu.VMEM((m_pad, 1), jnp.float32),
                        pltpu.VMEM((m_pad, 1), jnp.float32),
                        pltpu.VMEM((m_pad, 1), jnp.float32)],
        compiler_params=pltpu.CompilerParams(
            dimension_semantics=("arbitrary",),
            vmem_limit_bytes=32 * 1024 * 1024),
    )(hidden_states, w, b, labels2d)
    return loss_sum[0, 0] / jnp.maximum(cnt[0, 0], 1.0)


# --------------------------------------------------------------------------
# Forward pass
# --------------------------------------------------------------------------
def vqa_forward(params, input_ids, images, labels, *, num_heads, patch):
    B, C, Himg, Wimg = images.shape
    # patchify (pure layout glue; the projection runs inside the fused kernel)
    Hp, Wp = Himg // patch, Wimg // patch
    x = images.reshape(B, C, Hp, patch, Wp, patch)
    patches_flat = x.transpose(0, 2, 4, 1, 3, 5).reshape(
        B * Hp * Wp, C * patch * patch)

    # single fused kernel: vision embed + LN, N pre-norm decoder layers,
    # final norm, fc_l1 -> relu -> fc_l2    -> (B*img_tokens, hidden_dim)
    feat_flat = fused_vision_decoder(params, patches_flat,
                                     batch=B, num_heads=num_heads)
    Sq = params["query_embed"].shape[0]
    hidden = feat_flat.shape[-1]
    feat = feat_flat.reshape(B, Sq, hidden)

    # LLM stand-in: token embedding lookup + concat + fused LM-head/xent.
    # TODO(synk): pretrained LlamaForCausalLM (+ PEFT/LoRA wrapping) is not
    # replicated; a token-embedding + single LM-head linear stands in for it.
    tok_emb = jnp.take(params["tok_embed"], input_ids, axis=0)      # (B,T,hid)
    seq = jnp.concatenate([feat, tok_emb], axis=1)                  # (B,L,hid)
    L = seq.shape[1]

    # HF causal shift done on the labels (no hidden-state slice copy):
    # position t predicts labels[t+1]; the last position is ignored.
    shifted_labels = jnp.concatenate(
        [labels[:, 1:], jnp.full((B, 1), -100, labels.dtype)], axis=1)

    loss = fused_lm_head_xent(seq.reshape(B * L, hidden),
                              shifted_labels.reshape(B * L),
                              params["lm_head_w"], params["lm_head_b"])
    return loss


# --------------------------------------------------------------------------
# Deterministic parameter construction
#   - matmul weights stored bf16 (halved HBM->VMEM DMA), LN params/biases f32
#   - QKV weights kept flat (D, 3D); 1/sqrt(dh) folded into the Q columns
# --------------------------------------------------------------------------
def _init(key, shape, scale=0.02):
    return scale * jax.random.normal(key, shape, dtype=jnp.float32)


def make_params(key, *, C, patch, num_ftrs, num_heads, num_layers,
                img_tokens, hidden_dim, dim_ff, vocab):
    D = num_ftrs
    dh = D // num_heads
    q_scale = 1.0 / (dh ** 0.5)
    keys = iter(jax.random.split(key, 8 * num_layers + 16))
    nk = lambda: next(keys)
    bf16 = lambda a: a.astype(jnp.bfloat16)

    sa_w_in, sa_b_in, sa_w_out, sa_b_out = [], [], [], []
    ca_wq, ca_bq, ca_wkv, ca_bkv, ca_wo, ca_bo = [], [], [], [], [], []
    ff_w1, ff_b1, ff_w2, ff_b2 = [], [], [], []
    for _ in range(num_layers):
        wq, wk, wv, wo = (_init(nk(), (D, D)) for _ in range(4))
        sa_w_in.append(bf16(jnp.concatenate([wq * q_scale, wk, wv], axis=1)))
        sa_b_in.append(jnp.zeros((1, 3 * D), jnp.float32))
        sa_w_out.append(bf16(wo))
        sa_b_out.append(jnp.zeros((1, D), jnp.float32))

        wq, wk, wv, wo = (_init(nk(), (D, D)) for _ in range(4))
        ca_wq.append(bf16(wq * q_scale))
        ca_bq.append(jnp.zeros((1, D), jnp.float32))
        ca_wkv.append(bf16(jnp.concatenate([wk, wv], axis=1)))
        ca_bkv.append(jnp.zeros((1, 2 * D), jnp.float32))
        ca_wo.append(bf16(wo))
        ca_bo.append(jnp.zeros((1, D), jnp.float32))

        ff_w1.append(bf16(_init(nk(), (D, dim_ff))))
        ff_b1.append(jnp.zeros((1, dim_ff), jnp.float32))
        ff_w2.append(bf16(_init(nk(), (dim_ff, D))))
        ff_b2.append(jnp.zeros((1, D), jnp.float32))

    params = {
        "patch_w": bf16(_init(nk(), (C * patch * patch, D))),
        "patch_b": jnp.zeros((1, D), jnp.float32),
        "vis_ln_g": jnp.ones((1, D), jnp.float32),
        "vis_ln_b": jnp.zeros((1, D), jnp.float32),
        "query_embed": _init(nk(), (img_tokens, D), scale=1.0),
        "sa_w_in": jnp.stack(sa_w_in), "sa_b_in": jnp.stack(sa_b_in),
        "sa_w_out": jnp.stack(sa_w_out), "sa_b_out": jnp.stack(sa_b_out),
        "ca_wq": jnp.stack(ca_wq), "ca_bq": jnp.stack(ca_bq),
        "ca_wkv": jnp.stack(ca_wkv), "ca_bkv": jnp.stack(ca_bkv),
        "ca_wo": jnp.stack(ca_wo), "ca_bo": jnp.stack(ca_bo),
        "ff_w1": jnp.stack(ff_w1), "ff_b1": jnp.stack(ff_b1),
        "ff_w2": jnp.stack(ff_w2), "ff_b2": jnp.stack(ff_b2),
        "ln_g": jnp.ones((num_layers, 3, 1, D), jnp.float32),
        "ln_b": jnp.zeros((num_layers, 3, 1, D), jnp.float32),
        "dec_norm_g": jnp.ones((1, D), jnp.float32),
        "dec_norm_b": jnp.zeros((1, D), jnp.float32),
        "fc_l1_w": bf16(_init(nk(), (D, D))),
        "fc_l1_b": jnp.zeros((1, D), jnp.float32),
        "fc_l2_w": bf16(_init(nk(), (D, hidden_dim))),
        "fc_l2_b": jnp.zeros((1, hidden_dim), jnp.float32),
        "tok_embed": _init(nk(), (vocab, hidden_dim), scale=1.0),
        "lm_head_w": bf16(_init(nk(), (hidden_dim, vocab))),
        "lm_head_b": jnp.zeros((1, vocab), jnp.float32),
    }
    return params


# --------------------------------------------------------------------------
# Main
# --------------------------------------------------------------------------
if __name__ == "__main__":
    # small, CLIP/Llama-analogous config with lane-dense feature dims
    B, C, IMG, PATCH = 2, 3, 16, 8          # images (2,3,16,16), 4 patches each
    NUM_FTRS = 128                           # model width (768 in real CLIP)
    HEADS = 4                                # model_args.H  (dh = 32)
    N_LAYERS = 2                             # model_args.N
    IMG_TOKENS = 8                           # model_args.img_token_num
    HIDDEN = 128                             # model_args.hidden_dim (LLM width)
    VOCAB = 256                              # llama vocab stand-in
    T = 6                                    # text length
    DIM_FF = 256                             # (1024 in the real decoder)

    key = jax.random.PRNGKey(0)
    kp, ki, kimg, klbl = jax.random.split(key, 4)

    params = make_params(kp, C=C, patch=PATCH, num_ftrs=NUM_FTRS,
                         num_heads=HEADS, num_layers=N_LAYERS,
                         img_tokens=IMG_TOKENS, hidden_dim=HIDDEN,
                         dim_ff=DIM_FF, vocab=VOCAB)

    images = jax.random.normal(kimg, (B, C, IMG, IMG), dtype=jnp.float32)
    input_ids = jax.random.randint(ki, (B, T), 0, VOCAB, dtype=jnp.int32)
    text_labels = jax.random.randint(klbl, (B, T), 0, VOCAB, dtype=jnp.int32)
    # image-token positions are ignored by the loss (ignore_index = -100)
    labels = jnp.concatenate(
        [jnp.full((B, IMG_TOKENS), -100, jnp.int32), text_labels], axis=1)

    fwd = jax.jit(functools.partial(vqa_forward, num_heads=HEADS, patch=PATCH))
    loss = fwd(params, input_ids, images, labels)
    jax.block_until_ready(loss)

    assert loss.shape == ()
    assert bool(jnp.isfinite(loss))
    print("KERNEL_OK")
</pallas_src>

<mosaic_0001>
module attributes {stable_mosaic.version = 11 : i64} {
  func.func @_vqa_decoder_kernel(%arg0: memref<8x192xf32, #tpu.memory_space<vmem>>, %arg1: memref<8x128xf32, #tpu.memory_space<vmem>>, %arg2: memref<192x128xbf16, #tpu.memory_space<vmem>>, %arg3: memref<1x128xf32, #tpu.memory_space<vmem>>, %arg4: memref<1x128xf32, #tpu.memory_space<vmem>>, %arg5: memref<1x128xf32, #tpu.memory_space<vmem>>, %arg6: memref<2x128x384xbf16, #tpu.memory_space<vmem>>, %arg7: memref<2x1x384xf32, #tpu.memory_space<vmem>>, %arg8: memref<2x128x128xbf16, #tpu.memory_space<vmem>>, %arg9: memref<2x1x128xf32, #tpu.memory_space<vmem>>, %arg10: memref<2x128x128xbf16, #tpu.memory_space<vmem>>, %arg11: memref<2x1x128xf32, #tpu.memory_space<vmem>>, %arg12: memref<2x128x256xbf16, #tpu.memory_space<vmem>>, %arg13: memref<2x1x256xf32, #tpu.memory_space<vmem>>, %arg14: memref<2x128x128xbf16, #tpu.memory_space<vmem>>, %arg15: memref<2x1x128xf32, #tpu.memory_space<vmem>>, %arg16: memref<2x128x256xbf16, #tpu.memory_space<vmem>>, %arg17: memref<2x1x256xf32, #tpu.memory_space<vmem>>, %arg18: memref<2x256x128xbf16, #tpu.memory_space<vmem>>, %arg19: memref<2x1x128xf32, #tpu.memory_space<vmem>>, %arg20: memref<2x3x1x128xf32, #tpu.memory_space<vmem>>, %arg21: memref<2x3x1x128xf32, #tpu.memory_space<vmem>>, %arg22: memref<1x128xf32, #tpu.memory_space<vmem>>, %arg23: memref<1x128xf32, #tpu.memory_space<vmem>>, %arg24: memref<128x128xbf16, #tpu.memory_space<vmem>>, %arg25: memref<1x128xf32, #tpu.memory_space<vmem>>, %arg26: memref<128x128xbf16, #tpu.memory_space<vmem>>, %arg27: memref<1x128xf32, #tpu.memory_space<vmem>>, %arg28: memref<16x128xf32, #tpu.memory_space<vmem>>) attributes {dimension_semantics = [], scalar_prefetch = 0 : i64, scratch_operands = 0 : i64, tpu.core_type = #tpu.core_type<tc>} {
    %c0 = arith.constant 0 : index
    %c0_0 = arith.constant 0 : index
    %0 = vector.load %arg0[%c0, %c0_0] : memref<8x192xf32, #tpu.memory_space<vmem>>, vector<8x192xf32>
    %c0_1 = arith.constant 0 : index
    %c0_2 = arith.constant 0 : index
    %1 = vector.load %arg2[%c0_1, %c0_2] : memref<192x128xbf16, #tpu.memory_space<vmem>>, vector<192x128xbf16>
    %2 = arith.truncf %0 : vector<8x192xf32> to vector<8x192xbf16>
    %cst = arith.constant dense<0.000000e+00> : vector<8x128xf32>
    %3 = tpu.matmul %2, %1, %cst {dimension_numbers = #tpu.dot_dimension_numbers<[1], [0], [0], [1], [0, 0, 1, 1], [], []>} : vector<8x192xbf16>, vector<192x128xbf16>, vector<8x128xf32> -> vector<8x128xf32>
    %c0_3 = arith.constant 0 : index
    %c0_4 = arith.constant 0 : index
    %4 = vector.load %arg3[%c0_3, %c0_4] : memref<1x128xf32, #tpu.memory_space<vmem>>, vector<1x128xf32>
    %5 = vector.broadcast %4 : vector<1x128xf32> to vector<8x128xf32>
    %6 = arith.addf %3, %5 : vector<8x128xf32>
    %c0_5 = arith.constant 0 : index
    %c0_6 = arith.constant 0 : index
    %7 = vector.load %arg4[%c0_5, %c0_6] : memref<1x128xf32, #tpu.memory_space<vmem>>, vector<1x128xf32>
    %c0_7 = arith.constant 0 : index
    %c0_8 = arith.constant 0 : index
    %8 = vector.load %arg5[%c0_7, %c0_8] : memref<1x128xf32, #tpu.memory_space<vmem>>, vector<1x128xf32>
    %cst_9 = arith.constant dense<0.000000e+00> : vector<8xf32>
    %9 = vector.multi_reduction <add>, %6, %cst_9 [1] : vector<8x128xf32> to vector<8xf32>
    %10 = vector.shape_cast %9 : vector<8xf32> to vector<8x1xf32>
    %cst_10 = arith.constant 1.280000e+02 : f32
    %11 = vector.broadcast %cst_10 : f32 to vector<8x1xf32>
    %12 = arith.divf %10, %11 : vector<8x1xf32>
    %13 = vector.broadcast %12 : vector<8x1xf32> to vector<8x128xf32>
    %14 = arith.subf %6, %13 : vector<8x128xf32>
    %15 = arith.mulf %14, %14 : vector<8x128xf32>
    %cst_11 = arith.constant dense<0.000000e+00> : vector<8xf32>
    %16 = vector.multi_reduction <add>, %15, %cst_11 [1] : vector<8x128xf32> to vector<8xf32>
    %17 = vector.shape_cast %16 : vector<8xf32> to vector<8x1xf32>
    %cst_12 = arith.constant 1.280000e+02 : f32
    %18 = vector.broadcast %cst_12 : f32 to vector<8x1xf32>
    %19 = arith.divf %17, %18 : vector<8x1xf32>
    %20 = vector.broadcast %12 : vector<8x1xf32> to vector<8x128xf32>
    %21 = arith.subf %6, %20 : vector<8x128xf32>
    %cst_13 = arith.constant 9.99999974E-6 : f32
    %22 = vector.broadcast %cst_13 : f32 to vector<8x1xf32>
    %23 = arith.addf %19, %22 : vector<8x1xf32>
    %24 = math.rsqrt %23 : vector<8x1xf32>
    %25 = vector.broadcast %24 : vector<8x1xf32> to vector<8x128xf32>
    %26 = arith.mulf %21, %25 : vector<8x128xf32>
    %27 = vector.broadcast %7 : vector<1x128xf32> to vector<8x128xf32>
    %28 = arith.mulf %26, %27 : vector<8x128xf32>
    %29 = vector.broadcast %8 : vector<1x128xf32> to vector<8x128xf32>
    %30 = arith.addf %28, %29 : vector<8x128xf32>
    %c0_14 = arith.constant 0 : index
    %c0_15 = arith.constant 0 : index
    %31 = vector.load %arg1[%c0_14, %c0_15] : memref<8x128xf32, #tpu.memory_space<vmem>>, vector<8x128xf32>
    %32 = tpu.concatenate %31, %31 in 0 : vector<8x128xf32>, vector<8x128xf32> -> vector<16x128xf32>
    %c0_16 = arith.constant 0 : index
    %c0_17 = arith.constant 0 : index
    %c0_18 = arith.constant 0 : index
    %c0_19 = arith.constant 0 : index
    %33 = vector.load %arg20[%c0_16, %c0_17, %c0_18, %c0_19] : memref<2x3x1x128xf32, #tpu.memory_space<vmem>>, vector<1x1x1x128xf32>
    %34 = vector.shape_cast %33 : vector<1x1x1x128xf32> to vector<1x128xf32>
    %c0_20 = arith.constant 0 : index
    %c0_21 = arith.constant 0 : index
    %c0_22 = arith.constant 0 : index
    %c0_23 = arith.constant 0 : index
    %35 = vector.load %arg21[%c0_20, %c0_21, %c0_22, %c0_23] : memref<2x3x1x128xf32, #tpu.memory_space<vmem>>, vector<1x1x1x128xf32>
    %36 = vector.shape_cast %35 : vector<1x1x1x128xf32> to vector<1x128xf32>
    %cst_24 = arith.constant dense<0.000000e+00> : vector<16xf32>
    %37 = vector.multi_reduction <add>, %32, %cst_24 [1] : vector<16x128xf32> to vector<16xf32>
    %38 = vector.shape_cast %37 : vector<16xf32> to vector<16x1xf32>
    %cst_25 = arith.constant 1.280000e+02 : f32
    %39 = vector.broadcast %cst_25 : f32 to vector<16x1xf32>
    %40 = arith.divf %38, %39 : vector<16x1xf32>
    %41 = vector.broadcast %40 : vector<16x1xf32> to vector<16x128xf32>
    %42 = arith.subf %32, %41 : vector<16x128xf32>
    %43 = arith.mulf %42, %42 : vector<16x128xf32>
    %cst_26 = arith.constant dense<0.000000e+00> : vector<16xf32>
    %44 = vector.multi_reduction <add>, %43, %cst_26 [1] : vector<16x128xf32> to vector<16xf32>
    %45 = vector.shape_cast %44 : vector<16xf32> to vector<16x1xf32>
    %cst_27 = arith.constant 1.280000e+02 : f32
    %46 = vector.broadcast %cst_27 : f32 to vector<16x1xf32>
    %47 = arith.divf %45, %46 : vector<16x1xf32>
    %48 = vector.broadcast %40 : vector<16x1xf32> to vector<16x128xf32>
    %49 = arith.subf %32, %48 : vector<16x128xf32>
    %cst_28 = arith.constant 9.99999974E-6 : f32
    %50 = vector.broadcast %cst_28 : f32 to vector<16x1xf32>
    %51 = arith.addf %47, %50 : vector<16x1xf32>
    %52 = math.rsqrt %51 : vector<16x1xf32>
    %53 = vector.broadcast %52 : vector<16x1xf32> to vector<16x128xf32>
    %54 = arith.mulf %49, %53 : vector<16x128xf32>
    %55 = vector.broadcast %34 : vector<1x128xf32> to vector<16x128xf32>
    %56 = arith.mulf %54, %55 : vector<16x128xf32>
    %57 = vector.broadcast %36 : vector<1x128xf32> to vector<16x128xf32>
    %58 = arith.addf %56, %57 : vector<16x128xf32>
    %c0_29 = arith.constant 0 : index
    %c0_30 = arith.constant 0 : index
    %c0_31 = arith.constant 0 : index
    %59 = vector.load %arg6[%c0_29, %c0_30, %c0_31] : memref<2x128x384xbf16, #tpu.memory_space<vmem>>, vector<1x128x384xbf16>
    %60 = vector.shape_cast %59 : vector<1x128x384xbf16> to vector<128x384xbf16>
    %61 = arith.truncf %58 : vector<16x128xf32> to vector<16x128xbf16>
    %cst_32 = arith.constant dense<0.000000e+00> : vector<16x384xf32>
    %62 = tpu.matmul %61, %60, %cst_32 {dimension_numbers = #tpu.dot_dimension_numbers<[1], [0], [0], [1], [0, 0, 1, 1], [], []>} : vector<16x128xbf16>, vector<128x384xbf16>, vector<16x384xf32> -> vector<16x384xf32>
    %c0_33 = arith.constant 0 : index
    %c0_34 = arith.constant 0 : index
    %c0_35 = arith.constant 0 : index
    %63 = vector.load %arg7[%c0_33, %c0_34, %c0_35] : memref<2x1x384xf32, #tpu.memory_space<vmem>>, vector<1x1x384xf32>
    %64 = vector.shape_cast %63 : vector<1x1x384xf32> to vector<1x384xf32>
    %65 = vector.broadcast %64 : vector<1x384xf32> to vector<16x384xf32>
    %66 = arith.addf %62, %65 : vector<16x384xf32>
    %67 = vector.extract_strided_slice %66 {offsets = [0, 0], sizes = [16, 128], strides = [1, 1]} : vector<16x384xf32> to vector<16x128xf32>
    %68 = vector.extract_strided_slice %66 {offsets = [0, 128], sizes = [16, 128], strides = [1, 1]} : vector<16x384xf32> to vector<16x128xf32>
    %69 = vector.extract_strided_slice %66 {offsets = [0, 256], sizes = [16, 128], strides = [1, 1]} : vector<16x384xf32> to vector<16x128xf32>
    %70 = vector.extract_strided_slice %67 {offsets = [0, 0], sizes = [16, 32], strides = [1, 1]} : vector<16x128xf32> to vector<16x32xf32>
    %71 = vector.shape_cast %70 : vector<16x32xf32> to vector<2x8x32xf32>
    %72 = arith.truncf %71 : vector<2x8x32xf32> to vector<2x8x32xbf16>
    %73 = vector.extract_strided_slice %68 {offsets = [0, 0], sizes = [16, 32], strides = [1, 1]} : vector<16x128xf32> to vector<16x32xf32>
    %74 = vector.shape_cast %73 : vector<16x32xf32> to vector<2x8x32xf32>
    %75 = arith.truncf %74 : vector<2x8x32xf32> to vector<2x8x32xbf16>
    %76 = vector.extract_strided_slice %69 {offsets = [0, 0], sizes = [16, 32], strides = [1, 1]} : vector<16x128xf32> to vector<16x32xf32>
    %77 = vector.shape_cast %76 : vector<16x32xf32> to vector<2x8x32xf32>
    %78 = arith.truncf %77 : vector<2x8x32xf32> to vector<2x8x32xbf16>
    "tpu.trace_start"() <{level = 10 : i32, message = "bqe,bke->bqk"}> : () -> ()
    %cst_36 = arith.constant dense<0.000000e+00> : vector<2x8x8xf32>
    %79 = tpu.matmul %72, %75, %cst_36 {dimension_numbers = #tpu.dot_dimension_numbers<[2], [2], [1], [1], [0, 0, 0, 1, 1, 1], [0], [0]>} : vector<2x8x32xbf16>, vector<2x8x32xbf16>, vector<2x8x8xf32> -> vector<2x8x8xf32>
    "tpu.trace_stop"() : () -> ()
    %cst_37 = arith.constant dense<0xFF800000> : vector<2x8xf32>
    %80 = vector.multi_reduction <maximumf>, %79, %cst_37 [2] : vector<2x8x8xf32> to vector<2x8xf32>
    %81 = vector.shape_cast %80 : vector<2x8xf32> to vector<2x8x1xf32>
    %82 = vector.broadcast %81 : vector<2x8x1xf32> to vector<2x8x8xf32>
    %83 = arith.subf %79, %82 : vector<2x8x8xf32>
    %84 = math.exp %83 : vector<2x8x8xf32>
    %cst_38 = arith.constant dense<0.000000e+00> : vector<2x8xf32>
    %85 = vector.multi_reduction <add>, %84, %cst_38 [2] : vector<2x8x8xf32> to vector<2x8xf32>
    %86 = vector.shape_cast %85 : vector<2x8xf32> to vector<2x8x1xf32>
    %87 = tpu.reciprocal %86 {approx = true} : vector<2x8x1xf32> -> vector<2x8x1xf32>
    %88 = vector.broadcast %87 : vector<2x8x1xf32> to vector<2x8x8xf32>
    %89 = arith.mulf %84, %88 : vector<2x8x8xf32>
    %90 = arith.truncf %89 : vector<2x8x8xf32> to vector<2x8x8xbf16>
    "tpu.trace_start"() <{level = 10 : i32, message = "bqk,bke->bqe"}> : () -> ()
    %cst_39 = arith.constant dense<0.000000e+00> : vector<2x8x32xf32>
    %91 = tpu.matmul %90, %78, %cst_39 {dimension_numbers = #tpu.dot_dimension_numbers<[2], [1], [1], [2], [0, 0, 0, 1, 1, 2], [0], [0]>} : vector<2x8x8xbf16>, vector<2x8x32xbf16>, vector<2x8x32xf32> -> vector<2x8x32xf32>
    "tpu.trace_stop"() : () -> ()
    %92 = vector.shape_cast %91 : vector<2x8x32xf32> to vector<16x32xf32>
    %93 = vector.extract_strided_slice %67 {offsets = [0, 32], sizes = [16, 32], strides = [1, 1]} : vector<16x128xf32> to vector<16x32xf32>
    %94 = vector.shape_cast %93 : vector<16x32xf32> to vector<2x8x32xf32>
    %95 = arith.truncf %94 : vector<2x8x32xf32> to vector<2x8x32xbf16>
    %96 = vector.extract_strided_slice %68 {offsets = [0, 32], sizes = [16, 32], strides = [1, 1]} : vector<16x128xf32> to vector<16x32xf32>
    %97 = vector.shape_cast %96 : vector<16x32xf32> to vector<2x8x32xf32>
    %98 = arith.truncf %97 : vector<2x8x32xf32> to vector<2x8x32xbf16>
    %99 = vector.extract_strided_slice %69 {offsets = [0, 32], sizes = [16, 32], strides = [1, 1]} : vector<16x128xf32> to vector<16x32xf32>
    %100 = vector.shape_cast %99 : vector<16x32xf32> to vector<2x8x32xf32>
    %101 = arith.truncf %100 : vector<2x8x32xf32> to vector<2x8x32xbf16>
    "tpu.trace_start"() <{level = 10 : i32, message = "bqe,bke->bqk"}> : () -> ()
    %cst_40 = arith.constant dense<0.000000e+00> : vector<2x8x8xf32>
    %102 = tpu.matmul %95, %98, %cst_40 {dimension_numbers = #tpu.dot_dimension_numbers<[2], [2], [1], [1], [0, 0, 0, 1, 1, 1], [0], [0]>} : vector<2x8x32xbf16>, vector<2x8x32xbf16>, vector<2x8x8xf32> -> vector<2x8x8xf32>
    "tpu.trace_stop"() : () -> ()
    %cst_41 = arith.constant dense<0xFF800000> : vector<2x8xf32>
    %103 = vector.multi_reduction <maximumf>, %102, %cst_41 [2] : vector<2x8x8xf32> to vector<2x8xf32>
    %104 = vector.shape_cast %103 : vector<2x8xf32> to vector<2x8x1xf32>
    %105 = vector.broadcast %104 : vector<2x8x1xf32> to vector<2x8x8xf32>
    %106 = arith.subf %102, %105 : vector<2x8x8xf32>
    %107 = math.exp %106 : vector<2x8x8xf32>
    %cst_42 = arith.constant dense<0.000000e+00> : vector<2x8xf32>
    %108 = vector.multi_reduction <add>, %107, %cst_42 [2] : vector<2x8x8xf32> to vector<2x8xf32>
    %109 = vector.shape_cast %108 : vector<2x8xf32> to vector<2x8x1xf32>
    %110 = tpu.reciprocal %109 {approx = true} : vector<2x8x1xf32> -> vector<2x8x1xf32>
    %111 = vector.broadcast %110 : vector<2x8x1xf32> to vector<2x8x8xf32>
    %112 = arith.mulf %107, %111 : vector<2x8x8xf32>
    %113 = arith.truncf %112 : vector<2x8x8xf32> to vector<2x8x8xbf16>
    "tpu.trace_start"() <{level = 10 : i32, message = "bqk,bke->bqe"}> : () -> ()
    %cst_43 = arith.constant dense<0.000000e+00> : vector<2x8x32xf32>
    %114 = tpu.matmul %113, %101, %cst_43 {dimension_numbers = #tpu.dot_dimension_numbers<[2], [1], [1], [2], [0, 0, 0, 1, 1, 2], [0], [0]>} : vector<2x8x8xbf16>, vector<2x8x32xbf16>, vector<2x8x32xf32> -> vector<2x8x32xf32>
    "tpu.trace_stop"() : () -> ()
    %115 = vector.shape_cast %114 : vector<2x8x32xf32> to vector<16x32xf32>
    %116 = vector.extract_strided_slice %67 {offsets = [0, 64], sizes = [16, 32], strides = [1, 1]} : vector<16x128xf32> to vector<16x32xf32>
    %117 = vector.shape_cast %116 : vector<16x32xf32> to vector<2x8x32xf32>
    %118 = arith.truncf %117 : vector<2x8x32xf32> to vector<2x8x32xbf16>
    %119 = vector.extract_strided_slice %68 {offsets = [0, 64], sizes = [16, 32], strides = [1, 1]} : vector<16x128xf32> to vector<16x32xf32>
    %120 = vector.shape_cast %119 : vector<16x32xf32> to vector<2x8x32xf32>
    %121 = arith.truncf %120 : vector<2x8x32xf32> to vector<2x8x32xbf16>
    %122 = vector.extract_strided_slice %69 {offsets = [0, 64], sizes = [16, 32], strides = [1, 1]} : vector<16x128xf32> to vector<16x32xf32>
    %123 = vector.shape_cast %122 : vector<16x32xf32> to vector<2x8x32xf32>
    %124 = arith.truncf %123 : vector<2x8x32xf32> to vector<2x8x32xbf16>
    "tpu.trace_start"() <{level = 10 : i32, message = "bqe,bke->bqk"}> : () -> ()
    %cst_44 = arith.constant dense<0.000000e+00> : vector<2x8x8xf32>
    %125 = tpu.matmul %118, %121, %cst_44 {dimension_numbers = #tpu.dot_dimension_numbers<[2], [2], [1], [1], [0, 0, 0, 1, 1, 1], [0], [0]>} : vector<2x8x32xbf16>, vector<2x8x32xbf16>, vector<2x8x8xf32> -> vector<2x8x8xf32>
    "tpu.trace_stop"() : () -> ()
    %cst_45 = arith.constant dense<0xFF800000> : vector<2x8xf32>
    %126 = vector.multi_reduction <maximumf>, %125, %cst_45 [2] : vector<2x8x8xf32> to vector<2x8xf32>
    %127 = vector.shape_cast %126 : vector<2x8xf32> to vector<2x8x1xf32>
    %128 = vector.broadcast %127 : vector<2x8x1xf32> to vector<2x8x8xf32>
    %129 = arith.subf %125, %128 : vector<2x8x8xf32>
    %130 = math.exp %129 : vector<2x8x8xf32>
    %cst_46 = arith.constant dense<0.000000e+00> : vector<2x8xf32>
    %131 = vector.multi_reduction <add>, %130, %cst_46 [2] : vector<2x8x8xf32> to vector<2x8xf32>
    %132 = vector.shape_cast %131 : vector<2x8xf32> to vector<2x8x1xf32>
    %133 = tpu.reciprocal %132 {approx = true} : vector<2x8x1xf32> -> vector<2x8x1xf32>
    %134 = vector.broadcast %133 : vector<2x8x1xf32> to vector<2x8x8xf32>
    %135 = arith.mulf %130, %134 : vector<2x8x8xf32>
    %136 = arith.truncf %135 : vector<2x8x8xf32> to vector<2x8x8xbf16>
    "tpu.trace_start"() <{level = 10 : i32, message = "bqk,bke->bqe"}> : () -> ()
    %cst_47 = arith.constant dense<0.000000e+00> : vector<2x8x32xf32>
    %137 = tpu.matmul %136, %124, %cst_47 {dimension_numbers = #tpu.dot_dimension_numbers<[2], [1], [1], [2], [0, 0, 0, 1, 1, 2], [0], [0]>} : vector<2x8x8xbf16>, vector<2x8x32xbf16>, vector<2x8x32xf32> -> vector<2x8x32xf32>
    "tpu.trace_stop"() : () -> ()
    %138 = vector.shape_cast %137 : vector<2x8x32xf32> to vector<16x32xf32>
    %139 = vector.extract_strided_slice %67 {offsets = [0, 96], sizes = [16, 32], strides = [1, 1]} : vector<16x128xf32> to vector<16x32xf32>
    %140 = vector.shape_cast %139 : vector<16x32xf32> to vector<2x8x32xf32>
    %141 = arith.truncf %140 : vector<2x8x32xf32> to vector<2x8x32xbf16>
    %142 = vector.extract_strided_slice %68 {offsets = [0, 96], sizes = [16, 32], strides = [1, 1]} : vector<16x128xf32> to vector<16x32xf32>
    %143 = vector.shape_cast %142 : vector<16x32xf32> to vector<2x8x32xf32>
    %144 = arith.truncf %143 : vector<2x8x32xf32> to vector<2x8x32xbf16>
    %145 = vector.extract_strided_slice %69 {offsets = [0, 96], sizes = [16, 32], strides = [1, 1]} : vector<16x128xf32> to vector<16x32xf32>
    %146 = vector.shape_cast %145 : vector<16x32xf32> to vector<2x8x32xf32>
    %147 = arith.truncf %146 : vector<2x8x32xf32> to vector<2x8x32xbf16>
    "tpu.trace_start"() <{level = 10 : i32, message = "bqe,bke->bqk"}> : () -> ()
    %cst_48 = arith.constant dense<0.000000e+00> : vector<2x8x8xf32>
    %148 = tpu.matmul %141, %144, %cst_48 {dimension_numbers = #tpu.dot_dimension_numbers<[2], [2], [1], [1], [0, 0, 0, 1, 1, 1], [0], [0]>} : vector<2x8x32xbf16>, vector<2x8x32xbf16>, vector<2x8x8xf32> -> vector<2x8x8xf32>
    "tpu.trace_stop"() : () -> ()
    %cst_49 = arith.constant dense<0xFF800000> : vector<2x8xf32>
    %149 = vector.multi_reduction <maximumf>, %148, %cst_49 [2] : vector<2x8x8xf32> to vector<2x8xf32>
    %150 = vector.shape_cast %149 : vector<2x8xf32> to vector<2x8x1xf32>
    %151 = vector.broadcast %150 : vector<2x8x1xf32> to vector<2x8x8xf32>
    %152 = arith.subf %148, %151 : vector<2x8x8xf32>
    %153 = math.exp %152 : vector<2x8x8xf32>
    %cst_50 = arith.constant dense<0.000000e+00> : vector<2x8xf32>
    %154 = vector.multi_reduction <add>, %153, %cst_50 [2] : vector<2x8x8xf32> to vector<2x8xf32>
    %155 = vector.shape_cast %154 : vector<2x8xf32> to vector<2x8x1xf32>
    %156 = tpu.reciprocal %155 {approx = true} : vector<2x8x1xf32> -> vector<2x8x1xf32>
    %157 = vector.broadcast %156 : vector<2x8x1xf32> to vector<2x8x8xf32>
    %158 = arith.mulf %153, %157 : vector<2x8x8xf32>
    %159 = arith.truncf %158 : vector<2x8x8xf32> to vector<2x8x8xbf16>
    "tpu.trace_start"() <{level = 10 : i32, message = "bqk,bke->bqe"}> : () -> ()
    %cst_51 = arith.constant dense<0.000000e+00> : vector<2x8x32xf32>
    %160 = tpu.matmul %159, %147, %cst_51 {dimension_numbers = #tpu.dot_dimension_numbers<[2], [1], [1], [2], [0, 0, 0, 1, 1, 2], [0], [0]>} : vector<2x8x8xbf16>, vector<2x8x32xbf16>, vector<2x8x32xf32> -> vector<2x8x32xf32>
    "tpu.trace_stop"() : () -> ()
    %161 = vector.shape_cast %160 : vector<2x8x32xf32> to vector<16x32xf32>
    %162 = tpu.concatenate %92, %115, %138, %161 in 1 : vector<16x32xf32>, vector<16x32xf32>, vector<16x32xf32>, vector<16x32xf32> -> vector<16x128xf32>
    %c0_52 = arith.constant 0 : index
    %c0_53 = arith.constant 0 : index
    %c0_54 = arith.constant 0 : index
    %163 = vector.load %arg8[%c0_52, %c0_53, %c0_54] : memref<2x128x128xbf16, #tpu.memory_space<vmem>>, vector<1x128x128xbf16>
    %164 = vector.shape_cast %163 : vector<1x128x128xbf16> to vector<128x128xbf16>
    %165 = arith.truncf %162 : vector<16x128xf32> to vector<16x128xbf16>
    %cst_55 = arith.constant dense<0.000000e+00> : vector<16x128xf32>
    %166 = tpu.matmul %165, %164, %cst_55 {dimension_numbers = #tpu.dot_dimension_numbers<[1], [0], [0], [1], [0, 0, 1, 1], [], []>} : vector<16x128xbf16>, vector<128x128xbf16>, vector<16x128xf32> -> vector<16x128xf32>
    %167 = arith.addf %32, %166 : vector<16x128xf32>
    %c0_56 = arith.constant 0 : index
    %c0_57 = arith.constant 0 : index
    %c0_58 = arith.constant 0 : index
    %168 = vector.load %arg9[%c0_56, %c0_57, %c0_58] : memref<2x1x128xf32, #tpu.memory_space<vmem>>, vector<1x1x128xf32>
    %169 = vector.shape_cast %168 : vector<1x1x128xf32> to vector<1x128xf32>
    %170 = vector.broadcast %169 : vector<1x128xf32> to vector<16x128xf32>
    %171 = arith.addf %167, %170 : vector<16x128xf32>
    %c0_59 = arith.constant 0 : index
    %c1 = arith.constant 1 : index
    %c0_60 = arith.constant 0 : index
    %c0_61 = arith.constant 0 : index
    %172 = vector.load %arg20[%c0_59, %c1, %c0_60, %c0_61] : memref<2x3x1x128xf32, #tpu.memory_space<vmem>>, vector<1x1x1x128xf32>
    %173 = vector.shape_cast %172 : vector<1x1x1x128xf32> to vector<1x128xf32>
    %c0_62 = arith.constant 0 : index
    %c1_63 = arith.constant 1 : index
    %c0_64 = arith.constant 0 : index
    %c0_65 = arith.constant 0 : index
    %174 = vector.load %arg21[%c0_62, %c1_63, %c0_64, %c0_65] : memref<2x3x1x128xf32, #tpu.memory_space<vmem>>, vector<1x1x1x128xf32>
    %175 = vector.shape_cast %174 : vector<1x1x1x128xf32> to vector<1x128xf32>
    %cst_66 = arith.constant dense<0.000000e+00> : vector<16xf32>
    %176 = vector.multi_reduction <add>, %171, %cst_66 [1] : vector<16x128xf32> to vector<16xf32>
    %177 = vector.shape_cast %176 : vector<16xf32> to vector<16x1xf32>
    %cst_67 = arith.constant 1.280000e+02 : f32
    %178 = vector.broadcast %cst_67 : f32 to vector<16x1xf32>
    %179 = arith.divf %177, %178 : vector<16x1xf32>
    %180 = vector.broadcast %179 : vector<16x1xf32> to vector<16x128xf32>
    %181 = arith.subf %171, %180 : vector<16x128xf32>
    %182 = arith.mulf %181, %181 : vector<16x128xf32>
    %cst_68 = arith.constant dense<0.000000e+00> : vector<16xf32>
    %183 = vector.multi_reduction <add>, %182, %cst_68 [1] : vector<16x128xf32> to vector<16xf32>
    %184 = vector.shape_cast %183 : vector<16xf32> to vector<16x1xf32>
    %cst_69 = arith.constant 1.280000e+02 : f32
    %185 = vector.broadcast %cst_69 : f32 to vector<16x1xf32>
    %186 = arith.divf %184, %185 : vector<16x1xf32>
    %187 = vector.broadcast %179 : vector<16x1xf32> to vector<16x128xf32>
    %188 = arith.subf %171, %187 : vector<16x128xf32>
    %cst_70 = arith.constant 9.99999974E-6 : f32
    %189 = vector.broadcast %cst_70 : f32 to vector<16x1xf32>
    %190 = arith.addf %186, %189 : vector<16x1xf32>
    %191 = math.rsqrt %190 : vector<16x1xf32>
    %192 = vector.broadcast %191 : vector<16x1xf32> to vector<16x128xf32>
    %193 = arith.mulf %188, %192 : vector<16x128xf32>
    %194 = vector.broadcast %173 : vector<1x128xf32> to vector<16x128xf32>
    %195 = arith.mulf %193, %194 : vector<16x128xf32>
    %196 = vector.broadcast %175 : vector<1x128xf32> to vector<16x128xf32>
    %197 = arith.addf %195, %196 : vector<16x128xf32>
    %c0_71 = arith.constant 0 : index
    %c0_72 = arith.constant 0 : index
    %c0_73 = arith.constant 0 : index
    %198 = vector.load %arg10[%c0_71, %c0_72, %c0_73] : memref<2x128x128xbf16, #tpu.memory_space<vmem>>, vector<1x128x128xbf16>
    %199 = vector.shape_cast %198 : vector<1x128x128xbf16> to vector<128x128xbf16>
    %200 = arith.truncf %197 : vector<16x128xf32> to vector<16x128xbf16>
    %cst_74 = arith.constant dense<0.000000e+00> : vector<16x128xf32>
    %201 = tpu.matmul %200, %199, %cst_74 {dimension_numbers = #tpu.dot_dimension_numbers<[1], [0], [0], [1], [0, 0, 1, 1], [], []>} : vector<16x128xbf16>, vector<128x128xbf16>, vector<16x128xf32> -> vector<16x128xf32>
    %c0_75 = arith.constant 0 : index
    %c0_76 = arith.constant 0 : index
    %c0_77 = arith.constant 0 : index
    %202 = vector.load %arg11[%c0_75, %c0_76, %c0_77] : memref<2x1x128xf32, #tpu.memory_space<vmem>>, vector<1x1x128xf32>
    %203 = vector.shape_cast %202 : vector<1x1x128xf32> to vector<1x128xf32>
    %204 = vector.broadcast %203 : vector<1x128xf32> to vector<16x128xf32>
    %205 = arith.addf %201, %204 : vector<16x128xf32>
    %c0_78 = arith.constant 0 : index
    %c0_79 = arith.constant 0 : index
    %c0_80 = arith.constant 0 : index
    %206 = vector.load %arg12[%c0_78, %c0_79, %c0_80] : memref<2x128x256xbf16, #tpu.memory_space<vmem>>, vector<1x128x256xbf16>
    %207 = vector.shape_cast %206 : vector<1x128x256xbf16> to vector<128x256xbf16>
    %208 = arith.truncf %30 : vector<8x128xf32> to vector<8x128xbf16>
    %cst_81 = arith.constant dense<0.000000e+00> : vector<8x256xf32>
    %209 = tpu.matmul %208, %207, %cst_81 {dimension_numbers = #tpu.dot_dimension_numbers<[1], [0], [0], [1], [0, 0, 1, 1], [], []>} : vector<8x128xbf16>, vector<128x256xbf16>, vector<8x256xf32> -> vector<8x256xf32>
    %c0_82 = arith.constant 0 : index
    %c0_83 = arith.constant 0 : index
    %c0_84 = arith.constant 0 : index
    %210 = vector.load %arg13[%c0_82, %c0_83, %c0_84] : memref<2x1x256xf32, #tpu.memory_space<vmem>>, vector<1x1x256xf32>
    %211 = vector.shape_cast %210 : vector<1x1x256xf32> to vector<1x256xf32>
    %212 = vector.broadcast %211 : vector<1x256xf32> to vector<8x256xf32>
    %213 = arith.addf %209, %212 : vector<8x256xf32>
    %214 = vector.extract_strided_slice %213 {offsets = [0, 0], sizes = [8, 128], strides = [1, 1]} : vector<8x256xf32> to vector<8x128xf32>
    %215 = vector.extract_strided_slice %213 {offsets = [0, 128], sizes = [8, 128], strides = [1, 1]} : vector<8x256xf32> to vector<8x128xf32>
    %216 = vector.extract_strided_slice %205 {offsets = [0, 0], sizes = [16, 32], strides = [1, 1]} : vector<16x128xf32> to vector<16x32xf32>
    %217 = vector.shape_cast %216 : vector<16x32xf32> to vector<2x8x32xf32>
    %218 = arith.truncf %217 : vector<2x8x32xf32> to vector<2x8x32xbf16>
    %219 = vector.extract_strided_slice %214 {offsets = [0, 0], sizes = [8, 32], strides = [1, 1]} : vector<8x128xf32> to vector<8x32xf32>
    %220 = vector.shape_cast %219 : vector<8x32xf32> to vector<2x4x32xf32>
    %221 = arith.truncf %220 : vector<2x4x32xf32> to vector<2x4x32xbf16>
    %222 = vector.extract_strided_slice %215 {offsets = [0, 0], sizes = [8, 32], strides = [1, 1]} : vector<8x128xf32> to vector<8x32xf32>
    %223 = vector.shape_cast %222 : vector<8x32xf32> to vector<2x4x32xf32>
    %224 = arith.truncf %223 : vector<2x4x32xf32> to vector<2x4x32xbf16>
    "tpu.trace_start"() <{level = 10 : i32, message = "bqe,bke->bqk"}> : () -> ()
    %cst_85 = arith.constant dense<0.000000e+00> : vector<2x8x4xf32>
    %225 = tpu.matmul %218, %221, %cst_85 {dimension_numbers = #tpu.dot_dimension_numbers<[2], [2], [1], [1], [0, 0, 0, 1, 1, 1], [0], [0]>} : vector<2x8x32xbf16>, vector<2x4x32xbf16>, vector<2x8x4xf32> -> vector<2x8x4xf32>
    "tpu.trace_stop"() : () -> ()
    %cst_86 = arith.constant dense<0xFF800000> : vector<2x8xf32>
    %226 = vector.multi_reduction <maximumf>, %225, %cst_86 [2] : vector<2x8x4xf32> to vector<2x8xf32>
    %227 = vector.shape_cast %226 : vector<2x8xf32> to vector<2x8x1xf32>
    %228 = vector.broadcast %227 : vector<2x8x1xf32> to vector<2x8x4xf32>
    %229 = arith.subf %225, %228 : vector<2x8x4xf32>
    %230 = math.exp %229 : vector<2x8x4xf32>
    %cst_87 = arith.constant dense<0.000000e+00> : vector<2x8xf32>
    %231 = vector.multi_reduction <add>, %230, %cst_87 [2] : vector<2x8x4xf32> to vector<2x8xf32>
    %232 = vector.shape_cast %231 : vector<2x8xf32> to vector<2x8x1xf32>
    %233 = tpu.reciprocal %232 {approx = true} : vector<2x8x1xf32> -> vector<2x8x1xf32>
    %234 = vector.broadcast %233 : vector<2x8x1xf32> to vector<2x8x4xf32>
    %235 = arith.mulf %230, %234 : vector<2x8x4xf32>
    %236 = arith.truncf %235 : vector<2x8x4xf32> to vector<2x8x4xbf16>
    "tpu.trace_start"() <{level = 10 : i32, message = "bqk,bke->bqe"}> : () -> ()
    %cst_88 = arith.constant dense<0.000000e+00> : vector<2x8x32xf32>
    %237 = tpu.matmul %236, %224, %cst_88 {dimension_numbers = #tpu.dot_dimension_numbers<[2], [1], [1], [2], [0, 0, 0, 1, 1, 2], [0], [0]>} : vector<2x8x4xbf16>, vector<2x4x32xbf16>, vector<2x8x32xf32> -> vector<2x8x32xf32>
    "tpu.trace_stop"() : () -> ()
    %238 = vector.shape_cast %237 : vector<2x8x32xf32> to vector<16x32xf32>
    %239 = vector.extract_strided_slice %205 {offsets = [0, 32], sizes = [16, 32], strides = [1, 1]} : vector<16x128xf32> to vector<16x32xf32>
    %240 = vector.shape_cast %239 : vector<16x32xf32> to vector<2x8x32xf32>
    %241 = arith.truncf %240 : vector<2x8x32xf32> to vector<2x8x32xbf16>
    %242 = vector.extract_strided_slice %214 {offsets = [0, 32], sizes = [8, 32], strides = [1, 1]} : vector<8x128xf32> to vector<8x32xf32>
    %243 = vector.shape_cast %242 : vector<8x32xf32> to vector<2x4x32xf32>
    %244 = arith.truncf %243 : vector<2x4x32xf32> to vector<2x4x32xbf16>
    %245 = vector.extract_strided_slice %215 {offsets = [0, 32], sizes = [8, 32], strides = [1, 1]} : vector<8x128xf32> to vector<8x32xf32>
    %246 = vector.shape_cast %245 : vector<8x32xf32> to vector<2x4x32xf32>
    %247 = arith.truncf %246 : vector<2x4x32xf32> to vector<2x4x32xbf16>
    "tpu.trace_start"() <{level = 10 : i32, message = "bqe,bke->bqk"}> : () -> ()
    %cst_89 = arith.constant dense<0.000000e+00> : vector<2x8x4xf32>
    %248 = tpu.matmul %241, %244, %cst_89 {dimension_numbers = #tpu.dot_dimension_numbers<[2], [2], [1], [1], [0, 0, 0, 1, 1, 1], [0], [0]>} : vector<2x8x32xbf16>, vector<2x4x32xbf16>, vector<2x8x4xf32> -> vector<2x8x4xf32>
    "tpu.trace_stop"() : () -> ()
    %cst_90 = arith.constant dense<0xFF800000> : vector<2x8xf32>
    %249 = vector.multi_reduction <maximumf>, %248, %cst_90 [2] : vector<2x8x4xf32> to vector<2x8xf32>
    %250 = vector.shape_cast %249 : vector<2x8xf32> to vector<2x8x1xf32>
    %251 = vector.broadcast %250 : vector<2x8x1xf32> to vector<2x8x4xf32>
    %252 = arith.subf %248, %251 : vector<2x8x4xf32>
    %253 = math.exp %252 : vector<2x8x4xf32>
    %cst_91 = arith.constant dense<0.000000e+00> : vector<2x8xf32>
    %254 = vector.multi_reduction <add>, %253, %cst_91 [2] : vector<2x8x4xf32> to vector<2x8xf32>
    %255 = vector.shape_cast %254 : vector<2x8xf32> to vector<2x8x1xf32>
    %256 = tpu.reciprocal %255 {approx = true} : vector<2x8x1xf32> -> vector<2x8x1xf32>
    %257 = vector.broadcast %256 : vector<2x8x1xf32> to vector<2x8x4xf32>
    %258 = arith.mulf %253, %257 : vector<2x8x4xf32>
    %259 = arith.truncf %258 : vector<2x8x4xf32> to vector<2x8x4xbf16>
    "tpu.trace_start"() <{level = 10 : i32, message = "bqk,bke->bqe"}> : () -> ()
    %cst_92 = arith.constant dense<0.000000e+00> : vector<2x8x32xf32>
    %260 = tpu.matmul %259, %247, %cst_92 {dimension_numbers = #tpu.dot_dimension_numbers<[2], [1], [1], [2], [0, 0, 0, 1, 1, 2], [0], [0]>} : vector<2x8x4xbf16>, vector<2x4x32xbf16>, vector<2x8x32xf32> -> vector<2x8x32xf32>
    "tpu.trace_stop"() : () -> ()
    %261 = vector.shape_cast %260 : vector<2x8x32xf32> to vector<16x32xf32>
    %262 = vector.extract_strided_slice %205 {offsets = [0, 64], sizes = [16, 32], strides = [1, 1]} : vector<16x128xf32> to vector<16x32xf32>
    %263 = vector.shape_cast %262 : vector<16x32xf32> to vector<2x8x32xf32>
    %264 = arith.truncf %263 : vector<2x8x32xf32> to vector<2x8x32xbf16>
    %265 = vector.extract_strided_slice %214 {offsets = [0, 64], sizes = [8, 32], strides = [1, 1]} : vector<8x128xf32> to vector<8x32xf32>
    %266 = vector.shape_cast %265 : vector<8x32xf32> to vector<2x4x32xf32>
    %267 = arith.truncf %266 : vector<2x4x32xf32> to vector<2x4x32xbf16>
    %268 = vector.extract_strided_slice %215 {offsets = [0, 64], sizes = [8, 32], strides = [1, 1]} : vector<8x128xf32> to vector<8x32xf32>
    %269 = vector.shape_cast %268 : vector<8x32xf32> to vector<2x4x32xf32>
    %270 = arith.truncf %269 : vector<2x4x32xf32> to vector<2x4x32xbf16>
    "tpu.trace_start"() <{level = 10 : i32, message = "bqe,bke->bqk"}> : () -> ()
    %cst_93 = arith.constant dense<0.000000e+00> : vector<2x8x4xf32>
    %271 = tpu.matmul %264, %267, %cst_93 {dimension_numbers = #tpu.dot_dimension_numbers<[2], [2], [1], [1], [0, 0, 0, 1, 1, 1], [0], [0]>} : vector<2x8x32xbf16>, vector<2x4x32xbf16>, vector<2x8x4xf32> -> vector<2x8x4xf32>
    "tpu.trace_stop"() : () -> ()
    %cst_94 = arith.constant dense<0xFF800000> : vector<2x8xf32>
    %272 = vector.multi_reduction <maximumf>, %271, %cst_94 [2] : vector<2x8x4xf32> to vector<2x8xf32>
    %273 = vector.shape_cast %272 : vector<2x8xf32> to vector<2x8x1xf32>
    %274 = vector.broadcast %273 : vector<2x8x1xf32> to vector<2x8x4xf32>
    %275 = arith.subf %271, %274 : vector<2x8x4xf32>
    %276 = math.exp %275 : vector<2x8x4xf32>
    %cst_95 = arith.constant dense<0.000000e+00> : vector<2x8xf32>
    %277 = vector.multi_reduction <add>, %276, %cst_95 [2] : vector<2x8x4xf32> to vector<2x8xf32>
    %278 = vector.shape_cast %277 : vector<2x8xf32> to vector<2x8x1xf32>
    %279 = tpu.reciprocal %278 {approx = true} : vector<2x8x1xf32> -> vector<2x8x1xf32>
    %280 = vector.broadcast %279 : vector<2x8x1xf32> to vector<2x8x4xf32>
    %281 = arith.mulf %276, %280 : vector<2x8x4xf32>
    %282 = arith.truncf %281 : vector<2x8x4xf32> to vector<2x8x4xbf16>
    "tpu.trace_start"() <{level = 10 : i32, message = "bqk,bke->bqe"}> : () -> ()
    %cst_96 = arith.constant dense<0.000000e+00> : vector<2x8x32xf32>
    %283 = tpu.matmul %282, %270, %cst_96 {dimension_numbers = #tpu.dot_dimension_numbers<[2], [1], [1], [2], [0, 0, 0, 1, 1, 2], [0], [0]>} : vector<2x8x4xbf16>, vector<2x4x32xbf16>, vector<2x8x32xf32> -> vector<2x8x32xf32>
    "tpu.trace_stop"() : () -> ()
    %284 = vector.shape_cast %283 : vector<2x8x32xf32> to vector<16x32xf32>
    %285 = vector.extract_strided_slice %205 {offsets = [0, 96], sizes = [16, 32], strides = [1, 1]} : vector<16x128xf32> to vector<16x32xf32>
    %286 = vector.shape_cast %285 : vector<16x32xf32> to vector<2x8x32xf32>
    %287 = arith.truncf %286 : vector<2x8x32xf32> to vector<2x8x32xbf16>
    %288 = vector.extract_strided_slice %214 {offsets = [0, 96], sizes = [8, 32], strides = [1, 1]} : vector<8x128xf32> to vector<8x32xf32>
    %289 = vector.shape_cast %288 : vector<8x32xf32> to vector<2x4x32xf32>
    %290 = arith.truncf %289 : vector<2x4x32xf32> to vector<2x4x32xbf16>
    %291 = vector.extract_strided_slice %215 {offsets = [0, 96], sizes = [8, 32], strides = [1, 1]} : vector<8x128xf32> to vector<8x32xf32>
    %292 = vector.shape_cast %291 : vector<8x32xf32> to vector<2x4x32xf32>
    %293 = arith.truncf %292 : vector<2x4x32xf32> to vector<2x4x32xbf16>
    "tpu.trace_start"() <{level = 10 : i32, message = "bqe,bke->bqk"}> : () -> ()
    %cst_97 = arith.constant dense<0.000000e+00> : vector<2x8x4xf32>
    %294 = tpu.matmul %287, %290, %cst_97 {dimension_numbers = #tpu.dot_dimension_numbers<[2], [2], [1], [1], [0, 0, 0, 1, 1, 1], [0], [0]>} : vector<2x8x32xbf16>, vector<2x4x32xbf16>, vector<2x8x4xf32> -> vector<2x8x4xf32>
    "tpu.trace_stop"() : () -> ()
    %cst_98 = arith.constant dense<0xFF800000> : vector<2x8xf32>
    %295 = vector.multi_reduction <maximumf>, %294, %cst_98 [2] : vector<2x8x4xf32> to vector<2x8xf32>
    %296 = vector.shape_cast %295 : vector<2x8xf32> to vector<2x8x1xf32>
    %297 = vector.broadcast %296 : vector<2x8x1xf32> to vector<2x8x4xf32>
    %298 = arith.subf %294, %297 : vector<2x8x4xf32>
    %299 = math.exp %298 : vector<2x8x4xf32>
    %cst_99 = arith.constant dense<0.000000e+00> : vector<2x8xf32>
    %300 = vector.multi_reduction <add>, %299, %cst_99 [2] : vector<2x8x4xf32> to vector<2x8xf32>
    %301 = vector.shape_cast %300 : vector<2x8xf32> to vector<2x8x1xf32>
    %302 = tpu.reciprocal %301 {approx = true} : vector<2x8x1xf32> -> vector<2x8x1xf32>
    %303 = vector.broadcast %302 : vector<2x8x1xf32> to vector<2x8x4xf32>
    %304 = arith.mulf %299, %303 : vector<2x8x4xf32>
    %305 = arith.truncf %304 : vector<2x8x4xf32> to vector<2x8x4xbf16>
    "tpu.trace_start"() <{level = 10 : i32, message = "bqk,bke->bqe"}> : () -> ()
    %cst_100 = arith.constant dense<0.000000e+00> : vector<2x8x32xf32>
    %306 = tpu.matmul %305, %293, %cst_100 {dimension_numbers = #tpu.dot_dimension_numbers<[2], [1], [1], [2], [0, 0, 0, 1, 1, 2], [0], [0]>} : vector<2x8x4xbf16>, vector<2x4x32xbf16>, vector<2x8x32xf32> -> vector<2x8x32xf32>
    "tpu.trace_stop"() : () -> ()
    %307 = vector.shape_cast %306 : vector<2x8x32xf32> to vector<16x32xf32>
    %308 = tpu.concatenate %238, %261, %284, %307 in 1 : vector<16x32xf32>, vector<16x32xf32>, vector<16x32xf32>, vector<16x32xf32> -> vector<16x128xf32>
    %c0_101 = arith.constant 0 : index
    %c0_102 = arith.constant 0 : index
    %c0_103 = arith.constant 0 : index
    %309 = vector.load %arg14[%c0_101, %c0_102, %c0_103] : memref<2x128x128xbf16, #tpu.memory_space<vmem>>, vector<1x128x128xbf16>
    %310 = vector.shape_cast %309 : vector<1x128x128xbf16> to vector<128x128xbf16>
    %311 = arith.truncf %308 : vector<16x128xf32> to vector<16x128xbf16>
    %cst_104 = arith.constant dense<0.000000e+00> : vector<16x128xf32>
    %312 = tpu.matmul %311, %310, %cst_104 {dimension_numbers = #tpu.dot_dimension_numbers<[1], [0], [0], [1], [0, 0, 1, 1], [], []>} : vector<16x128xbf16>, vector<128x128xbf16>, vector<16x128xf32> -> vector<16x128xf32>
    %313 = arith.addf %171, %312 : vector<16x128xf32>
    %c0_105 = arith.constant 0 : index
    %c0_106 = arith.constant 0 : index
    %c0_107 = arith.constant 0 : index
    %314 = vector.load %arg15[%c0_105, %c0_106, %c0_107] : memref<2x1x128xf32, #tpu.memory_space<vmem>>, vector<1x1x128xf32>
    %315 = vector.shape_cast %314 : vector<1x1x128xf32> to vector<1x128xf32>
    %316 = vector.broadcast %315 : vector<1x128xf32> to vector<16x128xf32>
    %317 = arith.addf %313, %316 : vector<16x128xf32>
    %c0_108 = arith.constant 0 : index
    %c2 = arith.constant 2 : index
    %c0_109 = arith.constant 0 : index
    %c0_110 = arith.constant 0 : index
    %318 = vector.load %arg20[%c0_108, %c2, %c0_109, %c0_110] : memref<2x3x1x128xf32, #tpu.memory_space<vmem>>, vector<1x1x1x128xf32>
    %319 = vector.shape_cast %318 : vector<1x1x1x128xf32> to vector<1x128xf32>
    %c0_111 = arith.constant 0 : index
    %c2_112 = arith.constant 2 : index
    %c0_113 = arith.constant 0 : index
    %c0_114 = arith.constant 0 : index
    %320 = vector.load %arg21[%c0_111, %c2_112, %c0_113, %c0_114] : memref<2x3x1x128xf32, #tpu.memory_space<vmem>>, vector<1x1x1x128xf32>
    %321 = vector.shape_cast %320 : vector<1x1x1x128xf32> to vector<1x128xf32>
    %cst_115 = arith.constant dense<0.000000e+00> : vector<16xf32>
    %322 = vector.multi_reduction <add>, %317, %cst_115 [1] : vector<16x128xf32> to vector<16xf32>
    %323 = vector.shape_cast %322 : vector<16xf32> to vector<16x1xf32>
    %cst_116 = arith.constant 1.280000e+02 : f32
    %324 = vector.broadcast %cst_116 : f32 to vector<16x1xf32>
    %325 = arith.divf %323, %324 : vector<16x1xf32>
    %326 = vector.broadcast %325 : vector<16x1xf32> to vector<16x128xf32>
    %327 = arith.subf %317, %326 : vector<16x128xf32>
    %328 = arith.mulf %327, %327 : vector<16x128xf32>
    %cst_117 = arith.constant dense<0.000000e+00> : vector<16xf32>
    %329 = vector.multi_reduction <add>, %328, %cst_117 [1] : vector<16x128xf32> to vector<16xf32>
    %330 = vector.shape_cast %329 : vector<16xf32> to vector<16x1xf32>
    %cst_118 = arith.constant 1.280000e+02 : f32
    %331 = vector.broadcast %cst_118 : f32 to vector<16x1xf32>
    %332 = arith.divf %330, %331 : vector<16x1xf32>
    %333 = vector.broadcast %325 : vector<16x1xf32> to vector<16x128xf32>
    %334 = arith.subf %317, %333 : vector<16x128xf32>
    %cst_119 = arith.constant 9.99999974E-6 : f32
    %335 = vector.broadcast %cst_119 : f32 to vector<16x1xf32>
    %336 = arith.addf %332, %335 : vector<16x1xf32>
    %337 = math.rsqrt %336 : vector<16x1xf32>
    %338 = vector.broadcast %337 : vector<16x1xf32> to vector<16x128xf32>
    %339 = arith.mulf %334, %338 : vector<16x128xf32>
    %340 = vector.broadcast %319 : vector<1x128xf32> to vector<16x128xf32>
    %341 = arith.mulf %339, %340 : vector<16x128xf32>
    %342 = vector.broadcast %321 : vector<1x128xf32> to vector<16x128xf32>
    %343 = arith.addf %341, %342 : vector<16x128xf32>
    %c0_120 = arith.constant 0 : index
    %c0_121 = arith.constant 0 : index
    %c0_122 = arith.constant 0 : index
    %344 = vector.load %arg16[%c0_120, %c0_121, %c0_122] : memref<2x128x256xbf16, #tpu.memory_space<vmem>>, vector<1x128x256xbf16>
    %345 = vector.shape_cast %344 : vector<1x128x256xbf16> to vector<128x256xbf16>
    %346 = arith.truncf %343 : vector<16x128xf32> to vector<16x128xbf16>
    %cst_123 = arith.constant dense<0.000000e+00> : vector<16x256xf32>
    %347 = tpu.matmul %346, %345, %cst_123 {dimension_numbers = #tpu.dot_dimension_numbers<[1], [0], [0], [1], [0, 0, 1, 1], [], []>} : vector<16x128xbf16>, vector<128x256xbf16>, vector<16x256xf32> -> vector<16x256xf32>
    %c0_124 = arith.constant 0 : index
    %c0_125 = arith.constant 0 : index
    %c0_126 = arith.constant 0 : index
    %348 = vector.load %arg17[%c0_124, %c0_125, %c0_126] : memref<2x1x256xf32, #tpu.memory_space<vmem>>, vector<1x1x256xf32>
    %349 = vector.shape_cast %348 : vector<1x1x256xf32> to vector<1x256xf32>
    %350 = vector.broadcast %349 : vector<1x256xf32> to vector<16x256xf32>
    %351 = arith.addf %347, %350 : vector<16x256xf32>
    %cst_127 = arith.constant 0.000000e+00 : f32
    %352 = vector.broadcast %cst_127 : f32 to vector<16x256xf32>
    %353 = arith.maximumf %351, %352 : vector<16x256xf32>
    %c0_128 = arith.constant 0 : index
    %c0_129 = arith.constant 0 : index
    %c0_130 = arith.constant 0 : index
    %354 = vector.load %arg18[%c0_128, %c0_129, %c0_130] : memref<2x256x128xbf16, #tpu.memory_space<vmem>>, vector<1x256x128xbf16>
    %355 = vector.shape_cast %354 : vector<1x256x128xbf16> to vector<256x128xbf16>
    %356 = arith.truncf %353 : vector<16x256xf32> to vector<16x256xbf16>
    %cst_131 = arith.constant dense<0.000000e+00> : vector<16x128xf32>
    %357 = tpu.matmul %356, %355, %cst_131 {dimension_numbers = #tpu.dot_dimension_numbers<[1], [0], [0], [1], [0, 0, 1, 1], [], []>} : vector<16x256xbf16>, vector<256x128xbf16>, vector<16x128xf32> -> vector<16x128xf32>
    %358 = arith.addf %317, %357 : vector<16x128xf32>
    %c0_132 = arith.constant 0 : index
    %c0_133 = arith.constant 0 : index
    %c0_134 = arith.constant 0 : index
    %359 = vector.load %arg19[%c0_132, %c0_133, %c0_134] : memref<2x1x128xf32, #tpu.memory_space<vmem>>, vector<1x1x128xf32>
    %360 = vector.shape_cast %359 : vector<1x1x128xf32> to vector<1x128xf32>
    %361 = vector.broadcast %360 : vector<1x128xf32> to vector<16x128xf32>
    %362 = arith.addf %358, %361 : vector<16x128xf32>
    %c1_135 = arith.constant 1 : index
    %c0_136 = arith.constant 0 : index
    %c0_137 = arith.constant 0 : index
    %c0_138 = arith.constant 0 : index
    %363 = vector.load %arg20[%c1_135, %c0_136, %c0_137, %c0_138] : memref<2x3x1x128xf32, #tpu.memory_space<vmem>>, vector<1x1x1x128xf32>
    %364 = vector.shape_cast %363 : vector<1x1x1x128xf32> to vector<1x128xf32>
    %c1_139 = arith.constant 1 : index
    %c0_140 = arith.constant 0 : index
    %c0_141 = arith.constant 0 : index
    %c0_142 = arith.constant 0 : index
    %365 = vector.load %arg21[%c1_139, %c0_140, %c0_141, %c0_142] : memref<2x3x1x128xf32, #tpu.memory_space<vmem>>, vector<1x1x1x128xf32>
    %366 = vector.shape_cast %365 : vector<1x1x1x128xf32> to vector<1x128xf32>
    %cst_143 = arith.constant dense<0.000000e+00> : vector<16xf32>
    %367 = vector.multi_reduction <add>, %362, %cst_143 [1] : vector<16x128xf32> to vector<16xf32>
    %368 = vector.shape_cast %367 : vector<16xf32> to vector<16x1xf32>
    %cst_144 = arith.constant 1.280000e+02 : f32
    %369 = vector.broadcast %cst_144 : f32 to vector<16x1xf32>
    %370 = arith.divf %368, %369 : vector<16x1xf32>
    %371 = vector.broadcast %370 : vector<16x1xf32> to vector<16x128xf32>
    %372 = arith.subf %362, %371 : vector<16x128xf32>
    %373 = arith.mulf %372, %372 : vector<16x128xf32>
    %cst_145 = arith.constant dense<0.000000e+00> : vector<16xf32>
    %374 = vector.multi_reduction <add>, %373, %cst_145 [1] : vector<16x128xf32> to vector<16xf32>
    %375 = vector.shape_cast %374 : vector<16xf32> to vector<16x1xf32>
    %cst_146 = arith.constant 1.280000e+02 : f32
    %376 = vector.broadcast %cst_146 : f32 to vector<16x1xf32>
    %377 = arith.divf %375, %376 : vector<16x1xf32>
    %378 = vector.broadcast %370 : vector<16x1xf32> to vector<16x128xf32>
    %379 = arith.subf %362, %378 : vector<16x128xf32>
    %cst_147 = arith.constant 9.99999974E-6 : f32
    %380 = vector.broadcast %cst_147 : f32 to vector<16x1xf32>
    %381 = arith.addf %377, %380 : vector<16x1xf32>
    %382 = math.rsqrt %381 : vector<16x1xf32>
    %383 = vector.broadcast %382 : vector<16x1xf32> to vector<16x128xf32>
    %384 = arith.mulf %379, %383 : vector<16x128xf32>
    %385 = vector.broadcast %364 : vector<1x128xf32> to vector<16x128xf32>
    %386 = arith.mulf %384, %385 : vector<16x128xf32>
    %387 = vector.broadcast %366 : vector<1x128xf32> to vector<16x128xf32>
    %388 = arith.addf %386, %387 : vector<16x128xf32>
    %c1_148 = arith.constant 1 : index
    %c0_149 = arith.constant 0 : index
    %c0_150 = arith.constant 0 : index
    %389 = vector.load %arg6[%c1_148, %c0_149, %c0_150] : memref<2x128x384xbf16, #tpu.memory_space<vmem>>, vector<1x128x384xbf16>
    %390 = vector.shape_cast %389 : vector<1x128x384xbf16> to vector<128x384xbf16>
    %391 = arith.truncf %388 : vector<16x128xf32> to vector<16x128xbf16>
    %cst_151 = arith.constant dense<0.000000e+00> : vector<16x384xf32>
    %392 = tpu.matmul %391, %390, %cst_151 {dimension_numbers = #tpu.dot_dimension_numbers<[1], [0], [0], [1], [0, 0, 1, 1], [], []>} : vector<16x128xbf16>, vector<128x384xbf16>, vector<16x384xf32> -> vector<16x384xf32>
    %c1_152 = arith.constant 1 : index
    %c0_153 = arith.constant 0 : index
    %c0_154 = arith.constant 0 : index
    %393 = vector.load %arg7[%c1_152, %c0_153, %c0_154] : memref<2x1x384xf32, #tpu.memory_space<vmem>>, vector<1x1x384xf32>
    %394 = vector.shape_cast %393 : vector<1x1x384xf32> to vector<1x384xf32>
    %395 = vector.broadcast %394 : vector<1x384xf32> to vector<16x384xf32>
    %396 = arith.addf %392, %395 : vector<16x384xf32>
    %397 = vector.extract_strided_slice %396 {offsets = [0, 0], sizes = [16, 128], strides = [1, 1]} : vector<16x384xf32> to vector<16x128xf32>
    %398 = vector.extract_strided_slice %396 {offsets = [0, 128], sizes = [16, 128], strides = [1, 1]} : vector<16x384xf32> to vector<16x128xf32>
    %399 = vector.extract_strided_slice %396 {offsets = [0, 256], sizes = [16, 128], strides = [1, 1]} : vector<16x384xf32> to vector<16x128xf32>
    %400 = vector.extract_strided_slice %397 {offsets = [0, 0], sizes = [16, 32], strides = [1, 1]} : vector<16x128xf32> to vector<16x32xf32>
    %401 = vector.shape_cast %400 : vector<16x32xf32> to vector<2x8x32xf32>
    %402 = arith.truncf %401 : vector<2x8x32xf32> to vector<2x8x32xbf16>
    %403 = vector.extract_strided_slice %398 {offsets = [0, 0], sizes = [16, 32], strides = [1, 1]} : vector<16x128xf32> to vector<16x32xf32>
    %404 = vector.shape_cast %403 : vector<16x32xf32> to vector<2x8x32xf32>
    %405 = arith.truncf %404 : vector<2x8x32xf32> to vector<2x8x32xbf16>
    %406 = vector.extract_strided_slice %399 {offsets = [0, 0], sizes = [16, 32], strides = [1, 1]} : vector<16x128xf32> to vector<16x32xf32>
    %407 = vector.shape_cast %406 : vector<16x32xf32> to vector<2x8x32xf32>
    %408 = arith.truncf %407 : vector<2x8x32xf32> to vector<2x8x32xbf16>
    "tpu.trace_start"() <{level = 10 : i32, message = "bqe,bke->bqk"}> : () -> ()
    %cst_155 = arith.constant dense<0.000000e+00> : vector<2x8x8xf32>
    %409 = tpu.matmul %402, %405, %cst_155 {dimension_numbers = #tpu.dot_dimension_numbers<[2], [2], [1], [1], [0, 0, 0, 1, 1, 1], [0], [0]>} : vector<2x8x32xbf16>, vector<2x8x32xbf16>, vector<2x8x8xf32> -> vector<2x8x8xf32>
    "tpu.trace_stop"() : () -> ()
    %cst_156 = arith.constant dense<0xFF800000> : vector<2x8xf32>
    %410 = vector.multi_reduction <maximumf>, %409, %cst_156 [2] : vector<2x8x8xf32> to vector<2x8xf32>
    %411 = vector.shape_cast %410 : vector<2x8xf32> to vector<2x8x1xf32>
    %412 = vector.broadcast %411 : vector<2x8x1xf32> to vector<2x8x8xf32>
    %413 = arith.subf %409, %412 : vector<2x8x8xf32>
    %414 = math.exp %413 : vector<2x8x8xf32>
    %cst_157 = arith.constant dense<0.000000e+00> : vector<2x8xf32>
    %415 = vector.multi_reduction <add>, %414, %cst_157 [2] : vector<2x8x8xf32> to vector<2x8xf32>
    %416 = vector.shape_cast %415 : vector<2x8xf32> to vector<2x8x1xf32>
    %417 = tpu.reciprocal %416 {approx = true} : vector<2x8x1xf32> -> vector<2x8x1xf32>
    %418 = vector.broadcast %417 : vector<2x8x1xf32> to vector<2x8x8xf32>
    %419 = arith.mulf %414, %418 : vector<2x8x8xf32>
    %420 = arith.truncf %419 : vector<2x8x8xf32> to vector<2x8x8xbf16>
    "tpu.trace_start"() <{level = 10 : i32, message = "bqk,bke->bqe"}> : () -> ()
    %cst_158 = arith.constant dense<0.000000e+00> : vector<2x8x32xf32>
    %421 = tpu.matmul %420, %408, %cst_158 {dimension_numbers = #tpu.dot_dimension_numbers<[2], [1], [1], [2], [0, 0, 0, 1, 1, 2], [0], [0]>} : vector<2x8x8xbf16>, vector<2x8x32xbf16>, vector<2x8x32xf32> -> vector<2x8x32xf32>
    "tpu.trace_stop"() : () -> ()
    %422 = vector.shape_cast %421 : vector<2x8x32xf32> to vector<16x32xf32>
    %423 = vector.extract_strided_slice %397 {offsets = [0, 32], sizes = [16, 32], strides = [1, 1]} : vector<16x128xf32> to vector<16x32xf32>
    %424 = vector.shape_cast %423 : vector<16x32xf32> to vector<2x8x32xf32>
    %425 = arith.truncf %424 : vector<2x8x32xf32> to vector<2x8x32xbf16>
    %426 = vector.extract_strided_slice %398 {offsets = [0, 32], sizes = [16, 32], strides = [1, 1]} : vector<16x128xf32> to vector<16x32xf32>
    %427 = vector.shape_cast %426 : vector<16x32xf32> to vector<2x8x32xf32>
    %428 = arith.truncf %427 : vector<2x8x32xf32> to vector<2x8x32xbf16>
    %429 = vector.extract_strided_slice %399 {offsets = [0, 32], sizes = [16, 32], strides = [1, 1]} : vector<16x128xf32> to vector<16x32xf32>
    %430 = vector.shape_cast %429 : vector<16x32xf32> to vector<2x8x32xf32>
    %431 = arith.truncf %430 : vector<2x8x32xf32> to vector<2x8x32xbf16>
    "tpu.trace_start"() <{level = 10 : i32, message = "bqe,bke->bqk"}> : () -> ()
    %cst_159 = arith.constant dense<0.000000e+00> : vector<2x8x8xf32>
    %432 = tpu.matmul %425, %428, %cst_159 {dimension_numbers = #tpu.dot_dimension_numbers<[2], [2], [1], [1], [0, 0, 0, 1, 1, 1], [0], [0]>} : vector<2x8x32xbf16>, vector<2x8x32xbf16>, vector<2x8x8xf32> -> vector<2x8x8xf32>
    "tpu.trace_stop"() : () -> ()
    %cst_160 = arith.constant dense<0xFF800000> : vector<2x8xf32>
    %433 = vector.multi_reduction <maximumf>, %432, %cst_160 [2] : vector<2x8x8xf32> to vector<2x8xf32>
    %434 = vector.shape_cast %433 : vector<2x8xf32> to vector<2x8x1xf32>
    %435 = vector.broadcast %434 : vector<2x8x1xf32> to vector<2x8x8xf32>
    %436 = arith.subf %432, %435 : vector<2x8x8xf32>
    %437 = math.exp %436 : vector<2x8x8xf32>
    %cst_161 = arith.constant dense<0.000000e+00> : vector<2x8xf32>
    %438 = vector.multi_reduction <add>, %437, %cst_161 [2] : vector<2x8x8xf32> to vector<2x8xf32>
    %439 = vector.shape_cast %438 : vector<2x8xf32> to vector<2x8x1xf32>
    %440 = tpu.reciprocal %439 {approx = true} : vector<2x8x1xf32> -> vector<2x8x1xf32>
    %441 = vector.broadcast %440 : vector<2x8x1xf32> to vector<2x8x8xf32>
    %442 = arith.mulf %437, %441 : vector<2x8x8xf32>
    %443 = arith.truncf %442 : vector<2x8x8xf32> to vector<2x8x8xbf16>
    "tpu.trace_start"() <{level = 10 : i32, message = "bqk,bke->bqe"}> : () -> ()
    %cst_162 = arith.constant dense<0.000000e+00> : vector<2x8x32xf32>
    %444 = tpu.matmul %443, %431, %cst_162 {dimension_numbers = #tpu.dot_dimension_numbers<[2], [1], [1], [2], [0, 0, 0, 1, 1, 2], [0], [0]>} : vector<2x8x8xbf16>, vector<2x8x32xbf16>, vector<2x8x32xf32> -> vector<2x8x32xf32>
    "tpu.trace_stop"() : () -> ()
    %445 = vector.shape_cast %444 : vector<2x8x32xf32> to vector<16x32xf32>
    %446 = vector.extract_strided_slice %397 {offsets = [0, 64], sizes = [16, 32], strides = [1, 1]} : vector<16x128xf32> to vector<16x32xf32>
    %447 = vector.shape_cast %446 : vector<16x32xf32> to vector<2x8x32xf32>
    %448 = arith.truncf %447 : vector<2x8x32xf32> to vector<2x8x32xbf16>
    %449 = vector.extract_strided_slice %398 {offsets = [0, 64], sizes = [16, 32], strides = [1, 1]} : vector<16x128xf32> to vector<16x32xf32>
    %450 = vector.shape_cast %449 : vector<16x32xf32> to vector<2x8x32xf32>
    %451 = arith.truncf %450 : vector<2x8x32xf32> to vector<2x8x32xbf16>
    %452 = vector.extract_strided_slice %399 {offsets = [0, 64], sizes = [16, 32], strides = [1, 1]} : vector<16x128xf32> to vector<16x32xf32>
    %453 = vector.shape_cast %452 : vector<16x32xf32> to vector<2x8x32xf32>
    %454 = arith.truncf %453 : vector<2x8x32xf32> to vector<2x8x32xbf16>
    "tpu.trace_start"() <{level = 10 : i32, message = "bqe,bke->bqk"}> : () -> ()
    %cst_163 = arith.constant dense<0.000000e+00> : vector<2x8x8xf32>
    %455 = tpu.matmul %448, %451, %cst_163 {dimension_numbers = #tpu.dot_dimension_numbers<[2], [2], [1], [1], [0, 0, 0, 1, 1, 1], [0], [0]>} : vector<2x8x32xbf16>, vector<2x8x32xbf16>, vector<2x8x8xf32> -> vector<2x8x8xf32>
    "tpu.trace_stop"() : () -> ()
    %cst_164 = arith.constant dense<0xFF800000> : vector<2x8xf32>
    %456 = vector.multi_reduction <maximumf>, %455, %cst_164 [2] : vector<2x8x8xf32> to vector<2x8xf32>
    %457 = vector.shape_cast %456 : vector<2x8xf32> to vector<2x8x1xf32>
    %458 = vector.broadcast %457 : vector<2x8x1xf32> to vector<2x8x8xf32>
    %459 = arith.subf %455, %458 : vector<2x8x8xf32>
    %460 = math.exp %459 : vector<2x8x8xf32>
    %cst_165 = arith.constant dense<0.000000e+00> : vector<2x8xf32>
    %461 = vector.multi_reduction <add>, %460, %cst_165 [2] : vector<2x8x8xf32> to vector<2x8xf32>
    %462 = vector.shape_cast %461 : vector<2x8xf32> to vector<2x8x1xf32>
    %463 = tpu.reciprocal %462 {approx = true} : vector<2x8x1xf32> -> vector<2x8x1xf32>
    %464 = vector.broadcast %463 : vector<2x8x1xf32> to vector<2x8x8xf32>
    %465 = arith.mulf %460, %464 : vector<2x8x8xf32>
    %466 = arith.truncf %465 : vector<2x8x8xf32> to vector<2x8x8xbf16>
    "tpu.trace_start"() <{level = 10 : i32, message = "bqk,bke->bqe"}> : () -> ()
    %cst_166 = arith.constant dense<0.000000e+00> : vector<2x8x32xf32>
    %467 = tpu.matmul %466, %454, %cst_166 {dimension_numbers = #tpu.dot_dimension_numbers<[2], [1], [1], [2], [0, 0, 0, 1, 1, 2], [0], [0]>} : vector<2x8x8xbf16>, vector<2x8x32xbf16>, vector<2x8x32xf32> -> vector<2x8x32xf32>
    "tpu.trace_stop"() : () -> ()
    %468 = vector.shape_cast %467 : vector<2x8x32xf32> to vector<16x32xf32>
    %469 = vector.extract_strided_slice %397 {offsets = [0, 96], sizes = [16, 32], strides = [1, 1]} : vector<16x128xf32> to vector<16x32xf32>
    %470 = vector.shape_cast %469 : vector<16x32xf32> to vector<2x8x32xf32>
    %471 = arith.truncf %470 : vector<2x8x32xf32> to vector<2x8x32xbf16>
    %472 = vector.extract_strided_slice %398 {offsets = [0, 96], sizes = [16, 32], strides = [1, 1]} : vector<16x128xf32> to vector<16x32xf32>
    %473 = vector.shape_cast %472 : vector<16x32xf32> to vector<2x8x32xf32>
    %474 = arith.truncf %473 : vector<2x8x32xf32> to vector<2x8x32xbf16>
    %475 = vector.extract_strided_slice %399 {offsets = [0, 96], sizes = [16, 32], strides = [1, 1]} : vector<16x128xf32> to vector<16x32xf32>
    %476 = vector.shape_cast %475 : vector<16x32xf32> to vector<2x8x32xf32>
    %477 = arith.truncf %476 : vector<2x8x32xf32> to vector<2x8x32xbf16>
    "tpu.trace_start"() <{level = 10 : i32, message = "bqe,bke->bqk"}> : () -> ()
    %cst_167 = arith.constant dense<0.000000e+00> : vector<2x8x8xf32>
    %478 = tpu.matmul %471, %474, %cst_167 {dimension_numbers = #tpu.dot_dimension_numbers<[2], [2], [1], [1], [0, 0, 0, 1, 1, 1], [0], [0]>} : vector<2x8x32xbf16>, vector<2x8x32xbf16>, vector<2x8x8xf32> -> vector<2x8x8xf32>
    "tpu.trace_stop"() : () -> ()
    %cst_168 = arith.constant dense<0xFF800000> : vector<2x8xf32>
    %479 = vector.multi_reduction <maximumf>, %478, %cst_168 [2] : vector<2x8x8xf32> to vector<2x8xf32>
    %480 = vector.shape_cast %479 : vector<2x8xf32> to vector<2x8x1xf32>
    %481 = vector.broadcast %480 : vector<2x8x1xf32> to vector<2x8x8xf32>
    %482 = arith.subf %478, %481 : vector<2x8x8xf32>
    %483 = math.exp %482 : vector<2x8x8xf32>
    %cst_169 = arith.constant dense<0.000000e+00> : vector<2x8xf32>
    %484 = vector.multi_reduction <add>, %483, %cst_169 [2] : vector<2x8x8xf32> to vector<2x8xf32>
    %485 = vector.shape_cast %484 : vector<2x8xf32> to vector<2x8x1xf32>
    %486 = tpu.reciprocal %485 {approx = true} : vector<2x8x1xf32> -> vector<2x8x1xf32>
    %487 = vector.broadcast %486 : vector<2x8x1xf32> to vector<2x8x8xf32>
    %488 = arith.mulf %483, %487 : vector<2x8x8xf32>
    %489 = arith.truncf %488 : vector<2x8x8xf32> to vector<2x8x8xbf16>
    "tpu.trace_start"() <{level = 10 : i32, message = "bqk,bke->bqe"}> : () -> ()
    %cst_170 = arith.constant dense<0.000000e+00> : vector<2x8x32xf32>
    %490 = tpu.matmul %489, %477, %cst_170 {dimension_numbers = #tpu.dot_dimension_numbers<[2], [1], [1], [2], [0, 0, 0, 1, 1, 2], [0], [0]>} : vector<2x8x8xbf16>, vector<2x8x32xbf16>, vector<2x8x32xf32> -> vector<2x8x32xf32>
    "tpu.trace_stop"() : () -> ()
    %491 = vector.shape_cast %490 : vector<2x8x32xf32> to vector<16x32xf32>
    %492 = tpu.concatenate %422, %445, %468, %491 in 1 : vector<16x32xf32>, vector<16x32xf32>, vector<16x32xf32>, vector<16x32xf32> -> vector<16x128xf32>
    %c1_171 = arith.constant 1 : index
    %c0_172 = arith.constant 0 : index
    %c0_173 = arith.constant 0 : index
    %493 = vector.load %arg8[%c1_171, %c0_172, %c0_173] : memref<2x128x128xbf16, #tpu.memory_space<vmem>>, vector<1x128x128xbf16>
    %494 = vector.shape_cast %493 : vector<1x128x128xbf16> to vector<128x128xbf16>
    %495 = arith.truncf %492 : vector<16x128xf32> to vector<16x128xbf16>
    %cst_174 = arith.constant dense<0.000000e+00> : vector<16x128xf32>
    %496 = tpu.matmul %495, %494, %cst_174 {dimension_numbers = #tpu.dot_dimension_numbers<[1], [0], [0], [1], [0, 0, 1, 1], [], []>} : vector<16x128xbf16>, vector<128x128xbf16>, vector<16x128xf32> -> vector<16x128xf32>
    %497 = arith.addf %362, %496 : vector<16x128xf32>
    %c1_175 = arith.constant 1 : index
    %c0_176 = arith.constant 0 : index
    %c0_177 = arith.constant 0 : index
    %498 = vector.load %arg9[%c1_175, %c0_176, %c0_177] : memref<2x1x128xf32, #tpu.memory_space<vmem>>, vector<1x1x128xf32>
    %499 = vector.shape_cast %498 : vector<1x1x128xf32> to vector<1x128xf32>
    %500 = vector.broadcast %499 : vector<1x128xf32> to vector<16x128xf32>
    %501 = arith.addf %497, %500 : vector<16x128xf32>
    %c1_178 = arith.constant 1 : index
    %c1_179 = arith.constant 1 : index
    %c0_180 = arith.constant 0 : index
    %c0_181 = arith.constant 0 : index
    %502 = vector.load %arg20[%c1_178, %c1_179, %c0_180, %c0_181] : memref<2x3x1x128xf32, #tpu.memory_space<vmem>>, vector<1x1x1x128xf32>
    %503 = vector.shape_cast %502 : vector<1x1x1x128xf32> to vector<1x128xf32>
    %c1_182 = arith.constant 1 : index
    %c1_183 = arith.constant 1 : index
    %c0_184 = arith.constant 0 : index
    %c0_185 = arith.constant 0 : index
    %504 = vector.load %arg21[%c1_182, %c1_183, %c0_184, %c0_185] : memref<2x3x1x128xf32, #tpu.memory_space<vmem>>, vector<1x1x1x128xf32>
    %505 = vector.shape_cast %504 : vector<1x1x1x128xf32> to vector<1x128xf32>
    %cst_186 = arith.constant dense<0.000000e+00> : vector<16xf32>
    %506 = vector.multi_reduction <add>, %501, %cst_186 [1] : vector<16x128xf32> to vector<16xf32>
    %507 = vector.shape_cast %506 : vector<16xf32> to vector<16x1xf32>
    %cst_187 = arith.constant 1.280000e+02 : f32
    %508 = vector.broadcast %cst_187 : f32 to vector<16x1xf32>
    %509 = arith.divf %507, %508 : vector<16x1xf32>
    %510 = vector.broadcast %509 : vector<16x1xf32> to vector<16x128xf32>
    %511 = arith.subf %501, %510 : vector<16x128xf32>
    %512 = arith.mulf %511, %511 : vector<16x128xf32>
    %cst_188 = arith.constant dense<0.000000e+00> : vector<16xf32>
    %513 = vector.multi_reduction <add>, %512, %cst_188 [1] : vector<16x128xf32> to vector<16xf32>
    %514 = vector.shape_cast %513 : vector<16xf32> to vector<16x1xf32>
    %cst_189 = arith.constant 1.280000e+02 : f32
    %515 = vector.broadcast %cst_189 : f32 to vector<16x1xf32>
    %516 = arith.divf %514, %515 : vector<16x1xf32>
    %517 = vector.broadcast %509 : vector<16x1xf32> to vector<16x128xf32>
    %518 = arith.subf %501, %517 : vector<16x128xf32>
    %cst_190 = arith.constant 9.99999974E-6 : f32
    %519 = vector.broadcast %cst_190 : f32 to vector<16x1xf32>
    %520 = arith.addf %516, %519 : vector<16x1xf32>
    %521 = math.rsqrt %520 : vector<16x1xf32>
    %522 = vector.broadcast %521 : vector<16x1xf32> to vector<16x128xf32>
    %523 = arith.mulf %518, %522 : vector<16x128xf32>
    %524 = vector.broadcast %503 : vector<1x128xf32> to vector<16x128xf32>
    %525 = arith.mulf %523, %524 : vector<16x128xf32>
    %526 = vector.broadcast %505 : vector<1x128xf32> to vector<16x128xf32>
    %527 = arith.addf %525, %526 : vector<16x128xf32>
    %c1_191 = arith.constant 1 : index
    %c0_192 = arith.constant 0 : index
    %c0_193 = arith.constant 0 : index
    %528 = vector.load %arg10[%c1_191, %c0_192, %c0_193] : memref<2x128x128xbf16, #tpu.memory_space<vmem>>, vector<1x128x128xbf16>
    %529 = vector.shape_cast %528 : vector<1x128x128xbf16> to vector<128x128xbf16>
    %530 = arith.truncf %527 : vector<16x128xf32> to vector<16x128xbf16>
    %cst_194 = arith.constant dense<0.000000e+00> : vector<16x128xf32>
    %531 = tpu.matmul %530, %529, %cst_194 {dimension_numbers = #tpu.dot_dimension_numbers<[1], [0], [0], [1], [0, 0, 1, 1], [], []>} : vector<16x128xbf16>, vector<128x128xbf16>, vector<16x128xf32> -> vector<16x128xf32>
    %c1_195 = arith.constant 1 : index
    %c0_196 = arith.constant 0 : index
    %c0_197 = arith.constant 0 : index
    %532 = vector.load %arg11[%c1_195, %c0_196, %c0_197] : memref<2x1x128xf32, #tpu.memory_space<vmem>>, vector<1x1x128xf32>
    %533 = vector.shape_cast %532 : vector<1x1x128xf32> to vector<1x128xf32>
    %534 = vector.broadcast %533 : vector<1x128xf32> to vector<16x128xf32>
    %535 = arith.addf %531, %534 : vector<16x128xf32>
    %c1_198 = arith.constant 1 : index
    %c0_199 = arith.constant 0 : index
    %c0_200 = arith.constant 0 : index
    %536 = vector.load %arg12[%c1_198, %c0_199, %c0_200] : memref<2x128x256xbf16, #tpu.memory_space<vmem>>, vector<1x128x256xbf16>
    %537 = vector.shape_cast %536 : vector<1x128x256xbf16> to vector<128x256xbf16>
    %538 = arith.truncf %30 : vector<8x128xf32> to vector<8x128xbf16>
    %cst_201 = arith.constant dense<0.000000e+00> : vector<8x256xf32>
    %539 = tpu.matmul %538, %537, %cst_201 {dimension_numbers = #tpu.dot_dimension_numbers<[1], [0], [0], [1], [0, 0, 1, 1], [], []>} : vector<8x128xbf16>, vector<128x256xbf16>, vector<8x256xf32> -> vector<8x256xf32>
    %c1_202 = arith.constant 1 : index
    %c0_203 = arith.constant 0 : index
    %c0_204 = arith.constant 0 : index
    %540 = vector.load %arg13[%c1_202, %c0_203, %c0_204] : memref<2x1x256xf32, #tpu.memory_space<vmem>>, vector<1x1x256xf32>
    %541 = vector.shape_cast %540 : vector<1x1x256xf32> to vector<1x256xf32>
    %542 = vector.broadcast %541 : vector<1x256xf32> to vector<8x256xf32>
    %543 = arith.addf %539, %542 : vector<8x256xf32>
    %544 = vector.extract_strided_slice %543 {offsets = [0, 0], sizes = [8, 128], strides = [1, 1]} : vector<8x256xf32> to vector<8x128xf32>
    %545 = vector.extract_strided_slice %543 {offsets = [0, 128], sizes = [8, 128], strides = [1, 1]} : vector<8x256xf32> to vector<8x128xf32>
    %546 = vector.extract_strided_slice %535 {offsets = [0, 0], sizes = [16, 32], strides = [1, 1]} : vector<16x128xf32> to vector<16x32xf32>
    %547 = vector.shape_cast %546 : vector<16x32xf32> to vector<2x8x32xf32>
    %548 = arith.truncf %547 : vector<2x8x32xf32> to vector<2x8x32xbf16>
    %549 = vector.extract_strided_slice %544 {offsets = [0, 0], sizes = [8, 32], strides = [1, 1]} : vector<8x128xf32> to vector<8x32xf32>
    %550 = vector.shape_cast %549 : vector<8x32xf32> to vector<2x4x32xf32>
    %551 = arith.truncf %550 : vector<2x4x32xf32> to vector<2x4x32xbf16>
    %552 = vector.extract_strided_slice %545 {offsets = [0, 0], sizes = [8, 32], strides = [1, 1]} : vector<8x128xf32> to vector<8x32xf32>
    %553 = vector.shape_cast %552 : vector<8x32xf32> to vector<2x4x32xf32>
    %554 = arith.truncf %553 : vector<2x4x32xf32> to vector<2x4x32xbf16>
    "tpu.trace_start"() <{level = 10 : i32, message = "bqe,bke->bqk"}> : () -> ()
    %cst_205 = arith.constant dense<0.000000e+00> : vector<2x8x4xf32>
    %555 = tpu.matmul %548, %551, %cst_205 {dimension_numbers = #tpu.dot_dimension_numbers<[2], [2], [1], [1], [0, 0, 0, 1, 1, 1], [0], [0]>} : vector<2x8x32xbf16>, vector<2x4x32xbf16>, vector<2x8x4xf32> -> vector<2x8x4xf32>
    "tpu.trace_stop"() : () -> ()
    %cst_206 = arith.constant dense<0xFF800000> : vector<2x8xf32>
    %556 = vector.multi_reduction <maximumf>, %555, %cst_206 [2] : vector<2x8x4xf32> to vector<2x8xf32>
    %557 = vector.shape_cast %556 : vector<2x8xf32> to vector<2x8x1xf32>
    %558 = vector.broadcast %557 : vector<2x8x1xf32> to vector<2x8x4xf32>
    %559 = arith.subf %555, %558 : vector<2x8x4xf32>
    %560 = math.exp %559 : vector<2x8x4xf32>
    %cst_207 = arith.constant dense<0.000000e+00> : vector<2x8xf32>
    %561 = vector.multi_reduction <add>, %560, %cst_207 [2] : vector<2x8x4xf32> to vector<2x8xf32>
    %562 = vector.shape_cast %561 : vector<2x8xf32> to vector<2x8x1xf32>
    %563 = tpu.reciprocal %562 {approx = true} : vector<2x8x1xf32> -> vector<2x8x1xf32>
    %564 = vector.broadcast %563 : vector<2x8x1xf32> to vector<2x8x4xf32>
    %565 = arith.mulf %560, %564 : vector<2x8x4xf32>
    %566 = arith.truncf %565 : vector<2x8x4xf32> to vector<2x8x4xbf16>
    "tpu.trace_start"() <{level = 10 : i32, message = "bqk,bke->bqe"}> : () -> ()
    %cst_208 = arith.constant dense<0.000000e+00> : vector<2x8x32xf32>
    %567 = tpu.matmul %566, %554, %cst_208 {dimension_numbers = #tpu.dot_dimension_numbers<[2], [1], [1], [2], [0, 0, 0, 1, 1, 2], [0], [0]>} : vector<2x8x4xbf16>, vector<2x4x32xbf16>, vector<2x8x32xf32> -> vector<2x8x32xf32>
    "tpu.trace_stop"() : () -> ()
    %568 = vector.shape_cast %567 : vector<2x8x32xf32> to vector<16x32xf32>
    %569 = vector.extract_strided_slice %535 {offsets = [0, 32], sizes = [16, 32], strides = [1, 1]} : vector<16x128xf32> to vector<16x32xf32>
    %570 = vector.shape_cast %569 : vector<16x32xf32> to vector<2x8x32xf32>
    %571 = arith.truncf %570 : vector<2x8x32xf32> to vector<2x8x32xbf16>
    %572 = vector.extract_strided_slice %544 {offsets = [0, 32], sizes = [8, 32], strides = [1, 1]} : vector<8x128xf32> to vector<8x32xf32>
    %573 = vector.shape_cast %572 : vector<8x32xf32> to vector<2x4x32xf32>
    %574 = arith.truncf %573 : vector<2x4x32xf32> to vector<2x4x32xbf16>
    %575 = vector.extract_strided_slice %545 {offsets = [0, 32], sizes = [8, 32], strides = [1, 1]} : vector<8x128xf32> to vector<8x32xf32>
    %576 = vector.shape_cast %575 : vector<8x32xf32> to vector<2x4x32xf32>
    %577 = arith.truncf %576 : vector<2x4x32xf32> to vector<2x4x32xbf16>
    "tpu.trace_start"() <{level = 10 : i32, message = "bqe,bke->bqk"}> : () -> ()
    %cst_209 = arith.constant dense<0.000000e+00> : vector<2x8x4xf32>
    %578 = tpu.matmul %571, %574, %cst_209 {dimension_numbers = #tpu.dot_dimension_numbers<[2], [2], [1], [1], [0, 0, 0, 1, 1, 1], [0], [0]>} : vector<2x8x32xbf16>, vector<2x4x32xbf16>, vector<2x8x4xf32> -> vector<2x8x4xf32>
    "tpu.trace_stop"() : () -> ()
    %cst_210 = arith.constant dense<0xFF800000> : vector<2x8xf32>
    %579 = vector.multi_reduction <maximumf>, %578, %cst_210 [2] : vector<2x8x4xf32> to vector<2x8xf32>
    %580 = vector.shape_cast %579 : vector<2x8xf32> to vector<2x8x1xf32>
    %581 = vector.broadcast %580 : vector<2x8x1xf32> to vector<2x8x4xf32>
    %582 = arith.subf %578, %581 : vector<2x8x4xf32>
    %583 = math.exp %582 : vector<2x8x4xf32>
    %cst_211 = arith.constant dense<0.000000e+00> : vector<2x8xf32>
    %584 = vector.multi_reduction <add>, %583, %cst_211 [2] : vector<2x8x4xf32> to vector<2x8xf32>
    %585 = vector.shape_cast %584 : vector<2x8xf32> to vector<2x8x1xf32>
    %586 = tpu.reciprocal %585 {approx = true} : vector<2x8x1xf32> -> vector<2x8x1xf32>
    %587 = vector.broadcast %586 : vector<2x8x1xf32> to vector<2x8x4xf32>
    %588 = arith.mulf %583, %587 : vector<2x8x4xf32>
    %589 = arith.truncf %588 : vector<2x8x4xf32> to vector<2x8x4xbf16>
    "tpu.trace_start"() <{level = 10 : i32, message = "bqk,bke->bqe"}> : () -> ()
    %cst_212 = arith.constant dense<0.000000e+00> : vector<2x8x32xf32>
    %590 = tpu.matmul %589, %577, %cst_212 {dimension_numbers = #tpu.dot_dimension_numbers<[2], [1], [1], [2], [0, 0, 0, 1, 1, 2], [0], [0]>} : vector<2x8x4xbf16>, vector<2x4x32xbf16>, vector<2x8x32xf32> -> vector<2x8x32xf32>
    "tpu.trace_stop"() : () -> ()
    %591 = vector.shape_cast %590 : vector<2x8x32xf32> to vector<16x32xf32>
    %592 = vector.extract_strided_slice %535 {offsets = [0, 64], sizes = [16, 32], strides = [1, 1]} : vector<16x128xf32> to vector<16x32xf32>
    %593 = vector.shape_cast %592 : vector<16x32xf32> to vector<2x8x32xf32>
    %594 = arith.truncf %593 : vector<2x8x32xf32> to vector<2x8x32xbf16>
    %595 = vector.extract_strided_slice %544 {offsets = [0, 64], sizes = [8, 32], strides = [1, 1]} : vector<8x128xf32> to vector<8x32xf32>
    %596 = vector.shape_cast %595 : vector<8x32xf32> to vector<2x4x32xf32>
    %597 = arith.truncf %596 : vector<2x4x32xf32> to vector<2x4x32xbf16>
    %598 = vector.extract_strided_slice %545 {offsets = [0, 64], sizes = [8, 32], strides = [1, 1]} : vector<8x128xf32> to vector<8x32xf32>
    %599 = vector.shape_cast %598 : vector<8x32xf32> to vector<2x4x32xf32>
    %600 = arith.truncf %599 : vector<2x4x32xf32> to vector<2x4x32xbf16>
    "tpu.trace_start"() <{level = 10 : i32, message = "bqe,bke->bqk"}> : () -> ()
    %cst_213 = arith.constant dense<0.000000e+00> : vector<2x8x4xf32>
    %601 = tpu.matmul %594, %597, %cst_213 {dimension_numbers = #tpu.dot_dimension_numbers<[2], [2], [1], [1], [0, 0, 0, 1, 1, 1], [0], [0]>} : vector<2x8x32xbf16>, vector<2x4x32xbf16>, vector<2x8x4xf32> -> vector<2x8x4xf32>
    "tpu.trace_stop"() : () -> ()
    %cst_214 = arith.constant dense<0xFF800000> : vector<2x8xf32>
    %602 = vector.multi_reduction <maximumf>, %601, %cst_214 [2] : vector<2x8x4xf32> to vector<2x8xf32>
    %603 = vector.shape_cast %602 : vector<2x8xf32> to vector<2x8x1xf32>
    %604 = vector.broadcast %603 : vector<2x8x1xf32> to vector<2x8x4xf32>
    %605 = arith.subf %601, %604 : vector<2x8x4xf32>
    %606 = math.exp %605 : vector<2x8x4xf32>
    %cst_215 = arith.constant dense<0.000000e+00> : vector<2x8xf32>
    %607 = vector.multi_reduction <add>, %606, %cst_215 [2] : vector<2x8x4xf32> to vector<2x8xf32>
    %608 = vector.shape_cast %607 : vector<2x8xf32> to vector<2x8x1xf32>
    %609 = tpu.reciprocal %608 {approx = true} : vector<2x8x1xf32> -> vector<2x8x1xf32>
    %610 = vector.broadcast %609 : vector<2x8x1xf32> to vector<2x8x4xf32>
    %611 = arith.mulf %606, %610 : vector<2x8x4xf32>
    %612 = arith.truncf %611 : vector<2x8x4xf32> to vector<2x8x4xbf16>
    "tpu.trace_start"() <{level = 10 : i32, message = "bqk,bke->bqe"}> : () -> ()
    %cst_216 = arith.constant dense<0.000000e+00> : vector<2x8x32xf32>
    %613 = tpu.matmul %612, %600, %cst_216 {dimension_numbers = #tpu.dot_dimension_numbers<[2], [1], [1], [2], [0, 0, 0, 1, 1, 2], [0], [0]>} : vector<2x8x4xbf16>, vector<2x4x32xbf16>, vector<2x8x32xf32> -> vector<2x8x32xf32>
    "tpu.trace_stop"() : () -> ()
    %614 = vector.shape_cast %613 : vector<2x8x32xf32> to vector<16x32xf32>
    %615 = vector.extract_strided_slice %535 {offsets = [0, 96], sizes = [16, 32], strides = [1, 1]} : vector<16x128xf32> to vector<16x32xf32>
    %616 = vector.shape_cast %615 : vector<16x32xf32> to vector<2x8x32xf32>
    %617 = arith.truncf %616 : vector<2x8x32xf32> to vector<2x8x32xbf16>
    %618 = vector.extract_strided_slice %544 {offsets = [0, 96], sizes = [8, 32], strides = [1, 1]} : vector<8x128xf32> to vector<8x32xf32>
    %619 = vector.shape_cast %618 : vector<8x32xf32> to vector<2x4x32xf32>
    %620 = arith.truncf %619 : vector<2x4x32xf32> to vector<2x4x32xbf16>
    %621 = vector.extract_strided_slice %545 {offsets = [0, 96], sizes = [8, 32], strides = [1, 1]} : vector<8x128xf32> to vector<8x32xf32>
    %622 = vector.shape_cast %621 : vector<8x32xf32> to vector<2x4x32xf32>
    %623 = arith.truncf %622 : vector<2x4x32xf32> to vector<2x4x32xbf16>
    "tpu.trace_start"() <{level = 10 : i32, message = "bqe,bke->bqk"}> : () -> ()
    %cst_217 = arith.constant dense<0.000000e+00> : vector<2x8x4xf32>
    %624 = tpu.matmul %617, %620, %cst_217 {dimension_numbers = #tpu.dot_dimension_numbers<[2], [2], [1], [1], [0, 0, 0, 1, 1, 1], [0], [0]>} : vector<2x8x32xbf16>, vector<2x4x32xbf16>, vector<2x8x4xf32> -> vector<2x8x4xf32>
    "tpu.trace_stop"() : () -> ()
    %cst_218 = arith.constant dense<0xFF800000> : vector<2x8xf32>
    %625 = vector.multi_reduction <maximumf>, %624, %cst_218 [2] : vector<2x8x4xf32> to vector<2x8xf32>
    %626 = vector.shape_cast %625 : vector<2x8xf32> to vector<2x8x1xf32>
    %627 = vector.broadcast %626 : vector<2x8x1xf32> to vector<2x8x4xf32>
    %628 = arith.subf %624, %627 : vector<2x8x4xf32>
    %629 = math.exp %628 : vector<2x8x4xf32>
    %cst_219 = arith.constant dense<0.000000e+00> : vector<2x8xf32>
    %630 = vector.multi_reduction <add>, %629, %cst_219 [2] : vector<2x8x4xf32> to vector<2x8xf32>
    %631 = vector.shape_cast %630 : vector<2x8xf32> to vector<2x8x1xf32>
    %632 = tpu.reciprocal %631 {approx = true} : vector<2x8x1xf32> -> vector<2x8x1xf32>
    %633 = vector.broadcast %632 : vector<2x8x1xf32> to vector<2x8x4xf32>
    %634 = arith.mulf %629, %633 : vector<2x8x4xf32>
    %635 = arith.truncf %634 : vector<2x8x4xf32> to vector<2x8x4xbf16>
    "tpu.trace_start"() <{level = 10 : i32, message = "bqk,bke->bqe"}> : () -> ()
    %cst_220 = arith.constant dense<0.000000e+00> : vector<2x8x32xf32>
    %636 = tpu.matmul %635, %623, %cst_220 {dimension_numbers = #tpu.dot_dimension_numbers<[2], [1], [1], [2], [0, 0, 0, 1, 1, 2], [0], [0]>} : vector<2x8x4xbf16>, vector<2x4x32xbf16>, vector<2x8x32xf32> -> vector<2x8x32xf32>
    "tpu.trace_stop"() : () -> ()
    %637 = vector.shape_cast %636 : vector<2x8x32xf32> to vector<16x32xf32>
    %638 = tpu.concatenate %568, %591, %614, %637 in 1 : vector<16x32xf32>, vector<16x32xf32>, vector<16x32xf32>, vector<16x32xf32> -> vector<16x128xf32>
    %c1_221 = arith.constant 1 : index
    %c0_222 = arith.constant 0 : index
    %c0_223 = arith.constant 0 : index
    %639 = vector.load %arg14[%c1_221, %c0_222, %c0_223] : memref<2x128x128xbf16, #tpu.memory_space<vmem>>, vector<1x128x128xbf16>
    %640 = vector.shape_cast %639 : vector<1x128x128xbf16> to vector<128x128xbf16>
    %641 = arith.truncf %638 : vector<16x128xf32> to vector<16x128xbf16>
    %cst_224 = arith.constant dense<0.000000e+00> : vector<16x128xf32>
    %642 = tpu.matmul %641, %640, %cst_224 {dimension_numbers = #tpu.dot_dimension_numbers<[1], [0], [0], [1], [0, 0, 1, 1], [], []>} : vector<16x128xbf16>, vector<128x128xbf16>, vector<16x128xf32> -> vector<16x128xf32>
    %643 = arith.addf %501, %642 : vector<16x128xf32>
    %c1_225 = arith.constant 1 : index
    %c0_226 = arith.constant 0 : index
    %c0_227 = arith.constant 0 : index
    %644 = vector.load %arg15[%c1_225, %c0_226, %c0_227] : memref<2x1x128xf32, #tpu.memory_space<vmem>>, vector<1x1x128xf32>
    %645 = vector.shape_cast %644 : vector<1x1x128xf32> to vector<1x128xf32>
    %646 = vector.broadcast %645 : vector<1x128xf32> to vector<16x128xf32>
    %647 = arith.addf %643, %646 : vector<16x128xf32>
    %c1_228 = arith.constant 1 : index
    %c2_229 = arith.constant 2 : index
    %c0_230 = arith.constant 0 : index
    %c0_231 = arith.constant 0 : index
    %648 = vector.load %arg20[%c1_228, %c2_229, %c0_230, %c0_231] : memref<2x3x1x128xf32, #tpu.memory_space<vmem>>, vector<1x1x1x128xf32>
    %649 = vector.shape_cast %648 : vector<1x1x1x128xf32> to vector<1x128xf32>
    %c1_232 = arith.constant 1 : index
    %c2_233 = arith.constant 2 : index
    %c0_234 = arith.constant 0 : index
    %c0_235 = arith.constant 0 : index
    %650 = vector.load %arg21[%c1_232, %c2_233, %c0_234, %c0_235] : memref<2x3x1x128xf32, #tpu.memory_space<vmem>>, vector<1x1x1x128xf32>
    %651 = vector.shape_cast %650 : vector<1x1x1x128xf32> to vector<1x128xf32>
    %cst_236 = arith.constant dense<0.000000e+00> : vector<16xf32>
    %652 = vector.multi_reduction <add>, %647, %cst_236 [1] : vector<16x128xf32> to vector<16xf32>
    %653 = vector.shape_cast %652 : vector<16xf32> to vector<16x1xf32>
    %cst_237 = arith.constant 1.280000e+02 : f32
    %654 = vector.broadcast %cst_237 : f32 to vector<16x1xf32>
    %655 = arith.divf %653, %654 : vector<16x1xf32>
    %656 = vector.broadcast %655 : vector<16x1xf32> to vector<16x128xf32>
    %657 = arith.subf %647, %656 : vector<16x128xf32>
    %658 = arith.mulf %657, %657 : vector<16x128xf32>
    %cst_238 = arith.constant dense<0.000000e+00> : vector<16xf32>
    %659 = vector.multi_reduction <add>, %658, %cst_238 [1] : vector<16x128xf32> to vector<16xf32>
    %660 = vector.shape_cast %659 : vector<16xf32> to vector<16x1xf32>
    %cst_239 = arith.constant 1.280000e+02 : f32
    %661 = vector.broadcast %cst_239 : f32 to vector<16x1xf32>
    %662 = arith.divf %660, %661 : vector<16x1xf32>
    %663 = vector.broadcast %655 : vector<16x1xf32> to vector<16x128xf32>
    %664 = arith.subf %647, %663 : vector<16x128xf32>
    %cst_240 = arith.constant 9.99999974E-6 : f32
    %665 = vector.broadcast %cst_240 : f32 to vector<16x1xf32>
    %666 = arith.addf %662, %665 : vector<16x1xf32>
    %667 = math.rsqrt %666 : vector<16x1xf32>
    %668 = vector.broadcast %667 : vector<16x1xf32> to vector<16x128xf32>
    %669 = arith.mulf %664, %668 : vector<16x128xf32>
    %670 = vector.broadcast %649 : vector<1x128xf32> to vector<16x128xf32>
    %671 = arith.mulf %669, %670 : vector<16x128xf32>
    %672 = vector.broadcast %651 : vector<1x128xf32> to vector<16x128xf32>
    %673 = arith.addf %671, %672 : vector<16x128xf32>
    %c1_241 = arith.constant 1 : index
    %c0_242 = arith.constant 0 : index
    %c0_243 = arith.constant 0 : index
    %674 = vector.load %arg16[%c1_241, %c0_242, %c0_243] : memref<2x128x256xbf16, #tpu.memory_space<vmem>>, vector<1x128x256xbf16>
    %675 = vector.shape_cast %674 : vector<1x128x256xbf16> to vector<128x256xbf16>
    %676 = arith.truncf %673 : vector<16x128xf32> to vector<16x128xbf16>
    %cst_244 = arith.constant dense<0.000000e+00> : vector<16x256xf32>
    %677 = tpu.matmul %676, %675, %cst_244 {dimension_numbers = #tpu.dot_dimension_numbers<[1], [0], [0], [1], [0, 0, 1, 1], [], []>} : vector<16x128xbf16>, vector<128x256xbf16>, vector<16x256xf32> -> vector<16x256xf32>
    %c1_245 = arith.constant 1 : index
    %c0_246 = arith.constant 0 : index
    %c0_247 = arith.constant 0 : index
    %678 = vector.load %arg17[%c1_245, %c0_246, %c0_247] : memref<2x1x256xf32, #tpu.memory_space<vmem>>, vector<1x1x256xf32>
    %679 = vector.shape_cast %678 : vector<1x1x256xf32> to vector<1x256xf32>
    %680 = vector.broadcast %679 : vector<1x256xf32> to vector<16x256xf32>
    %681 = arith.addf %677, %680 : vector<16x256xf32>
    %cst_248 = arith.constant 0.000000e+00 : f32
    %682 = vector.broadcast %cst_248 : f32 to vector<16x256xf32>
    %683 = arith.maximumf %681, %682 : vector<16x256xf32>
    %c1_249 = arith.constant 1 : index
    %c0_250 = arith.constant 0 : index
    %c0_251 = arith.constant 0 : index
    %684 = vector.load %arg18[%c1_249, %c0_250, %c0_251] : memref<2x256x128xbf16, #tpu.memory_space<vmem>>, vector<1x256x128xbf16>
    %685 = vector.shape_cast %684 : vector<1x256x128xbf16> to vector<256x128xbf16>
    %686 = arith.truncf %683 : vector<16x256xf32> to vector<16x256xbf16>
    %cst_252 = arith.constant dense<0.000000e+00> : vector<16x128xf32>
    %687 = tpu.matmul %686, %685, %cst_252 {dimension_numbers = #tpu.dot_dimension_numbers<[1], [0], [0], [1], [0, 0, 1, 1], [], []>} : vector<16x256xbf16>, vector<256x128xbf16>, vector<16x128xf32> -> vector<16x128xf32>
    %688 = arith.addf %647, %687 : vector<16x128xf32>
    %c1_253 = arith.constant 1 : index
    %c0_254 = arith.constant 0 : index
    %c0_255 = arith.constant 0 : index
    %689 = vector.load %arg19[%c1_253, %c0_254, %c0_255] : memref<2x1x128xf32, #tpu.memory_space<vmem>>, vector<1x1x128xf32>
    %690 = vector.shape_cast %689 : vector<1x1x128xf32> to vector<1x128xf32>
    %691 = vector.broadcast %690 : vector<1x128xf32> to vector<16x128xf32>
    %692 = arith.addf %688, %691 : vector<16x128xf32>
    %c0_256 = arith.constant 0 : index
    %c0_257 = arith.constant 0 : index
    %693 = vector.load %arg22[%c0_256, %c0_257] : memref<1x128xf32, #tpu.memory_space<vmem>>, vector<1x128xf32>
    %c0_258 = arith.constant 0 : index
    %c0_259 = arith.constant 0 : index
    %694 = vector.load %arg23[%c0_258, %c0_259] : memref<1x128xf32, #tpu.memory_space<vmem>>, vector<1x128xf32>
    %cst_260 = arith.constant dense<0.000000e+00> : vector<16xf32>
    %695 = vector.multi_reduction <add>, %692, %cst_260 [1] : vector<16x128xf32> to vector<16xf32>
    %696 = vector.shape_cast %695 : vector<16xf32> to vector<16x1xf32>
    %cst_261 = arith.constant 1.280000e+02 : f32
    %697 = vector.broadcast %cst_261 : f32 to vector<16x1xf32>
    %698 = arith.divf %696, %697 : vector<16x1xf32>
    %699 = vector.broadcast %698 : vector<16x1xf32> to vector<16x128xf32>
    %700 = arith.subf %692, %699 : vector<16x128xf32>
    %701 = arith.mulf %700, %700 : vector<16x128xf32>
    %cst_262 = arith.constant dense<0.000000e+00> : vector<16xf32>
    %702 = vector.multi_reduction <add>, %701, %cst_262 [1] : vector<16x128xf32> to vector<16xf32>
    %703 = vector.shape_cast %702 : vector<16xf32> to vector<16x1xf32>
    %cst_263 = arith.constant 1.280000e+02 : f32
    %704 = vector.broadcast %cst_263 : f32 to vector<16x1xf32>
    %705 = arith.divf %703, %704 : vector<16x1xf32>
    %706 = vector.broadcast %698 : vector<16x1xf32> to vector<16x128xf32>
    %707 = arith.subf %692, %706 : vector<16x128xf32>
    %cst_264 = arith.constant 9.99999974E-6 : f32
    %708 = vector.broadcast %cst_264 : f32 to vector<16x1xf32>
    %709 = arith.addf %705, %708 : vector<16x1xf32>
    %710 = math.rsqrt %709 : vector<16x1xf32>
    %711 = vector.broadcast %710 : vector<16x1xf32> to vector<16x128xf32>
    %712 = arith.mulf %707, %711 : vector<16x128xf32>
    %713 = vector.broadcast %693 : vector<1x128xf32> to vector<16x128xf32>
    %714 = arith.mulf %712, %713 : vector<16x128xf32>
    %715 = vector.broadcast %694 : vector<1x128xf32> to vector<16x128xf32>
    %716 = arith.addf %714, %715 : vector<16x128xf32>
    %c0_265 = arith.constant 0 : index
    %c0_266 = arith.constant 0 : index
    %717 = vector.load %arg24[%c0_265, %c0_266] : memref<128x128xbf16, #tpu.memory_space<vmem>>, vector<128x128xbf16>
    %718 = arith.truncf %716 : vector<16x128xf32> to vector<16x128xbf16>
    %cst_267 = arith.constant dense<0.000000e+00> : vector<16x128xf32>
    %719 = tpu.matmul %718, %717, %cst_267 {dimension_numbers = #tpu.dot_dimension_numbers<[1], [0], [0], [1], [0, 0, 1, 1], [], []>} : vector<16x128xbf16>, vector<128x128xbf16>, vector<16x128xf32> -> vector<16x128xf32>
    %c0_268 = arith.constant 0 : index
    %c0_269 = arith.constant 0 : index
    %720 = vector.load %arg25[%c0_268, %c0_269] : memref<1x128xf32, #tpu.memory_space<vmem>>, vector<1x128xf32>
    %721 = vector.broadcast %720 : vector<1x128xf32> to vector<16x128xf32>
    %722 = arith.addf %719, %721 : vector<16x128xf32>
    %cst_270 = arith.constant 0.000000e+00 : f32
    %723 = vector.broadcast %cst_270 : f32 to vector<16x128xf32>
    %724 = arith.maximumf %722, %723 : vector<16x128xf32>
    %c0_271 = arith.constant 0 : index
    %c0_272 = arith.constant 0 : index
    %725 = vector.load %arg26[%c0_271, %c0_272] : memref<128x128xbf16, #tpu.memory_space<vmem>>, vector<128x128xbf16>
    %726 = arith.truncf %724 : vector<16x128xf32> to vector<16x128xbf16>
    %cst_273 = arith.constant dense<0.000000e+00> : vector<16x128xf32>
    %727 = tpu.matmul %726, %725, %cst_273 {dimension_numbers = #tpu.dot_dimension_numbers<[1], [0], [0], [1], [0, 0, 1, 1], [], []>} : vector<16x128xbf16>, vector<128x128xbf16>, vector<16x128xf32> -> vector<16x128xf32>
    %c0_274 = arith.constant 0 : index
    %c0_275 = arith.constant 0 : index
    %728 = vector.load %arg27[%c0_274, %c0_275] : memref<1x128xf32, #tpu.memory_space<vmem>>, vector<1x128xf32>
    %729 = vector.broadcast %728 : vector<1x128xf32> to vector<16x128xf32>
    %730 = arith.addf %727, %729 : vector<16x128xf32>
    %c0_276 = arith.constant 0 : index
    %c0_277 = arith.constant 0 : index
    %731 = vector.load %arg28[%c0_276, %c0_277] : memref<16x128xf32, #tpu.memory_space<vmem>>, vector<16x128xf32>
    tpu.vector_store %arg28[%c0_276, %c0_277], %730 {strides = array<i32>} : memref<16x128xf32, #tpu.memory_space<vmem>>, vector<16x128xf32>,
    return
  }
}

module attributes {stable_mosaic.version = 11 : i64} {
  func.func @_lmhead_xent_kernel(%arg0: i32, %arg1: memref<32x128xf32, #tpu.memory_space<vmem>>, %arg2: memref<128x256xbf16, #tpu.memory_space<vmem>>, %arg3: memref<1x256xf32, #tpu.memory_space<vmem>>, %arg4: memref<32x1xi32, #tpu.memory_space<vmem>>, %arg5: memref<1x1xf32, #tpu.memory_space<vmem>>, %arg6: memref<1x1xf32, #tpu.memory_space<vmem>>, %arg7: memref<32x1xf32, #tpu.memory_space<vmem>>, %arg8: memref<32x1xf32, #tpu.memory_space<vmem>>, %arg9: memref<32x1xf32, #tpu.memory_space<vmem>>) attributes {dimension_semantics = [#tpu.dimension_semantics<arbitrary>], iteration_bounds = array<i64: 1>, scalar_prefetch = 0 : i64, scratch_operands = 3 : i64, tpu.core_type = #tpu.core_type<tc>, window_params = [{pipeline_mode = #tpu.pipeline_mode<synchronous>, transform_indices = @transform_0, window_bounds = array<i64: 32, 128>}, {transform_indices = @transform_1, window_bounds = array<i64: 128, 256>}, {transform_indices = @transform_2, window_bounds = array<i64: 1, 256>}, {pipeline_mode = #tpu.pipeline_mode<synchronous>, transform_indices = @transform_3, window_bounds = array<i64: 32, 1>}, {pipeline_mode = #tpu.pipeline_mode<synchronous>, transform_indices = @transform_4, window_bounds = array<i64: 1, 1>}, {pipeline_mode = #tpu.pipeline_mode<synchronous>, transform_indices = @transform_5, window_bounds = array<i64: 1, 1>}]} {
    %c0 = arith.constant 0 : index
    %c0_0 = arith.constant 0 : index
    %0 = vector.load %arg1[%c0, %c0_0] : memref<32x128xf32, #tpu.memory_space<vmem>>, vector<32x128xf32>
    %1 = arith.truncf %0 : vector<32x128xf32> to vector<32x128xbf16>
    %c0_1 = arith.constant 0 : index
    %c0_2 = arith.constant 0 : index
    %2 = vector.load %arg2[%c0_1, %c0_2] : memref<128x256xbf16, #tpu.memory_space<vmem>>, vector<128x256xbf16>
    %cst = arith.constant dense<0.000000e+00> : vector<32x256xf32>
    %3 = tpu.matmul %1, %2, %cst {dimension_numbers = #tpu.dot_dimension_numbers<[1], [0], [0], [1], [0, 0, 1, 1], [], []>} : vector<32x128xbf16>, vector<128x256xbf16>, vector<32x256xf32> -> vector<32x256xf32>
    %c0_3 = arith.constant 0 : index
    %c0_4 = arith.constant 0 : index
    %4 = vector.load %arg3[%c0_3, %c0_4] : memref<1x256xf32, #tpu.memory_space<vmem>>, vector<1x256xf32>
    %5 = vector.broadcast %4 : vector<1x256xf32> to vector<32x256xf32>
    %6 = arith.addf %3, %5 : vector<32x256xf32>
    %c0_5 = arith.constant 0 : index
    %c0_6 = arith.constant 0 : index
    %7 = vector.load %arg4[%c0_5, %c0_6] : memref<32x1xi32, #tpu.memory_space<vmem>>, vector<32x1xi32>
    %c0_i32 = arith.constant 0 : i32
    %8 = arith.cmpi eq, %arg0, %c0_i32 : i32
    %9 = arith.extui %8 : i1 to i32
    %c0_i32_7 = arith.constant 0 : i32
    %10 = arith.cmpi ne, %9, %c0_i32_7 : i32
    scf.if %10 {
      %cst_26 = arith.constant 0xFF800000 : f32
      %43 = vector.broadcast %cst_26 : f32 to vector<32x1xf32>
      %c0_27 = arith.constant 0 : index
      %c0_28 = arith.constant 0 : index
      %44 = vector.load %arg7[%c0_27, %c0_28] : memref<32x1xf32, #tpu.memory_space<vmem>>, vector<32x1xf32>
      tpu.vector_store %arg7[%c0_27, %c0_28], %43 {strides = array<i32>} : memref<32x1xf32, #tpu.memory_space<vmem>>, vector<32x1xf32>,
      %cst_29 = arith.constant 0.000000e+00 : f32
      %45 = vector.broadcast %cst_29 : f32 to vector<32x1xf32>
      %c0_30 = arith.constant 0 : index
      %c0_31 = arith.constant 0 : index
      %46 = vector.load %arg8[%c0_30, %c0_31] : memref<32x1xf32, #tpu.memory_space<vmem>>, vector<32x1xf32>
      tpu.vector_store %arg8[%c0_30, %c0_31], %45 {strides = array<i32>} : memref<32x1xf32, #tpu.memory_space<vmem>>, vector<32x1xf32>,
      %cst_32 = arith.constant 0.000000e+00 : f32
      %47 = vector.broadcast %cst_32 : f32 to vector<32x1xf32>
      %c0_33 = arith.constant 0 : index
      %c0_34 = arith.constant 0 : index
      %48 = vector.load %arg9[%c0_33, %c0_34] : memref<32x1xf32, #tpu.memory_space<vmem>>, vector<32x1xf32>
      tpu.vector_store %arg9[%c0_33, %c0_34], %47 {strides = array<i32>} : memref<32x1xf32, #tpu.memory_space<vmem>>, vector<32x1xf32>,
    } else {
    }
    %c0_8 = arith.constant 0 : index
    %c0_9 = arith.constant 0 : index
    %11 = vector.load %arg7[%c0_8, %c0_9] : memref<32x1xf32, #tpu.memory_space<vmem>>, vector<32x1xf32>
    %cst_10 = arith.constant dense<0xFF800000> : vector<32xf32>
    %12 = vector.multi_reduction <maximumf>, %6, %cst_10 [1] : vector<32x256xf32> to vector<32xf32>
    %13 = vector.shape_cast %12 : vector<32xf32> to vector<32x1xf32>
    %14 = arith.maximumf %11, %13 : vector<32x1xf32>
    %15 = arith.subf %11, %14 : vector<32x1xf32>
    %16 = math.exp %15 : vector<32x1xf32>
    %c0_11 = arith.constant 0 : index
    %c0_12 = arith.constant 0 : index
    %17 = vector.load %arg8[%c0_11, %c0_12] : memref<32x1xf32, #tpu.memory_space<vmem>>, vector<32x1xf32>
    %18 = arith.mulf %16, %17 : vector<32x1xf32>
    %19 = vector.broadcast %14 : vector<32x1xf32> to vector<32x256xf32>
    %20 = arith.subf %6, %19 : vector<32x256xf32>
    %21 = math.exp %20 : vector<32x256xf32>
    %cst_13 = arith.constant dense<0.000000e+00> : vector<32xf32>
    %22 = vector.multi_reduction <add>, %21, %cst_13 [1] : vector<32x256xf32> to vector<32xf32>
    %23 = vector.shape_cast %22 : vector<32xf32> to vector<32x1xf32>
    %24 = arith.addf %18, %23 : vector<32x1xf32>
    %c0_14 = arith.constant 0 : index
    %c0_15 = arith.constant 0 : index
    %25 = vector.load %arg8[%c0_14, %c0_15] : memref<32x1xf32, #tpu.memory_space<vmem>>, vector<32x1xf32>
    tpu.vector_store %arg8[%c0_14, %c0_15], %24 {strides = array<i32>} : memref<32x1xf32, #tpu.memory_space<vmem>>, vector<32x1xf32>,
    %c0_16 = arith.constant 0 : index
    %c0_17 = arith.constant 0 : index
    %26 = vector.load %arg7[%c0_16, %c0_17] : memref<32x1xf32, #tpu.memory_space<vmem>>, vector<32x1xf32>
    tpu.vector_store %arg7[%c0_16, %c0_17], %14 {strides = array<i32>} : memref<32x1xf32, #tpu.memory_space<vmem>>, vector<32x1xf32>,
    %27 = tpu.iota {dimensions = array<i32: 1>} : vector<32x256xi32>
    %c256_i32 = arith.constant 256 : i32
    %28 = arith.muli %arg0, %c256_i32 : i32
    %29 = vector.broadcast %28 : i32 to vector<32x256xi32>
    %30 = arith.addi %27, %29 : vector<32x256xi32>
    %c0_18 = arith.constant 0 : index
    %c0_19 = arith.constant 0 : index
    %31 = vector.load %arg9[%c0_18, %c0_19] : memref<32x1xf32, #tpu.memory_space<vmem>>, vector<32x1xf32>
    %32 = vector.broadcast %7 : vector<32x1xi32> to vector<32x256xi32>
    %33 = arith.cmpi eq, %30, %32 : vector<32x256xi32>
    %cst_20 = arith.constant 0.000000e+00 : f32
    %34 = vector.broadcast %cst_20 : f32 to vector<32x256xf32>
    %35 = arith.select %33, %6, %34 : vector<32x256xi1>, vector<32x256xf32>
    %cst_21 = arith.constant dense<0.000000e+00> : vector<32xf32>
    %36 = vector.multi_reduction <add>, %35, %cst_21 [1] : vector<32x256xf32> to vector<32xf32>
    %37 = vector.shape_cast %36 : vector<32xf32> to vector<32x1xf32>
    %38 = arith.addf %31, %37 : vector<32x1xf32>
    %c0_22 = arith.constant 0 : index
    %c0_23 = arith.constant 0 : index
    %39 = vector.load %arg9[%c0_22, %c0_23] : memref<32x1xf32, #tpu.memory_space<vmem>>, vector<32x1xf32>
    tpu.vector_store %arg9[%c0_22, %c0_23], %38 {strides = array<i32>} : memref<32x1xf32, #tpu.memory_space<vmem>>, vector<32x1xf32>,
    %c0_i32_24 = arith.constant 0 : i32
    %40 = arith.cmpi eq, %arg0, %c0_i32_24 : i32
    %41 = arith.extui %40 : i1 to i32
    %c0_i32_25 = arith.constant 0 : i32
    %42 = arith.cmpi ne, %41, %c0_i32_25 : i32
    scf.if %42 {
      %c-100_i32 = arith.constant -100 : i32
      %43 = vector.broadcast %c-100_i32 : i32 to vector<32x1xi32>
      %44 = arith.cmpi ne, %7, %43 : vector<32x1xi32>
      %45 = arith.extui %44 : vector<32x1xi1> to vector<32x1xi32>
      %46 = arith.sitofp %45 : vector<32x1xi32> to vector<32x1xf32>
      %c0_26 = arith.constant 0 : index
      %c0_27 = arith.constant 0 : index
      %47 = vector.load %arg7[%c0_26, %c0_27] : memref<32x1xf32, #tpu.memory_space<vmem>>, vector<32x1xf32>
      %c0_28 = arith.constant 0 : index
      %c0_29 = arith.constant 0 : index
      %48 = vector.load %arg8[%c0_28, %c0_29] : memref<32x1xf32, #tpu.memory_space<vmem>>, vector<32x1xf32>
      %49 = math.log %48 : vector<32x1xf32>
      %50 = arith.addf %47, %49 : vector<32x1xf32>
      %c0_30 = arith.constant 0 : index
      %c0_31 = arith.constant 0 : index
      %51 = vector.load %arg9[%c0_30, %c0_31] : memref<32x1xf32, #tpu.memory_space<vmem>>, vector<32x1xf32>
      %52 = arith.subf %50, %51 : vector<32x1xf32>
      %53 = arith.mulf %52, %46 : vector<32x1xf32>
      %cst_32 = arith.constant dense<0.000000e+00> : vector<1xf32>
      %54 = vector.multi_reduction <add>, %53, %cst_32 [0] : vector<32x1xf32> to vector<1xf32>
      %55 = vector.shape_cast %54 : vector<1xf32> to vector<1x1xf32>
      %c0_33 = arith.constant 0 : index
      %c0_34 = arith.constant 0 : index
      %56 = vector.load %arg5[%c0_33, %c0_34] : memref<1x1xf32, #tpu.memory_space<vmem>>, vector<1x1xf32>
      tpu.vector_store %arg5[%c0_33, %c0_34], %55 {strides = array<i32>} : memref<1x1xf32, #tpu.memory_space<vmem>>, vector<1x1xf32>,
      %cst_35 = arith.constant dense<0.000000e+00> : vector<1xf32>
      %57 = vector.multi_reduction <add>, %46, %cst_35 [0] : vector<32x1xf32> to vector<1xf32>
      %58 = vector.shape_cast %57 : vector<1xf32> to vector<1x1xf32>
      %c0_36 = arith.constant 0 : index
      %c0_37 = arith.constant 0 : index
      %59 = vector.load %arg6[%c0_36, %c0_37] : memref<1x1xf32, #tpu.memory_space<vmem>>, vector<1x1xf32>
      tpu.vector_store %arg6[%c0_36, %c0_37], %58 {strides = array<i32>} : memref<1x1xf32, #tpu.memory_space<vmem>>, vector<1x1xf32>,
    } else {
    }
    return
  }
  func.func @transform_0(%arg0: i32) -> (i32, i32) {
    %c0_i32 = arith.constant 0 : i32
    %c0_i32_0 = arith.constant 0 : i32
    %c0_i32_1 = arith.constant 0 : i32
    return %c0_i32, %c0_i32_0 : i32, i32
  }
  func.func @transform_1(%arg0: i32) -> (i32, i32) {
    %c0_i32 = arith.constant 0 : i32
    %c0_i32_0 = arith.constant 0 : i32
    return %c0_i32, %arg0 : i32, i32
  }
  func.func @transform_2(%arg0: i32) -> (i32, i32) {
    %c0_i32 = arith.constant 0 : i32
    %c0_i32_0 = arith.constant 0 : i32
    return %c0_i32, %arg0 : i32, i32
  }
  func.func @transform_3(%arg0: i32) -> (i32, i32) {
    %c0_i32 = arith.constant 0 : i32
    %c0_i32_0 = arith.constant 0 : i32
    %c0_i32_1 = arith.constant 0 : i32
    return %c0_i32, %c0_i32_0 : i32, i32
  }
  func.func @transform_4(%arg0: i32) -> (i32, i32) {
    %c0_i32 = arith.constant 0 : i32
    %c0_i32_0 = arith.constant 0 : i32
    %c0_i32_1 = arith.constant 0 : i32
    return %c0_i32, %c0_i32_0 : i32, i32
  }
  func.func @transform_5(%arg0: i32) -> (i32, i32) {
    %c0_i32 = arith.constant 0 : i32
    %c0_i32_0 = arith.constant 0 : i32
    %c0_i32_1 = arith.constant 0 : i32
    return %c0_i32, %c0_i32_0 : i32, i32
  }
}

</mosaic_0001>

<llo_original>
// kernel: vqa_forward.3
$region0: #{vqa_forward.3}
  #allocation0 [shape = 'u32[]', space=smem, size = 0x4, offset = 0x4, fixed_abs, tag = 'smem constant byte address 0x4 - core index']
  #allocation1 [shape = 'u32[144,128]{1,0:T(1,128)}', space=vmem, size = 0x12000, scoped, tag = 'internal scratch']
  #allocation2 [shape = 'f32[32,1]{1,0:T(8,128)}', space=vmem, size = 0x4000, scoped, tag = 'scratch operand']
  #allocation3 [shape = 'f32[32,1]{1,0:T(8,128)}', space=vmem, size = 0x4000, scoped, tag = 'scratch operand']
  #allocation4 [shape = 'f32[32,1]{1,0:T(8,128)}', space=vmem, size = 0x4000, scoped, tag = 'scratch operand']
  %s0 = inlined_call_operand.vmem [shape: f32[32,128], index: 0, kind: input, shape index: {}]
  %s1 = inlined_call_operand.vmem [shape: bf16[128,256], index: 1, kind: input, shape index: {}]
  %s2 = inlined_call_operand.vmem [shape: f32[1,256], index: 2, kind: input, shape index: {}]
  %s3 = inlined_call_operand.vmem [shape: s32[32,1], index: 3, kind: input, shape index: {}]
  %s4 = inlined_call_operand.hbm [shape: f32[1,1], index: 4, kind: output, shape index: {0}]
  %s5 = inlined_call_operand.hbm [shape: f32[1,1], index: 5, kind: output, shape index: {1}]
  %6 = xla_tuple %s4, %s5
  %s7 = sld [smem:[#allocation0]]
  $region42: #{vqa_forward.3} parent=0
    _
  %s9 = ssub.s32 1, %s7
  %s10 = scalar_select 0, %s9, %s7
  $region1: #{vqa_forward.3} parent=0
    #allocation5 [shape = 'u8[512]{0}', space=vmem, size = 0x400, scoped, tag = 'output window, operand 0, single buffered']
    #allocation6 [shape = 's32[1]{0}', space=sflag, size = 0x4, scoped, tag = 'scoped memory for vqa_forward.3']
    #allocation7 [shape = 'u8[512]{0}', space=vmem, size = 0x400, scoped, tag = 'output window, operand 1, single buffered']
    #allocation8 [shape = 's32[1]{0}', space=sflag, size = 0x4, scoped, tag = 'scoped memory for vqa_forward.3']
    %11 = vsyncpa [#allocation6], 0
    %12 = vsyncpa [#allocation8], 0
    // Predicated region
    $region2: #{vqa_forward.3} parent=1 // pred_check
      _
    $region3: #{vqa_forward.3} parent=1 // pred_check_branch
      %14 = sbr.rel (0) target = $region5
    $region4: #{vqa_forward.3} parent=1 // pred_region
      _
    $region5: #{vqa_forward.3} parent=1 // pred_fallthru
      _
    // Predicated region
    $region6: #{vqa_forward.3} parent=1 // pred_check
      _
    $region7: #{vqa_forward.3} parent=1 // pred_check_branch
      %16 = sbr.rel (0) target = $region9
    $region8: #{vqa_forward.3} parent=1 // pred_region
      _
    $region9: #{vqa_forward.3} parent=1 // pred_fallthru
      _
    // Predicated region
    $region10: #{vqa_forward.3} parent=1 // pred_check
      _
    $region11: #{vqa_forward.3} parent=1 // pred_check_branch
      %18 = sbr.rel (0) target = $region13
    $region12: #{vqa_forward.3} parent=1 // pred_region
      _
    $region13: #{vqa_forward.3} parent=1 // pred_fallthru
      _
    // Predicated region
    $region14: #{vqa_forward.3} parent=1 // pred_check
      _
    $region15: #{vqa_forward.3} parent=1 // pred_check_branch
      %20 = sbr.rel (0) target = $region17
    $region16: #{vqa_forward.3} parent=1 // pred_region
      _
    $region17: #{vqa_forward.3} parent=1 // pred_fallthru
      _
    %v22 = vld [vmem:[%s0] sm:$0xff]
    %v23 = vld [vmem:[%s0 + $0x8] sm:$0xff]
    %v24 = vld [vmem:[%s0 + $0x10] sm:$0xff]
    %v25 = vld [vmem:[%s0 + $0x18] sm:$0xff]
    %v26 = vpack.c.bf16 %v23, %v22
    %v27 = vpack.c.bf16 %v25, %v24
    %v28 = vld [vmem:[%s1] sm:$0xff]
    %v29 = vld [vmem:[%s1 + $0x8] sm:$0xff]
    %v30 = vld [vmem:[%s1 + $0x10] sm:$0xff]
    %v31 = vld [vmem:[%s1 + $0x18] sm:$0xff]
    %v32 = vld [vmem:[%s1 + $0x20] sm:$0xff]
    %v33 = vld [vmem:[%s1 + $0x28] sm:$0xff]
    %v34 = vld [vmem:[%s1 + $0x30] sm:$0xff]
    %v35 = vld [vmem:[%s1 + $0x38] sm:$0xff]
    %v36 = vld [vmem:[%s1 + $0x40] sm:$0xff]
    %v37 = vld [vmem:[%s1 + $0x48] sm:$0xff]
    %v38 = vld [vmem:[%s1 + $0x50] sm:$0xff]
    %v39 = vld [vmem:[%s1 + $0x58] sm:$0xff]
    %v40 = vld [vmem:[%s1 + $0x60] sm:$0xff]
    %v41 = vld [vmem:[%s1 + $0x68] sm:$0xff]
    %v42 = vld [vmem:[%s1 + $0x70] sm:$0xff]
    %v43 = vld [vmem:[%s1 + $0x78] sm:$0xff]
    %v44 = vld [vmem:[%s2] sm:$0x3]
    %v46 = vlaneseq
    %v47 = vshrl.u32 %v46, 7
    %v48 = vsub.s32 0, %v47
    %v49 = vrot.slane %v44, %v48
    %v50 = vlaneseq
    %v51 = vshrl.u32 %v50, 7
    %v52 = vsub.s32 1, %v51
    %v53 = vrot.slane %v44, %v52
    %v72 = vunpack.c.l.b16 %v28
    %v73 = vunpack.c.h.b16 %v28
    %v74 = vunpack.c.l.b16 %v29
    %v75 = vunpack.c.h.b16 %v29
    %v76 = vunpack.c.l.b16 %v30
    %v77 = vunpack.c.h.b16 %v30
    %v78 = vunpack.c.l.b16 %v31
    %v79 = vunpack.c.h.b16 %v31
    %v80 = vunpack.c.l.b16 %v32
    %v81 = vunpack.c.h.b16 %v32
    %v82 = vunpack.c.l.b16 %v33
    %v83 = vunpack.c.h.b16 %v33
    %v84 = vunpack.c.l.b16 %v34
    %v85 = vunpack.c.h.b16 %v34
    %v86 = vunpack.c.l.b16 %v35
    %v87 = vunpack.c.h.b16 %v35
    %v88 = vunpack.c.l.b16 %v36
    %v89 = vunpack.c.h.b16 %v36
    %v90 = vunpack.c.l.b16 %v37
    %v91 = vunpack.c.h.b16 %v37
    %v92 = vunpack.c.l.b16 %v38
    %v93 = vunpack.c.h.b16 %v38
    %v94 = vunpack.c.l.b16 %v39
    %v95 = vunpack.c.h.b16 %v39
    %v96 = vunpack.c.l.b16 %v40
    %v97 = vunpack.c.h.b16 %v40
    %v98 = vunpack.c.l.b16 %v41
    %v99 = vunpack.c.h.b16 %v41
    %v100 = vunpack.c.l.b16 %v42
    %v101 = vunpack.c.h.b16 %v42
    %v102 = vunpack.c.l.b16 %v43
    %v103 = vunpack.c.h.b16 %v43
    %v104 = vpack.c.b16 %v74, %v72
    %v105 = vpack.c.b16 %v75, %v73
    %v106 = vpack.c.b16 %v78, %v76
    %v107 = vpack.c.b16 %v79, %v77
    %v108 = vpack.c.b16 %v82, %v80
    %v109 = vpack.c.b16 %v83, %v81
    %v110 = vpack.c.b16 %v86, %v84
    %v111 = vpack.c.b16 %v87, %v85
    %v112 = vpack.c.b16 %v90, %v88
    %v113 = vpack.c.b16 %v91, %v89
    %v114 = vpack.c.b16 %v94, %v92
    %v115 = vpack.c.b16 %v95, %v93
    %v116 = vpack.c.b16 %v98, %v96
    %v117 = vpack.c.b16 %v99, %v97
    %v118 = vpack.c.b16 %v102, %v100
    %v119 = vpack.c.b16 %v103, %v101
    %136 = vmatprep.subr.bf16.mxu0 %v105
    %137 = vmatpush1.bf16.msra.mxu0 %v104
    %138 = vmatprep.subr.bf16.mxu0 %v107
    %139 = vmatpush1.bf16.msra.mxu0 %v106
    %140 = vmatprep.subr.bf16.mxu0 %v109
    %141 = vmatpush1.bf16.msra.mxu0 %v108
    %142 = vmatprep.subr.bf16.mxu0 %v111
    %143 = vmatpush1.bf16.msra.mxu0 %v110
    %144 = vmatprep.subr.bf16.mxu0 %v113
    %145 = vmatpush1.bf16.msra.mxu0 %v112
    %146 = vmatprep.subr.bf16.mxu0 %v115
    %147 = vmatpush1.bf16.msra.mxu0 %v114
    %148 = vmatprep.subr.bf16.mxu0 %v117
    %149 = vmatpush1.bf16.msra.mxu0 %v116
    %150 = vmatprep.subr.bf16.mxu0 %v119
    %151 = vmatpush1.bf16.msra.mxu0 %v118
    %152 = vmatprep.subr.bf16.mxu0 0
    %153 = vmatpush1.bf16.msra.mxu0 0
    %154 = vmatprep.subr.bf16.mxu0 0
    %155 = vmatpush1.bf16.msra.mxu0 0
    %156 = vmatprep.subr.bf16.mxu0 0
    %157 = vmatpush1.bf16.msra.mxu0 0
    %158 = vmatprep.subr.bf16.mxu0 0
    %159 = vmatpush1.bf16.msra.mxu0 0
    %160 = vmatprep.subr.bf16.mxu0 0
    %161 = vmatpush1.bf16.msra.mxu0 0
    %162 = vmatprep.subr.bf16.mxu0 0
    %163 = vmatpush1.bf16.msra.mxu0 0
    %164 = vmatprep.subr.bf16.mxu0 0
    %165 = vmatpush1.bf16.msra.mxu0 0
    %166 = vmatprep.subr.bf16.mxu0 0
    %167 = vmatpush1.bf16.msra.mxu0 0
    %168 = vmatprep.mubr.bf16.mxu0 0
    %169 = vmatmul.mubr.bf16.gmra.mrb[0].mxu0 %v26
    %v170 = vpop.f32.mrb[0].mxu0
    %v171 = vadd.f32 %v49, %v170
    %v172 = vpop.f32.mrb[0].mxu0
    %v173 = vadd.f32 %v53, %v172
    %v174 = vpop.f32.mrb[0].mxu0
    %v175 = vadd.f32 %v49, %v174
    %v176 = vpop.f32.mrb[0].mxu0
    %v177 = vadd.f32 %v53, %v176
    %178 = vmatprep.mubr.bf16.mxu0 0
    %179 = vmatmul.mubr.bf16.gmra.mrb[0].mxu0 %v27
    %v180 = vpop.f32.mrb[0].mxu0
    %v181 = vadd.f32 %v49, %v180
    %v182 = vpop.f32.mrb[0].mxu0
    %v183 = vadd.f32 %v53, %v182
    %v184 = vpop.f32.mrb[0].mxu0
    %v185 = vadd.f32 %v49, %v184
    %v186 = vpop.f32.mrb[0].mxu0
    %v187 = vadd.f32 %v53, %v186
    %188 = vdwg.mxu0
    %v189 = vld [vmem:[%s3] sm:$0xff]
    %v190 = vld [vmem:[%s3 + $0x8] sm:$0xff]
    %v191 = vld [vmem:[%s3 + $0x10] sm:$0xff]
    %v192 = vld [vmem:[%s3 + $0x18] sm:$0xff]
    %p193 = scmp.eq.s32.totalorder 0, 0
    // Predicated region
    $region18: #{vqa_forward.3} parent=1 // pred_check
      %p194 = pneg %p193
    $region19: #{vqa_forward.3} parent=1 // pred_check_branch
      %196 = sbr.rel (%p194) target = $region21
    $region20: #{vqa_forward.3} parent=1 // pred_region
      %vm197 = vcmask 7168
      %198 = vst.msk [vmem:[#allocation2] sm:$0xff] %vm197, -inf
      %199 = vst.msk [vmem:[#allocation2 + $0x8] sm:$0xff] %vm197, -inf
      %200 = vst.msk [vmem:[#allocation2 + $0x10] sm:$0xff] %vm197, -inf
      %201 = vst.msk [vmem:[#allocation2 + $0x18] sm:$0xff] %vm197, -inf
      %202 = vst.msk [vmem:[#allocation3] sm:$0xff] %vm197, 0.0
      %203 = vst.msk [vmem:[#allocation3 + $0x8] sm:$0xff] %vm197, 0.0
      %204 = vst.msk [vmem:[#allocation3 + $0x10] sm:$0xff] %vm197, 0.0
      %205 = vst.msk [vmem:[#allocation3 + $0x18] sm:$0xff] %vm197, 0.0
      %206 = vst.msk [vmem:[#allocation4] sm:$0xff] %vm197, 0.0
      %207 = vst.msk [vmem:[#allocation4 + $0x8] sm:$0xff] %vm197, 0.0
      %208 = vst.msk [vmem:[#allocation4 + $0x10] sm:$0xff] %vm197, 0.0
      %209 = vst.msk [vmem:[#allocation4 + $0x18] sm:$0xff] %vm197, 0.0
    $region21: #{vqa_forward.3} parent=1 // pred_fallthru
      _
    %v210 = vld [vmem:[#allocation2] sm:$0xff]
    %v211 = vld [vmem:[#allocation2 + $0x8] sm:$0xff]
    %v212 = vld [vmem:[#allocation2 + $0x10] sm:$0xff]
    %v213 = vld [vmem:[#allocation2 + $0x18] sm:$0xff]
    %v214 = vmax.f32 %v171, %v173
    %215 = vmax.xlane.f32.xlu0 %v214
    %v216 = vpop.xlane.xlu0 %215
    %v217 = vmax.f32 %v175, %v177
    %218 = vmax.xlane.f32.xlu0 %v217
    %v219 = vpop.xlane.xlu0 %218
    %v220 = vmax.f32 %v181, %v183
    %221 = vmax.xlane.f32.xlu0 %v220
    %v222 = vpop.xlane.xlu0 %221
    %v223 = vmax.f32 %v185, %v187
    %224 = vmax.xlane.f32.xlu0 %v223
    %v225 = vpop.xlane.xlu0 %224
    %v226 = vmax.f32 %v210, %v216
    %v227 = vmax.f32 %v211, %v219
    %v228 = vmax.f32 %v212, %v222
    %v229 = vmax.f32 %v213, %v225
    %v230 = vsub.f32 %v210, %v226
    %v231 = vsub.f32 %v211, %v227
    %v232 = vsub.f32 %v212, %v228
    %v233 = vsub.f32 %v213, %v229
    %v234 = vmul.f32 %v230, 1.442695
    %v235 = vpow.pop %v234
    %v236 = vmul.f32 %v231, 1.442695
    %v237 = vpow.pop %v236
    %v238 = vmul.f32 %v232, 1.442695
    %v239 = vpow.pop %v238
    %v240 = vmul.f32 %v233, 1.442695
    %v241 = vpow.pop %v240
    %v242 = vld [vmem:[#allocation3] sm:$0xff]
    %v243 = vld [vmem:[#allocation3 + $0x8] sm:$0xff]
    %v244 = vld [vmem:[#allocation3 + $0x10] sm:$0xff]
    %v245 = vld [vmem:[#allocation3 + $0x18] sm:$0xff]
    %v246 = vmul.f32 %v235, %v242
    %v247 = vmul.f32 %v237, %v243
    %v248 = vmul.f32 %v239, %v244
    %v249 = vmul.f32 %v241, %v245
    %251 = vset.pattern.permute.xlu0 0
    %252 = vperm.xlu0 %251, %v226
    %v253 = vpop.permute.xlu0 %252
    %256 = vset.pattern.permute.xlu0 0
    %257 = vperm.xlu0 %256, %v227
    %v258 = vpop.permute.xlu0 %257
    %261 = vset.pattern.permute.xlu0 0
    %262 = vperm.xlu0 %261, %v228
    %v263 = vpop.permute.xlu0 %262
    %266 = vset.pattern.permute.xlu0 0
    %267 = vperm.xlu0 %266, %v229
    %v268 = vpop.permute.xlu0 %267
    %v270 = vsub.f32 %v171, %v253
    %v271 = vsub.f32 %v173, %v253
    %v272 = vsub.f32 %v175, %v258
    %v273 = vsub.f32 %v177, %v258
    %v274 = vsub.f32 %v181, %v263
    %v275 = vsub.f32 %v183, %v263
    %v276 = vsub.f32 %v185, %v268
    %v277 = vsub.f32 %v187, %v268
    %v278 = vmul.f32 %v270, 1.442695
    %v279 = vpow.pop %v278
    %v280 = vmul.f32 %v271, 1.442695
    %v281 = vpow.pop %v280
    %v282 = vmul.f32 %v272, 1.442695
    %v283 = vpow.pop %v282
    %v284 = vmul.f32 %v273, 1.442695
    %v285 = vpow.pop %v284
    %v286 = vmul.f32 %v274, 1.442695
    %v287 = vpow.pop %v286
    %v288 = vmul.f32 %v275, 1.442695
    %v289 = vpow.pop %v288
    %v290 = vmul.f32 %v276, 1.442695
    %v291 = vpow.pop %v290
    %v292 = vmul.f32 %v277, 1.442695
    %v293 = vpow.pop %v292
    %v294 = vadd.f32 %v279, %v281
    %295 = vadd.xlane.f32.xlu0 %v294
    %v296 = vpop.xlane.xlu0 %295
    %v297 = vadd.f32 %v283, %v285
    %298 = vadd.xlane.f32.xlu0 %v297
    %v299 = vpop.xlane.xlu0 %298
    %v300 = vadd.f32 %v287, %v289
    %301 = vadd.xlane.f32.xlu0 %v300
    %v302 = vpop.xlane.xlu0 %301
    %v303 = vadd.f32 %v291, %v293
    %304 = vadd.xlane.f32.xlu0 %v303
    %v305 = vpop.xlane.xlu0 %304
    %v306 = vadd.f32 %v246, %v296
    %v307 = vadd.f32 %v247, %v299
    %v308 = vadd.f32 %v248, %v302
    %v309 = vadd.f32 %v249, %v305
    %vm310 = vcmask 7168
    %311 = vst.msk [vmem:[#allocation3] sm:$0xff] %vm310, %v306
    %312 = vst.msk [vmem:[#allocation3 + $0x8] sm:$0xff] %vm310, %v307
    %313 = vst.msk [vmem:[#allocation3 + $0x10] sm:$0xff] %vm310, %v308
    %314 = vst.msk [vmem:[#allocation3 + $0x18] sm:$0xff] %vm310, %v309
    %315 = vst.msk [vmem:[#allocation2] sm:$0xff] %vm310, %v226
    %316 = vst.msk [vmem:[#allocation2 + $0x8] sm:$0xff] %vm310, %v227
    %317 = vst.msk [vmem:[#allocation2 + $0x10] sm:$0xff] %vm310, %v228
    %318 = vst.msk [vmem:[#allocation2 + $0x18] sm:$0xff] %vm310, %v229
    %v319 = vlaneseq
    %v320 = vand.u32 %v319, 127
    %v321 = vadd.s32 %v320, 128
    %s322 = smul.u32 0, 256
    %v323 = vstv %s322
    %v324 = vadd.s32 %v320, %v323
    %v325 = vadd.s32 %v321, %v323
    %v326 = vld [vmem:[#allocation4] sm:$0xff]
    %v327 = vld [vmem:[#allocation4 + $0x8] sm:$0xff]
    %v328 = vld [vmem:[#allocation4 + $0x10] sm:$0xff]
    %v329 = vld [vmem:[#allocation4 + $0x18] sm:$0xff]
    %330 = vset.pattern.permute.xlu0 0
    %331 = vperm.xlu0 %330, %v189
    %v332 = vpop.permute.xlu0 %331
    %333 = vset.pattern.permute.xlu0 0
    %334 = vperm.xlu0 %333, %v190
    %v335 = vpop.permute.xlu0 %334
    %336 = vset.pattern.permute.xlu0 0
    %337 = vperm.xlu0 %336, %v191
    %v338 = vpop.permute.xlu0 %337
    %339 = vset.pattern.permute.xlu0 0
    %340 = vperm.xlu0 %339, %v192
    %v341 = vpop.permute.xlu0 %340
    %vm342 = vcmp.eq.s32.totalorder %v324, %v332
    %vm343 = vcmp.eq.s32.totalorder %v325, %v332
    %vm344 = vcmp.eq.s32.totalorder %v324, %v335
    %vm345 = vcmp.eq.s32.totalorder %v325, %v335
    %vm346 = vcmp.eq.s32.totalorder %v324, %v338
    %vm347 = vcmp.eq.s32.totalorder %v325, %v338
    %vm348 = vcmp.eq.s32.totalorder %v324, %v341
    %vm349 = vcmp.eq.s32.totalorder %v325, %v341
    %v350 = vsel %vm342, %v171, 0.0
    %v351 = vsel %vm343, %v173, 0.0
    %v352 = vsel %vm344, %v175, 0.0
    %v353 = vsel %vm345, %v177, 0.0
    %v354 = vsel %vm346, %v181, 0.0
    %v355 = vsel %vm347, %v183, 0.0
    %v356 = vsel %vm348, %v185, 0.0
    %v357 = vsel %vm349, %v187, 0.0
    %v358 = vadd.f32 %v350, %v351
    %359 = vadd.xlane.f32.xlu0 %v358
    %v360 = vpop.xlane.xlu0 %359
    %v361 = vadd.f32 %v352, %v353
    %362 = vadd.xlane.f32.xlu0 %v361
    %v363 = vpop.xlane.xlu0 %362
    %v364 = vadd.f32 %v354, %v355
    %365 = vadd.xlane.f32.xlu0 %v364
    %v366 = vpop.xlane.xlu0 %365
    %v367 = vadd.f32 %v356, %v357
    %368 = vadd.xlane.f32.xlu0 %v367
    %v369 = vpop.xlane.xlu0 %368
    %v370 = vadd.f32 %v326, %v360
    %v371 = vadd.f32 %v327, %v363
    %v372 = vadd.f32 %v328, %v366
    %v373 = vadd.f32 %v329, %v369
    %374 = vst.msk [vmem:[#allocation4] sm:$0xff] %vm310, %v370
    %375 = vst.msk [vmem:[#allocation4 + $0x8] sm:$0xff] %vm310, %v371
    %376 = vst.msk [vmem:[#allocation4 + $0x10] sm:$0xff] %vm310, %v372
    %377 = vst.msk [vmem:[#allocation4 + $0x18] sm:$0xff] %vm310, %v373
    // Predicated region
    $region22: #{vqa_forward.3} parent=1 // pred_check
      %p378 = pneg %p193
    $region23: #{vqa_forward.3} parent=1 // pred_check_branch
      %380 = sbr.rel (%p378) target = $region25
    $region24: #{vqa_forward.3} parent=1 // pred_region
      %vm381 = vcmp.ne.s32.totalorder %v189, 4294967196
      %vm382 = vcmp.ne.s32.totalorder %v190, 4294967196
      %vm383 = vcmp.ne.s32.totalorder %v191, 4294967196
      %vm384 = vcmp.ne.s32.totalorder %v192, 4294967196
      %v385 = vsel %vm381, 1, 0
      %v386 = vsel %vm382, 1, 0
      %v387 = vsel %vm383, 1, 0
      %v388 = vsel %vm384, 1, 0
      %v389 = vcvt.s32.f32 %v385
      %v390 = vcvt.s32.f32 %v386
      %v391 = vcvt.s32.f32 %v387
      %v392 = vcvt.s32.f32 %v388
      %v393 = vld [vmem:[#allocation2] sm:$0xff]
      %v394 = vld [vmem:[#allocation2 + $0x8] sm:$0xff]
      %v395 = vld [vmem:[#allocation2 + $0x10] sm:$0xff]
      %v396 = vld [vmem:[#allocation2 + $0x18] sm:$0xff]
      %v397 = vld [vmem:[#allocation3] sm:$0xff]
      %v398 = vld [vmem:[#allocation3 + $0x8] sm:$0xff]
      %v399 = vld [vmem:[#allocation3 + $0x10] sm:$0xff]
      %v400 = vld [vmem:[#allocation3 + $0x18] sm:$0xff]
      %v401 = vlog2.pop %v397
      %v402 = vmul.f32 %v401, 0.6931472
      %v403 = vlog2.pop %v398
      %v404 = vmul.f32 %v403, 0.6931472
      %v405 = vlog2.pop %v399
      %v406 = vmul.f32 %v405, 0.6931472
      %v407 = vlog2.pop %v400
      %v408 = vmul.f32 %v407, 0.6931472
      %v409 = vadd.f32 %v393, %v402
      %v410 = vadd.f32 %v394, %v404
      %v411 = vadd.f32 %v395, %v406
      %v412 = vadd.f32 %v396, %v408
      %v413 = vld [vmem:[#allocation4] sm:$0xff]
      %v414 = vld [vmem:[#allocation4 + $0x8] sm:$0xff]
      %v415 = vld [vmem:[#allocation4 + $0x10] sm:$0xff]
      %v416 = vld [vmem:[#allocation4 + $0x18] sm:$0xff]
      %v417 = vsub.f32 %v409, %v413
      %v418 = vsub.f32 %v410, %v414
      %v419 = vsub.f32 %v411, %v415
      %v420 = vsub.f32 %v412, %v416
      %v421 = vmul.f32 %v417, %v389
      %v422 = vmul.f32 %v418, %v390
      %v423 = vmul.f32 %v419, %v391
      %v424 = vmul.f32 %v420, %v392
      %v425 = vsel %vm310, %v421, 0.0
      %v426 = vsel %vm310, %v422, 0.0
      %v427 = vadd.f32 %v425, %v426
      %v428 = vsel %vm310, %v423, 0.0
      %v429 = vadd.f32 %v427, %v428
      %v430 = vsel %vm310, %v424, 0.0
      %v431 = vadd.f32 %v429, %v430
      %v432 = vrot.slane %v431, 4
      %v433 = vadd.f32 %v431, %v432
      %v434 = vrot.slane %v433, 2
      %v435 = vadd.f32 %v433, %v434
      %v436 = vrot.slane %v435, 1
      %v437 = vadd.f32 %v435, %v436
      %vm438 = vcmask 0
      %439 = vst.msk [vmem:[#allocation5] sm:$0x1] %vm438, %v437
      %v440 = vsel %vm310, %v389, 0.0
      %v441 = vsel %vm310, %v390, 0.0
      %v442 = vadd.f32 %v440, %v441
      %v443 = vsel %vm310, %v391, 0.0
      %v444 = vadd.f32 %v442, %v443
      %v445 = vsel %vm310, %v392, 0.0
      %v446 = vadd.f32 %v444, %v445
      %v447 = vrot.slane %v446, 4
      %v448 = vadd.f32 %v446, %v447
      %v449 = vrot.slane %v448, 2
      %v450 = vadd.f32 %v448, %v449
      %v451 = vrot.slane %v450, 1
      %v452 = vadd.f32 %v450, %v451
      %453 = vst.msk [vmem:[#allocation7] sm:$0x1] %vm438, %v452
    $region25: #{vqa_forward.3} parent=1 // pred_fallthru
      _
    // Predicated region
    $region26: #{vqa_forward.3} parent=1 // pred_check
      _
    $region27: #{vqa_forward.3} parent=1 // pred_check_branch
      %455 = sbr.rel (0) target = $region29
    $region28: #{vqa_forward.3} parent=1 // pred_region
      %s457 = ssub.s32 16, 16
      %458 = vsyncadd [#allocation6], %s457
      %s460 = sshll.u32 [#allocation5], 4
      %s461 = int_to_ptr.vmem [resolvable:$true] %s460
      %463 = dma.vmem_to_hbm [thread:$0]  %s461, 16, %s4, [#allocation6]
    $region29: #{vqa_forward.3} parent=1 // pred_fallthru
      _
    // Predicated region
    $region30: #{vqa_forward.3} parent=1 // pred_check
      _
    $region31: #{vqa_forward.3} parent=1 // pred_check_branch
      %465 = sbr.rel (0) target = $region33
    $region32: #{vqa_forward.3} parent=1 // pred_region
      %s467 = ssub.s32 16, 16
      %468 = vsyncadd [#allocation8], %s467
      %s470 = sshll.u32 [#allocation7], 4
      %s471 = int_to_ptr.vmem [resolvable:$true] %s470
      %473 = dma.vmem_to_hbm [thread:$0]  %s471, 16, %s5, [#allocation8]
    $region33: #{vqa_forward.3} parent=1 // pred_fallthru
      _
    // Predicated region
    $region34: #{vqa_forward.3} parent=1 // pred_check
      _
    $region35: #{vqa_forward.3} parent=1 // pred_check_branch
      %475 = sbr.rel (0) target = $region37
    $region36: #{vqa_forward.3} parent=1 // pred_region
      %476 = dma.done [#allocation6], 16
    $region37: #{vqa_forward.3} parent=1 // pred_fallthru
      _
    // Predicated region
    $region38: #{vqa_forward.3} parent=1 // pred_check
      _
    $region39: #{vqa_forward.3} parent=1 // pred_check_branch
      %478 = sbr.rel (0) target = $region41
    $region40: #{vqa_forward.3} parent=1 // pred_region
      %479 = dma.done [#allocation8], 16
    $region41: #{vqa_forward.3} parent=1 // pred_fallthru
      _
    %480 = vsyncpa [#allocation6], 1
    %481 = vsyncpa [#allocation8], 1

// kernel: vqa_forward.2
$region0: #{vqa_forward.2}
  #allocation0 [shape = 'u32[]', space=smem, size = 0x4, offset = 0x4, fixed_abs, tag = 'smem constant byte address 0x4 - core index']
  #allocation1 [shape = 'u32[144,128]{1,0:T(1,128)}', space=vmem, size = 0x12000, scoped, tag = 'internal scratch']
  %s0 = inlined_call_operand.vmem [shape: f32[8,192], index: 0, kind: input, shape index: {}]
  %s1 = inlined_call_operand.vmem [shape: f32[8,128], index: 1, kind: input, shape index: {}]
  %s2 = inlined_call_operand.hbm [shape: bf16[192,128], index: 2, kind: input, shape index: {}]
  %s3 = inlined_call_operand.vmem [shape: f32[1,128], index: 3, kind: input, shape index: {}]
  %s4 = inlined_call_operand.hbm [shape: f32[1,128], index: 4, kind: input, shape index: {}]
  %s5 = inlined_call_operand.hbm [shape: f32[1,128], index: 5, kind: input, shape index: {}]
  %s6 = inlined_call_operand.vmem [shape: bf16[2,128,384], index: 6, kind: input, shape index: {}]
  %s7 = inlined_call_operand.hbm [shape: f32[2,1,384], index: 7, kind: input, shape index: {}]
  %s8 = inlined_call_operand.hbm [shape: bf16[2,128,128], index: 8, kind: input, shape index: {}]
  %s9 = inlined_call_operand.hbm [shape: f32[2,1,128], index: 9, kind: input, shape index: {}]
  %s10 = inlined_call_operand.hbm [shape: bf16[2,128,128], index: 10, kind: input, shape index: {}]
  %s11 = inlined_call_operand.hbm [shape: f32[2,1,128], index: 11, kind: input, shape index: {}]
  %s12 = inlined_call_operand.vmem [shape: bf16[2,128,256], index: 12, kind: input, shape index: {}]
  %s13 = inlined_call_operand.hbm [shape: f32[2,1,256], index: 13, kind: input, shape index: {}]
  %s14 = inlined_call_operand.hbm [shape: bf16[2,128,128], index: 14, kind: input, shape index: {}]
  %s15 = inlined_call_operand.hbm [shape: f32[2,1,128], index: 15, kind: input, shape index: {}]
  %s16 = inlined_call_operand.vmem [shape: bf16[2,128,256], index: 16, kind: input, shape index: {}]
  %s17 = inlined_call_operand.hbm [shape: f32[2,1,256], index: 17, kind: input, shape index: {}]
  %s18 = inlined_call_operand.hbm [shape: bf16[2,256,128], index: 18, kind: input, shape index: {}]
  %s19 = inlined_call_operand.hbm [shape: f32[2,1,128], index: 19, kind: input, shape index: {}]
  %s20 = inlined_call_operand.hbm [shape: f32[2,3,1,128], index: 20, kind: input, shape index: {}]
  %s21 = inlined_call_operand.hbm [shape: f32[2,3,1,128], index: 21, kind: input, shape index: {}]
  %s22 = inlined_call_operand.hbm [shape: f32[1,128], index: 22, kind: input, shape index: {}]
  %s23 = inlined_call_operand.hbm [shape: f32[1,128], index: 23, kind: input, shape index: {}]
  %s24 = inlined_call_operand.hbm [shape: bf16[128,128], index: 24, kind: input, shape index: {}]
  %s25 = inlined_call_operand.hbm [shape: f32[1,128], index: 25, kind: input, shape index: {}]
  %s26 = inlined_call_operand.hbm [shape: bf16[128,128], index: 26, kind: input, shape index: {}]
  %s27 = inlined_call_operand.hbm [shape: f32[1,128], index: 27, kind: input, shape index: {}]
  %s28 = inlined_call_operand.vmem [shape: f32[16,128], index: 28, kind: output, shape index: {}]
  %s29 = sld [smem:[#allocation0]]
  $region210: #{vqa_forward.2} parent=0
    _
  %s31 = ssub.s32 1, %s29
  %s32 = scalar_select 0, %s31, %s29
  $region1: #{vqa_forward.2} parent=0
    #allocation2 [shape = 'u8[49152]{0}', space=vmem, size = 0xc000, scoped, tag = 'input window, operand 2, single buffered']
    #allocation3 [shape = 's32[1]{0}', space=sflag, size = 0x4, scoped, tag = 'scoped memory for vqa_forward.2']
    #allocation4 [shape = 'u8[512]{0}', space=vmem, size = 0x400, scoped, tag = 'input window, operand 4, single buffered']
    #allocation5 [shape = 's32[1]{0}', space=sflag, size = 0x4, scoped, tag = 'scoped memory for vqa_forward.2']
    #allocation6 [shape = 'u8[512]{0}', space=vmem, size = 0x400, scoped, tag = 'input window, operand 5, single buffered']
    #allocation7 [shape = 'u8[3072]{0}', space=vmem, size = 0xc00, scoped, tag = 'input window, operand 7, single buffered']
    #allocation8 [shape = 's32[1]{0}', space=sflag, size = 0x4, scoped, tag = 'scoped memory for vqa_forward.2']
    #allocation9 [shape = 'u8[65536]{0}', space=vmem, size = 0x10000, scoped, tag = 'input window, operand 8, single buffered']
    #allocation10 [shape = 'u8[1024]{0}', space=vmem, size = 0x400, scoped, tag = 'input window, operand 9, single buffered']
    #allocation11 [shape = 's32[1]{0}', space=sflag, size = 0x4, scoped, tag = 'scoped memory for vqa_forward.2']
    #allocation12 [shape = 'u8[65536]{0}', space=vmem, size = 0x10000, scoped, tag = 'input window, operand 10, single buffered']
    #allocation13 [shape = 'u8[1024]{0}', space=vmem, size = 0x400, scoped, tag = 'input window, operand 11, single buffered']
    #allocation14 [shape = 's32[1]{0}', space=sflag, size = 0x4, scoped, tag = 'scoped memory for vqa_forward.2']
    #allocation15 [shape = 'u8[2048]{0}', space=vmem, size = 0x800, scoped, tag = 'input window, operand 13, single buffered']
    #allocation16 [shape = 'u8[65536]{0}', space=vmem, size = 0x10000, scoped, tag = 'input window, operand 14, single buffered']
    #allocation17 [shape = 's32[1]{0}', space=sflag, size = 0x4, scoped, tag = 'scoped memory for vqa_forward.2']
    #allocation18 [shape = 'u8[1024]{0}', space=vmem, size = 0x400, scoped, tag = 'input window, operand 15, single buffered']
    #allocation19 [shape = 'u8[2048]{0}', space=vmem, size = 0x800, scoped, tag = 'input window, operand 17, single buffered']
    #allocation20 [shape = 's32[1]{0}', space=sflag, size = 0x4, scoped, tag = 'scoped memory for vqa_forward.2']
    #allocation21 [shape = 'u8[131072]{0}', space=vmem, size = 0x20000, scoped, tag = 'input window, operand 18, single buffered']
    #allocation22 [shape = 'u8[1024]{0}', space=vmem, size = 0x400, scoped, tag = 'input window, operand 19, single buffered']
    #allocation23 [shape = 's32[1]{0}', space=sflag, size = 0x4, scoped, tag = 'scoped memory for vqa_forward.2']
    #allocation24 [shape = 'u8[3072]{0}', space=vmem, size = 0xc00, scoped, tag = 'input window, operand 20, single buffered']
    #allocation25 [shape = 'u8[3072]{0}', space=vmem, size = 0xc00, scoped, tag = 'input window, operand 21, single buffered']
    #allocation26 [shape = 's32[1]{0}', space=sflag, size = 0x4, scoped, tag = 'scoped memory for vqa_forward.2']
    #allocation27 [shape = 'u8[512]{0}', space=vmem, size = 0x400, scoped, tag = 'input window, operand 22, single buffered']
    #allocation28 [shape = 'u8[512]{0}', space=vmem, size = 0x400, scoped, tag = 'input window, operand 23, single buffered']
    #allocation29 [shape = 's32[1]{0}', space=sflag, size = 0x4, scoped, tag = 'scoped memory for vqa_forward.2']
    #allocation30 [shape = 'u8[32768]{0}', space=vmem, size = 0x8000, scoped, tag = 'input window, operand 24, single buffered']
    #allocation31 [shape = 'u8[512]{0}', space=vmem, size = 0x400, scoped, tag = 'input window, operand 25, single buffered']
    #allocation32 [shape = 's32[1]{0}', space=sflag, size = 0x4, scoped, tag = 'scoped memory for vqa_forward.2']
    #allocation33 [shape = 'u8[32768]{0}', space=vmem, size = 0x8000, scoped, tag = 'input window, operand 26, single buffered']
    #allocation34 [shape = 'u8[512]{0}', space=vmem, size = 0x400, scoped, tag = 'input window, operand 27, single buffered']
    #allocation35 [shape = 's32[1]{0}', space=sflag, size = 0x4, scoped, tag = 'scoped memory for vqa_forward.2']
    %33 = vsyncpa [#allocation3], 0
    %34 = vsyncpa [#allocation5], 0
    %35 = vsyncpa [#allocation8], 0
    %36 = vsyncpa [#allocation11], 0
    %37 = vsyncpa [#allocation14], 0
    %38 = vsyncpa [#allocation17], 0
    %39 = vsyncpa [#allocation20], 0
    %40 = vsyncpa [#allocation23], 0
    %41 = vsyncpa [#allocation26], 0
    %42 = vsyncpa [#allocation29], 0
    %43 = vsyncpa [#allocation32], 0
    %44 = vsyncpa [#allocation35], 0
    // Predicated region
    $region2: #{vqa_forward.2} parent=1 // pred_check
      _
    $region3: #{vqa_forward.2} parent=1 // pred_check_branch
      %46 = sbr.rel (0) target = $region5
    $region4: #{vqa_forward.2} parent=1 // pred_region
      _
    $region5: #{vqa_forward.2} parent=1 // pred_fallthru
      _
    // Predicated region
    $region6: #{vqa_forward.2} parent=1 // pred_check
      _
    $region7: #{vqa_forward.2} parent=1 // pred_check_branch
      %48 = sbr.rel (0) target = $region9
    $region8: #{vqa_forward.2} parent=1 // pred_region
      _
    $region9: #{vqa_forward.2} parent=1 // pred_fallthru
      _
    // Predicated region
    $region10: #{vqa_forward.2} parent=1 // pred_check
      _
    $region11: #{vqa_forward.2} parent=1 // pred_check_branch
      %50 = sbr.rel (0) target = $region13
    $region12: #{vqa_forward.2} parent=1 // pred_region
      %s52 = ssub.s32 1536, 1536
      %53 = vsyncadd [#allocation3], %s52
      %s54 = sshll.u32 [#allocation2], 4
      %s55 = int_to_ptr.vmem [resolvable:$true] %s54
      %60 = dma.hbm_to_vmem [thread:$0]  %s2, 1536, %s55, [#allocation3], 64, 64, 4
    $region13: #{vqa_forward.2} parent=1 // pred_fallthru
      _
    // Predicated region
    $region14: #{vqa_forward.2} parent=1 // pred_check
      _
    $region15: #{vqa_forward.2} parent=1 // pred_check_branch
      %62 = sbr.rel (0) target = $region17
    $region16: #{vqa_forward.2} parent=1 // pred_region
      _
    $region17: #{vqa_forward.2} parent=1 // pred_fallthru
      _
    // Predicated region
    $region18: #{vqa_forward.2} parent=1 // pred_check
      _
    $region19: #{vqa_forward.2} parent=1 // pred_check_branch
      %64 = sbr.rel (0) target = $region21
    $region20: #{vqa_forward.2} parent=1 // pred_region
      %s66 = ssub.s32 16, 16
      %67 = vsyncadd [#allocation5], %s66
      %s69 = sshll.u32 [#allocation4], 4
      %s70 = int_to_ptr.vmem [resolvable:$true] %s69
      %72 = dma.hbm_to_vmem [thread:$0]  %s4, 16, %s70, [#allocation5]
    $region21: #{vqa_forward.2} parent=1 // pred_fallthru
      _
    // Predicated region
    $region22: #{vqa_forward.2} parent=1 // pred_check
      _
    $region23: #{vqa_forward.2} parent=1 // pred_check_branch
      %74 = sbr.rel (0) target = $region25
    $region24: #{vqa_forward.2} parent=1 // pred_region
      %s76 = ssub.s32 16, 16
      %77 = vsyncadd [#allocation5], %s76
      %s79 = sshll.u32 [#allocation6], 4
      %s80 = int_to_ptr.vmem [resolvable:$true] %s79
      %82 = dma.hbm_to_vmem [thread:$0]  %s5, 16, %s80, [#allocation5]
    $region25: #{vqa_forward.2} parent=1 // pred_fallthru
      _
    // Predicated region
    $region26: #{vqa_forward.2} parent=1 // pred_check
      _
    $region27: #{vqa_forward.2} parent=1 // pred_check_branch
      %84 = sbr.rel (0) target = $region29
    $region28: #{vqa_forward.2} parent=1 // pred_region
      _
    $region29: #{vqa_forward.2} parent=1 // pred_fallthru
      _
    // Predicated region
    $region30: #{vqa_forward.2} parent=1 // pred_check
      _
    $region31: #{vqa_forward.2} parent=1 // pred_check_branch
      %86 = sbr.rel (0) target = $region33
    $region32: #{vqa_forward.2} parent=1 // pred_region
      %s88 = ssub.s32 96, 96
      %89 = vsyncadd [#allocation8], %s88
      %s90 = sshll.u32 [#allocation7], 4
      %s91 = int_to_ptr.vmem [resolvable:$true] %s90
      %96 = dma.hbm_to_vmem [thread:$0]  %s7, 96, %s91, [#allocation8], 48, 48, 3
    $region33: #{vqa_forward.2} parent=1 // pred_fallthru
      _
    // Predicated region
    $region34: #{vqa_forward.2} parent=1 // pred_check
      _
    $region35: #{vqa_forward.2} parent=1 // pred_check_branch
      %98 = sbr.rel (0) target = $region37
    $region36: #{vqa_forward.2} parent=1 // pred_region
      %s100 = ssub.s32 2048, 2048
      %101 = vsyncadd [#allocation8], %s100
      %s102 = sshll.u32 [#allocation9], 4
      %s103 = int_to_ptr.vmem [resolvable:$true] %s102
      %108 = dma.hbm_to_vmem [thread:$0]  %s8, 2048, %s103, [#allocation8], 64, 64, 4
    $region37: #{vqa_forward.2} parent=1 // pred_fallthru
      _
    // Predicated region
    $region38: #{vqa_forward.2} parent=1 // pred_check
      _
    $region39: #{vqa_forward.2} parent=1 // pred_check_branch
      %110 = sbr.rel (0) target = $region41
    $region40: #{vqa_forward.2} parent=1 // pred_region
      %s112 = ssub.s32 32, 32
      %113 = vsyncadd [#allocation11], %s112
      %s114 = sshll.u32 [#allocation10], 4
      %s115 = int_to_ptr.vmem [resolvable:$true] %s114
      %120 = dma.hbm_to_vmem [thread:$0]  %s9, 32, %s115, [#allocation11], 16, 16, 1
    $region41: #{vqa_forward.2} parent=1 // pred_fallthru
      _
    // Predicated region
    $region42: #{vqa_forward.2} parent=1 // pred_check
      _
    $region43: #{vqa_forward.2} parent=1 // pred_check_branch
      %122 = sbr.rel (0) target = $region45
    $region44: #{vqa_forward.2} parent=1 // pred_region
      %s124 = ssub.s32 2048, 2048
      %125 = vsyncadd [#allocation11], %s124
      %s126 = sshll.u32 [#allocation12], 4
      %s127 = int_to_ptr.vmem [resolvable:$true] %s126
      %132 = dma.hbm_to_vmem [thread:$0]  %s10, 2048, %s127, [#allocation11], 64, 64, 4
    $region45: #{vqa_forward.2} parent=1 // pred_fallthru
      _
    // Predicated region
    $region46: #{vqa_forward.2} parent=1 // pred_check
      _
    $region47: #{vqa_forward.2} parent=1 // pred_check_branch
      %134 = sbr.rel (0) target = $region49
    $region48: #{vqa_forward.2} parent=1 // pred_region
      %s136 = ssub.s32 32, 32
      %137 = vsyncadd [#allocation14], %s136
      %s138 = sshll.u32 [#allocation13], 4
      %s139 = int_to_ptr.vmem [resolvable:$true] %s138
      %144 = dma.hbm_to_vmem [thread:$0]  %s11, 32, %s139, [#allocation14], 16, 16, 1
    $region49: #{vqa_forward.2} parent=1 // pred_fallthru
      _
    // Predicated region
    $region50: #{vqa_forward.2} parent=1 // pred_check
      _
    $region51: #{vqa_forward.2} parent=1 // pred_check_branch
      %146 = sbr.rel (0) target = $region53
    $region52: #{vqa_forward.2} parent=1 // pred_region
      _
    $region53: #{vqa_forward.2} parent=1 // pred_fallthru
      _
    // Predicated region
    $region54: #{vqa_forward.2} parent=1 // pred_check
      _
    $region55: #{vqa_forward.2} parent=1 // pred_check_branch
      %148 = sbr.rel (0) target = $region57
    $region56: #{vqa_forward.2} parent=1 // pred_region
      %s150 = ssub.s32 64, 64
      %151 = vsyncadd [#allocation14], %s150
      %s152 = sshll.u32 [#allocation15], 4
      %s153 = int_to_ptr.vmem [resolvable:$true] %s152
      %158 = dma.hbm_to_vmem [thread:$0]  %s13, 64, %s153, [#allocation14], 32, 32, 2
    $region57: #{vqa_forward.2} parent=1 // pred_fallthru
      _
    // Predicated region
    $region58: #{vqa_forward.2} parent=1 // pred_check
      _
    $region59: #{vqa_forward.2} parent=1 // pred_check_branch
      %160 = sbr.rel (0) target = $region61
    $region60: #{vqa_forward.2} parent=1 // pred_region
      %s162 = ssub.s32 2048, 2048
      %163 = vsyncadd [#allocation17], %s162
      %s164 = sshll.u32 [#allocation16], 4
      %s165 = int_to_ptr.vmem [resolvable:$true] %s164
      %170 = dma.hbm_to_vmem [thread:$0]  %s14, 2048, %s165, [#allocation17], 64, 64, 4
    $region61: #{vqa_forward.2} parent=1 // pred_fallthru
      _
    // Predicated region
    $region62: #{vqa_forward.2} parent=1 // pred_check
      _
    $region63: #{vqa_forward.2} parent=1 // pred_check_branch
      %172 = sbr.rel (0) target = $region65
    $region64: #{vqa_forward.2} parent=1 // pred_region
      %s174 = ssub.s32 32, 32
      %175 = vsyncadd [#allocation17], %s174
      %s176 = sshll.u32 [#allocation18], 4
      %s177 = int_to_ptr.vmem [resolvable:$true] %s176
      %182 = dma.hbm_to_vmem [thread:$0]  %s15, 32, %s177, [#allocation17], 16, 16, 1
    $region65: #{vqa_forward.2} parent=1 // pred_fallthru
      _
    // Predicated region
    $region66: #{vqa_forward.2} parent=1 // pred_check
      _
    $region67: #{vqa_forward.2} parent=1 // pred_check_branch
      %184 = sbr.rel (0) target = $region69
    $region68: #{vqa_forward.2} parent=1 // pred_region
      _
    $region69: #{vqa_forward.2} parent=1 // pred_fallthru
      _
    // Predicated region
    $region70: #{vqa_forward.2} parent=1 // pred_check
      _
    $region71: #{vqa_forward.2} parent=1 // pred_check_branch
      %186 = sbr.rel (0) target = $region73
    $region72: #{vqa_forward.2} parent=1 // pred_region
      %s188 = ssub.s32 64, 64
      %189 = vsyncadd [#allocation20], %s188
      %s190 = sshll.u32 [#allocation19], 4
      %s191 = int_to_ptr.vmem [resolvable:$true] %s190
      %196 = dma.hbm_to_vmem [thread:$0]  %s17, 64, %s191, [#allocation20], 32, 32, 2
    $region73: #{vqa_forward.2} parent=1 // pred_fallthru
      _
    // Predicated region
    $region74: #{vqa_forward.2} parent=1 // pred_check
      _
    $region75: #{vqa_forward.2} parent=1 // pred_check_branch
      %198 = sbr.rel (0) target = $region77
    $region76: #{vqa_forward.2} parent=1 // pred_region
      %s200 = ssub.s32 4096, 4096
      %201 = vsyncadd [#allocation20], %s200
      %s202 = sshll.u32 [#allocation21], 4
      %s203 = int_to_ptr.vmem [resolvable:$true] %s202
      %208 = dma.hbm_to_vmem [thread:$0]  %s18, 4096, %s203, [#allocation20], 64, 64, 4
    $region77: #{vqa_forward.2} parent=1 // pred_fallthru
      _
    // Predicated region
    $region78: #{vqa_forward.2} parent=1 // pred_check
      _
    $region79: #{vqa_forward.2} parent=1 // pred_check_branch
      %210 = sbr.rel (0) target = $region81
    $region80: #{vqa_forward.2} parent=1 // pred_region
      %s212 = ssub.s32 32, 32
      %213 = vsyncadd [#allocation23], %s212
      %s214 = sshll.u32 [#allocation22], 4
      %s215 = int_to_ptr.vmem [resolvable:$true] %s214
      %220 = dma.hbm_to_vmem [thread:$0]  %s19, 32, %s215, [#allocation23], 16, 16, 1
    $region81: #{vqa_forward.2} parent=1 // pred_fallthru
      _
    // Predicated region
    $region82: #{vqa_forward.2} parent=1 // pred_check
      _
    $region83: #{vqa_forward.2} parent=1 // pred_check_branch
      %222 = sbr.rel (0) target = $region85
    $region84: #{vqa_forward.2} parent=1 // pred_region
      %s224 = ssub.s32 96, 96
      %225 = vsyncadd [#allocation23], %s224
      %s226 = sshll.u32 [#allocation24], 4
      %s227 = int_to_ptr.vmem [resolvable:$true] %s226
      %232 = dma.hbm_to_vmem [thread:$0]  %s20, 96, %s227, [#allocation23], 16, 16, 1
    $region85: #{vqa_forward.2} parent=1 // pred_fallthru
      _
    // Predicated region
    $region86: #{vqa_forward.2} parent=1 // pred_check
      _
    $region87: #{vqa_forward.2} parent=1 // pred_check_branch
      %234 = sbr.rel (0) target = $region89
    $region88: #{vqa_forward.2} parent=1 // pred_region
      %s236 = ssub.s32 96, 96
      %237 = vsyncadd [#allocation26], %s236
      %s238 = sshll.u32 [#allocation25], 4
      %s239 = int_to_ptr.vmem [resolvable:$true] %s238
      %244 = dma.hbm_to_vmem [thread:$0]  %s21, 96, %s239, [#allocation26], 16, 16, 1
    $region89: #{vqa_forward.2} parent=1 // pred_fallthru
      _
    // Predicated region
    $region90: #{vqa_forward.2} parent=1 // pred_check
      _
    $region91: #{vqa_forward.2} parent=1 // pred_check_branch
      %246 = sbr.rel (0) target = $region93
    $region92: #{vqa_forward.2} parent=1 // pred_region
      %s248 = ssub.s32 16, 16
      %249 = vsyncadd [#allocation26], %s248
      %s251 = sshll.u32 [#allocation27], 4
      %s252 = int_to_ptr.vmem [resolvable:$true] %s251
      %254 = dma.hbm_to_vmem [thread:$0]  %s22, 16, %s252, [#allocation26]
    $region93: #{vqa_forward.2} parent=1 // pred_fallthru
      _
    // Predicated region
    $region94: #{vqa_forward.2} parent=1 // pred_check
      _
    $region95: #{vqa_forward.2} parent=1 // pred_check_branch
      %256 = sbr.rel (0) target = $region97
    $region96: #{vqa_forward.2} parent=1 // pred_region
      %s258 = ssub.s32 16, 16
      %259 = vsyncadd [#allocation29], %s258
      %s261 = sshll.u32 [#allocation28], 4
      %s262 = int_to_ptr.vmem [resolvable:$true] %s261
      %264 = dma.hbm_to_vmem [thread:$0]  %s23, 16, %s262, [#allocation29]
    $region97: #{vqa_forward.2} parent=1 // pred_fallthru
      _
    // Predicated region
    $region98: #{vqa_forward.2} parent=1 // pred_check
      _
    $region99: #{vqa_forward.2} parent=1 // pred_check_branch
      %266 = sbr.rel (0) target = $region101
    $region100: #{vqa_forward.2} parent=1 // pred_region
      %s268 = ssub.s32 1024, 1024
      %269 = vsyncadd [#allocation29], %s268
      %s270 = sshll.u32 [#allocation30], 4
      %s271 = int_to_ptr.vmem [resolvable:$true] %s270
      %276 = dma.hbm_to_vmem [thread:$0]  %s24, 1024, %s271, [#allocation29], 64, 64, 4
    $region101: #{vqa_forward.2} parent=1 // pred_fallthru
      _
    // Predicated region
    $region102: #{vqa_forward.2} parent=1 // pred_check
      _
    $region103: #{vqa_forward.2} parent=1 // pred_check_branch
      %278 = sbr.rel (0) target = $region105
    $region104: #{vqa_forward.2} parent=1 // pred_region
      %s280 = ssub.s32 16, 16
      %281 = vsyncadd [#allocation32], %s280
      %s283 = sshll.u32 [#allocation31], 4
      %s284 = int_to_ptr.vmem [resolvable:$true] %s283
      %286 = dma.hbm_to_vmem [thread:$0]  %s25, 16, %s284, [#allocation32]
    $region105: #{vqa_forward.2} parent=1 // pred_fallthru
      _
    // Predicated region
    $region106: #{vqa_forward.2} parent=1 // pred_check
      _
    $region107: #{vqa_forward.2} parent=1 // pred_check_branch
      %288 = sbr.rel (0) target = $region109
    $region108: #{vqa_forward.2} parent=1 // pred_region
      %s290 = ssub.s32 1024, 1024
      %291 = vsyncadd [#allocation32], %s290
      %s292 = sshll.u32 [#allocation33], 4
      %s293 = int_to_ptr.vmem [resolvable:$true] %s292
      %298 = dma.hbm_to_vmem [thread:$0]  %s26, 1024, %s293, [#allocation32], 64, 64, 4
    $region109: #{vqa_forward.2} parent=1 // pred_fallthru
      _
    // Predicated region
    $region110: #{vqa_forward.2} parent=1 // pred_check
      _
    $region111: #{vqa_forward.2} parent=1 // pred_check_branch
      %300 = sbr.rel (0) target = $region113
    $region112: #{vqa_forward.2} parent=1 // pred_region
      %s302 = ssub.s32 16, 16
      %303 = vsyncadd [#allocation35], %s302
      %s305 = sshll.u32 [#allocation34], 4
      %s306 = int_to_ptr.vmem [resolvable:$true] %s305
      %308 = dma.hbm_to_vmem [thread:$0]  %s27, 16, %s306, [#allocation35]
    $region113: #{vqa_forward.2} parent=1 // pred_fallthru
      _
    // Predicated region
    $region114: #{vqa_forward.2} parent=1 // pred_check
      _
    $region115: #{vqa_forward.2} parent=1 // pred_check_branch
      %310 = sbr.rel (0) target = $region117
    $region116: #{vqa_forward.2} parent=1 // pred_region
      %311 = dma.done [#allocation3], 1536
    $region117: #{vqa_forward.2} parent=1 // pred_fallthru
      _
    // Predicated region
    $region118: #{vqa_forward.2} parent=1 // pred_check
      _
    $region119: #{vqa_forward.2} parent=1 // pred_check_branch
      %313 = sbr.rel (0) target = $region121
    $region120: #{vqa_forward.2} parent=1 // pred_region
      %314 = dma.done [#allocation5], 16
    $region121: #{vqa_forward.2} parent=1 // pred_fallthru
      _
    // Predicated region
    $region122: #{vqa_forward.2} parent=1 // pred_check
      _
    $region123: #{vqa_forward.2} parent=1 // pred_check_branch
      %316 = sbr.rel (0) target = $region125
    $region124: #{vqa_forward.2} parent=1 // pred_region
      %317 = dma.done [#allocation5], 16
    $region125: #{vqa_forward.2} parent=1 // pred_fallthru
      _
    // Predicated region
    $region126: #{vqa_forward.2} parent=1 // pred_check
      _
    $region127: #{vqa_forward.2} parent=1 // pred_check_branch
      %319 = sbr.rel (0) target = $region129
    $region128: #{vqa_forward.2} parent=1 // pred_region
      %320 = dma.done [#allocation8], 96
    $region129: #{vqa_forward.2} parent=1 // pred_fallthru
      _
    // Predicated region
    $region130: #{vqa_forward.2} parent=1 // pred_check
      _
    $region131: #{vqa_forward.2} parent=1 // pred_check_branch
      %322 = sbr.rel (0) target = $region133
    $region132: #{vqa_forward.2} parent=1 // pred_region
      %323 = dma.done [#allocation8], 2048
    $region133: #{vqa_forward.2} parent=1 // pred_fallthru
      _
    // Predicated region
    $region134: #{vqa_forward.2} parent=1 // pred_check
      _
    $region135: #{vqa_forward.2} parent=1 // pred_check_branch
      %325 = sbr.rel (0) target = $region137
    $region136: #{vqa_forward.2} parent=1 // pred_region
      %326 = dma.done [#allocation11], 32
    $region137: #{vqa_forward.2} parent=1 // pred_fallthru
      _
    // Predicated region
    $region138: #{vqa_forward.2} parent=1 // pred_check
      _
    $region139: #{vqa_forward.2} parent=1 // pred_check_branch
      %328 = sbr.rel (0) target = $region141
    $region140: #{vqa_forward.2} parent=1 // pred_region
      %329 = dma.done [#allocation11], 2048
    $region141: #{vqa_forward.2} parent=1 // pred_fallthru
      _
    // Predicated region
    $region142: #{vqa_forward.2} parent=1 // pred_check
      _
    $region143: #{vqa_forward.2} parent=1 // pred_check_branch
      %331 = sbr.rel (0) target = $region145
    $region144: #{vqa_forward.2} parent=1 // pred_region
      %332 = dma.done [#allocation14], 32
    $region145: #{vqa_forward.2} parent=1 // pred_fallthru
      _
    // Predicated region
    $region146: #{vqa_forward.2} parent=1 // pred_check
      _
    $region147: #{vqa_forward.2} parent=1 // pred_check_branch
      %334 = sbr.rel (0) target = $region149
    $region148: #{vqa_forward.2} parent=1 // pred_region
      %335 = dma.done [#allocation14], 64
    $region149: #{vqa_forward.2} parent=1 // pred_fallthru
      _
    // Predicated region
    $region150: #{vqa_forward.2} parent=1 // pred_check
      _
    $region151: #{vqa_forward.2} parent=1 // pred_check_branch
      %337 = sbr.rel (0) target = $region153
    $region152: #{vqa_forward.2} parent=1 // pred_region
      %338 = dma.done [#allocation17], 2048
    $region153: #{vqa_forward.2} parent=1 // pred_fallthru
      _
    // Predicated region
    $region154: #{vqa_forward.2} parent=1 // pred_check
      _
    $region155: #{vqa_forward.2} parent=1 // pred_check_branch
      %340 = sbr.rel (0) target = $region157
    $region156: #{vqa_forward.2} parent=1 // pred_region
      %341 = dma.done [#allocation17], 32
    $region157: #{vqa_forward.2} parent=1 // pred_fallthru
      _
    // Predicated region
    $region158: #{vqa_forward.2} parent=1 // pred_check
      _
    $region159: #{vqa_forward.2} parent=1 // pred_check_branch
      %343 = sbr.rel (0) target = $region161
    $region160: #{vqa_forward.2} parent=1 // pred_region
      %344 = dma.done [#allocation20], 64
    $region161: #{vqa_forward.2} parent=1 // pred_fallthru
      _
    // Predicated region
    $region162: #{vqa_forward.2} parent=1 // pred_check
      _
    $region163: #{vqa_forward.2} parent=1 // pred_check_branch
      %346 = sbr.rel (0) target = $region165
    $region164: #{vqa_forward.2} parent=1 // pred_region
      %347 = dma.done [#allocation20], 4096
    $region165: #{vqa_forward.2} parent=1 // pred_fallthru
      _
    // Predicated region
    $region166: #{vqa_forward.2} parent=1 // pred_check
      _
    $region167: #{vqa_forward.2} parent=1 // pred_check_branch
      %349 = sbr.rel (0) target = $region169
    $region168: #{vqa_forward.2} parent=1 // pred_region
      %350 = dma.done [#allocation23], 32
    $region169: #{vqa_forward.2} parent=1 // pred_fallthru
      _
    // Predicated region
    $region170: #{vqa_forward.2} parent=1 // pred_check
      _
    $region171: #{vqa_forward.2} parent=1 // pred_check_branch
      %352 = sbr.rel (0) target = $region173
    $region172: #{vqa_forward.2} parent=1 // pred_region
      %353 = dma.done [#allocation23], 96
    $region173: #{vqa_forward.2} parent=1 // pred_fallthru
      _
    // Predicated region
    $region174: #{vqa_forward.2} parent=1 // pred_check
      _
    $region175: #{vqa_forward.2} parent=1 // pred_check_branch
      %355 = sbr.rel (0) target = $region177
    $region176: #{vqa_forward.2} parent=1 // pred_region
      %356 = dma.done [#allocation26], 96
    $region177: #{vqa_forward.2} parent=1 // pred_fallthru
      _
    // Predicated region
    $region178: #{vqa_forward.2} parent=1 // pred_check
      _
    $region179: #{vqa_forward.2} parent=1 // pred_check_branch
      %358 = sbr.rel (0) target = $region181
    $region180: #{vqa_forward.2} parent=1 // pred_region
      %359 = dma.done [#allocation26], 16
    $region181: #{vqa_forward.2} parent=1 // pred_fallthru
      _
    // Predicated region
    $region182: #{vqa_forward.2} parent=1 // pred_check
      _
    $region183: #{vqa_forward.2} parent=1 // pred_check_branch
      %361 = sbr.rel (0) target = $region185
    $region184: #{vqa_forward.2} parent=1 // pred_region
      %362 = dma.done [#allocation29], 16
    $region185: #{vqa_forward.2} parent=1 // pred_fallthru
      _
    // Predicated region
    $region186: #{vqa_forward.2} parent=1 // pred_check
      _
    $region187: #{vqa_forward.2} parent=1 // pred_check_branch
      %364 = sbr.rel (0) target = $region189
    $region188: #{vqa_forward.2} parent=1 // pred_region
      %365 = dma.done [#allocation29], 1024
    $region189: #{vqa_forward.2} parent=1 // pred_fallthru
      _
    // Predicated region
    $region190: #{vqa_forward.2} parent=1 // pred_check
      _
    $region191: #{vqa_forward.2} parent=1 // pred_check_branch
      %367 = sbr.rel (0) target = $region193
    $region192: #{vqa_forward.2} parent=1 // pred_region
      %368 = dma.done [#allocation32], 16
    $region193: #{vqa_forward.2} parent=1 // pred_fallthru
      _
    // Predicated region
    $region194: #{vqa_forward.2} parent=1 // pred_check
      _
    $region195: #{vqa_forward.2} parent=1 // pred_check_branch
      %370 = sbr.rel (0) target = $region197
    $region196: #{vqa_forward.2} parent=1 // pred_region
      %371 = dma.done [#allocation32], 1024
    $region197: #{vqa_forward.2} parent=1 // pred_fallthru
      _
    // Predicated region
    $region198: #{vqa_forward.2} parent=1 // pred_check
      _
    $region199: #{vqa_forward.2} parent=1 // pred_check_branch
      %373 = sbr.rel (0) target = $region201
    $region200: #{vqa_forward.2} parent=1 // pred_region
      %374 = dma.done [#allocation35], 16
    $region201: #{vqa_forward.2} parent=1 // pred_fallthru
      _
    %v376 = vld [vmem:[%s0] sm:$0xff]
    %v377 = vld [vmem:[%s0 + $0x8] sm:$0xff]
    %v378 = vld [vmem:[#allocation2] sm:$0xf]
    %v379 = vld [vmem:[#allocation2 + $0x4] sm:$0xf]
    %v380 = vld [vmem:[#allocation2 + $0x8] sm:$0xf]
    %v381 = vld [vmem:[#allocation2 + $0xc] sm:$0xf]
    %v382 = vld [vmem:[#allocation2 + $0x10] sm:$0xf]
    %v383 = vld [vmem:[#allocation2 + $0x14] sm:$0xf]
    %v384 = vld [vmem:[#allocation2 + $0x18] sm:$0xf]
    %v385 = vld [vmem:[#allocation2 + $0x1c] sm:$0xf]
    %v386 = vld [vmem:[#allocation2 + $0x20] sm:$0xf]
    %v387 = vld [vmem:[#allocation2 + $0x24] sm:$0xf]
    %v388 = vld [vmem:[#allocation2 + $0x28] sm:$0xf]
    %v389 = vld [vmem:[#allocation2 + $0x2c] sm:$0xf]
    %v390 = vld [vmem:[#allocation2 + $0x30] sm:$0xf]
    %v391 = vld [vmem:[#allocation2 + $0x34] sm:$0xf]
    %v392 = vld [vmem:[#allocation2 + $0x38] sm:$0xf]
    %v393 = vld [vmem:[#allocation2 + $0x3c] sm:$0xf]
    %v394 = vld [vmem:[#allocation2 + $0x40] sm:$0xf]
    %v395 = vld [vmem:[#allocation2 + $0x44] sm:$0xf]
    %v396 = vld [vmem:[#allocation2 + $0x48] sm:$0xf]
    %v397 = vld [vmem:[#allocation2 + $0x4c] sm:$0xf]
    %v398 = vld [vmem:[#allocation2 + $0x50] sm:$0xf]
    %v399 = vld [vmem:[#allocation2 + $0x54] sm:$0xf]
    %v400 = vld [vmem:[#allocation2 + $0x58] sm:$0xf]
    %v401 = vld [vmem:[#allocation2 + $0x5c] sm:$0xf]
    %v402 = vpack.c.bf16 %v376, %v376
    %v403 = vpack.c.bf16 %v377, %v377
    %v404 = vld [vmem:[%s3] sm:$0x1]
    %v406 = vlaneseq
    %v407 = vshrl.u32 %v406, 7
    %v408 = vsub.s32 0, %v407
    %v409 = vrot.slane %v404, %v408
    %v435 = vunpack.c.l.b16 %v378
    %v436 = vunpack.c.l.b16 %v379
    %v437 = vunpack.c.l.b16 %v380
    %v438 = vunpack.c.l.b16 %v381
    %v439 = vunpack.c.l.b16 %v382
    %v440 = vunpack.c.l.b16 %v383
    %v441 = vunpack.c.l.b16 %v384
    %v442 = vunpack.c.l.b16 %v385
    %v443 = vunpack.c.l.b16 %v386
    %v444 = vunpack.c.l.b16 %v387
    %v445 = vunpack.c.l.b16 %v388
    %v446 = vunpack.c.l.b16 %v389
    %v447 = vunpack.c.l.b16 %v390
    %v448 = vunpack.c.l.b16 %v391
    %v449 = vunpack.c.l.b16 %v392
    %v450 = vunpack.c.l.b16 %v393
    %v451 = vunpack.c.l.b16 %v394
    %v452 = vunpack.c.l.b16 %v395
    %v453 = vunpack.c.l.b16 %v396
    %v454 = vunpack.c.l.b16 %v397
    %v455 = vunpack.c.l.b16 %v398
    %v456 = vunpack.c.l.b16 %v399
    %v457 = vunpack.c.l.b16 %v400
    %v458 = vunpack.c.l.b16 %v401
    %v459 = vpack.c.b16 %v436, %v435
    %v460 = vpack.c.b16 %v438, %v437
    %v461 = vpack.c.b16 %v440, %v439
    %v462 = vpack.c.b16 %v442, %v441
    %v463 = vpack.c.b16 %v444, %v443
    %v464 = vpack.c.b16 %v446, %v445
    %v465 = vpack.c.b16 %v448, %v447
    %v466 = vpack.c.b16 %v450, %v449
    %v467 = vpack.c.b16 %v452, %v451
    %v468 = vpack.c.b16 %v454, %v453
    %v469 = vpack.c.b16 %v456, %v455
    %v470 = vpack.c.b16 %v458, %v457
    %vm483 = vcmask 523264
    %v485 = vsel %vm483, %v403, 0
    %487 = vmatprep.subr.bf16.mxu0 0
    %488 = vmatpush1.bf16.msra.mxu0 %v459
    %489 = vmatprep.subr.bf16.mxu0 0
    %490 = vmatpush1.bf16.msra.mxu0 %v460
    %491 = vmatprep.subr.bf16.mxu0 0
    %492 = vmatpush1.bf16.msra.mxu0 %v461
    %493 = vmatprep.subr.bf16.mxu0 0
    %494 = vmatpush1.bf16.msra.mxu0 %v462
    %495 = vmatprep.subr.bf16.mxu0 0
    %496 = vmatpush1.bf16.msra.mxu0 %v463
    %497 = vmatprep.subr.bf16.mxu0 0
    %498 = vmatpush1.bf16.msra.mxu0 %v464
    %499 = vmatprep.subr.bf16.mxu0 0
    %500 = vmatpush1.bf16.msra.mxu0 %v465
    %501 = vmatprep.subr.bf16.mxu0 0
    %502 = vmatpush1.bf16.msra.mxu0 %v466
    %503 = vmatprep.subr.bf16.mxu0 0
    %504 = vmatpush1.bf16.msra.mxu0 %v467
    %505 = vmatprep.subr.bf16.mxu0 0
    %506 = vmatpush1.bf16.msra.mxu0 %v468
    %507 = vmatprep.subr.bf16.mxu0 0
    %508 = vmatpush1.bf16.msra.mxu0 %v469
    %509 = vmatprep.subr.bf16.mxu0 0
    %510 = vmatpush1.bf16.msra.mxu0 %v470
    %511 = vmatprep.subr.bf16.mxu0 0
    %512 = vmatpush1.bf16.msra.mxu0 0
    %513 = vmatprep.subr.bf16.mxu0 0
    %514 = vmatpush1.bf16.msra.mxu0 0
    %515 = vmatprep.subr.bf16.mxu0 0
    %516 = vmatpush1.bf16.msra.mxu0 0
    %517 = vmatprep.subr.bf16.mxu0 0
    %518 = vmatpush1.bf16.msra.mxu0 0
    %519 = vmatprep.mubr.bf16.mxu0 %v485
    %520 = vmatmul.mubr.bf16.gmra.mrb[0].mxu0 %v402
    %v521 = vpop.f32.mrb[0].mxu0
    %v522 = vadd.f32 %v409, %v521
    %v523 = vpop.f32.mrb[0].mxu0
    %v524 = vpop.f32.mrb[0].mxu0
    %v525 = vpop.f32.mrb[0].mxu0
    %526 = vdwg.mxu0
    %v527 = vld [vmem:[#allocation4] sm:$0x1]
    %v528 = vld [vmem:[#allocation6] sm:$0x1]
    %529 = vadd.xlane.f32.xlu0 %v522
    %v530 = vpop.xlane.xlu0 %529
    %v531 = vrcp.pop 128.0
    %v532 = vmul.f32 %v530, %v531
    %v533 = vsub.f32 %v522, %v532
    %v534 = vmul.f32 %v533, %v533
    %535 = vadd.xlane.f32.xlu0 %v534
    %v536 = vpop.xlane.xlu0 %535
    %v537 = vmul.f32 %v536, %v531
    %v538 = vadd.f32 %v537, 1e-05
    %v539 = vrsqrt.pop %v538
    %v540 = vmul.f32 %v533, %v539
    %v542 = vlaneseq
    %v543 = vshrl.u32 %v542, 7
    %v544 = vsub.s32 0, %v543
    %v545 = vrot.slane %v527, %v544
    %v547 = vmul.f32 %v540, %v545
    %v549 = vlaneseq
    %v550 = vshrl.u32 %v549, 7
    %v551 = vsub.s32 0, %v550
    %v552 = vrot.slane %v528, %v551
    %v554 = vadd.f32 %v547, %v552
    %v555 = vld [vmem:[%s1] sm:$0xff]
    %v556 = vld [vmem:[#allocation24] sm:$0x1]
    %v557 = vld [vmem:[#allocation25] sm:$0x1]
    %558 = vadd.xlane.f32.xlu0 %v555
    %v559 = vpop.xlane.xlu0 %558
    %v560 = vmul.f32 %v559, %v531
    %v561 = vsub.f32 %v555, %v560
    %v562 = vmul.f32 %v561, %v561
    %563 = vadd.xlane.f32.xlu0 %v562
    %v564 = vpop.xlane.xlu0 %563
    %v565 = vmul.f32 %v564, %v531
    %v566 = vadd.f32 %v565, 1e-05
    %v567 = vrsqrt.pop %v566
    %v568 = vmul.f32 %v561, %v567
    %v570 = vlaneseq
    %v571 = vshrl.u32 %v570, 7
    %v572 = vsub.s32 0, %v571
    %v573 = vrot.slane %v556, %v572
    %v575 = vmul.f32 %v568, %v573
    %v577 = vlaneseq
    %v578 = vshrl.u32 %v577, 7
    %v579 = vsub.s32 0, %v578
    %v580 = vrot.slane %v557, %v579
    %v582 = vadd.f32 %v575, %v580
    %v583 = vld [vmem:[%s6] sm:$0xff]
    %v584 = vld [vmem:[%s6 + $0x8] sm:$0xf]
    %v585 = vld [vmem:[%s6 + $0xc] sm:$0xff]
    %v586 = vld [vmem:[%s6 + $0x14] sm:$0xf]
    %v587 = vld [vmem:[%s6 + $0x18] sm:$0xff]
    %v588 = vld [vmem:[%s6 + $0x20] sm:$0xf]
    %v589 = vld [vmem:[%s6 + $0x24] sm:$0xff]
    %v590 = vld [vmem:[%s6 + $0x2c] sm:$0xf]
    %v591 = vld [vmem:[%s6 + $0x30] sm:$0xff]
    %v592 = vld [vmem:[%s6 + $0x38] sm:$0xf]
    %v593 = vld [vmem:[%s6 + $0x3c] sm:$0xff]
    %v594 = vld [vmem:[%s6 + $0x44] sm:$0xf]
    %v595 = vld [vmem:[%s6 + $0x48] sm:$0xff]
    %v596 = vld [vmem:[%s6 + $0x50] sm:$0xf]
    %v597 = vld [vmem:[%s6 + $0x54] sm:$0xff]
    %v598 = vld [vmem:[%s6 + $0x5c] sm:$0xf]
    %v599 = vld [vmem:[%s6 + $0x60] sm:$0xff]
    %v600 = vld [vmem:[%s6 + $0x68] sm:$0xf]
    %v601 = vld [vmem:[%s6 + $0x6c] sm:$0xff]
    %v602 = vld [vmem:[%s6 + $0x74] sm:$0xf]
    %v603 = vld [vmem:[%s6 + $0x78] sm:$0xff]
    %v604 = vld [vmem:[%s6 + $0x80] sm:$0xf]
    %v605 = vld [vmem:[%s6 + $0x84] sm:$0xff]
    %v606 = vld [vmem:[%s6 + $0x8c] sm:$0xf]
    %v607 = vld [vmem:[%s6 + $0x90] sm:$0xff]
    %v608 = vld [vmem:[%s6 + $0x98] sm:$0xf]
    %v609 = vld [vmem:[%s6 + $0x9c] sm:$0xff]
    %v610 = vld [vmem:[%s6 + $0xa4] sm:$0xf]
    %v611 = vld [vmem:[%s6 + $0xa8] sm:$0xff]
    %v612 = vld [vmem:[%s6 + $0xb0] sm:$0xf]
    %v613 = vld [vmem:[%s6 + $0xb4] sm:$0xff]
    %v614 = vld [vmem:[%s6 + $0xbc] sm:$0xf]
    %v615 = vpack.c.bf16 %v582, %v582
    %v616 = vld [vmem:[#allocation7] sm:$0x7]
    %v618 = vlaneseq
    %v619 = vshrl.u32 %v618, 7
    %v620 = vsub.s32 0, %v619
    %v621 = vrot.slane %v616, %v620
    %v622 = vlaneseq
    %v623 = vshrl.u32 %v622, 7
    %v624 = vsub.s32 1, %v623
    %v625 = vrot.slane %v616, %v624
    %v626 = vlaneseq
    %v627 = vshrl.u32 %v626, 7
    %v628 = vsub.s32 2, %v627
    %v629 = vrot.slane %v616, %v628
    %v665 = vunpack.c.l.b16 %v583
    %v666 = vunpack.c.h.b16 %v583
    %v667 = vunpack.c.l.b16 %v584
    %v668 = vunpack.c.l.b16 %v585
    %v669 = vunpack.c.h.b16 %v585
    %v670 = vunpack.c.l.b16 %v586
    %v671 = vunpack.c.l.b16 %v587
    %v672 = vunpack.c.h.b16 %v587
    %v673 = vunpack.c.l.b16 %v588
    %v674 = vunpack.c.l.b16 %v589
    %v675 = vunpack.c.h.b16 %v589
    %v676 = vunpack.c.l.b16 %v590
    %v677 = vunpack.c.l.b16 %v591
    %v678 = vunpack.c.h.b16 %v591
    %v679 = vunpack.c.l.b16 %v592
    %v680 = vunpack.c.l.b16 %v593
    %v681 = vunpack.c.h.b16 %v593
    %v682 = vunpack.c.l.b16 %v594
    %v683 = vunpack.c.l.b16 %v595
    %v684 = vunpack.c.h.b16 %v595
    %v685 = vunpack.c.l.b16 %v596
    %v686 = vunpack.c.l.b16 %v597
    %v687 = vunpack.c.h.b16 %v597
    %v688 = vunpack.c.l.b16 %v598
    %v689 = vunpack.c.l.b16 %v599
    %v690 = vunpack.c.h.b16 %v599
    %v691 = vunpack.c.l.b16 %v600
    %v692 = vunpack.c.l.b16 %v601
    %v693 = vunpack.c.h.b16 %v601
    %v694 = vunpack.c.l.b16 %v602
    %v695 = vunpack.c.l.b16 %v603
    %v696 = vunpack.c.h.b16 %v603
    %v697 = vunpack.c.l.b16 %v604
    %v698 = vunpack.c.l.b16 %v605
    %v699 = vunpack.c.h.b16 %v605
    %v700 = vunpack.c.l.b16 %v606
    %v701 = vunpack.c.l.b16 %v607
    %v702 = vunpack.c.h.b16 %v607
    %v703 = vunpack.c.l.b16 %v608
    %v704 = vunpack.c.l.b16 %v609
    %v705 = vunpack.c.h.b16 %v609
    %v706 = vunpack.c.l.b16 %v610
    %v707 = vunpack.c.l.b16 %v611
    %v708 = vunpack.c.h.b16 %v611
    %v709 = vunpack.c.l.b16 %v612
    %v710 = vunpack.c.l.b16 %v613
    %v711 = vunpack.c.h.b16 %v613
    %v712 = vunpack.c.l.b16 %v614
    %v713 = vpack.c.b16 %v668, %v665
    %v714 = vpack.c.b16 %v669, %v666
    %v715 = vpack.c.b16 %v670, %v667
    %v716 = vpack.c.b16 %v674, %v671
    %v717 = vpack.c.b16 %v675, %v672
    %v718 = vpack.c.b16 %v676, %v673
    %v719 = vpack.c.b16 %v680, %v677
    %v720 = vpack.c.b16 %v681, %v678
    %v721 = vpack.c.b16 %v682, %v679
    %v722 = vpack.c.b16 %v686, %v683
    %v723 = vpack.c.b16 %v687, %v684
    %v724 = vpack.c.b16 %v688, %v685
    %v725 = vpack.c.b16 %v692, %v689
    %v726 = vpack.c.b16 %v693, %v690
    %v727 = vpack.c.b16 %v694, %v691
    %v728 = vpack.c.b16 %v698, %v695
    %v729 = vpack.c.b16 %v699, %v696
    %v730 = vpack.c.b16 %v700, %v697
    %v731 = vpack.c.b16 %v704, %v701
    %v732 = vpack.c.b16 %v705, %v702
    %v733 = vpack.c.b16 %v706, %v703
    %v734 = vpack.c.b16 %v710, %v707
    %v735 = vpack.c.b16 %v711, %v708
    %v736 = vpack.c.b16 %v712, %v709
    %761 = vmatprep.subr.bf16.mxu0 %v714
    %762 = vmatpush1.bf16.msra.mxu0 %v713
    %763 = vmatprep.subr.bf16.mxu0 %v717
    %764 = vmatpush1.bf16.msra.mxu0 %v716
    %765 = vmatprep.subr.bf16.mxu0 %v720
    %766 = vmatpush1.bf16.msra.mxu0 %v719
    %767 = vmatprep.subr.bf16.mxu0 %v723
    %768 = vmatpush1.bf16.msra.mxu0 %v722
    %769 = vmatprep.subr.bf16.mxu0 %v726
    %770 = vmatpush1.bf16.msra.mxu0 %v725
    %771 = vmatprep.subr.bf16.mxu0 %v729
    %772 = vmatpush1.bf16.msra.mxu0 %v728
    %773 = vmatprep.subr.bf16.mxu0 %v732
    %774 = vmatpush1.bf16.msra.mxu0 %v731
    %775 = vmatprep.subr.bf16.mxu0 %v735
    %776 = vmatpush1.bf16.msra.mxu0 %v734
    %777 = vmatprep.subr.bf16.mxu0 0
    %778 = vmatpush1.bf16.msra.mxu0 0
    %779 = vmatprep.subr.bf16.mxu0 0
    %780 = vmatpush1.bf16.msra.mxu0 0
    %781 = vmatprep.subr.bf16.mxu0 0
    %782 = vmatpush1.bf16.msra.mxu0 0
    %783 = vmatprep.subr.bf16.mxu0 0
    %784 = vmatpush1.bf16.msra.mxu0 0
    %785 = vmatprep.subr.bf16.mxu0 0
    %786 = vmatpush1.bf16.msra.mxu0 0
    %787 = vmatprep.subr.bf16.mxu0 0
    %788 = vmatpush1.bf16.msra.mxu0 0
    %789 = vmatprep.subr.bf16.mxu0 0
    %790 = vmatpush1.bf16.msra.mxu0 0
    %791 = vmatprep.subr.bf16.mxu0 0
    %792 = vmatpush1.bf16.msra.mxu0 0
    %793 = vmatprep.mubr.bf16.mxu0 0
    %794 = vmatmul.mubr.bf16.gmra.mrb[0].mxu0 %v615
    %v795 = vpop.f32.mrb[0].mxu0
    %v796 = vadd.f32 %v621, %v795
    %v797 = vpop.f32.mrb[0].mxu0
    %v798 = vadd.f32 %v625, %v797
    %v799 = vpop.f32.mrb[0].mxu0
    %v800 = vadd.f32 %v621, %v799
    %v801 = vpop.f32.mrb[0].mxu0
    %v802 = vadd.f32 %v625, %v801
    %803 = vdwg.mxu0
    %804 = vmatprep.subr.bf16.mxu0 0
    %805 = vmatpush1.bf16.msra.mxu0 %v715
    %806 = vmatprep.subr.bf16.mxu0 0
    %807 = vmatpush1.bf16.msra.mxu0 %v718
    %808 = vmatprep.subr.bf16.mxu0 0
    %809 = vmatpush1.bf16.msra.mxu0 %v721
    %810 = vmatprep.subr.bf16.mxu0 0
    %811 = vmatpush1.bf16.msra.mxu0 %v724
    %812 = vmatprep.subr.bf16.mxu0 0
    %813 = vmatpush1.bf16.msra.mxu0 %v727
    %814 = vmatprep.subr.bf16.mxu0 0
    %815 = vmatpush1.bf16.msra.mxu0 %v730
    %816 = vmatprep.subr.bf16.mxu0 0
    %817 = vmatpush1.bf16.msra.mxu0 %v733
    %818 = vmatprep.subr.bf16.mxu0 0
    %819 = vmatpush1.bf16.msra.mxu0 %v736
    %820 = vmatprep.subr.bf16.mxu0 0
    %821 = vmatpush1.bf16.msra.mxu0 0
    %822 = vmatprep.subr.bf16.mxu0 0
    %823 = vmatpush1.bf16.msra.mxu0 0
    %824 = vmatprep.subr.bf16.mxu0 0
    %825 = vmatpush1.bf16.msra.mxu0 0
    %826 = vmatprep.subr.bf16.mxu0 0
    %827 = vmatpush1.bf16.msra.mxu0 0
    %828 = vmatprep.subr.bf16.mxu0 0
    %829 = vmatpush1.bf16.msra.mxu0 0
    %830 = vmatprep.subr.bf16.mxu0 0
    %831 = vmatpush1.bf16.msra.mxu0 0
    %832 = vmatprep.subr.bf16.mxu0 0
    %833 = vmatpush1.bf16.msra.mxu0 0
    %834 = vmatprep.subr.bf16.mxu0 0
    %835 = vmatpush1.bf16.msra.mxu0 0
    %836 = vmatprep.mubr.bf16.mxu0 0
    %837 = vmatmul.mubr.bf16.gmra.mrb[0].mxu0 %v615
    %v838 = vpop.f32.mrb[0].mxu0
    %v839 = vadd.f32 %v629, %v838
    %v840 = vpop.f32.mrb[0].mxu0
    %v841 = vpop.f32.mrb[0].mxu0
    %v842 = vadd.f32 %v629, %v841
    %v843 = vpop.f32.mrb[0].mxu0
    %844 = vdwg.mxu0
    %v845 = vpack.c.bf16 %v796, %v796
    %v846 = vpack.c.bf16 %v800, %v800
    %v847 = vpack.c.bf16 %v798, %v798
    %v848 = vpack.c.bf16 %v802, %v802
    %v849 = vpack.c.bf16 %v839, %v839
    %v850 = vpack.c.bf16 %v842, %v842
    %vm851 = vcmask 261120
    %v853 = vsel %vm851, %v845, 0
    %v856 = vsel %vm851, %v847, 0
    %858 = vmatprep.subr.bf16.mxu0 0
    %859 = vmatpush1.bf16.xpose.msra.mxu0 %v856
    %860 = vmatprep.subr.bf16.mxu0 0
    %861 = vmatpush1.bf16.xpose.msra.mxu0 0
    %862 = vmatprep.subr.bf16.mxu0 0
    %863 = vmatpush1.bf16.xpose.msra.mxu0 0
    %864 = vmatprep.subr.bf16.mxu0 0
    %865 = vmatpush1.bf16.xpose.msra.mxu0 0
    %866 = vmatprep.subr.bf16.mxu0 0
    %867 = vmatpush1.bf16.xpose.msra.mxu0 0
    %868 = vmatprep.subr.bf16.mxu0 0
    %869 = vmatpush1.bf16.xpose.msra.mxu0 0
    %870 = vmatprep.subr.bf16.mxu0 0
    %871 = vmatpush1.bf16.xpose.msra.mxu0 0
    %872 = vmatprep.subr.bf16.mxu0 0
    %873 = vmatpush1.bf16.xpose.msra.mxu0 0
    %874 = vmatprep.subr.bf16.mxu0 0
    %875 = vmatpush1.bf16.xpose.msra.mxu0 0
    %876 = vmatprep.subr.bf16.mxu0 0
    %877 = vmatpush1.bf16.xpose.msra.mxu0 0
    %878 = vmatprep.subr.bf16.mxu0 0
    %879 = vmatpush1.bf16.xpose.msra.mxu0 0
    %880 = vmatprep.subr.bf16.mxu0 0
    %881 = vmatpush1.bf16.xpose.msra.mxu0 0
    %882 = vmatprep.subr.bf16.mxu0 0
    %883 = vmatpush1.bf16.xpose.msra.mxu0 0
    %884 = vmatprep.subr.bf16.mxu0 0
    %885 = vmatpush1.bf16.xpose.msra.mxu0 0
    %886 = vmatprep.subr.bf16.mxu0 0
    %887 = vmatpush1.bf16.xpose.msra.mxu0 0
    %888 = vmatprep.subr.bf16.mxu0 0
    %889 = vmatpush1.bf16.xpose.msra.mxu0 0
    %890 = vmatprep.mubr.bf16.mxu0 0
    %891 = vmatmul.mubr.bf16.gmra.mrb[0].mxu0 %v853
    %v892 = vpop.f32.mrb[0].mxu0
    %v893 = vadd.f32 0.0, %v892
    %v894 = vpop.f32.mrb[0].mxu0
    %v895 = vpop.f32.mrb[0].mxu0
    %v896 = vpop.f32.mrb[0].mxu0
    %897 = vdwg.mxu0
    %v899 = vsel %vm851, %v846, 0
    %v902 = vsel %vm851, %v848, 0
    %904 = vmatprep.subr.bf16.mxu0 0
    %905 = vmatpush1.bf16.xpose.msra.mxu0 %v902
    %906 = vmatprep.subr.bf16.mxu0 0
    %907 = vmatpush1.bf16.xpose.msra.mxu0 0
    %908 = vmatprep.subr.bf16.mxu0 0
    %909 = vmatpush1.bf16.xpose.msra.mxu0 0
    %910 = vmatprep.subr.bf16.mxu0 0
    %911 = vmatpush1.bf16.xpose.msra.mxu0 0
    %912 = vmatprep.subr.bf16.mxu0 0
    %913 = vmatpush1.bf16.xpose.msra.mxu0 0
    %914 = vmatprep.subr.bf16.mxu0 0
    %915 = vmatpush1.bf16.xpose.msra.mxu0 0
    %916 = vmatprep.subr.bf16.mxu0 0
    %917 = vmatpush1.bf16.xpose.msra.mxu0 0
    %918 = vmatprep.subr.bf16.mxu0 0
    %919 = vmatpush1.bf16.xpose.msra.mxu0 0
    %920 = vmatprep.subr.bf16.mxu0 0
    %921 = vmatpush1.bf16.xpose.msra.mxu0 0
    %922 = vmatprep.subr.bf16.mxu0 0
    %923 = vmatpush1.bf16.xpose.msra.mxu0 0
    %924 = vmatprep.subr.bf16.mxu0 0
    %925 = vmatpush1.bf16.xpose.msra.mxu0 0
    %926 = vmatprep.subr.bf16.mxu0 0
    %927 = vmatpush1.bf16.xpose.msra.mxu0 0
    %928 = vmatprep.subr.bf16.mxu0 0
    %929 = vmatpush1.bf16.xpose.msra.mxu0 0
    %930 = vmatprep.subr.bf16.mxu0 0
    %931 = vmatpush1.bf16.xpose.msra.mxu0 0
    %932 = vmatprep.subr.bf16.mxu0 0
    %933 = vmatpush1.bf16.xpose.msra.mxu0 0
    %934 = vmatprep.subr.bf16.mxu0 0
    %935 = vmatpush1.bf16.xpose.msra.mxu0 0
    %936 = vmatprep.mubr.bf16.mxu0 0
    %937 = vmatmul.mubr.bf16.gmra.mrb[0].mxu0 %v899
    %v938 = vpop.f32.mrb[0].mxu0
    %v939 = vadd.f32 0.0, %v938
    %v940 = vpop.f32.mrb[0].mxu0
    %v941 = vpop.f32.mrb[0].mxu0
    %v942 = vpop.f32.mrb[0].mxu0
    %943 = vdwg.mxu0
    %vm944 = vcmask 64512
    %v945 = vsel %vm944, %v893, -inf
    %946 = vmax.xlane.f32.xlu0 %v945
    %v947 = vpop.xlane.xlu0 %946
    %v948 = vsel %vm944, %v939, -inf
    %949 = vmax.xlane.f32.xlu0 %v948
    %v950 = vpop.xlane.xlu0 %949
    %v951 = vsub.f32 %v893, %v947
    %v952 = vsub.f32 %v939, %v950
    %v953 = vmul.f32 %v951, 1.442695
    %v954 = vpow.pop %v953
    %v955 = vmul.f32 %v952, 1.442695
    %v956 = vpow.pop %v955
    %v957 = vsel %vm944, %v954, 0.0
    %958 = vadd.xlane.f32.xlu0 %v957
    %v959 = vpop.xlane.xlu0 %958
    %v960 = vsel %vm944, %v956, 0.0
    %961 = vadd.xlane.f32.xlu0 %v960
    %v962 = vpop.xlane.xlu0 %961
    %v963 = vrcp.pop %v959
    %v964 = vrcp.pop %v962
    %v965 = vmul.f32 %v954, %v963
    %v966 = vmul.f32 %v956, %v964
    %v967 = vpack.c.bf16 %v965, %v965
    %v968 = vpack.c.bf16 %v966, %v966
    %v970 = vsel %vm944, %v967, 0
    %vm972 = vcmask 1043456
    %v974 = vsel %vm972, %v849, 0
    %976 = vmatprep.subr.bf16.mxu0 0
    %977 = vmatpush1.bf16.msra.mxu0 %v974
    %978 = vmatprep.subr.bf16.mxu0 0
    %979 = vmatpush1.bf16.msra.mxu0 0
    %980 = vmatprep.subr.bf16.mxu0 0
    %981 = vmatpush1.bf16.msra.mxu0 0
    %982 = vmatprep.subr.bf16.mxu0 0
    %983 = vmatpush1.bf16.msra.mxu0 0
    %984 = vmatprep.subr.bf16.mxu0 0
    %985 = vmatpush1.bf16.msra.mxu0 0
    %986 = vmatprep.subr.bf16.mxu0 0
    %987 = vmatpush1.bf16.msra.mxu0 0
    %988 = vmatprep.subr.bf16.mxu0 0
    %989 = vmatpush1.bf16.msra.mxu0 0
    %990 = vmatprep.subr.bf16.mxu0 0
    %991 = vmatpush1.bf16.msra.mxu0 0
    %992 = vmatprep.subr.bf16.mxu0 0
    %993 = vmatpush1.bf16.msra.mxu0 0
    %994 = vmatprep.subr.bf16.mxu0 0
    %995 = vmatpush1.bf16.msra.mxu0 0
    %996 = vmatprep.subr.bf16.mxu0 0
    %997 = vmatpush1.bf16.msra.mxu0 0
    %998 = vmatprep.subr.bf16.mxu0 0
    %999 = vmatpush1.bf16.msra.mxu0 0
    %1000 = vmatprep.subr.bf16.mxu0 0
    %1001 = vmatpush1.bf16.msra.mxu0 0
    %1002 = vmatprep.subr.bf16.mxu0 0
    %1003 = vmatpush1.bf16.msra.mxu0 0
    %1004 = vmatprep.subr.bf16.mxu0 0
    %1005 = vmatpush1.bf16.msra.mxu0 0
    %1006 = vmatprep.subr.bf16.mxu0 0
    %1007 = vmatpush1.bf16.msra.mxu0 0
    %1008 = vmatprep.mubr.bf16.mxu0 0
    %1009 = vmatmul.mubr.bf16.gmra.mrb[0].mxu0 %v970
    %v1010 = vpop.f32.mrb[0].mxu0
    %v1011 = vadd.f32 0.0, %v1010
    %v1012 = vpop.f32.mrb[0].mxu0
    %v1013 = vpop.f32.mrb[0].mxu0
    %v1014 = vpop.f32.mrb[0].mxu0
    %1015 = vdwg.mxu0
    %v1017 = vsel %vm944, %v968, 0
    %v1020 = vsel %vm972, %v850, 0
    %1022 = vmatprep.subr.bf16.mxu0 0
    %1023 = vmatpush1.bf16.msra.mxu0 %v1020
    %1024 = vmatprep.subr.bf16.mxu0 0
    %1025 = vmatpush1.bf16.msra.mxu0 0
    %1026 = vmatprep.subr.bf16.mxu0 0
    %1027 = vmatpush1.bf16.msra.mxu0 0
    %1028 = vmatprep.subr.bf16.mxu0 0
    %1029 = vmatpush1.bf16.msra.mxu0 0
    %1030 = vmatprep.subr.bf16.mxu0 0
    %1031 = vmatpush1.bf16.msra.mxu0 0
    %1032 = vmatprep.subr.bf16.mxu0 0
    %1033 = vmatpush1.bf16.msra.mxu0 0
    %1034 = vmatprep.subr.bf16.mxu0 0
    %1035 = vmatpush1.bf16.msra.mxu0 0
    %1036 = vmatprep.subr.bf16.mxu0 0
    %1037 = vmatpush1.bf16.msra.mxu0 0
    %1038 = vmatprep.subr.bf16.mxu0 0
    %1039 = vmatpush1.bf16.msra.mxu0 0
    %1040 = vmatprep.subr.bf16.mxu0 0
    %1041 = vmatpush1.bf16.msra.mxu0 0
    %1042 = vmatprep.subr.bf16.mxu0 0
    %1043 = vmatpush1.bf16.msra.mxu0 0
    %1044 = vmatprep.subr.bf16.mxu0 0
    %1045 = vmatpush1.bf16.msra.mxu0 0
    %1046 = vmatprep.subr.bf16.mxu0 0
    %1047 = vmatpush1.bf16.msra.mxu0 0
    %1048 = vmatprep.subr.bf16.mxu0 0
    %1049 = vmatpush1.bf16.msra.mxu0 0
    %1050 = vmatprep.subr.bf16.mxu0 0
    %1051 = vmatpush1.bf16.msra.mxu0 0
    %1052 = vmatprep.subr.bf16.mxu0 0
    %1053 = vmatpush1.bf16.msra.mxu0 0
    %1054 = vmatprep.mubr.bf16.mxu0 0
    %1055 = vmatmul.mubr.bf16.gmra.mrb[0].mxu0 %v1017
    %v1056 = vpop.f32.mrb[0].mxu0
    %v1057 = vadd.f32 0.0, %v1056
    %v1058 = vpop.f32.mrb[0].mxu0
    %v1059 = vpop.f32.mrb[0].mxu0
    %v1060 = vpop.f32.mrb[0].mxu0
    %1061 = vdwg.mxu0
    %1063 = vrot.lane.b32.xlu0 %v845, 96
    %v1064 = vpop.permute.xlu0 %1063
    %1066 = vrot.lane.b32.xlu0 %v847, 96
    %v1067 = vpop.permute.xlu0 %1066
    %v1069 = vsel %vm851, %v1064, 0
    %v1072 = vsel %vm851, %v1067, 0
    %1074 = vmatprep.subr.bf16.mxu0 0
    %1075 = vmatpush1.bf16.xpose.msra.mxu0 %v1072
    %1076 = vmatprep.subr.bf16.mxu0 0
    %1077 = vmatpush1.bf16.xpose.msra.mxu0 0
    %1078 = vmatprep.subr.bf16.mxu0 0
    %1079 = vmatpush1.bf16.xpose.msra.mxu0 0
    %1080 = vmatprep.subr.bf16.mxu0 0
    %1081 = vmatpush1.bf16.xpose.msra.mxu0 0
    %1082 = vmatprep.subr.bf16.mxu0 0
    %1083 = vmatpush1.bf16.xpose.msra.mxu0 0
    %1084 = vmatprep.subr.bf16.mxu0 0
    %1085 = vmatpush1.bf16.xpose.msra.mxu0 0
    %1086 = vmatprep.subr.bf16.mxu0 0
    %1087 = vmatpush1.bf16.xpose.msra.mxu0 0
    %1088 = vmatprep.subr.bf16.mxu0 0
    %1089 = vmatpush1.bf16.xpose.msra.mxu0 0
    %1090 = vmatprep.subr.bf16.mxu0 0
    %1091 = vmatpush1.bf16.xpose.msra.mxu0 0
    %1092 = vmatprep.subr.bf16.mxu0 0
    %1093 = vmatpush1.bf16.xpose.msra.mxu0 0
    %1094 = vmatprep.subr.bf16.mxu0 0
    %1095 = vmatpush1.bf16.xpose.msra.mxu0 0
    %1096 = vmatprep.subr.bf16.mxu0 0
    %1097 = vmatpush1.bf16.xpose.msra.mxu0 0
    %1098 = vmatprep.subr.bf16.mxu0 0
    %1099 = vmatpush1.bf16.xpose.msra.mxu0 0
    %1100 = vmatprep.subr.bf16.mxu0 0
    %1101 = vmatpush1.bf16.xpose.msra.mxu0 0
    %1102 = vmatprep.subr.bf16.mxu0 0
    %1103 = vmatpush1.bf16.xpose.msra.mxu0 0
    %1104 = vmatprep.subr.bf16.mxu0 0
    %1105 = vmatpush1.bf16.xpose.msra.mxu0 0
    %1106 = vmatprep.mubr.bf16.mxu0 0
    %1107 = vmatmul.mubr.bf16.gmra.mrb[0].mxu0 %v1069
    %v1108 = vpop.f32.mrb[0].mxu0
    %v1109 = vadd.f32 0.0, %v1108
    %v1110 = vpop.f32.mrb[0].mxu0
    %v1111 = vpop.f32.mrb[0].mxu0
    %v1112 = vpop.f32.mrb[0].mxu0
    %1113 = vdwg.mxu0
    %1115 = vrot.lane.b32.xlu0 %v846, 96
    %v1116 = vpop.permute.xlu0 %1115
    %1118 = vrot.lane.b32.xlu0 %v848, 96
    %v1119 = vpop.permute.xlu0 %1118
    %v1121 = vsel %vm851, %v1116, 0
    %v1124 = vsel %vm851, %v1119, 0
    %1126 = vmatprep.subr.bf16.mxu0 0
    %1127 = vmatpush1.bf16.xpose.msra.mxu0 %v1124
    %1128 = vmatprep.subr.bf16.mxu0 0
    %1129 = vmatpush1.bf16.xpose.msra.mxu0 0
    %1130 = vmatprep.subr.bf16.mxu0 0
    %1131 = vmatpush1.bf16.xpose.msra.mxu0 0
    %1132 = vmatprep.subr.bf16.mxu0 0
    %1133 = vmatpush1.bf16.xpose.msra.mxu0 0
    %1134 = vmatprep.subr.bf16.mxu0 0
    %1135 = vmatpush1.bf16.xpose.msra.mxu0 0
    %1136 = vmatprep.subr.bf16.mxu0 0
    %1137 = vmatpush1.bf16.xpose.msra.mxu0 0
    %1138 = vmatprep.subr.bf16.mxu0 0
    %1139 = vmatpush1.bf16.xpose.msra.mxu0 0
    %1140 = vmatprep.subr.bf16.mxu0 0
    %1141 = vmatpush1.bf16.xpose.msra.mxu0 0
    %1142 = vmatprep.subr.bf16.mxu0 0
    %1143 = vmatpush1.bf16.xpose.msra.mxu0 0
    %1144 = vmatprep.subr.bf16.mxu0 0
    %1145 = vmatpush1.bf16.xpose.msra.mxu0 0
    %1146 = vmatprep.subr.bf16.mxu0 0
    %1147 = vmatpush1.bf16.xpose.msra.mxu0 0
    %1148 = vmatprep.subr.bf16.mxu0 0
    %1149 = vmatpush1.bf16.xpose.msra.mxu0 0
    %1150 = vmatprep.subr.bf16.mxu0 0
    %1151 = vmatpush1.bf16.xpose.msra.mxu0 0
    %1152 = vmatprep.subr.bf16.mxu0 0
    %1153 = vmatpush1.bf16.xpose.msra.mxu0 0
    %1154 = vmatprep.subr.bf16.mxu0 0
    %1155 = vmatpush1.bf16.xpose.msra.mxu0 0
    %1156 = vmatprep.subr.bf16.mxu0 0
    %1157 = vmatpush1.bf16.xpose.msra.mxu0 0
    %1158 = vmatprep.mubr.bf16.mxu0 0
    %1159 = vmatmul.mubr.bf16.gmra.mrb[0].mxu0 %v1121
    %v1160 = vpop.f32.mrb[0].mxu0
    %v1161 = vadd.f32 0.0, %v1160
    %v1162 = vpop.f32.mrb[0].mxu0
    %v1163 = vpop.f32.mrb[0].mxu0
    %v1164 = vpop.f32.mrb[0].mxu0
    %1165 = vdwg.mxu0
    %v1166 = vsel %vm944, %v1109, -inf
    %1167 = vmax.xlane.f32.xlu0 %v1166
    %v1168 = vpop.xlane.xlu0 %1167
    %v1169 = vsel %vm944, %v1161, -inf
    %1170 = vmax.xlane.f32.xlu0 %v1169
    %v1171 = vpop.xlane.xlu0 %1170
    %v1172 = vsub.f32 %v1109, %v1168
    %v1173 = vsub.f32 %v1161, %v1171
    %v1174 = vmul.f32 %v1172, 1.442695
    %v1175 = vpow.pop %v1174
    %v1176 = vmul.f32 %v1173, 1.442695
    %v1177 = vpow.pop %v1176
    %v1178 = vsel %vm944, %v1175, 0.0
    %1179 = vadd.xlane.f32.xlu0 %v1178
    %v1180 = vpop.xlane.xlu0 %1179
    %v1181 = vsel %vm944, %v1177, 0.0
    %1182 = vadd.xlane.f32.xlu0 %v1181
    %v1183 = vpop.xlane.xlu0 %1182
    %v1184 = vrcp.pop %v1180
    %v1185 = vrcp.pop %v1183
    %v1186 = vmul.f32 %v1175, %v1184
    %v1187 = vmul.f32 %v1177, %v1185
    %v1188 = vpack.c.bf16 %v1186, %v1186
    %v1189 = vpack.c.bf16 %v1187, %v1187
    %1191 = vrot.lane.b32.xlu0 %v849, 96
    %v1192 = vpop.permute.xlu0 %1191
    %v1194 = vsel %vm944, %v1188, 0
    %v1197 = vsel %vm972, %v1192, 0
    %1199 = vmatprep.subr.bf16.mxu0 0
    %1200 = vmatpush1.bf16.msra.mxu0 %v1197
    %1201 = vmatprep.subr.bf16.mxu0 0
    %1202 = vmatpush1.bf16.msra.mxu0 0
    %1203 = vmatprep.subr.bf16.mxu0 0
    %1204 = vmatpush1.bf16.msra.mxu0 0
    %1205 = vmatprep.subr.bf16.mxu0 0
    %1206 = vmatpush1.bf16.msra.mxu0 0
    %1207 = vmatprep.subr.bf16.mxu0 0
    %1208 = vmatpush1.bf16.msra.mxu0 0
    %1209 = vmatprep.subr.bf16.mxu0 0
    %1210 = vmatpush1.bf16.msra.mxu0 0
    %1211 = vmatprep.subr.bf16.mxu0 0
    %1212 = vmatpush1.bf16.msra.mxu0 0
    %1213 = vmatprep.subr.bf16.mxu0 0
    %1214 = vmatpush1.bf16.msra.mxu0 0
    %1215 = vmatprep.subr.bf16.mxu0 0
    %1216 = vmatpush1.bf16.msra.mxu0 0
    %1217 = vmatprep.subr.bf16.mxu0 0
    %1218 = vmatpush1.bf16.msra.mxu0 0
    %1219 = vmatprep.subr.bf16.mxu0 0
    %1220 = vmatpush1.bf16.msra.mxu0 0
    %1221 = vmatprep.subr.bf16.mxu0 0
    %1222 = vmatpush1.bf16.msra.mxu0 0
    %1223 = vmatprep.subr.bf16.mxu0 0
    %1224 = vmatpush1.bf16.msra.mxu0 0
    %1225 = vmatprep.subr.bf16.mxu0 0
    %1226 = vmatpush1.bf16.msra.mxu0 0
    %1227 = vmatprep.subr.bf16.mxu0 0
    %1228 = vmatpush1.bf16.msra.mxu0 0
    %1229 = vmatprep.subr.bf16.mxu0 0
    %1230 = vmatpush1.bf16.msra.mxu0 0
    %1231 = vmatprep.mubr.bf16.mxu0 0
    %1232 = vmatmul.mubr.bf16.gmra.mrb[0].mxu0 %v1194
    %v1233 = vpop.f32.mrb[0].mxu0
    %v1234 = vadd.f32 0.0, %v1233
    %v1235 = vpop.f32.mrb[0].mxu0
    %v1236 = vpop.f32.mrb[0].mxu0
    %v1237 = vpop.f32.mrb[0].mxu0
    %1238 = vdwg.mxu0
    %1240 = vrot.lane.b32.xlu0 %v850, 96
    %v1241 = vpop.permute.xlu0 %1240
    %v1243 = vsel %vm944, %v1189, 0
    %v1246 = vsel %vm972, %v1241, 0
    %1248 = vmatprep.subr.bf16.mxu0 0
    %1249 = vmatpush1.bf16.msra.mxu0 %v1246
    %1250 = vmatprep.subr.bf16.mxu0 0
    %1251 = vmatpush1.bf16.msra.mxu0 0
    %1252 = vmatprep.subr.bf16.mxu0 0
    %1253 = vmatpush1.bf16.msra.mxu0 0
    %1254 = vmatprep.subr.bf16.mxu0 0
    %1255 = vmatpush1.bf16.msra.mxu0 0
    %1256 = vmatprep.subr.bf16.mxu0 0
    %1257 = vmatpush1.bf16.msra.mxu0 0
    %1258 = vmatprep.subr.bf16.mxu0 0
    %1259 = vmatpush1.bf16.msra.mxu0 0
    %1260 = vmatprep.subr.bf16.mxu0 0
    %1261 = vmatpush1.bf16.msra.mxu0 0
    %1262 = vmatprep.subr.bf16.mxu0 0
    %1263 = vmatpush1.bf16.msra.mxu0 0
    %1264 = vmatprep.subr.bf16.mxu0 0
    %1265 = vmatpush1.bf16.msra.mxu0 0
    %1266 = vmatprep.subr.bf16.mxu0 0
    %1267 = vmatpush1.bf16.msra.mxu0 0
    %1268 = vmatprep.subr.bf16.mxu0 0
    %1269 = vmatpush1.bf16.msra.mxu0 0
    %1270 = vmatprep.subr.bf16.mxu0 0
    %1271 = vmatpush1.bf16.msra.mxu0 0
    %1272 = vmatprep.subr.bf16.mxu0 0
    %1273 = vmatpush1.bf16.msra.mxu0 0
    %1274 = vmatprep.subr.bf16.mxu0 0
    %1275 = vmatpush1.bf16.msra.mxu0 0
    %1276 = vmatprep.subr.bf16.mxu0 0
    %1277 = vmatpush1.bf16.msra.mxu0 0
    %1278 = vmatprep.subr.bf16.mxu0 0
    %1279 = vmatpush1.bf16.msra.mxu0 0
    %1280 = vmatprep.mubr.bf16.mxu0 0
    %1281 = vmatmul.mubr.bf16.gmra.mrb[0].mxu0 %v1243
    %v1282 = vpop.f32.mrb[0].mxu0
    %v1283 = vadd.f32 0.0, %v1282
    %v1284 = vpop.f32.mrb[0].mxu0
    %v1285 = vpop.f32.mrb[0].mxu0
    %v1286 = vpop.f32.mrb[0].mxu0
    %1287 = vdwg.mxu0
    %1288 = vrot.lane.b32.xlu0 %v845, 64
    %v1289 = vpop.permute.xlu0 %1288
    %1290 = vrot.lane.b32.xlu0 %v847, 64
    %v1291 = vpop.permute.xlu0 %1290
    %v1293 = vsel %vm851, %v1289, 0
    %v1296 = vsel %vm851, %v1291, 0
    %1298 = vmatprep.subr.bf16.mxu0 0
    %1299 = vmatpush1.bf16.xpose.msra.mxu0 %v1296
    %1300 = vmatprep.subr.bf16.mxu0 0
    %1301 = vmatpush1.bf16.xpose.msra.mxu0 0
    %1302 = vmatprep.subr.bf16.mxu0 0
    %1303 = vmatpush1.bf16.xpose.msra.mxu0 0
    %1304 = vmatprep.subr.bf16.mxu0 0
    %1305 = vmatpush1.bf16.xpose.msra.mxu0 0
    %1306 = vmatprep.subr.bf16.mxu0 0
    %1307 = vmatpush1.bf16.xpose.msra.mxu0 0
    %1308 = vmatprep.subr.bf16.mxu0 0
    %1309 = vmatpush1.bf16.xpose.msra.mxu0 0
    %1310 = vmatprep.subr.bf16.mxu0 0
    %1311 = vmatpush1.bf16.xpose.msra.mxu0 0
    %1312 = vmatprep.subr.bf16.mxu0 0
    %1313 = vmatpush1.bf16.xpose.msra.mxu0 0
    %1314 = vmatprep.subr.bf16.mxu0 0
    %1315 = vmatpush1.bf16.xpose.msra.mxu0 0
    %1316 = vmatprep.subr.bf16.mxu0 0
    %1317 = vmatpush1.bf16.xpose.msra.mxu0 0
    %1318 = vmatprep.subr.bf16.mxu0 0
    %1319 = vmatpush1.bf16.xpose.msra.mxu0 0
    %1320 = vmatprep.subr.bf16.mxu0 0
    %1321 = vmatpush1.bf16.xpose.msra.mxu0 0
    %1322 = vmatprep.subr.bf16.mxu0 0
    %1323 = vmatpush1.bf16.xpose.msra.mxu0 0
    %1324 = vmatprep.subr.bf16.mxu0 0
    %1325 = vmatpush1.bf16.xpose.msra.mxu0 0
    %1326 = vmatprep.subr.bf16.mxu0 0
    %1327 = vmatpush1.bf16.xpose.msra.mxu0 0
    %1328 = vmatprep.subr.bf16.mxu0 0
    %1329 = vmatpush1.bf16.xpose.msra.mxu0 0
    %1330 = vmatprep.mubr.bf16.mxu0 0
    %1331 = vmatmul.mubr.bf16.gmra.mrb[0].mxu0 %v1293
    %v1332 = vpop.f32.mrb[0].mxu0
    %v1333 = vadd.f32 0.0, %v1332
    %v1334 = vpop.f32.mrb[0].mxu0
    %v1335 = vpop.f32.mrb[0].mxu0
    %v1336 = vpop.f32.mrb[0].mxu0
    %1337 = vdwg.mxu0
    %1338 = vrot.lane.b32.xlu0 %v846, 64
    %v1339 = vpop.permute.xlu0 %1338
    %1340 = vrot.lane.b32.xlu0 %v848, 64
    %v1341 = vpop.permute.xlu0 %1340
    %v1343 = vsel %vm851, %v1339, 0
    %v1346 = vsel %vm851, %v1341, 0
    %1348 = vmatprep.subr.bf16.mxu0 0
    %1349 = vmatpush1.bf16.xpose.msra.mxu0 %v1346
    %1350 = vmatprep.subr.bf16.mxu0 0
    %1351 = vmatpush1.bf16.xpose.msra.mxu0 0
    %1352 = vmatprep.subr.bf16.mxu0 0
    %1353 = vmatpush1.bf16.xpose.msra.mxu0 0
    %1354 = vmatprep.subr.bf16.mxu0 0
    %1355 = vmatpush1.bf16.xpose.msra.mxu0 0
    %1356 = vmatprep.subr.bf16.mxu0 0
    %1357 = vmatpush1.bf16.xpose.msra.mxu0 0
    %1358 = vmatprep.subr.bf16.mxu0 0
    %1359 = vmatpush1.bf16.xpose.msra.mxu0 0
    %1360 = vmatprep.subr.bf16.mxu0 0
    %1361 = vmatpush1.bf16.xpose.msra.mxu0 0
    %1362 = vmatprep.subr.bf16.mxu0 0
    %1363 = vmatpush1.bf16.xpose.msra.mxu0 0
    %1364 = vmatprep.subr.bf16.mxu0 0
    %1365 = vmatpush1.bf16.xpose.msra.mxu0 0
    %1366 = vmatprep.subr.bf16.mxu0 0
    %1367 = vmatpush1.bf16.xpose.msra.mxu0 0
    %1368 = vmatprep.subr.bf16.mxu0 0
    %1369 = vmatpush1.bf16.xpose.msra.mxu0 0
    %1370 = vmatprep.subr.bf16.mxu0 0
    %1371 = vmatpush1.bf16.xpose.msra.mxu0 0
    %1372 = vmatprep.subr.bf16.mxu0 0
    %1373 = vmatpush1.bf16.xpose.msra.mxu0 0
    %1374 = vmatprep.subr.bf16.mxu0 0
    %1375 = vmatpush1.bf16.xpose.msra.mxu0 0
    %1376 = vmatprep.subr.bf16.mxu0 0
    %1377 = vmatpush1.bf16.xpose.msra.mxu0 0
    %1378 = vmatprep.subr.bf16.mxu0 0
    %1379 = vmatpush1.bf16.xpose.msra.mxu0 0
    %1380 = vmatprep.mubr.bf16.mxu0 0
    %1381 = vmatmul.mubr.bf16.gmra.mrb[0].mxu0 %v1343
    %v1382 = vpop.f32.mrb[0].mxu0
    %v1383 = vadd.f32 0.0, %v1382
    %v1384 = vpop.f32.mrb[0].mxu0
    %v1385 = vpop.f32.mrb[0].mxu0
    %v1386 = vpop.f32.mrb[0].mxu0
    %1387 = vdwg.mxu0
    %v1388 = vsel %vm944, %v1333, -inf
    %1389 = vmax.xlane.f32.xlu0 %v1388
    %v1390 = vpop.xlane.xlu0 %1389
    %v1391 = vsel %vm944, %v1383, -inf
    %1392 = vmax.xlane.f32.xlu0 %v1391
    %v1393 = vpop.xlane.xlu0 %1392
    %v1394 = vsub.f32 %v1333, %v1390
    %v1395 = vsub.f32 %v1383, %v1393
    %v1396 = vmul.f32 %v1394, 1.442695
    %v1397 = vpow.pop %v1396
    %v1398 = vmul.f32 %v1395, 1.442695
    %v1399 = vpow.pop %v1398
    %v1400 = vsel %vm944, %v1397, 0.0
    %1401 = vadd.xlane.f32.xlu0 %v1400
    %v1402 = vpop.xlane.xlu0 %1401
    %v1403 = vsel %vm944, %v1399, 0.0
    %1404 = vadd.xlane.f32.xlu0 %v1403
    %v1405 = vpop.xlane.xlu0 %1404
    %v1406 = vrcp.pop %v1402
    %v1407 = vrcp.pop %v1405
    %v1408 = vmul.f32 %v1397, %v1406
    %v1409 = vmul.f32 %v1399, %v1407
    %v1410 = vpack.c.bf16 %v1408, %v1408
    %v1411 = vpack.c.bf16 %v1409, %v1409
    %1412 = vrot.lane.b32.xlu0 %v849, 64
    %v1413 = vpop.permute.xlu0 %1412
    %v1415 = vsel %vm944, %v1410, 0
    %v1418 = vsel %vm972, %v1413, 0
    %1420 = vmatprep.subr.bf16.mxu0 0
    %1421 = vmatpush1.bf16.msra.mxu0 %v1418
    %1422 = vmatprep.subr.bf16.mxu0 0
    %1423 = vmatpush1.bf16.msra.mxu0 0
    %1424 = vmatprep.subr.bf16.mxu0 0
    %1425 = vmatpush1.bf16.msra.mxu0 0
    %1426 = vmatprep.subr.bf16.mxu0 0
    %1427 = vmatpush1.bf16.msra.mxu0 0
    %1428 = vmatprep.subr.bf16.mxu0 0
    %1429 = vmatpush1.bf16.msra.mxu0 0
    %1430 = vmatprep.subr.bf16.mxu0 0
    %1431 = vmatpush1.bf16.msra.mxu0 0
    %1432 = vmatprep.subr.bf16.mxu0 0
    %1433 = vmatpush1.bf16.msra.mxu0 0
    %1434 = vmatprep.subr.bf16.mxu0 0
    %1435 = vmatpush1.bf16.msra.mxu0 0
    %1436 = vmatprep.subr.bf16.mxu0 0
    %1437 = vmatpush1.bf16.msra.mxu0 0
    %1438 = vmatprep.subr.bf16.mxu0 0
    %1439 = vmatpush1.bf16.msra.mxu0 0
    %1440 = vmatprep.subr.bf16.mxu0 0
    %1441 = vmatpush1.bf16.msra.mxu0 0
    %1442 = vmatprep.subr.bf16.mxu0 0
    %1443 = vmatpush1.bf16.msra.mxu0 0
    %1444 = vmatprep.subr.bf16.mxu0 0
    %1445 = vmatpush1.bf16.msra.mxu0 0
    %1446 = vmatprep.subr.bf16.mxu0 0
    %1447 = vmatpush1.bf16.msra.mxu0 0
    %1448 = vmatprep.subr.bf16.mxu0 0
    %1449 = vmatpush1.bf16.msra.mxu0 0
    %1450 = vmatprep.subr.bf16.mxu0 0
    %1451 = vmatpush1.bf16.msra.mxu0 0
    %1452 = vmatprep.mubr.bf16.mxu0 0
    %1453 = vmatmul.mubr.bf16.gmra.mrb[0].mxu0 %v1415
    %v1454 = vpop.f32.mrb[0].mxu0
    %v1455 = vadd.f32 0.0, %v1454
    %v1456 = vpop.f32.mrb[0].mxu0
    %v1457 = vpop.f32.mrb[0].mxu0
    %v1458 = vpop.f32.mrb[0].mxu0
    %1459 = vdwg.mxu0
    %1460 = vrot.lane.b32.xlu0 %v850, 64
    %v1461 = vpop.permute.xlu0 %1460
    %v1463 = vsel %vm944, %v1411, 0
    %v1466 = vsel %vm972, %v1461, 0
    %1468 = vmatprep.subr.bf16.mxu0 0
    %1469 = vmatpush1.bf16.msra.mxu0 %v1466
    %1470 = vmatprep.subr.bf16.mxu0 0
    %1471 = vmatpush1.bf16.msra.mxu0 0
    %1472 = vmatprep.subr.bf16.mxu0 0
    %1473 = vmatpush1.bf16.msra.mxu0 0
    %1474 = vmatprep.subr.bf16.mxu0 0
    %1475 = vmatpush1.bf16.msra.mxu0 0
    %1476 = vmatprep.subr.bf16.mxu0 0
    %1477 = vmatpush1.bf16.msra.mxu0 0
    %1478 = vmatprep.subr.bf16.mxu0 0
    %1479 = vmatpush1.bf16.msra.mxu0 0
    %1480 = vmatprep.subr.bf16.mxu0 0
    %1481 = vmatpush1.bf16.msra.mxu0 0
    %1482 = vmatprep.subr.bf16.mxu0 0
    %1483 = vmatpush1.bf16.msra.mxu0 0
    %1484 = vmatprep.subr.bf16.mxu0 0
    %1485 = vmatpush1.bf16.msra.mxu0 0
    %1486 = vmatprep.subr.bf16.mxu0 0
    %1487 = vmatpush1.bf16.msra.mxu0 0
    %1488 = vmatprep.subr.bf16.mxu0 0
    %1489 = vmatpush1.bf16.msra.mxu0 0
    %1490 = vmatprep.subr.bf16.mxu0 0
    %1491 = vmatpush1.bf16.msra.mxu0 0
    %1492 = vmatprep.subr.bf16.mxu0 0
    %1493 = vmatpush1.bf16.msra.mxu0 0
    %1494 = vmatprep.subr.bf16.mxu0 0
    %1495 = vmatpush1.bf16.msra.mxu0 0
    %1496 = vmatprep.subr.bf16.mxu0 0
    %1497 = vmatpush1.bf16.msra.mxu0 0
    %1498 = vmatprep.subr.bf16.mxu0 0
    %1499 = vmatpush1.bf16.msra.mxu0 0
    %1500 = vmatprep.mubr.bf16.mxu0 0
    %1501 = vmatmul.mubr.bf16.gmra.mrb[0].mxu0 %v1463
    %v1502 = vpop.f32.mrb[0].mxu0
    %v1503 = vadd.f32 0.0, %v1502
    %v1504 = vpop.f32.mrb[0].mxu0
    %v1505 = vpop.f32.mrb[0].mxu0
    %v1506 = vpop.f32.mrb[0].mxu0
    %1507 = vdwg.mxu0
    %1508 = vrot.lane.b32.xlu0 %v845, 32
    %v1509 = vpop.permute.xlu0 %1508
    %1510 = vrot.lane.b32.xlu0 %v847, 32
    %v1511 = vpop.permute.xlu0 %1510
    %v1513 = vsel %vm851, %v1509, 0
    %v1516 = vsel %vm851, %v1511, 0
    %1518 = vmatprep.subr.bf16.mxu0 0
    %1519 = vmatpush1.bf16.xpose.msra.mxu0 %v1516
    %1520 = vmatprep.subr.bf16.mxu0 0
    %1521 = vmatpush1.bf16.xpose.msra.mxu0 0
    %1522 = vmatprep.subr.bf16.mxu0 0
    %1523 = vmatpush1.bf16.xpose.msra.mxu0 0
    %1524 = vmatprep.subr.bf16.mxu0 0
    %1525 = vmatpush1.bf16.xpose.msra.mxu0 0
    %1526 = vmatprep.subr.bf16.mxu0 0
    %1527 = vmatpush1.bf16.xpose.msra.mxu0 0
    %1528 = vmatprep.subr.bf16.mxu0 0
    %1529 = vmatpush1.bf16.xpose.msra.mxu0 0
    %1530 = vmatprep.subr.bf16.mxu0 0
    %1531 = vmatpush1.bf16.xpose.msra.mxu0 0
    %1532 = vmatprep.subr.bf16.mxu0 0
    %1533 = vmatpush1.bf16.xpose.msra.mxu0 0
    %1534 = vmatprep.subr.bf16.mxu0 0
    %1535 = vmatpush1.bf16.xpose.msra.mxu0 0
    %1536 = vmatprep.subr.bf16.mxu0 0
    %1537 = vmatpush1.bf16.xpose.msra.mxu0 0
    %1538 = vmatprep.subr.bf16.mxu0 0
    %1539 = vmatpush1.bf16.xpose.msra.mxu0 0
    %1540 = vmatprep.subr.bf16.mxu0 0
    %1541 = vmatpush1.bf16.xpose.msra.mxu0 0
    %1542 = vmatprep.subr.bf16.mxu0 0
    %1543 = vmatpush1.bf16.xpose.msra.mxu0 0
    %1544 = vmatprep.subr.bf16.mxu0 0
    %1545 = vmatpush1.bf16.xpose.msra.mxu0 0
    %1546 = vmatprep.subr.bf16.mxu0 0
    %1547 = vmatpush1.bf16.xpose.msra.mxu0 0
    %1548 = vmatprep.subr.bf16.mxu0 0
    %1549 = vmatpush1.bf16.xpose.msra.mxu0 0
    %1550 = vmatprep.mubr.bf16.mxu0 0
    %1551 = vmatmul.mubr.bf16.gmra.mrb[0].mxu0 %v1513
    %v1552 = vpop.f32.mrb[0].mxu0
    %v1553 = vadd.f32 0.0, %v1552
    %v1554 = vpop.f32.mrb[0].mxu0
    %v1555 = vpop.f32.mrb[0].mxu0
    %v1556 = vpop.f32.mrb[0].mxu0
    %1557 = vdwg.mxu0
    %1558 = vrot.lane.b32.xlu0 %v846, 32
    %v1559 = vpop.permute.xlu0 %1558
    %1560 = vrot.lane.b32.xlu0 %v848, 32
    %v1561 = vpop.permute.xlu0 %1560
    %v1563 = vsel %vm851, %v1559, 0
    %v1566 = vsel %vm851, %v1561, 0
    %1568 = vmatprep.subr.bf16.mxu0 0
    %1569 = vmatpush1.bf16.xpose.msra.mxu0 %v1566
    %1570 = vmatprep.subr.bf16.mxu0 0
    %1571 = vmatpush1.bf16.xpose.msra.mxu0 0
    %1572 = vmatprep.subr.bf16.mxu0 0
    %1573 = vmatpush1.bf16.xpose.msra.mxu0 0
    %1574 = vmatprep.subr.bf16.mxu0 0
    %1575 = vmatpush1.bf16.xpose.msra.mxu0 0
    %1576 = vmatprep.subr.bf16.mxu0 0
    %1577 = vmatpush1.bf16.xpose.msra.mxu0 0
    %1578 = vmatprep.subr.bf16.mxu0 0
    %1579 = vmatpush1.bf16.xpose.msra.mxu0 0
    %1580 = vmatprep.subr.bf16.mxu0 0
    %1581 = vmatpush1.bf16.xpose.msra.mxu0 0
    %1582 = vmatprep.subr.bf16.mxu0 0
    %1583 = vmatpush1.bf16.xpose.msra.mxu0 0
    %1584 = vmatprep.subr.bf16.mxu0 0
    %1585 = vmatpush1.bf16.xpose.msra.mxu0 0
    %1586 = vmatprep.subr.bf16.mxu0 0
    %1587 = vmatpush1.bf16.xpose.msra.mxu0 0
    %1588 = vmatprep.subr.bf16.mxu0 0
    %1589 = vmatpush1.bf16.xpose.msra.mxu0 0
    %1590 = vmatprep.subr.bf16.mxu0 0
    %1591 = vmatpush1.bf16.xpose.msra.mxu0 0
    %1592 = vmatprep.subr.bf16.mxu0 0
    %1593 = vmatpush1.bf16.xpose.msra.mxu0 0
    %1594 = vmatprep.subr.bf16.mxu0 0
    %1595 = vmatpush1.bf16.xpose.msra.mxu0 0
    %1596 = vmatprep.subr.bf16.mxu0 0
    %1597 = vmatpush1.bf16.xpose.msra.mxu0 0
    %1598 = vmatprep.subr.bf16.mxu0 0
    %1599 = vmatpush1.bf16.xpose.msra.mxu0 0
    %1600 = vmatprep.mubr.bf16.mxu0 0
    %1601 = vmatmul.mubr.bf16.gmra.mrb[0].mxu0 %v1563
    %v1602 = vpop.f32.mrb[0].mxu0
    %v1603 = vadd.f32 0.0, %v1602
    %v1604 = vpop.f32.mrb[0].mxu0
    %v1605 = vpop.f32.mrb[0].mxu0
    %v1606 = vpop.f32.mrb[0].mxu0
    %1607 = vdwg.mxu0
    %v1608 = vsel %vm944, %v1553, -inf
    %1609 = vmax.xlane.f32.xlu0 %v1608
    %v1610 = vpop.xlane.xlu0 %1609
    %v1611 = vsel %vm944, %v1603, -inf
    %1612 = vmax.xlane.f32.xlu0 %v1611
    %v1613 = vpop.xlane.xlu0 %1612
    %v1614 = vsub.f32 %v1553, %v1610
    %v1615 = vsub.f32 %v1603, %v1613
    %v1616 = vmul.f32 %v1614, 1.442695
    %v1617 = vpow.pop %v1616
    %v1618 = vmul.f32 %v1615, 1.442695
    %v1619 = vpow.pop %v1618
    %v1620 = vsel %vm944, %v1617, 0.0
    %1621 = vadd.xlane.f32.xlu0 %v1620
    %v1622 = vpop.xlane.xlu0 %1621
    %v1623 = vsel %vm944, %v1619, 0.0
    %1624 = vadd.xlane.f32.xlu0 %v1623
    %v1625 = vpop.xlane.xlu0 %1624
    %v1626 = vrcp.pop %v1622
    %v1627 = vrcp.pop %v1625
    %v1628 = vmul.f32 %v1617, %v1626
    %v1629 = vmul.f32 %v1619, %v1627
    %v1630 = vpack.c.bf16 %v1628, %v1628
    %v1631 = vpack.c.bf16 %v1629, %v1629
    %1632 = vrot.lane.b32.xlu0 %v849, 32
    %v1633 = vpop.permute.xlu0 %1632
    %v1635 = vsel %vm944, %v1630, 0
    %v1638 = vsel %vm972, %v1633, 0
    %1640 = vmatprep.subr.bf16.mxu0 0
    %1641 = vmatpush1.bf16.msra.mxu0 %v1638
    %1642 = vmatprep.subr.bf16.mxu0 0
    %1643 = vmatpush1.bf16.msra.mxu0 0
    %1644 = vmatprep.subr.bf16.mxu0 0
    %1645 = vmatpush1.bf16.msra.mxu0 0
    %1646 = vmatprep.subr.bf16.mxu0 0
    %1647 = vmatpush1.bf16.msra.mxu0 0
    %1648 = vmatprep.subr.bf16.mxu0 0
    %1649 = vmatpush1.bf16.msra.mxu0 0
    %1650 = vmatprep.subr.bf16.mxu0 0
    %1651 = vmatpush1.bf16.msra.mxu0 0
    %1652 = vmatprep.subr.bf16.mxu0 0
    %1653 = vmatpush1.bf16.msra.mxu0 0
    %1654 = vmatprep.subr.bf16.mxu0 0
    %1655 = vmatpush1.bf16.msra.mxu0 0
    %1656 = vmatprep.subr.bf16.mxu0 0
    %1657 = vmatpush1.bf16.msra.mxu0 0
    %1658 = vmatprep.subr.bf16.mxu0 0
    %1659 = vmatpush1.bf16.msra.mxu0 0
    %1660 = vmatprep.subr.bf16.mxu0 0
    %1661 = vmatpush1.bf16.msra.mxu0 0
    %1662 = vmatprep.subr.bf16.mxu0 0
    %1663 = vmatpush1.bf16.msra.mxu0 0
    %1664 = vmatprep.subr.bf16.mxu0 0
    %1665 = vmatpush1.bf16.msra.mxu0 0
    %1666 = vmatprep.subr.bf16.mxu0 0
    %1667 = vmatpush1.bf16.msra.mxu0 0
    %1668 = vmatprep.subr.bf16.mxu0 0
    %1669 = vmatpush1.bf16.msra.mxu0 0
    %1670 = vmatprep.subr.bf16.mxu0 0
    %1671 = vmatpush1.bf16.msra.mxu0 0
    %1672 = vmatprep.mubr.bf16.mxu0 0
    %1673 = vmatmul.mubr.bf16.gmra.mrb[0].mxu0 %v1635
    %v1674 = vpop.f32.mrb[0].mxu0
    %v1675 = vadd.f32 0.0, %v1674
    %v1676 = vpop.f32.mrb[0].mxu0
    %v1677 = vpop.f32.mrb[0].mxu0
    %v1678 = vpop.f32.mrb[0].mxu0
    %1679 = vdwg.mxu0
    %1680 = vrot.lane.b32.xlu0 %v850, 32
    %v1681 = vpop.permute.xlu0 %1680
    %v1683 = vsel %vm944, %v1631, 0
    %v1686 = vsel %vm972, %v1681, 0
    %1688 = vmatprep.subr.bf16.mxu0 0
    %1689 = vmatpush1.bf16.msra.mxu0 %v1686
    %1690 = vmatprep.subr.bf16.mxu0 0
    %1691 = vmatpush1.bf16.msra.mxu0 0
    %1692 = vmatprep.subr.bf16.mxu0 0
    %1693 = vmatpush1.bf16.msra.mxu0 0
    %1694 = vmatprep.subr.bf16.mxu0 0
    %1695 = vmatpush1.bf16.msra.mxu0 0
    %1696 = vmatprep.subr.bf16.mxu0 0
    %1697 = vmatpush1.bf16.msra.mxu0 0
    %1698 = vmatprep.subr.bf16.mxu0 0
    %1699 = vmatpush1.bf16.msra.mxu0 0
    %1700 = vmatprep.subr.bf16.mxu0 0
    %1701 = vmatpush1.bf16.msra.mxu0 0
    %1702 = vmatprep.subr.bf16.mxu0 0
    %1703 = vmatpush1.bf16.msra.mxu0 0
    %1704 = vmatprep.subr.bf16.mxu0 0
    %1705 = vmatpush1.bf16.msra.mxu0 0
    %1706 = vmatprep.subr.bf16.mxu0 0
    %1707 = vmatpush1.bf16.msra.mxu0 0
    %1708 = vmatprep.subr.bf16.mxu0 0
    %1709 = vmatpush1.bf16.msra.mxu0 0
    %1710 = vmatprep.subr.bf16.mxu0 0
    %1711 = vmatpush1.bf16.msra.mxu0 0
    %1712 = vmatprep.subr.bf16.mxu0 0
    %1713 = vmatpush1.bf16.msra.mxu0 0
    %1714 = vmatprep.subr.bf16.mxu0 0
    %1715 = vmatpush1.bf16.msra.mxu0 0
    %1716 = vmatprep.subr.bf16.mxu0 0
    %1717 = vmatpush1.bf16.msra.mxu0 0
    %1718 = vmatprep.subr.bf16.mxu0 0
    %1719 = vmatpush1.bf16.msra.mxu0 0
    %1720 = vmatprep.mubr.bf16.mxu0 0
    %1721 = vmatmul.mubr.bf16.gmra.mrb[0].mxu0 %v1683
    %v1722 = vpop.f32.mrb[0].mxu0
    %v1723 = vadd.f32 0.0, %v1722
    %v1724 = vpop.f32.mrb[0].mxu0
    %v1725 = vpop.f32.mrb[0].mxu0
    %v1726 = vpop.f32.mrb[0].mxu0
    %1727 = vdwg.mxu0
    %1730 = vrot.lane.b32.xlu0 %v1234, 32
    %v1731 = vpop.permute.xlu0 %1730
    %1732 = vrot.lane.b32.xlu0 %v1283, 32
    %v1733 = vpop.permute.xlu0 %1732
    %1738 = vrot.lane.b32.xlu0 %v1455, 64
    %v1739 = vpop.permute.xlu0 %1738
    %1740 = vrot.lane.b32.xlu0 %v1503, 64
    %v1741 = vpop.permute.xlu0 %1740
    %1746 = vrot.lane.b32.xlu0 %v1675, 96
    %v1747 = vpop.permute.xlu0 %1746
    %1748 = vrot.lane.b32.xlu0 %v1723, 96
    %v1749 = vpop.permute.xlu0 %1748
    %v1752 = vsel %vm851, %v1011, %v1731
    %v1753 = vsel %vm851, %v1057, %v1733
    %v1754 = vsel %vm483, %v1752, %v1739
    %v1755 = vsel %vm483, %v1753, %v1741
    %vm1756 = vcmask 785408
    %v1757 = vsel %vm1756, %v1754, %v1747
    %v1758 = vsel %vm1756, %v1755, %v1749
    %v1759 = vld [vmem:[#allocation9] sm:$0xf]
    %v1760 = vld [vmem:[#allocation9 + $0x4] sm:$0xf]
    %v1761 = vld [vmem:[#allocation9 + $0x8] sm:$0xf]
    %v1762 = vld [vmem:[#allocation9 + $0xc] sm:$0xf]
    %v1763 = vld [vmem:[#allocation9 + $0x10] sm:$0xf]
    %v1764 = vld [vmem:[#allocation9 + $0x14] sm:$0xf]
    %v1765 = vld [vmem:[#allocation9 + $0x18] sm:$0xf]
    %v1766 = vld [vmem:[#allocation9 + $0x1c] sm:$0xf]
    %v1767 = vld [vmem:[#allocation9 + $0x20] sm:$0xf]
    %v1768 = vld [vmem:[#allocation9 + $0x24] sm:$0xf]
    %v1769 = vld [vmem:[#allocation9 + $0x28] sm:$0xf]
    %v1770 = vld [vmem:[#allocation9 + $0x2c] sm:$0xf]
    %v1771 = vld [vmem:[#allocation9 + $0x30] sm:$0xf]
    %v1772 = vld [vmem:[#allocation9 + $0x34] sm:$0xf]
    %v1773 = vld [vmem:[#allocation9 + $0x38] sm:$0xf]
    %v1774 = vld [vmem:[#allocation9 + $0x3c] sm:$0xf]
    %v1775 = vpack.c.bf16 %v1758, %v1757
    %v1792 = vunpack.c.l.b16 %v1759
    %v1793 = vunpack.c.l.b16 %v1760
    %v1794 = vunpack.c.l.b16 %v1761
    %v1795 = vunpack.c.l.b16 %v1762
    %v1796 = vunpack.c.l.b16 %v1763
    %v1797 = vunpack.c.l.b16 %v1764
    %v1798 = vunpack.c.l.b16 %v1765
    %v1799 = vunpack.c.l.b16 %v1766
    %v1800 = vunpack.c.l.b16 %v1767
    %v1801 = vunpack.c.l.b16 %v1768
    %v1802 = vunpack.c.l.b16 %v1769
    %v1803 = vunpack.c.l.b16 %v1770
    %v1804 = vunpack.c.l.b16 %v1771
    %v1805 = vunpack.c.l.b16 %v1772
    %v1806 = vunpack.c.l.b16 %v1773
    %v1807 = vunpack.c.l.b16 %v1774
    %v1808 = vpack.c.b16 %v1793, %v1792
    %v1809 = vpack.c.b16 %v1795, %v1794
    %v1810 = vpack.c.b16 %v1797, %v1796
    %v1811 = vpack.c.b16 %v1799, %v1798
    %v1812 = vpack.c.b16 %v1801, %v1800
    %v1813 = vpack.c.b16 %v1803, %v1802
    %v1814 = vpack.c.b16 %v1805, %v1804
    %v1815 = vpack.c.b16 %v1807, %v1806
    %1824 = vmatprep.subr.bf16.mxu0 0
    %1825 = vmatpush1.bf16.msra.mxu0 %v1808
    %1826 = vmatprep.subr.bf16.mxu0 0
    %1827 = vmatpush1.bf16.msra.mxu0 %v1809
    %1828 = vmatprep.subr.bf16.mxu0 0
    %1829 = vmatpush1.bf16.msra.mxu0 %v1810
    %1830 = vmatprep.subr.bf16.mxu0 0
    %1831 = vmatpush1.bf16.msra.mxu0 %v1811
    %1832 = vmatprep.subr.bf16.mxu0 0
    %1833 = vmatpush1.bf16.msra.mxu0 %v1812
    %1834 = vmatprep.subr.bf16.mxu0 0
    %1835 = vmatpush1.bf16.msra.mxu0 %v1813
    %1836 = vmatprep.subr.bf16.mxu0 0
    %1837 = vmatpush1.bf16.msra.mxu0 %v1814
    %1838 = vmatprep.subr.bf16.mxu0 0
    %1839 = vmatpush1.bf16.msra.mxu0 %v1815
    %1840 = vmatprep.subr.bf16.mxu0 0
    %1841 = vmatpush1.bf16.msra.mxu0 0
    %1842 = vmatprep.subr.bf16.mxu0 0
    %1843 = vmatpush1.bf16.msra.mxu0 0
    %1844 = vmatprep.subr.bf16.mxu0 0
    %1845 = vmatpush1.bf16.msra.mxu0 0
    %1846 = vmatprep.subr.bf16.mxu0 0
    %1847 = vmatpush1.bf16.msra.mxu0 0
    %1848 = vmatprep.subr.bf16.mxu0 0
    %1849 = vmatpush1.bf16.msra.mxu0 0
    %1850 = vmatprep.subr.bf16.mxu0 0
    %1851 = vmatpush1.bf16.msra.mxu0 0
    %1852 = vmatprep.subr.bf16.mxu0 0
    %1853 = vmatpush1.bf16.msra.mxu0 0
    %1854 = vmatprep.subr.bf16.mxu0 0
    %1855 = vmatpush1.bf16.msra.mxu0 0
    %1856 = vmatprep.mubr.bf16.mxu0 0
    %1857 = vmatmul.mubr.bf16.gmra.mrb[0].mxu0 %v1775
    %v1858 = vpop.f32.mrb[0].mxu0
    %v1859 = vadd.f32 0.0, %v1858
    %v1860 = vpop.f32.mrb[0].mxu0
    %v1861 = vpop.f32.mrb[0].mxu0
    %v1862 = vadd.f32 0.0, %v1861
    %v1863 = vpop.f32.mrb[0].mxu0
    %1864 = vdwg.mxu0
    %v1865 = vadd.f32 %v555, %v1859
    %v1866 = vadd.f32 %v555, %v1862
    %v1867 = vld [vmem:[#allocation10] sm:$0x1]
    %v1869 = vlaneseq
    %v1870 = vshrl.u32 %v1869, 7
    %v1871 = vsub.s32 0, %v1870
    %v1872 = vrot.slane %v1867, %v1871
    %v1874 = vadd.f32 %v1865, %v1872
    %v1875 = vadd.f32 %v1866, %v1872
    %s1876 = scalar_lea.vmem [#allocation24], 1
    %v1877 = vld [vmem:[%s1876] sm:$0x1]
    %s1878 = scalar_lea.vmem [#allocation25], 1
    %v1879 = vld [vmem:[%s1878] sm:$0x1]
    %1880 = vadd.xlane.f32.xlu0 %v1874
    %v1881 = vpop.xlane.xlu0 %1880
    %1882 = vadd.xlane.f32.xlu0 %v1875
    %v1883 = vpop.xlane.xlu0 %1882
    %v1884 = vmul.f32 %v1881, %v531
    %v1885 = vmul.f32 %v1883, %v531
    %v1886 = vsub.f32 %v1874, %v1884
    %v1887 = vsub.f32 %v1875, %v1885
    %v1888 = vmul.f32 %v1886, %v1886
    %v1889 = vmul.f32 %v1887, %v1887
    %1890 = vadd.xlane.f32.xlu0 %v1888
    %v1891 = vpop.xlane.xlu0 %1890
    %1892 = vadd.xlane.f32.xlu0 %v1889
    %v1893 = vpop.xlane.xlu0 %1892
    %v1894 = vmul.f32 %v1891, %v531
    %v1895 = vmul.f32 %v1893, %v531
    %v1896 = vadd.f32 %v1894, 1e-05
    %v1897 = vadd.f32 %v1895, 1e-05
    %v1898 = vrsqrt.pop %v1896
    %v1899 = vrsqrt.pop %v1897
    %v1900 = vmul.f32 %v1886, %v1898
    %v1901 = vmul.f32 %v1887, %v1899
    %v1903 = vlaneseq
    %v1904 = vshrl.u32 %v1903, 7
    %v1905 = vsub.s32 0, %v1904
    %v1906 = vrot.slane %v1877, %v1905
    %v1908 = vmul.f32 %v1900, %v1906
    %v1909 = vmul.f32 %v1901, %v1906
    %v1911 = vlaneseq
    %v1912 = vshrl.u32 %v1911, 7
    %v1913 = vsub.s32 0, %v1912
    %v1914 = vrot.slane %v1879, %v1913
    %v1916 = vadd.f32 %v1908, %v1914
    %v1917 = vadd.f32 %v1909, %v1914
    %v1918 = vld [vmem:[#allocation12] sm:$0xf]
    %v1919 = vld [vmem:[#allocation12 + $0x4] sm:$0xf]
    %v1920 = vld [vmem:[#allocation12 + $0x8] sm:$0xf]
    %v1921 = vld [vmem:[#allocation12 + $0xc] sm:$0xf]
    %v1922 = vld [vmem:[#allocation12 + $0x10] sm:$0xf]
    %v1923 = vld [vmem:[#allocation12 + $0x14] sm:$0xf]
    %v1924 = vld [vmem:[#allocation12 + $0x18] sm:$0xf]
    %v1925 = vld [vmem:[#allocation12 + $0x1c] sm:$0xf]
    %v1926 = vld [vmem:[#allocation12 + $0x20] sm:$0xf]
    %v1927 = vld [vmem:[#allocation12 + $0x24] sm:$0xf]
    %v1928 = vld [vmem:[#allocation12 + $0x28] sm:$0xf]
    %v1929 = vld [vmem:[#allocation12 + $0x2c] sm:$0xf]
    %v1930 = vld [vmem:[#allocation12 + $0x30] sm:$0xf]
    %v1931 = vld [vmem:[#allocation12 + $0x34] sm:$0xf]
    %v1932 = vld [vmem:[#allocation12 + $0x38] sm:$0xf]
    %v1933 = vld [vmem:[#allocation12 + $0x3c] sm:$0xf]
    %v1934 = vpack.c.bf16 %v1917, %v1916
    %v1935 = vld [vmem:[#allocation13] sm:$0x1]
    %v1937 = vlaneseq
    %v1938 = vshrl.u32 %v1937, 7
    %v1939 = vsub.s32 0, %v1938
    %v1940 = vrot.slane %v1935, %v1939
    %v1958 = vunpack.c.l.b16 %v1918
    %v1959 = vunpack.c.l.b16 %v1919
    %v1960 = vunpack.c.l.b16 %v1920
    %v1961 = vunpack.c.l.b16 %v1921
    %v1962 = vunpack.c.l.b16 %v1922
    %v1963 = vunpack.c.l.b16 %v1923
    %v1964 = vunpack.c.l.b16 %v1924
    %v1965 = vunpack.c.l.b16 %v1925
    %v1966 = vunpack.c.l.b16 %v1926
    %v1967 = vunpack.c.l.b16 %v1927
    %v1968 = vunpack.c.l.b16 %v1928
    %v1969 = vunpack.c.l.b16 %v1929
    %v1970 = vunpack.c.l.b16 %v1930
    %v1971 = vunpack.c.l.b16 %v1931
    %v1972 = vunpack.c.l.b16 %v1932
    %v1973 = vunpack.c.l.b16 %v1933
    %v1974 = vpack.c.b16 %v1959, %v1958
    %v1975 = vpack.c.b16 %v1961, %v1960
    %v1976 = vpack.c.b16 %v1963, %v1962
    %v1977 = vpack.c.b16 %v1965, %v1964
    %v1978 = vpack.c.b16 %v1967, %v1966
    %v1979 = vpack.c.b16 %v1969, %v1968
    %v1980 = vpack.c.b16 %v1971, %v1970
    %v1981 = vpack.c.b16 %v1973, %v1972
    %1990 = vmatprep.subr.bf16.mxu0 0
    %1991 = vmatpush1.bf16.msra.mxu0 %v1974
    %1992 = vmatprep.subr.bf16.mxu0 0
    %1993 = vmatpush1.bf16.msra.mxu0 %v1975
    %1994 = vmatprep.subr.bf16.mxu0 0
    %1995 = vmatpush1.bf16.msra.mxu0 %v1976
    %1996 = vmatprep.subr.bf16.mxu0 0
    %1997 = vmatpush1.bf16.msra.mxu0 %v1977
    %1998 = vmatprep.subr.bf16.mxu0 0
    %1999 = vmatpush1.bf16.msra.mxu0 %v1978
    %2000 = vmatprep.subr.bf16.mxu0 0
    %2001 = vmatpush1.bf16.msra.mxu0 %v1979
    %2002 = vmatprep.subr.bf16.mxu0 0
    %2003 = vmatpush1.bf16.msra.mxu0 %v1980
    %2004 = vmatprep.subr.bf16.mxu0 0
    %2005 = vmatpush1.bf16.msra.mxu0 %v1981
    %2006 = vmatprep.subr.bf16.mxu0 0
    %2007 = vmatpush1.bf16.msra.mxu0 0
    %2008 = vmatprep.subr.bf16.mxu0 0
    %2009 = vmatpush1.bf16.msra.mxu0 0
    %2010 = vmatprep.subr.bf16.mxu0 0
    %2011 = vmatpush1.bf16.msra.mxu0 0
    %2012 = vmatprep.subr.bf16.mxu0 0
    %2013 = vmatpush1.bf16.msra.mxu0 0
    %2014 = vmatprep.subr.bf16.mxu0 0
    %2015 = vmatpush1.bf16.msra.mxu0 0
    %2016 = vmatprep.subr.bf16.mxu0 0
    %2017 = vmatpush1.bf16.msra.mxu0 0
    %2018 = vmatprep.subr.bf16.mxu0 0
    %2019 = vmatpush1.bf16.msra.mxu0 0
    %2020 = vmatprep.subr.bf16.mxu0 0
    %2021 = vmatpush1.bf16.msra.mxu0 0
    %2022 = vmatprep.mubr.bf16.mxu0 0
    %2023 = vmatmul.mubr.bf16.gmra.mrb[0].mxu0 %v1934
    %v2024 = vpop.f32.mrb[0].mxu0
    %v2025 = vadd.f32 %v1940, %v2024
    %v2026 = vpop.f32.mrb[0].mxu0
    %v2027 = vpop.f32.mrb[0].mxu0
    %v2028 = vadd.f32 %v1940, %v2027
    %v2029 = vpop.f32.mrb[0].mxu0
    %2030 = vdwg.mxu0
    %v2031 = vld [vmem:[%s12] sm:$0xff]
    %v2032 = vld [vmem:[%s12 + $0x8] sm:$0xff]
    %v2033 = vld [vmem:[%s12 + $0x10] sm:$0xff]
    %v2034 = vld [vmem:[%s12 + $0x18] sm:$0xff]
    %v2035 = vld [vmem:[%s12 + $0x20] sm:$0xff]
    %v2036 = vld [vmem:[%s12 + $0x28] sm:$0xff]
    %v2037 = vld [vmem:[%s12 + $0x30] sm:$0xff]
    %v2038 = vld [vmem:[%s12 + $0x38] sm:$0xff]
    %v2039 = vld [vmem:[%s12 + $0x40] sm:$0xff]
    %v2040 = vld [vmem:[%s12 + $0x48] sm:$0xff]
    %v2041 = vld [vmem:[%s12 + $0x50] sm:$0xff]
    %v2042 = vld [vmem:[%s12 + $0x58] sm:$0xff]
    %v2043 = vld [vmem:[%s12 + $0x60] sm:$0xff]
    %v2044 = vld [vmem:[%s12 + $0x68] sm:$0xff]
    %v2045 = vld [vmem:[%s12 + $0x70] sm:$0xff]
    %v2046 = vld [vmem:[%s12 + $0x78] sm:$0xff]
    %v2047 = vpack.c.bf16 %v554, %v554
    %v2048 = vld [vmem:[#allocation15] sm:$0x3]
    %v2050 = vlaneseq
    %v2051 = vshrl.u32 %v2050, 7
    %v2052 = vsub.s32 0, %v2051
    %v2053 = vrot.slane %v2048, %v2052
    %v2054 = vlaneseq
    %v2055 = vshrl.u32 %v2054, 7
    %v2056 = vsub.s32 1, %v2055
    %v2057 = vrot.slane %v2048, %v2056
    %v2076 = vunpack.c.l.b16 %v2031
    %v2077 = vunpack.c.h.b16 %v2031
    %v2078 = vunpack.c.l.b16 %v2032
    %v2079 = vunpack.c.h.b16 %v2032
    %v2080 = vunpack.c.l.b16 %v2033
    %v2081 = vunpack.c.h.b16 %v2033
    %v2082 = vunpack.c.l.b16 %v2034
    %v2083 = vunpack.c.h.b16 %v2034
    %v2084 = vunpack.c.l.b16 %v2035
    %v2085 = vunpack.c.h.b16 %v2035
    %v2086 = vunpack.c.l.b16 %v2036
    %v2087 = vunpack.c.h.b16 %v2036
    %v2088 = vunpack.c.l.b16 %v2037
    %v2089 = vunpack.c.h.b16 %v2037
    %v2090 = vunpack.c.l.b16 %v2038
    %v2091 = vunpack.c.h.b16 %v2038
    %v2092 = vunpack.c.l.b16 %v2039
    %v2093 = vunpack.c.h.b16 %v2039
    %v2094 = vunpack.c.l.b16 %v2040
    %v2095 = vunpack.c.h.b16 %v2040
    %v2096 = vunpack.c.l.b16 %v2041
    %v2097 = vunpack.c.h.b16 %v2041
    %v2098 = vunpack.c.l.b16 %v2042
    %v2099 = vunpack.c.h.b16 %v2042
    %v2100 = vunpack.c.l.b16 %v2043
    %v2101 = vunpack.c.h.b16 %v2043
    %v2102 = vunpack.c.l.b16 %v2044
    %v2103 = vunpack.c.h.b16 %v2044
    %v2104 = vunpack.c.l.b16 %v2045
    %v2105 = vunpack.c.h.b16 %v2045
    %v2106 = vunpack.c.l.b16 %v2046
    %v2107 = vunpack.c.h.b16 %v2046
    %v2108 = vpack.c.b16 %v2078, %v2076
    %v2109 = vpack.c.b16 %v2079, %v2077
    %v2110 = vpack.c.b16 %v2082, %v2080
    %v2111 = vpack.c.b16 %v2083, %v2081
    %v2112 = vpack.c.b16 %v2086, %v2084
    %v2113 = vpack.c.b16 %v2087, %v2085
    %v2114 = vpack.c.b16 %v2090, %v2088
    %v2115 = vpack.c.b16 %v2091, %v2089
    %v2116 = vpack.c.b16 %v2094, %v2092
    %v2117 = vpack.c.b16 %v2095, %v2093
    %v2118 = vpack.c.b16 %v2098, %v2096
    %v2119 = vpack.c.b16 %v2099, %v2097
    %v2120 = vpack.c.b16 %v2102, %v2100
    %v2121 = vpack.c.b16 %v2103, %v2101
    %v2122 = vpack.c.b16 %v2106, %v2104
    %v2123 = vpack.c.b16 %v2107, %v2105
    %2140 = vmatprep.subr.bf16.mxu0 %v2109
    %2141 = vmatpush1.bf16.msra.mxu0 %v2108
    %2142 = vmatprep.subr.bf16.mxu0 %v2111
    %2143 = vmatpush1.bf16.msra.mxu0 %v2110
    %2144 = vmatprep.subr.bf16.mxu0 %v2113
    %2145 = vmatpush1.bf16.msra.mxu0 %v2112
    %2146 = vmatprep.subr.bf16.mxu0 %v2115
    %2147 = vmatpush1.bf16.msra.mxu0 %v2114
    %2148 = vmatprep.subr.bf16.mxu0 %v2117
    %2149 = vmatpush1.bf16.msra.mxu0 %v2116
    %2150 = vmatprep.subr.bf16.mxu0 %v2119
    %2151 = vmatpush1.bf16.msra.mxu0 %v2118
    %2152 = vmatprep.subr.bf16.mxu0 %v2121
    %2153 = vmatpush1.bf16.msra.mxu0 %v2120
    %2154 = vmatprep.subr.bf16.mxu0 %v2123
    %2155 = vmatpush1.bf16.msra.mxu0 %v2122
    %2156 = vmatprep.subr.bf16.mxu0 0
    %2157 = vmatpush1.bf16.msra.mxu0 0
    %2158 = vmatprep.subr.bf16.mxu0 0
    %2159 = vmatpush1.bf16.msra.mxu0 0
    %2160 = vmatprep.subr.bf16.mxu0 0
    %2161 = vmatpush1.bf16.msra.mxu0 0
    %2162 = vmatprep.subr.bf16.mxu0 0
    %2163 = vmatpush1.bf16.msra.mxu0 0
    %2164 = vmatprep.subr.bf16.mxu0 0
    %2165 = vmatpush1.bf16.msra.mxu0 0
    %2166 = vmatprep.subr.bf16.mxu0 0
    %2167 = vmatpush1.bf16.msra.mxu0 0
    %2168 = vmatprep.subr.bf16.mxu0 0
    %2169 = vmatpush1.bf16.msra.mxu0 0
    %2170 = vmatprep.subr.bf16.mxu0 0
    %2171 = vmatpush1.bf16.msra.mxu0 0
    %2172 = vmatprep.mubr.bf16.mxu0 0
    %2173 = vmatmul.mubr.bf16.gmra.mrb[0].mxu0 %v2047
    %v2174 = vpop.f32.mrb[0].mxu0
    %v2175 = vadd.f32 %v2053, %v2174
    %v2176 = vpop.f32.mrb[0].mxu0
    %v2177 = vadd.f32 %v2057, %v2176
    %v2178 = vpop.f32.mrb[0].mxu0
    %v2179 = vpop.f32.mrb[0].mxu0
    %2180 = vdwg.mxu0
    %v2181 = vpack.c.bf16 %v2025, %v2025
    %v2182 = vpack.c.bf16 %v2028, %v2028
    %v2184 = vcombine.high %v2175, %v2175
    %v2186 = vpack.c.bf16 %v2175, %v2175
    %v2187 = vpack.c.bf16 %v2184, %v2184
    %v2189 = vcombine.high %v2177, %v2177
    %v2191 = vpack.c.bf16 %v2177, %v2177
    %v2192 = vpack.c.bf16 %v2189, %v2189
    %v2194 = vsel %vm851, %v2181, 0
    %v2197 = vsel %vm851, %v2186, 0
    %2199 = vmatprep.subr.bf16.mxu0 0
    %2200 = vmatpush1.bf16.xpose.msra.mxu0 %v2197
    %2201 = vmatprep.subr.bf16.mxu0 0
    %2202 = vmatpush1.bf16.xpose.msra.mxu0 0
    %2203 = vmatprep.subr.bf16.mxu0 0
    %2204 = vmatpush1.bf16.xpose.msra.mxu0 0
    %2205 = vmatprep.subr.bf16.mxu0 0
    %2206 = vmatpush1.bf16.xpose.msra.mxu0 0
    %2207 = vmatprep.subr.bf16.mxu0 0
    %2208 = vmatpush1.bf16.xpose.msra.mxu0 0
    %2209 = vmatprep.subr.bf16.mxu0 0
    %2210 = vmatpush1.bf16.xpose.msra.mxu0 0
    %2211 = vmatprep.subr.bf16.mxu0 0
    %2212 = vmatpush1.bf16.xpose.msra.mxu0 0
    %2213 = vmatprep.subr.bf16.mxu0 0
    %2214 = vmatpush1.bf16.xpose.msra.mxu0 0
    %2215 = vmatprep.subr.bf16.mxu0 0
    %2216 = vmatpush1.bf16.xpose.msra.mxu0 0
    %2217 = vmatprep.subr.bf16.mxu0 0
    %2218 = vmatpush1.bf16.xpose.msra.mxu0 0
    %2219 = vmatprep.subr.bf16.mxu0 0
    %2220 = vmatpush1.bf16.xpose.msra.mxu0 0
    %2221 = vmatprep.subr.bf16.mxu0 0
    %2222 = vmatpush1.bf16.xpose.msra.mxu0 0
    %2223 = vmatprep.subr.bf16.mxu0 0
    %2224 = vmatpush1.bf16.xpose.msra.mxu0 0
    %2225 = vmatprep.subr.bf16.mxu0 0
    %2226 = vmatpush1.bf16.xpose.msra.mxu0 0
    %2227 = vmatprep.subr.bf16.mxu0 0
    %2228 = vmatpush1.bf16.xpose.msra.mxu0 0
    %2229 = vmatprep.subr.bf16.mxu0 0
    %2230 = vmatpush1.bf16.xpose.msra.mxu0 0
    %2231 = vmatprep.mubr.bf16.mxu0 0
    %2232 = vmatmul.mubr.bf16.gmra.mrb[0].mxu0 %v2194
    %v2233 = vpop.f32.mrb[0].mxu0
    %v2234 = vadd.f32 0.0, %v2233
    %v2235 = vpop.f32.mrb[0].mxu0
    %v2236 = vpop.f32.mrb[0].mxu0
    %v2237 = vpop.f32.mrb[0].mxu0
    %2238 = vdwg.mxu0
    %v2240 = vsel %vm851, %v2182, 0
    %v2243 = vsel %vm851, %v2187, 0
    %2245 = vmatprep.subr.bf16.mxu0 0
    %2246 = vmatpush1.bf16.xpose.msra.mxu0 %v2243
    %2247 = vmatprep.subr.bf16.mxu0 0
    %2248 = vmatpush1.bf16.xpose.msra.mxu0 0
    %2249 = vmatprep.subr.bf16.mxu0 0
    %2250 = vmatpush1.bf16.xpose.msra.mxu0 0
    %2251 = vmatprep.subr.bf16.mxu0 0
    %2252 = vmatpush1.bf16.xpose.msra.mxu0 0
    %2253 = vmatprep.subr.bf16.mxu0 0
    %2254 = vmatpush1.bf16.xpose.msra.mxu0 0
    %2255 = vmatprep.subr.bf16.mxu0 0
    %2256 = vmatpush1.bf16.xpose.msra.mxu0 0
    %2257 = vmatprep.subr.bf16.mxu0 0
    %2258 = vmatpush1.bf16.xpose.msra.mxu0 0
    %2259 = vmatprep.subr.bf16.mxu0 0
    %2260 = vmatpush1.bf16.xpose.msra.mxu0 0
    %2261 = vmatprep.subr.bf16.mxu0 0
    %2262 = vmatpush1.bf16.xpose.msra.mxu0 0
    %2263 = vmatprep.subr.bf16.mxu0 0
    %2264 = vmatpush1.bf16.xpose.msra.mxu0 0
    %2265 = vmatprep.subr.bf16.mxu0 0
    %2266 = vmatpush1.bf16.xpose.msra.mxu0 0
    %2267 = vmatprep.subr.bf16.mxu0 0
    %2268 = vmatpush1.bf16.xpose.msra.mxu0 0
    %2269 = vmatprep.subr.bf16.mxu0 0
    %2270 = vmatpush1.bf16.xpose.msra.mxu0 0
    %2271 = vmatprep.subr.bf16.mxu0 0
    %2272 = vmatpush1.bf16.xpose.msra.mxu0 0
    %2273 = vmatprep.subr.bf16.mxu0 0
    %2274 = vmatpush1.bf16.xpose.msra.mxu0 0
    %2275 = vmatprep.subr.bf16.mxu0 0
    %2276 = vmatpush1.bf16.xpose.msra.mxu0 0
    %2277 = vmatprep.mubr.bf16.mxu0 0
    %2278 = vmatmul.mubr.bf16.gmra.mrb[0].mxu0 %v2240
    %v2279 = vpop.f32.mrb[0].mxu0
    %v2280 = vadd.f32 0.0, %v2279
    %v2281 = vpop.f32.mrb[0].mxu0
    %v2282 = vpop.f32.mrb[0].mxu0
    %v2283 = vpop.f32.mrb[0].mxu0
    %2284 = vdwg.mxu0
    %vm2285 = vcmask 31744
    %v2286 = vsel %vm2285, %v2234, -inf
    %2287 = vmax.xlane.f32.xlu0 %v2286
    %v2288 = vpop.xlane.xlu0 %2287
    %v2289 = vsel %vm2285, %v2280, -inf
    %2290 = vmax.xlane.f32.xlu0 %v2289
    %v2291 = vpop.xlane.xlu0 %2290
    %v2292 = vsub.f32 %v2234, %v2288
    %v2293 = vsub.f32 %v2280, %v2291
    %v2294 = vmul.f32 %v2292, 1.442695
    %v2295 = vpow.pop %v2294
    %v2296 = vmul.f32 %v2293, 1.442695
    %v2297 = vpow.pop %v2296
    %v2298 = vsel %vm2285, %v2295, 0.0
    %2299 = vadd.xlane.f32.xlu0 %v2298
    %v2300 = vpop.xlane.xlu0 %2299
    %v2301 = vsel %vm2285, %v2297, 0.0
    %2302 = vadd.xlane.f32.xlu0 %v2301
    %v2303 = vpop.xlane.xlu0 %2302
    %v2304 = vrcp.pop %v2300
    %v2305 = vrcp.pop %v2303
    %v2306 = vmul.f32 %v2295, %v2304
    %v2307 = vmul.f32 %v2297, %v2305
    %v2308 = vpack.c.bf16 %v2306, %v2306
    %v2309 = vpack.c.bf16 %v2307, %v2307
    %v2311 = vsel %vm2285, %v2308, 0
    %vm2313 = vcmask 1041408
    %v2315 = vsel %vm2313, %v2191, 0
    %2317 = vmatprep.subr.bf16.mxu0 0
    %2318 = vmatpush1.bf16.msra.mxu0 %v2315
    %2319 = vmatprep.subr.bf16.mxu0 0
    %2320 = vmatpush1.bf16.msra.mxu0 0
    %2321 = vmatprep.subr.bf16.mxu0 0
    %2322 = vmatpush1.bf16.msra.mxu0 0
    %2323 = vmatprep.subr.bf16.mxu0 0
    %2324 = vmatpush1.bf16.msra.mxu0 0
    %2325 = vmatprep.subr.bf16.mxu0 0
    %2326 = vmatpush1.bf16.msra.mxu0 0
    %2327 = vmatprep.subr.bf16.mxu0 0
    %2328 = vmatpush1.bf16.msra.mxu0 0
    %2329 = vmatprep.subr.bf16.mxu0 0
    %2330 = vmatpush1.bf16.msra.mxu0 0
    %2331 = vmatprep.subr.bf16.mxu0 0
    %2332 = vmatpush1.bf16.msra.mxu0 0
    %2333 = vmatprep.subr.bf16.mxu0 0
    %2334 = vmatpush1.bf16.msra.mxu0 0
    %2335 = vmatprep.subr.bf16.mxu0 0
    %2336 = vmatpush1.bf16.msra.mxu0 0
    %2337 = vmatprep.subr.bf16.mxu0 0
    %2338 = vmatpush1.bf16.msra.mxu0 0
    %2339 = vmatprep.subr.bf16.mxu0 0
    %2340 = vmatpush1.bf16.msra.mxu0 0
    %2341 = vmatprep.subr.bf16.mxu0 0
    %2342 = vmatpush1.bf16.msra.mxu0 0
    %2343 = vmatprep.subr.bf16.mxu0 0
    %2344 = vmatpush1.bf16.msra.mxu0 0
    %2345 = vmatprep.subr.bf16.mxu0 0
    %2346 = vmatpush1.bf16.msra.mxu0 0
    %2347 = vmatprep.subr.bf16.mxu0 0
    %2348 = vmatpush1.bf16.msra.mxu0 0
    %2349 = vmatprep.mubr.bf16.mxu0 0
    %2350 = vmatmul.mubr.bf16.gmra.mrb[0].mxu0 %v2311
    %v2351 = vpop.f32.mrb[0].mxu0
    %v2352 = vadd.f32 0.0, %v2351
    %v2353 = vpop.f32.mrb[0].mxu0
    %v2354 = vpop.f32.mrb[0].mxu0
    %v2355 = vpop.f32.mrb[0].mxu0
    %2356 = vdwg.mxu0
    %v2358 = vsel %vm2285, %v2309, 0
    %v2361 = vsel %vm2313, %v2192, 0
    %2363 = vmatprep.subr.bf16.mxu0 0
    %2364 = vmatpush1.bf16.msra.mxu0 %v2361
    %2365 = vmatprep.subr.bf16.mxu0 0
    %2366 = vmatpush1.bf16.msra.mxu0 0
    %2367 = vmatprep.subr.bf16.mxu0 0
    %2368 = vmatpush1.bf16.msra.mxu0 0
    %2369 = vmatprep.subr.bf16.mxu0 0
    %2370 = vmatpush1.bf16.msra.mxu0 0
    %2371 = vmatprep.subr.bf16.mxu0 0
    %2372 = vmatpush1.bf16.msra.mxu0 0
    %2373 = vmatprep.subr.bf16.mxu0 0
    %2374 = vmatpush1.bf16.msra.mxu0 0
    %2375 = vmatprep.subr.bf16.mxu0 0
    %2376 = vmatpush1.bf16.msra.mxu0 0
    %2377 = vmatprep.subr.bf16.mxu0 0
    %2378 = vmatpush1.bf16.msra.mxu0 0
    %2379 = vmatprep.subr.bf16.mxu0 0
    %2380 = vmatpush1.bf16.msra.mxu0 0
    %2381 = vmatprep.subr.bf16.mxu0 0
    %2382 = vmatpush1.bf16.msra.mxu0 0
    %2383 = vmatprep.subr.bf16.mxu0 0
    %2384 = vmatpush1.bf16.msra.mxu0 0
    %2385 = vmatprep.subr.bf16.mxu0 0
    %2386 = vmatpush1.bf16.msra.mxu0 0
    %2387 = vmatprep.subr.bf16.mxu0 0
    %2388 = vmatpush1.bf16.msra.mxu0 0
    %2389 = vmatprep.subr.bf16.mxu0 0
    %2390 = vmatpush1.bf16.msra.mxu0 0
    %2391 = vmatprep.subr.bf16.mxu0 0
    %2392 = vmatpush1.bf16.msra.mxu0 0
    %2393 = vmatprep.subr.bf16.mxu0 0
    %2394 = vmatpush1.bf16.msra.mxu0 0
    %2395 = vmatprep.mubr.bf16.mxu0 0
    %2396 = vmatmul.mubr.bf16.gmra.mrb[0].mxu0 %v2358
    %v2397 = vpop.f32.mrb[0].mxu0
    %v2398 = vadd.f32 0.0, %v2397
    %v2399 = vpop.f32.mrb[0].mxu0
    %v2400 = vpop.f32.mrb[0].mxu0
    %v2401 = vpop.f32.mrb[0].mxu0
    %2402 = vdwg.mxu0
    %2404 = vrot.lane.b32.xlu0 %v2181, 96
    %v2405 = vpop.permute.xlu0 %2404
    %2407 = vrot.lane.b32.xlu0 %v2186, 96
    %v2408 = vpop.permute.xlu0 %2407
    %v2410 = vsel %vm851, %v2405, 0
    %v2413 = vsel %vm851, %v2408, 0
    %2415 = vmatprep.subr.bf16.mxu0 0
    %2416 = vmatpush1.bf16.xpose.msra.mxu0 %v2413
    %2417 = vmatprep.subr.bf16.mxu0 0
    %2418 = vmatpush1.bf16.xpose.msra.mxu0 0
    %2419 = vmatprep.subr.bf16.mxu0 0
    %2420 = vmatpush1.bf16.xpose.msra.mxu0 0
    %2421 = vmatprep.subr.bf16.mxu0 0
    %2422 = vmatpush1.bf16.xpose.msra.mxu0 0
    %2423 = vmatprep.subr.bf16.mxu0 0
    %2424 = vmatpush1.bf16.xpose.msra.mxu0 0
    %2425 = vmatprep.subr.bf16.mxu0 0
    %2426 = vmatpush1.bf16.xpose.msra.mxu0 0
    %2427 = vmatprep.subr.bf16.mxu0 0
    %2428 = vmatpush1.bf16.xpose.msra.mxu0 0
    %2429 = vmatprep.subr.bf16.mxu0 0
    %2430 = vmatpush1.bf16.xpose.msra.mxu0 0
    %2431 = vmatprep.subr.bf16.mxu0 0
    %2432 = vmatpush1.bf16.xpose.msra.mxu0 0
    %2433 = vmatprep.subr.bf16.mxu0 0
    %2434 = vmatpush1.bf16.xpose.msra.mxu0 0
    %2435 = vmatprep.subr.bf16.mxu0 0
    %2436 = vmatpush1.bf16.xpose.msra.mxu0 0
    %2437 = vmatprep.subr.bf16.mxu0 0
    %2438 = vmatpush1.bf16.xpose.msra.mxu0 0
    %2439 = vmatprep.subr.bf16.mxu0 0
    %2440 = vmatpush1.bf16.xpose.msra.mxu0 0
    %2441 = vmatprep.subr.bf16.mxu0 0
    %2442 = vmatpush1.bf16.xpose.msra.mxu0 0
    %2443 = vmatprep.subr.bf16.mxu0 0
    %2444 = vmatpush1.bf16.xpose.msra.mxu0 0
    %2445 = vmatprep.subr.bf16.mxu0 0
    %2446 = vmatpush1.bf16.xpose.msra.mxu0 0
    %2447 = vmatprep.mubr.bf16.mxu0 0
    %2448 = vmatmul.mubr.bf16.gmra.mrb[0].mxu0 %v2410
    %v2449 = vpop.f32.mrb[0].mxu0
    %v2450 = vadd.f32 0.0, %v2449
    %v2451 = vpop.f32.mrb[0].mxu0
    %v2452 = vpop.f32.mrb[0].mxu0
    %v2453 = vpop.f32.mrb[0].mxu0
    %2454 = vdwg.mxu0
    %2456 = vrot.lane.b32.xlu0 %v2182, 96
    %v2457 = vpop.permute.xlu0 %2456
    %2459 = vrot.lane.b32.xlu0 %v2187, 96
    %v2460 = vpop.permute.xlu0 %2459
    %v2462 = vsel %vm851, %v2457, 0
    %v2465 = vsel %vm851, %v2460, 0
    %2467 = vmatprep.subr.bf16.mxu0 0
    %2468 = vmatpush1.bf16.xpose.msra.mxu0 %v2465
    %2469 = vmatprep.subr.bf16.mxu0 0
    %2470 = vmatpush1.bf16.xpose.msra.mxu0 0
    %2471 = vmatprep.subr.bf16.mxu0 0
    %2472 = vmatpush1.bf16.xpose.msra.mxu0 0
    %2473 = vmatprep.subr.bf16.mxu0 0
    %2474 = vmatpush1.bf16.xpose.msra.mxu0 0
    %2475 = vmatprep.subr.bf16.mxu0 0
    %2476 = vmatpush1.bf16.xpose.msra.mxu0 0
    %2477 = vmatprep.subr.bf16.mxu0 0
    %2478 = vmatpush1.bf16.xpose.msra.mxu0 0
    %2479 = vmatprep.subr.bf16.mxu0 0
    %2480 = vmatpush1.bf16.xpose.msra.mxu0 0
    %2481 = vmatprep.subr.bf16.mxu0 0
    %2482 = vmatpush1.bf16.xpose.msra.mxu0 0
    %2483 = vmatprep.subr.bf16.mxu0 0
    %2484 = vmatpush1.bf16.xpose.msra.mxu0 0
    %2485 = vmatprep.subr.bf16.mxu0 0
    %2486 = vmatpush1.bf16.xpose.msra.mxu0 0
    %2487 = vmatprep.subr.bf16.mxu0 0
    %2488 = vmatpush1.bf16.xpose.msra.mxu0 0
    %2489 = vmatprep.subr.bf16.mxu0 0
    %2490 = vmatpush1.bf16.xpose.msra.mxu0 0
    %2491 = vmatprep.subr.bf16.mxu0 0
    %2492 = vmatpush1.bf16.xpose.msra.mxu0 0
    %2493 = vmatprep.subr.bf16.mxu0 0
    %2494 = vmatpush1.bf16.xpose.msra.mxu0 0
    %2495 = vmatprep.subr.bf16.mxu0 0
    %2496 = vmatpush1.bf16.xpose.msra.mxu0 0
    %2497 = vmatprep.subr.bf16.mxu0 0
    %2498 = vmatpush1.bf16.xpose.msra.mxu0 0
    %2499 = vmatprep.mubr.bf16.mxu0 0
    %2500 = vmatmul.mubr.bf16.gmra.mrb[0].mxu0 %v2462
    %v2501 = vpop.f32.mrb[0].mxu0
    %v2502 = vadd.f32 0.0, %v2501
    %v2503 = vpop.f32.mrb[0].mxu0
    %v2504 = vpop.f32.mrb[0].mxu0
    %v2505 = vpop.f32.mrb[0].mxu0
    %2506 = vdwg.mxu0
    %v2507 = vsel %vm2285, %v2450, -inf
    %2508 = vmax.xlane.f32.xlu0 %v2507
    %v2509 = vpop.xlane.xlu0 %2508
    %v2510 = vsel %vm2285, %v2502, -inf
    %2511 = vmax.xlane.f32.xlu0 %v2510
    %v2512 = vpop.xlane.xlu0 %2511
    %v2513 = vsub.f32 %v2450, %v2509
    %v2514 = vsub.f32 %v2502, %v2512
    %v2515 = vmul.f32 %v2513, 1.442695
    %v2516 = vpow.pop %v2515
    %v2517 = vmul.f32 %v2514, 1.442695
    %v2518 = vpow.pop %v2517
    %v2519 = vsel %vm2285, %v2516, 0.0
    %2520 = vadd.xlane.f32.xlu0 %v2519
    %v2521 = vpop.xlane.xlu0 %2520
    %v2522 = vsel %vm2285, %v2518, 0.0
    %2523 = vadd.xlane.f32.xlu0 %v2522
    %v2524 = vpop.xlane.xlu0 %2523
    %v2525 = vrcp.pop %v2521
    %v2526 = vrcp.pop %v2524
    %v2527 = vmul.f32 %v2516, %v2525
    %v2528 = vmul.f32 %v2518, %v2526
    %v2529 = vpack.c.bf16 %v2527, %v2527
    %v2530 = vpack.c.bf16 %v2528, %v2528
    %2532 = vrot.lane.b32.xlu0 %v2191, 96
    %v2533 = vpop.permute.xlu0 %2532
    %v2535 = vsel %vm2285, %v2529, 0
    %v2538 = vsel %vm2313, %v2533, 0
    %2540 = vmatprep.subr.bf16.mxu0 0
    %2541 = vmatpush1.bf16.msra.mxu0 %v2538
    %2542 = vmatprep.subr.bf16.mxu0 0
    %2543 = vmatpush1.bf16.msra.mxu0 0
    %2544 = vmatprep.subr.bf16.mxu0 0
    %2545 = vmatpush1.bf16.msra.mxu0 0
    %2546 = vmatprep.subr.bf16.mxu0 0
    %2547 = vmatpush1.bf16.msra.mxu0 0
    %2548 = vmatprep.subr.bf16.mxu0 0
    %2549 = vmatpush1.bf16.msra.mxu0 0
    %2550 = vmatprep.subr.bf16.mxu0 0
    %2551 = vmatpush1.bf16.msra.mxu0 0
    %2552 = vmatprep.subr.bf16.mxu0 0
    %2553 = vmatpush1.bf16.msra.mxu0 0
    %2554 = vmatprep.subr.bf16.mxu0 0
    %2555 = vmatpush1.bf16.msra.mxu0 0
    %2556 = vmatprep.subr.bf16.mxu0 0
    %2557 = vmatpush1.bf16.msra.mxu0 0
    %2558 = vmatprep.subr.bf16.mxu0 0
    %2559 = vmatpush1.bf16.msra.mxu0 0
    %2560 = vmatprep.subr.bf16.mxu0 0
    %2561 = vmatpush1.bf16.msra.mxu0 0
    %2562 = vmatprep.subr.bf16.mxu0 0
    %2563 = vmatpush1.bf16.msra.mxu0 0
    %2564 = vmatprep.subr.bf16.mxu0 0
    %2565 = vmatpush1.bf16.msra.mxu0 0
    %2566 = vmatprep.subr.bf16.mxu0 0
    %2567 = vmatpush1.bf16.msra.mxu0 0
    %2568 = vmatprep.subr.bf16.mxu0 0
    %2569 = vmatpush1.bf16.msra.mxu0 0
    %2570 = vmatprep.subr.bf16.mxu0 0
    %2571 = vmatpush1.bf16.msra.mxu0 0
    %2572 = vmatprep.mubr.bf16.mxu0 0
    %2573 = vmatmul.mubr.bf16.gmra.mrb[0].mxu0 %v2535
    %v2574 = vpop.f32.mrb[0].mxu0
    %v2575 = vadd.f32 0.0, %v2574
    %v2576 = vpop.f32.mrb[0].mxu0
    %v2577 = vpop.f32.mrb[0].mxu0
    %v2578 = vpop.f32.mrb[0].mxu0
    %2579 = vdwg.mxu0
    %2581 = vrot.lane.b32.xlu0 %v2192, 96
    %v2582 = vpop.permute.xlu0 %2581
    %v2584 = vsel %vm2285, %v2530, 0
    %v2587 = vsel %vm2313, %v2582, 0
    %2589 = vmatprep.subr.bf16.mxu0 0
    %2590 = vmatpush1.bf16.msra.mxu0 %v2587
    %2591 = vmatprep.subr.bf16.mxu0 0
    %2592 = vmatpush1.bf16.msra.mxu0 0
    %2593 = vmatprep.subr.bf16.mxu0 0
    %2594 = vmatpush1.bf16.msra.mxu0 0
    %2595 = vmatprep.subr.bf16.mxu0 0
    %2596 = vmatpush1.bf16.msra.mxu0 0
    %2597 = vmatprep.subr.bf16.mxu0 0
    %2598 = vmatpush1.bf16.msra.mxu0 0
    %2599 = vmatprep.subr.bf16.mxu0 0
    %2600 = vmatpush1.bf16.msra.mxu0 0
    %2601 = vmatprep.subr.bf16.mxu0 0
    %2602 = vmatpush1.bf16.msra.mxu0 0
    %2603 = vmatprep.subr.bf16.mxu0 0
    %2604 = vmatpush1.bf16.msra.mxu0 0
    %2605 = vmatprep.subr.bf16.mxu0 0
    %2606 = vmatpush1.bf16.msra.mxu0 0
    %2607 = vmatprep.subr.bf16.mxu0 0
    %2608 = vmatpush1.bf16.msra.mxu0 0
    %2609 = vmatprep.subr.bf16.mxu0 0
    %2610 = vmatpush1.bf16.msra.mxu0 0
    %2611 = vmatprep.subr.bf16.mxu0 0
    %2612 = vmatpush1.bf16.msra.mxu0 0
    %2613 = vmatprep.subr.bf16.mxu0 0
    %2614 = vmatpush1.bf16.msra.mxu0 0
    %2615 = vmatprep.subr.bf16.mxu0 0
    %2616 = vmatpush1.bf16.msra.mxu0 0
    %2617 = vmatprep.subr.bf16.mxu0 0
    %2618 = vmatpush1.bf16.msra.mxu0 0
    %2619 = vmatprep.subr.bf16.mxu0 0
    %2620 = vmatpush1.bf16.msra.mxu0 0
    %2621 = vmatprep.mubr.bf16.mxu0 0
    %2622 = vmatmul.mubr.bf16.gmra.mrb[0].mxu0 %v2584
    %v2623 = vpop.f32.mrb[0].mxu0
    %v2624 = vadd.f32 0.0, %v2623
    %v2625 = vpop.f32.mrb[0].mxu0
    %v2626 = vpop.f32.mrb[0].mxu0
    %v2627 = vpop.f32.mrb[0].mxu0
    %2628 = vdwg.mxu0
    %2629 = vrot.lane.b32.xlu0 %v2181, 64
    %v2630 = vpop.permute.xlu0 %2629
    %2631 = vrot.lane.b32.xlu0 %v2186, 64
    %v2632 = vpop.permute.xlu0 %2631
    %v2634 = vsel %vm851, %v2630, 0
    %v2637 = vsel %vm851, %v2632, 0
    %2639 = vmatprep.subr.bf16.mxu0 0
    %2640 = vmatpush1.bf16.xpose.msra.mxu0 %v2637
    %2641 = vmatprep.subr.bf16.mxu0 0
    %2642 = vmatpush1.bf16.xpose.msra.mxu0 0
    %2643 = vmatprep.subr.bf16.mxu0 0
    %2644 = vmatpush1.bf16.xpose.msra.mxu0 0
    %2645 = vmatprep.subr.bf16.mxu0 0
    %2646 = vmatpush1.bf16.xpose.msra.mxu0 0
    %2647 = vmatprep.subr.bf16.mxu0 0
    %2648 = vmatpush1.bf16.xpose.msra.mxu0 0
    %2649 = vmatprep.subr.bf16.mxu0 0
    %2650 = vmatpush1.bf16.xpose.msra.mxu0 0
    %2651 = vmatprep.subr.bf16.mxu0 0
    %2652 = vmatpush1.bf16.xpose.msra.mxu0 0
    %2653 = vmatprep.subr.bf16.mxu0 0
    %2654 = vmatpush1.bf16.xpose.msra.mxu0 0
    %2655 = vmatprep.subr.bf16.mxu0 0
    %2656 = vmatpush1.bf16.xpose.msra.mxu0 0
    %2657 = vmatprep.subr.bf16.mxu0 0
    %2658 = vmatpush1.bf16.xpose.msra.mxu0 0
    %2659 = vmatprep.subr.bf16.mxu0 0
    %2660 = vmatpush1.bf16.xpose.msra.mxu0 0
    %2661 = vmatprep.subr.bf16.mxu0 0
    %2662 = vmatpush1.bf16.xpose.msra.mxu0 0
    %2663 = vmatprep.subr.bf16.mxu0 0
    %2664 = vmatpush1.bf16.xpose.msra.mxu0 0
    %2665 = vmatprep.subr.bf16.mxu0 0
    %2666 = vmatpush1.bf16.xpose.msra.mxu0 0
    %2667 = vmatprep.subr.bf16.mxu0 0
    %2668 = vmatpush1.bf16.xpose.msra.mxu0 0
    %2669 = vmatprep.subr.bf16.mxu0 0
    %2670 = vmatpush1.bf16.xpose.msra.mxu0 0
    %2671 = vmatprep.mubr.bf16.mxu0 0
    %2672 = vmatmul.mubr.bf16.gmra.mrb[0].mxu0 %v2634
    %v2673 = vpop.f32.mrb[0].mxu0
    %v2674 = vadd.f32 0.0, %v2673
    %v2675 = vpop.f32.mrb[0].mxu0
    %v2676 = vpop.f32.mrb[0].mxu0
    %v2677 = vpop.f32.mrb[0].mxu0
    %2678 = vdwg.mxu0
    %2679 = vrot.lane.b32.xlu0 %v2182, 64
    %v2680 = vpop.permute.xlu0 %2679
    %2681 = vrot.lane.b32.xlu0 %v2187, 64
    %v2682 = vpop.permute.xlu0 %2681
    %v2684 = vsel %vm851, %v2680, 0
    %v2687 = vsel %vm851, %v2682, 0
    %2689 = vmatprep.subr.bf16.mxu0 0
    %2690 = vmatpush1.bf16.xpose.msra.mxu0 %v2687
    %2691 = vmatprep.subr.bf16.mxu0 0
    %2692 = vmatpush1.bf16.xpose.msra.mxu0 0
    %2693 = vmatprep.subr.bf16.mxu0 0
    %2694 = vmatpush1.bf16.xpose.msra.mxu0 0
    %2695 = vmatprep.subr.bf16.mxu0 0
    %2696 = vmatpush1.bf16.xpose.msra.mxu0 0
    %2697 = vmatprep.subr.bf16.mxu0 0
    %2698 = vmatpush1.bf16.xpose.msra.mxu0 0
    %2699 = vmatprep.subr.bf16.mxu0 0
    %2700 = vmatpush1.bf16.xpose.msra.mxu0 0
    %2701 = vmatprep.subr.bf16.mxu0 0
    %2702 = vmatpush1.bf16.xpose.msra.mxu0 0
    %2703 = vmatprep.subr.bf16.mxu0 0
    %2704 = vmatpush1.bf16.xpose.msra.mxu0 0
    %2705 = vmatprep.subr.bf16.mxu0 0
    %2706 = vmatpush1.bf16.xpose.msra.mxu0 0
    %2707 = vmatprep.subr.bf16.mxu0 0
    %2708 = vmatpush1.bf16.xpose.msra.mxu0 0
    %2709 = vmatprep.subr.bf16.mxu0 0
    %2710 = vmatpush1.bf16.xpose.msra.mxu0 0
    %2711 = vmatprep.subr.bf16.mxu0 0
    %2712 = vmatpush1.bf16.xpose.msra.mxu0 0
    %2713 = vmatprep.subr.bf16.mxu0 0
    %2714 = vmatpush1.bf16.xpose.msra.mxu0 0
    %2715 = vmatprep.subr.bf16.mxu0 0
    %2716 = vmatpush1.bf16.xpose.msra.mxu0 0
    %2717 = vmatprep.subr.bf16.mxu0 0
    %2718 = vmatpush1.bf16.xpose.msra.mxu0 0
    %2719 = vmatprep.subr.bf16.mxu0 0
    %2720 = vmatpush1.bf16.xpose.msra.mxu0 0
    %2721 = vmatprep.mubr.bf16.mxu0 0
    %2722 = vmatmul.mubr.bf16.gmra.mrb[0].mxu0 %v2684
    %v2723 = vpop.f32.mrb[0].mxu0
    %v2724 = vadd.f32 0.0, %v2723
    %v2725 = vpop.f32.mrb[0].mxu0
    %v2726 = vpop.f32.mrb[0].mxu0
    %v2727 = vpop.f32.mrb[0].mxu0
    %2728 = vdwg.mxu0
    %v2729 = vsel %vm2285, %v2674, -inf
    %2730 = vmax.xlane.f32.xlu0 %v2729
    %v2731 = vpop.xlane.xlu0 %2730
    %v2732 = vsel %vm2285, %v2724, -inf
    %2733 = vmax.xlane.f32.xlu0 %v2732
    %v2734 = vpop.xlane.xlu0 %2733
    %v2735 = vsub.f32 %v2674, %v2731
    %v2736 = vsub.f32 %v2724, %v2734
    %v2737 = vmul.f32 %v2735, 1.442695
    %v2738 = vpow.pop %v2737
    %v2739 = vmul.f32 %v2736, 1.442695
    %v2740 = vpow.pop %v2739
    %v2741 = vsel %vm2285, %v2738, 0.0
    %2742 = vadd.xlane.f32.xlu0 %v2741
    %v2743 = vpop.xlane.xlu0 %2742
    %v2744 = vsel %vm2285, %v2740, 0.0
    %2745 = vadd.xlane.f32.xlu0 %v2744
    %v2746 = vpop.xlane.xlu0 %2745
    %v2747 = vrcp.pop %v2743
    %v2748 = vrcp.pop %v2746
    %v2749 = vmul.f32 %v2738, %v2747
    %v2750 = vmul.f32 %v2740, %v2748
    %v2751 = vpack.c.bf16 %v2749, %v2749
    %v2752 = vpack.c.bf16 %v2750, %v2750
    %2753 = vrot.lane.b32.xlu0 %v2191, 64
    %v2754 = vpop.permute.xlu0 %2753
    %v2756 = vsel %vm2285, %v2751, 0
    %v2759 = vsel %vm2313, %v2754, 0
    %2761 = vmatprep.subr.bf16.mxu0 0
    %2762 = vmatpush1.bf16.msra.mxu0 %v2759
    %2763 = vmatprep.subr.bf16.mxu0 0
    %2764 = vmatpush1.bf16.msra.mxu0 0
    %2765 = vmatprep.subr.bf16.mxu0 0
    %2766 = vmatpush1.bf16.msra.mxu0 0
    %2767 = vmatprep.subr.bf16.mxu0 0
    %2768 = vmatpush1.bf16.msra.mxu0 0
    %2769 = vmatprep.subr.bf16.mxu0 0
    %2770 = vmatpush1.bf16.msra.mxu0 0
    %2771 = vmatprep.subr.bf16.mxu0 0
    %2772 = vmatpush1.bf16.msra.mxu0 0
    %2773 = vmatprep.subr.bf16.mxu0 0
    %2774 = vmatpush1.bf16.msra.mxu0 0
    %2775 = vmatprep.subr.bf16.mxu0 0
    %2776 = vmatpush1.bf16.msra.mxu0 0
    %2777 = vmatprep.subr.bf16.mxu0 0
    %2778 = vmatpush1.bf16.msra.mxu0 0
    %2779 = vmatprep.subr.bf16.mxu0 0
    %2780 = vmatpush1.bf16.msra.mxu0 0
    %2781 = vmatprep.subr.bf16.mxu0 0
    %2782 = vmatpush1.bf16.msra.mxu0 0
    %2783 = vmatprep.subr.bf16.mxu0 0
    %2784 = vmatpush1.bf16.msra.mxu0 0
    %2785 = vmatprep.subr.bf16.mxu0 0
    %2786 = vmatpush1.bf16.msra.mxu0 0
    %2787 = vmatprep.subr.bf16.mxu0 0
    %2788 = vmatpush1.bf16.msra.mxu0 0
    %2789 = vmatprep.subr.bf16.mxu0 0
    %2790 = vmatpush1.bf16.msra.mxu0 0
    %2791 = vmatprep.subr.bf16.mxu0 0
    %2792 = vmatpush1.bf16.msra.mxu0 0
    %2793 = vmatprep.mubr.bf16.mxu0 0
    %2794 = vmatmul.mubr.bf16.gmra.mrb[0].mxu0 %v2756
    %v2795 = vpop.f32.mrb[0].mxu0
    %v2796 = vadd.f32 0.0, %v2795
    %v2797 = vpop.f32.mrb[0].mxu0
    %v2798 = vpop.f32.mrb[0].mxu0
    %v2799 = vpop.f32.mrb[0].mxu0
    %2800 = vdwg.mxu0
    %2801 = vrot.lane.b32.xlu0 %v2192, 64
    %v2802 = vpop.permute.xlu0 %2801
    %v2804 = vsel %vm2285, %v2752, 0
    %v2807 = vsel %vm2313, %v2802, 0
    %2809 = vmatprep.subr.bf16.mxu0 0
    %2810 = vmatpush1.bf16.msra.mxu0 %v2807
    %2811 = vmatprep.subr.bf16.mxu0 0
    %2812 = vmatpush1.bf16.msra.mxu0 0
    %2813 = vmatprep.subr.bf16.mxu0 0
    %2814 = vmatpush1.bf16.msra.mxu0 0
    %2815 = vmatprep.subr.bf16.mxu0 0
    %2816 = vmatpush1.bf16.msra.mxu0 0
    %2817 = vmatprep.subr.bf16.mxu0 0
    %2818 = vmatpush1.bf16.msra.mxu0 0
    %2819 = vmatprep.subr.bf16.mxu0 0
    %2820 = vmatpush1.bf16.msra.mxu0 0
    %2821 = vmatprep.subr.bf16.mxu0 0
    %2822 = vmatpush1.bf16.msra.mxu0 0
    %2823 = vmatprep.subr.bf16.mxu0 0
    %2824 = vmatpush1.bf16.msra.mxu0 0
    %2825 = vmatprep.subr.bf16.mxu0 0
    %2826 = vmatpush1.bf16.msra.mxu0 0
    %2827 = vmatprep.subr.bf16.mxu0 0
    %2828 = vmatpush1.bf16.msra.mxu0 0
    %2829 = vmatprep.subr.bf16.mxu0 0
    %2830 = vmatpush1.bf16.msra.mxu0 0
    %2831 = vmatprep.subr.bf16.mxu0 0
    %2832 = vmatpush1.bf16.msra.mxu0 0
    %2833 = vmatprep.subr.bf16.mxu0 0
    %2834 = vmatpush1.bf16.msra.mxu0 0
    %2835 = vmatprep.subr.bf16.mxu0 0
    %2836 = vmatpush1.bf16.msra.mxu0 0
    %2837 = vmatprep.subr.bf16.mxu0 0
    %2838 = vmatpush1.bf16.msra.mxu0 0
    %2839 = vmatprep.subr.bf16.mxu0 0
    %2840 = vmatpush1.bf16.msra.mxu0 0
    %2841 = vmatprep.mubr.bf16.mxu0 0
    %2842 = vmatmul.mubr.bf16.gmra.mrb[0].mxu0 %v2804
    %v2843 = vpop.f32.mrb[0].mxu0
    %v2844 = vadd.f32 0.0, %v2843
    %v2845 = vpop.f32.mrb[0].mxu0
    %v2846 = vpop.f32.mrb[0].mxu0
    %v2847 = vpop.f32.mrb[0].mxu0
    %2848 = vdwg.mxu0
    %2849 = vrot.lane.b32.xlu0 %v2181, 32
    %v2850 = vpop.permute.xlu0 %2849
    %2851 = vrot.lane.b32.xlu0 %v2186, 32
    %v2852 = vpop.permute.xlu0 %2851
    %v2854 = vsel %vm851, %v2850, 0
    %v2857 = vsel %vm851, %v2852, 0
    %2859 = vmatprep.subr.bf16.mxu0 0
    %2860 = vmatpush1.bf16.xpose.msra.mxu0 %v2857
    %2861 = vmatprep.subr.bf16.mxu0 0
    %2862 = vmatpush1.bf16.xpose.msra.mxu0 0
    %2863 = vmatprep.subr.bf16.mxu0 0
    %2864 = vmatpush1.bf16.xpose.msra.mxu0 0
    %2865 = vmatprep.subr.bf16.mxu0 0
    %2866 = vmatpush1.bf16.xpose.msra.mxu0 0
    %2867 = vmatprep.subr.bf16.mxu0 0
    %2868 = vmatpush1.bf16.xpose.msra.mxu0 0
    %2869 = vmatprep.subr.bf16.mxu0 0
    %2870 = vmatpush1.bf16.xpose.msra.mxu0 0
    %2871 = vmatprep.subr.bf16.mxu0 0
    %2872 = vmatpush1.bf16.xpose.msra.mxu0 0
    %2873 = vmatprep.subr.bf16.mxu0 0
    %2874 = vmatpush1.bf16.xpose.msra.mxu0 0
    %2875 = vmatprep.subr.bf16.mxu0 0
    %2876 = vmatpush1.bf16.xpose.msra.mxu0 0
    %2877 = vmatprep.subr.bf16.mxu0 0
    %2878 = vmatpush1.bf16.xpose.msra.mxu0 0
    %2879 = vmatprep.subr.bf16.mxu0 0
    %2880 = vmatpush1.bf16.xpose.msra.mxu0 0
    %2881 = vmatprep.subr.bf16.mxu0 0
    %2882 = vmatpush1.bf16.xpose.msra.mxu0 0
    %2883 = vmatprep.subr.bf16.mxu0 0
    %2884 = vmatpush1.bf16.xpose.msra.mxu0 0
    %2885 = vmatprep.subr.bf16.mxu0 0
    %2886 = vmatpush1.bf16.xpose.msra.mxu0 0
    %2887 = vmatprep.subr.bf16.mxu0 0
    %2888 = vmatpush1.bf16.xpose.msra.mxu0 0
    %2889 = vmatprep.subr.bf16.mxu0 0
    %2890 = vmatpush1.bf16.xpose.msra.mxu0 0
    %2891 = vmatprep.mubr.bf16.mxu0 0
    %2892 = vmatmul.mubr.bf16.gmra.mrb[0].mxu0 %v2854
    %v2893 = vpop.f32.mrb[0].mxu0
    %v2894 = vadd.f32 0.0, %v2893
    %v2895 = vpop.f32.mrb[0].mxu0
    %v2896 = vpop.f32.mrb[0].mxu0
    %v2897 = vpop.f32.mrb[0].mxu0
    %2898 = vdwg.mxu0
    %2899 = vrot.lane.b32.xlu0 %v2182, 32
    %v2900 = vpop.permute.xlu0 %2899
    %2901 = vrot.lane.b32.xlu0 %v2187, 32
    %v2902 = vpop.permute.xlu0 %2901
    %v2904 = vsel %vm851, %v2900, 0
    %v2907 = vsel %vm851, %v2902, 0
    %2909 = vmatprep.subr.bf16.mxu0 0
    %2910 = vmatpush1.bf16.xpose.msra.mxu0 %v2907
    %2911 = vmatprep.subr.bf16.mxu0 0
    %2912 = vmatpush1.bf16.xpose.msra.mxu0 0
    %2913 = vmatprep.subr.bf16.mxu0 0
    %2914 = vmatpush1.bf16.xpose.msra.mxu0 0
    %2915 = vmatprep.subr.bf16.mxu0 0
    %2916 = vmatpush1.bf16.xpose.msra.mxu0 0
    %2917 = vmatprep.subr.bf16.mxu0 0
    %2918 = vmatpush1.bf16.xpose.msra.mxu0 0
    %2919 = vmatprep.subr.bf16.mxu0 0
    %2920 = vmatpush1.bf16.xpose.msra.mxu0 0
    %2921 = vmatprep.subr.bf16.mxu0 0
    %2922 = vmatpush1.bf16.xpose.msra.mxu0 0
    %2923 = vmatprep.subr.bf16.mxu0 0
    %2924 = vmatpush1.bf16.xpose.msra.mxu0 0
    %2925 = vmatprep.subr.bf16.mxu0 0
    %2926 = vmatpush1.bf16.xpose.msra.mxu0 0
    %2927 = vmatprep.subr.bf16.mxu0 0
    %2928 = vmatpush1.bf16.xpose.msra.mxu0 0
    %2929 = vmatprep.subr.bf16.mxu0 0
    %2930 = vmatpush1.bf16.xpose.msra.mxu0 0
    %2931 = vmatprep.subr.bf16.mxu0 0
    %2932 = vmatpush1.bf16.xpose.msra.mxu0 0
    %2933 = vmatprep.subr.bf16.mxu0 0
    %2934 = vmatpush1.bf16.xpose.msra.mxu0 0
    %2935 = vmatprep.subr.bf16.mxu0 0
    %2936 = vmatpush1.bf16.xpose.msra.mxu0 0
    %2937 = vmatprep.subr.bf16.mxu0 0
    %2938 = vmatpush1.bf16.xpose.msra.mxu0 0
    %2939 = vmatprep.subr.bf16.mxu0 0
    %2940 = vmatpush1.bf16.xpose.msra.mxu0 0
    %2941 = vmatprep.mubr.bf16.mxu0 0
    %2942 = vmatmul.mubr.bf16.gmra.mrb[0].mxu0 %v2904
    %v2943 = vpop.f32.mrb[0].mxu0
    %v2944 = vadd.f32 0.0, %v2943
    %v2945 = vpop.f32.mrb[0].mxu0
    %v2946 = vpop.f32.mrb[0].mxu0
    %v2947 = vpop.f32.mrb[0].mxu0
    %2948 = vdwg.mxu0
    %v2949 = vsel %vm2285, %v2894, -inf
    %2950 = vmax.xlane.f32.xlu0 %v2949
    %v2951 = vpop.xlane.xlu0 %2950
    %v2952 = vsel %vm2285, %v2944, -inf
    %2953 = vmax.xlane.f32.xlu0 %v2952
    %v2954 = vpop.xlane.xlu0 %2953
    %v2955 = vsub.f32 %v2894, %v2951
    %v2956 = vsub.f32 %v2944, %v2954
    %v2957 = vmul.f32 %v2955, 1.442695
    %v2958 = vpow.pop %v2957
    %v2959 = vmul.f32 %v2956, 1.442695
    %v2960 = vpow.pop %v2959
    %v2961 = vsel %vm2285, %v2958, 0.0
    %2962 = vadd.xlane.f32.xlu0 %v2961
    %v2963 = vpop.xlane.xlu0 %2962
    %v2964 = vsel %vm2285, %v2960, 0.0
    %2965 = vadd.xlane.f32.xlu0 %v2964
    %v2966 = vpop.xlane.xlu0 %2965
    %v2967 = vrcp.pop %v2963
    %v2968 = vrcp.pop %v2966
    %v2969 = vmul.f32 %v2958, %v2967
    %v2970 = vmul.f32 %v2960, %v2968
    %v2971 = vpack.c.bf16 %v2969, %v2969
    %v2972 = vpack.c.bf16 %v2970, %v2970
    %2973 = vrot.lane.b32.xlu0 %v2191, 32
    %v2974 = vpop.permute.xlu0 %2973
    %v2976 = vsel %vm2285, %v2971, 0
    %v2979 = vsel %vm2313, %v2974, 0
    %2981 = vmatprep.subr.bf16.mxu0 0
    %2982 = vmatpush1.bf16.msra.mxu0 %v2979
    %2983 = vmatprep.subr.bf16.mxu0 0
    %2984 = vmatpush1.bf16.msra.mxu0 0
    %2985 = vmatprep.subr.bf16.mxu0 0
    %2986 = vmatpush1.bf16.msra.mxu0 0
    %2987 = vmatprep.subr.bf16.mxu0 0
    %2988 = vmatpush1.bf16.msra.mxu0 0
    %2989 = vmatprep.subr.bf16.mxu0 0
    %2990 = vmatpush1.bf16.msra.mxu0 0
    %2991 = vmatprep.subr.bf16.mxu0 0
    %2992 = vmatpush1.bf16.msra.mxu0 0
    %2993 = vmatprep.subr.bf16.mxu0 0
    %2994 = vmatpush1.bf16.msra.mxu0 0
    %2995 = vmatprep.subr.bf16.mxu0 0
    %2996 = vmatpush1.bf16.msra.mxu0 0
    %2997 = vmatprep.subr.bf16.mxu0 0
    %2998 = vmatpush1.bf16.msra.mxu0 0
    %2999 = vmatprep.subr.bf16.mxu0 0
    %3000 = vmatpush1.bf16.msra.mxu0 0
    %3001 = vmatprep.subr.bf16.mxu0 0
    %3002 = vmatpush1.bf16.msra.mxu0 0
    %3003 = vmatprep.subr.bf16.mxu0 0
    %3004 = vmatpush1.bf16.msra.mxu0 0
    %3005 = vmatprep.subr.bf16.mxu0 0
    %3006 = vmatpush1.bf16.msra.mxu0 0
    %3007 = vmatprep.subr.bf16.mxu0 0
    %3008 = vmatpush1.bf16.msra.mxu0 0
    %3009 = vmatprep.subr.bf16.mxu0 0
    %3010 = vmatpush1.bf16.msra.mxu0 0
    %3011 = vmatprep.subr.bf16.mxu0 0
    %3012 = vmatpush1.bf16.msra.mxu0 0
    %3013 = vmatprep.mubr.bf16.mxu0 0
    %3014 = vmatmul.mubr.bf16.gmra.mrb[0].mxu0 %v2976
    %v3015 = vpop.f32.mrb[0].mxu0
    %v3016 = vadd.f32 0.0, %v3015
    %v3017 = vpop.f32.mrb[0].mxu0
    %v3018 = vpop.f32.mrb[0].mxu0
    %v3019 = vpop.f32.mrb[0].mxu0
    %3020 = vdwg.mxu0
    %3021 = vrot.lane.b32.xlu0 %v2192, 32
    %v3022 = vpop.permute.xlu0 %3021
    %v3024 = vsel %vm2285, %v2972, 0
    %v3027 = vsel %vm2313, %v3022, 0
    %3029 = vmatprep.subr.bf16.mxu0 0
    %3030 = vmatpush1.bf16.msra.mxu0 %v3027
    %3031 = vmatprep.subr.bf16.mxu0 0
    %3032 = vmatpush1.bf16.msra.mxu0 0
    %3033 = vmatprep.subr.bf16.mxu0 0
    %3034 = vmatpush1.bf16.msra.mxu0 0
    %3035 = vmatprep.subr.bf16.mxu0 0
    %3036 = vmatpush1.bf16.msra.mxu0 0
    %3037 = vmatprep.subr.bf16.mxu0 0
    %3038 = vmatpush1.bf16.msra.mxu0 0
    %3039 = vmatprep.subr.bf16.mxu0 0
    %3040 = vmatpush1.bf16.msra.mxu0 0
    %3041 = vmatprep.subr.bf16.mxu0 0
    %3042 = vmatpush1.bf16.msra.mxu0 0
    %3043 = vmatprep.subr.bf16.mxu0 0
    %3044 = vmatpush1.bf16.msra.mxu0 0
    %3045 = vmatprep.subr.bf16.mxu0 0
    %3046 = vmatpush1.bf16.msra.mxu0 0
    %3047 = vmatprep.subr.bf16.mxu0 0
    %3048 = vmatpush1.bf16.msra.mxu0 0
    %3049 = vmatprep.subr.bf16.mxu0 0
    %3050 = vmatpush1.bf16.msra.mxu0 0
    %3051 = vmatprep.subr.bf16.mxu0 0
    %3052 = vmatpush1.bf16.msra.mxu0 0
    %3053 = vmatprep.subr.bf16.mxu0 0
    %3054 = vmatpush1.bf16.msra.mxu0 0
    %3055 = vmatprep.subr.bf16.mxu0 0
    %3056 = vmatpush1.bf16.msra.mxu0 0
    %3057 = vmatprep.subr.bf16.mxu0 0
    %3058 = vmatpush1.bf16.msra.mxu0 0
    %3059 = vmatprep.subr.bf16.mxu0 0
    %3060 = vmatpush1.bf16.msra.mxu0 0
    %3061 = vmatprep.mubr.bf16.mxu0 0
    %3062 = vmatmul.mubr.bf16.gmra.mrb[0].mxu0 %v3024
    %v3063 = vpop.f32.mrb[0].mxu0
    %v3064 = vadd.f32 0.0, %v3063
    %v3065 = vpop.f32.mrb[0].mxu0
    %v3066 = vpop.f32.mrb[0].mxu0
    %v3067 = vpop.f32.mrb[0].mxu0
    %3068 = vdwg.mxu0
    %3071 = vrot.lane.b32.xlu0 %v2575, 32
    %v3072 = vpop.permute.xlu0 %3071
    %3073 = vrot.lane.b32.xlu0 %v2624, 32
    %v3074 = vpop.permute.xlu0 %3073
    %3079 = vrot.lane.b32.xlu0 %v2796, 64
    %v3080 = vpop.permute.xlu0 %3079
    %3081 = vrot.lane.b32.xlu0 %v2844, 64
    %v3082 = vpop.permute.xlu0 %3081
    %3087 = vrot.lane.b32.xlu0 %v3016, 96
    %v3088 = vpop.permute.xlu0 %3087
    %3089 = vrot.lane.b32.xlu0 %v3064, 96
    %v3090 = vpop.permute.xlu0 %3089
    %v3093 = vsel %vm851, %v2352, %v3072
    %v3094 = vsel %vm851, %v2398, %v3074
    %v3095 = vsel %vm483, %v3093, %v3080
    %v3096 = vsel %vm483, %v3094, %v3082
    %v3097 = vsel %vm1756, %v3095, %v3088
    %v3098 = vsel %vm1756, %v3096, %v3090
    %v3099 = vld [vmem:[#allocation16] sm:$0xf]
    %v3100 = vld [vmem:[#allocation16 + $0x4] sm:$0xf]
    %v3101 = vld [vmem:[#allocation16 + $0x8] sm:$0xf]
    %v3102 = vld [vmem:[#allocation16 + $0xc] sm:$0xf]
    %v3103 = vld [vmem:[#allocation16 + $0x10] sm:$0xf]
    %v3104 = vld [vmem:[#allocation16 + $0x14] sm:$0xf]
    %v3105 = vld [vmem:[#allocation16 + $0x18] sm:$0xf]
    %v3106 = vld [vmem:[#allocation16 + $0x1c] sm:$0xf]
    %v3107 = vld [vmem:[#allocation16 + $0x20] sm:$0xf]
    %v3108 = vld [vmem:[#allocation16 + $0x24] sm:$0xf]
    %v3109 = vld [vmem:[#allocation16 + $0x28] sm:$0xf]
    %v3110 = vld [vmem:[#allocation16 + $0x2c] sm:$0xf]
    %v3111 = vld [vmem:[#allocation16 + $0x30] sm:$0xf]
    %v3112 = vld [vmem:[#allocation16 + $0x34] sm:$0xf]
    %v3113 = vld [vmem:[#allocation16 + $0x38] sm:$0xf]
    %v3114 = vld [vmem:[#allocation16 + $0x3c] sm:$0xf]
    %v3115 = vpack.c.bf16 %v3098, %v3097
    %v3132 = vunpack.c.l.b16 %v3099
    %v3133 = vunpack.c.l.b16 %v3100
    %v3134 = vunpack.c.l.b16 %v3101
    %v3135 = vunpack.c.l.b16 %v3102
    %v3136 = vunpack.c.l.b16 %v3103
    %v3137 = vunpack.c.l.b16 %v3104
    %v3138 = vunpack.c.l.b16 %v3105
    %v3139 = vunpack.c.l.b16 %v3106
    %v3140 = vunpack.c.l.b16 %v3107
    %v3141 = vunpack.c.l.b16 %v3108
    %v3142 = vunpack.c.l.b16 %v3109
    %v3143 = vunpack.c.l.b16 %v3110
    %v3144 = vunpack.c.l.b16 %v3111
    %v3145 = vunpack.c.l.b16 %v3112
    %v3146 = vunpack.c.l.b16 %v3113
    %v3147 = vunpack.c.l.b16 %v3114
    %v3148 = vpack.c.b16 %v3133, %v3132
    %v3149 = vpack.c.b16 %v3135, %v3134
    %v3150 = vpack.c.b16 %v3137, %v3136
    %v3151 = vpack.c.b16 %v3139, %v3138
    %v3152 = vpack.c.b16 %v3141, %v3140
    %v3153 = vpack.c.b16 %v3143, %v3142
    %v3154 = vpack.c.b16 %v3145, %v3144
    %v3155 = vpack.c.b16 %v3147, %v3146
    %3164 = vmatprep.subr.bf16.mxu0 0
    %3165 = vmatpush1.bf16.msra.mxu0 %v3148
    %3166 = vmatprep.subr.bf16.mxu0 0
    %3167 = vmatpush1.bf16.msra.mxu0 %v3149
    %3168 = vmatprep.subr.bf16.mxu0 0
    %3169 = vmatpush1.bf16.msra.mxu0 %v3150
    %3170 = vmatprep.subr.bf16.mxu0 0
    %3171 = vmatpush1.bf16.msra.mxu0 %v3151
    %3172 = vmatprep.subr.bf16.mxu0 0
    %3173 = vmatpush1.bf16.msra.mxu0 %v3152
    %3174 = vmatprep.subr.bf16.mxu0 0
    %3175 = vmatpush1.bf16.msra.mxu0 %v3153
    %3176 = vmatprep.subr.bf16.mxu0 0
    %3177 = vmatpush1.bf16.msra.mxu0 %v3154
    %3178 = vmatprep.subr.bf16.mxu0 0
    %3179 = vmatpush1.bf16.msra.mxu0 %v3155
    %3180 = vmatprep.subr.bf16.mxu0 0
    %3181 = vmatpush1.bf16.msra.mxu0 0
    %3182 = vmatprep.subr.bf16.mxu0 0
    %3183 = vmatpush1.bf16.msra.mxu0 0
    %3184 = vmatprep.subr.bf16.mxu0 0
    %3185 = vmatpush1.bf16.msra.mxu0 0
    %3186 = vmatprep.subr.bf16.mxu0 0
    %3187 = vmatpush1.bf16.msra.mxu0 0
    %3188 = vmatprep.subr.bf16.mxu0 0
    %3189 = vmatpush1.bf16.msra.mxu0 0
    %3190 = vmatprep.subr.bf16.mxu0 0
    %3191 = vmatpush1.bf16.msra.mxu0 0
    %3192 = vmatprep.subr.bf16.mxu0 0
    %3193 = vmatpush1.bf16.msra.mxu0 0
    %3194 = vmatprep.subr.bf16.mxu0 0
    %3195 = vmatpush1.bf16.msra.mxu0 0
    %3196 = vmatprep.mubr.bf16.mxu0 0
    %3197 = vmatmul.mubr.bf16.gmra.mrb[0].mxu0 %v3115
    %v3198 = vpop.f32.mrb[0].mxu0
    %v3199 = vadd.f32 0.0, %v3198
    %v3200 = vpop.f32.mrb[0].mxu0
    %v3201 = vpop.f32.mrb[0].mxu0
    %v3202 = vadd.f32 0.0, %v3201
    %v3203 = vpop.f32.mrb[0].mxu0
    %3204 = vdwg.mxu0
    %v3205 = vadd.f32 %v1874, %v3199
    %v3206 = vadd.f32 %v1875, %v3202
    %v3207 = vld [vmem:[#allocation18] sm:$0x1]
    %v3209 = vlaneseq
    %v3210 = vshrl.u32 %v3209, 7
    %v3211 = vsub.s32 0, %v3210
    %v3212 = vrot.slane %v3207, %v3211
    %v3214 = vadd.f32 %v3205, %v3212
    %v3215 = vadd.f32 %v3206, %v3212
    %s3216 = scalar_lea.vmem [#allocation24], 2
    %v3217 = vld [vmem:[%s3216] sm:$0x1]
    %s3218 = scalar_lea.vmem [#allocation25], 2
    %v3219 = vld [vmem:[%s3218] sm:$0x1]
    %3220 = vadd.xlane.f32.xlu0 %v3214
    %v3221 = vpop.xlane.xlu0 %3220
    %3222 = vadd.xlane.f32.xlu0 %v3215
    %v3223 = vpop.xlane.xlu0 %3222
    %v3224 = vmul.f32 %v3221, %v531
    %v3225 = vmul.f32 %v3223, %v531
    %v3226 = vsub.f32 %v3214, %v3224
    %v3227 = vsub.f32 %v3215, %v3225
    %v3228 = vmul.f32 %v3226, %v3226
    %v3229 = vmul.f32 %v3227, %v3227
    %3230 = vadd.xlane.f32.xlu0 %v3228
    %v3231 = vpop.xlane.xlu0 %3230
    %3232 = vadd.xlane.f32.xlu0 %v3229
    %v3233 = vpop.xlane.xlu0 %3232
    %v3234 = vmul.f32 %v3231, %v531
    %v3235 = vmul.f32 %v3233, %v531
    %v3236 = vadd.f32 %v3234, 1e-05
    %v3237 = vadd.f32 %v3235, 1e-05
    %v3238 = vrsqrt.pop %v3236
    %v3239 = vrsqrt.pop %v3237
    %v3240 = vmul.f32 %v3226, %v3238
    %v3241 = vmul.f32 %v3227, %v3239
    %v3243 = vlaneseq
    %v3244 = vshrl.u32 %v3243, 7
    %v3245 = vsub.s32 0, %v3244
    %v3246 = vrot.slane %v3217, %v3245
    %v3248 = vmul.f32 %v3240, %v3246
    %v3249 = vmul.f32 %v3241, %v3246
    %v3251 = vlaneseq
    %v3252 = vshrl.u32 %v3251, 7
    %v3253 = vsub.s32 0, %v3252
    %v3254 = vrot.slane %v3219, %v3253
    %v3256 = vadd.f32 %v3248, %v3254
    %v3257 = vadd.f32 %v3249, %v3254
    %v3258 = vld [vmem:[%s16] sm:$0xff]
    %v3259 = vld [vmem:[%s16 + $0x8] sm:$0xff]
    %v3260 = vld [vmem:[%s16 + $0x10] sm:$0xff]
    %v3261 = vld [vmem:[%s16 + $0x18] sm:$0xff]
    %v3262 = vld [vmem:[%s16 + $0x20] sm:$0xff]
    %v3263 = vld [vmem:[%s16 + $0x28] sm:$0xff]
    %v3264 = vld [vmem:[%s16 + $0x30] sm:$0xff]
    %v3265 = vld [vmem:[%s16 + $0x38] sm:$0xff]
    %v3266 = vld [vmem:[%s16 + $0x40] sm:$0xff]
    %v3267 = vld [vmem:[%s16 + $0x48] sm:$0xff]
    %v3268 = vld [vmem:[%s16 + $0x50] sm:$0xff]
    %v3269 = vld [vmem:[%s16 + $0x58] sm:$0xff]
    %v3270 = vld [vmem:[%s16 + $0x60] sm:$0xff]
    %v3271 = vld [vmem:[%s16 + $0x68] sm:$0xff]
    %v3272 = vld [vmem:[%s16 + $0x70] sm:$0xff]
    %v3273 = vld [vmem:[%s16 + $0x78] sm:$0xff]
    %v3274 = vpack.c.bf16 %v3257, %v3256
    %v3275 = vld [vmem:[#allocation19] sm:$0x3]
    %v3277 = vlaneseq
    %v3278 = vshrl.u32 %v3277, 7
    %v3279 = vsub.s32 0, %v3278
    %v3280 = vrot.slane %v3275, %v3279
    %v3281 = vlaneseq
    %v3282 = vshrl.u32 %v3281, 7
    %v3283 = vsub.s32 1, %v3282
    %v3284 = vrot.slane %v3275, %v3283
    %v3303 = vunpack.c.l.b16 %v3258
    %v3304 = vunpack.c.h.b16 %v3258
    %v3305 = vunpack.c.l.b16 %v3259
    %v3306 = vunpack.c.h.b16 %v3259
    %v3307 = vunpack.c.l.b16 %v3260
    %v3308 = vunpack.c.h.b16 %v3260
    %v3309 = vunpack.c.l.b16 %v3261
    %v3310 = vunpack.c.h.b16 %v3261
    %v3311 = vunpack.c.l.b16 %v3262
    %v3312 = vunpack.c.h.b16 %v3262
    %v3313 = vunpack.c.l.b16 %v3263
    %v3314 = vunpack.c.h.b16 %v3263
    %v3315 = vunpack.c.l.b16 %v3264
    %v3316 = vunpack.c.h.b16 %v3264
    %v3317 = vunpack.c.l.b16 %v3265
    %v3318 = vunpack.c.h.b16 %v3265
    %v3319 = vunpack.c.l.b16 %v3266
    %v3320 = vunpack.c.h.b16 %v3266
    %v3321 = vunpack.c.l.b16 %v3267
    %v3322 = vunpack.c.h.b16 %v3267
    %v3323 = vunpack.c.l.b16 %v3268
    %v3324 = vunpack.c.h.b16 %v3268
    %v3325 = vunpack.c.l.b16 %v3269
    %v3326 = vunpack.c.h.b16 %v3269
    %v3327 = vunpack.c.l.b16 %v3270
    %v3328 = vunpack.c.h.b16 %v3270
    %v3329 = vunpack.c.l.b16 %v3271
    %v3330 = vunpack.c.h.b16 %v3271
    %v3331 = vunpack.c.l.b16 %v3272
    %v3332 = vunpack.c.h.b16 %v3272
    %v3333 = vunpack.c.l.b16 %v3273
    %v3334 = vunpack.c.h.b16 %v3273
    %v3335 = vpack.c.b16 %v3305, %v3303
    %v3336 = vpack.c.b16 %v3306, %v3304
    %v3337 = vpack.c.b16 %v3309, %v3307
    %v3338 = vpack.c.b16 %v3310, %v3308
    %v3339 = vpack.c.b16 %v3313, %v3311
    %v3340 = vpack.c.b16 %v3314, %v3312
    %v3341 = vpack.c.b16 %v3317, %v3315
    %v3342 = vpack.c.b16 %v3318, %v3316
    %v3343 = vpack.c.b16 %v3321, %v3319
    %v3344 = vpack.c.b16 %v3322, %v3320
    %v3345 = vpack.c.b16 %v3325, %v3323
    %v3346 = vpack.c.b16 %v3326, %v3324
    %v3347 = vpack.c.b16 %v3329, %v3327
    %v3348 = vpack.c.b16 %v3330, %v3328
    %v3349 = vpack.c.b16 %v3333, %v3331
    %v3350 = vpack.c.b16 %v3334, %v3332
    %3367 = vmatprep.subr.bf16.mxu0 %v3336
    %3368 = vmatpush1.bf16.msra.mxu0 %v3335
    %3369 = vmatprep.subr.bf16.mxu0 %v3338
    %3370 = vmatpush1.bf16.msra.mxu0 %v3337
    %3371 = vmatprep.subr.bf16.mxu0 %v3340
    %3372 = vmatpush1.bf16.msra.mxu0 %v3339
    %3373 = vmatprep.subr.bf16.mxu0 %v3342
    %3374 = vmatpush1.bf16.msra.mxu0 %v3341
    %3375 = vmatprep.subr.bf16.mxu0 %v3344
    %3376 = vmatpush1.bf16.msra.mxu0 %v3343
    %3377 = vmatprep.subr.bf16.mxu0 %v3346
    %3378 = vmatpush1.bf16.msra.mxu0 %v3345
    %3379 = vmatprep.subr.bf16.mxu0 %v3348
    %3380 = vmatpush1.bf16.msra.mxu0 %v3347
    %3381 = vmatprep.subr.bf16.mxu0 %v3350
    %3382 = vmatpush1.bf16.msra.mxu0 %v3349
    %3383 = vmatprep.subr.bf16.mxu0 0
    %3384 = vmatpush1.bf16.msra.mxu0 0
    %3385 = vmatprep.subr.bf16.mxu0 0
    %3386 = vmatpush1.bf16.msra.mxu0 0
    %3387 = vmatprep.subr.bf16.mxu0 0
    %3388 = vmatpush1.bf16.msra.mxu0 0
    %3389 = vmatprep.subr.bf16.mxu0 0
    %3390 = vmatpush1.bf16.msra.mxu0 0
    %3391 = vmatprep.subr.bf16.mxu0 0
    %3392 = vmatpush1.bf16.msra.mxu0 0
    %3393 = vmatprep.subr.bf16.mxu0 0
    %3394 = vmatpush1.bf16.msra.mxu0 0
    %3395 = vmatprep.subr.bf16.mxu0 0
    %3396 = vmatpush1.bf16.msra.mxu0 0
    %3397 = vmatprep.subr.bf16.mxu0 0
    %3398 = vmatpush1.bf16.msra.mxu0 0
    %3399 = vmatprep.mubr.bf16.mxu0 0
    %3400 = vmatmul.mubr.bf16.gmra.mrb[0].mxu0 %v3274
    %v3401 = vpop.f32.mrb[0].mxu0
    %v3402 = vadd.f32 %v3280, %v3401
    %v3403 = vpop.f32.mrb[0].mxu0
    %v3404 = vadd.f32 %v3284, %v3403
    %v3405 = vpop.f32.mrb[0].mxu0
    %v3406 = vadd.f32 %v3280, %v3405
    %v3407 = vpop.f32.mrb[0].mxu0
    %v3408 = vadd.f32 %v3284, %v3407
    %3409 = vdwg.mxu0
    %v3410 = vmax.f32 %v3402, 0.0
    %v3411 = vmax.f32 %v3404, 0.0
    %v3412 = vmax.f32 %v3406, 0.0
    %v3413 = vmax.f32 %v3408, 0.0
    %v3414 = vld [vmem:[#allocation21] sm:$0xf]
    %v3415 = vld [vmem:[#allocation21 + $0x4] sm:$0xf]
    %v3416 = vld [vmem:[#allocation21 + $0x8] sm:$0xf]
    %v3417 = vld [vmem:[#allocation21 + $0xc] sm:$0xf]
    %v3418 = vld [vmem:[#allocation21 + $0x10] sm:$0xf]
    %v3419 = vld [vmem:[#allocation21 + $0x14] sm:$0xf]
    %v3420 = vld [vmem:[#allocation21 + $0x18] sm:$0xf]
    %v3421 = vld [vmem:[#allocation21 + $0x1c] sm:$0xf]
    %v3422 = vld [vmem:[#allocation21 + $0x20] sm:$0xf]
    %v3423 = vld [vmem:[#allocation21 + $0x24] sm:$0xf]
    %v3424 = vld [vmem:[#allocation21 + $0x28] sm:$0xf]
    %v3425 = vld [vmem:[#allocation21 + $0x2c] sm:$0xf]
    %v3426 = vld [vmem:[#allocation21 + $0x30] sm:$0xf]
    %v3427 = vld [vmem:[#allocation21 + $0x34] sm:$0xf]
    %v3428 = vld [vmem:[#allocation21 + $0x38] sm:$0xf]
    %v3429 = vld [vmem:[#allocation21 + $0x3c] sm:$0xf]
    %v3430 = vld [vmem:[#allocation21 + $0x40] sm:$0xf]
    %v3431 = vld [vmem:[#allocation21 + $0x44] sm:$0xf]
    %v3432 = vld [vmem:[#allocation21 + $0x48] sm:$0xf]
    %v3433 = vld [vmem:[#allocation21 + $0x4c] sm:$0xf]
    %v3434 = vld [vmem:[#allocation21 + $0x50] sm:$0xf]
    %v3435 = vld [vmem:[#allocation21 + $0x54] sm:$0xf]
    %v3436 = vld [vmem:[#allocation21 + $0x58] sm:$0xf]
    %v3437 = vld [vmem:[#allocation21 + $0x5c] sm:$0xf]
    %v3438 = vld [vmem:[#allocation21 + $0x60] sm:$0xf]
    %v3439 = vld [vmem:[#allocation21 + $0x64] sm:$0xf]
    %v3440 = vld [vmem:[#allocation21 + $0x68] sm:$0xf]
    %v3441 = vld [vmem:[#allocation21 + $0x6c] sm:$0xf]
    %v3442 = vld [vmem:[#allocation21 + $0x70] sm:$0xf]
    %v3443 = vld [vmem:[#allocation21 + $0x74] sm:$0xf]
    %v3444 = vld [vmem:[#allocation21 + $0x78] sm:$0xf]
    %v3445 = vld [vmem:[#allocation21 + $0x7c] sm:$0xf]
    %v3446 = vpack.c.bf16 %v3412, %v3410
    %v3447 = vpack.c.bf16 %v3413, %v3411
    %v3480 = vunpack.c.l.b16 %v3414
    %v3481 = vunpack.c.l.b16 %v3415
    %v3482 = vunpack.c.l.b16 %v3416
    %v3483 = vunpack.c.l.b16 %v3417
    %v3484 = vunpack.c.l.b16 %v3418
    %v3485 = vunpack.c.l.b16 %v3419
    %v3486 = vunpack.c.l.b16 %v3420
    %v3487 = vunpack.c.l.b16 %v3421
    %v3488 = vunpack.c.l.b16 %v3422
    %v3489 = vunpack.c.l.b16 %v3423
    %v3490 = vunpack.c.l.b16 %v3424
    %v3491 = vunpack.c.l.b16 %v3425
    %v3492 = vunpack.c.l.b16 %v3426
    %v3493 = vunpack.c.l.b16 %v3427
    %v3494 = vunpack.c.l.b16 %v3428
    %v3495 = vunpack.c.l.b16 %v3429
    %v3496 = vunpack.c.l.b16 %v3430
    %v3497 = vunpack.c.l.b16 %v3431
    %v3498 = vunpack.c.l.b16 %v3432
    %v3499 = vunpack.c.l.b16 %v3433
    %v3500 = vunpack.c.l.b16 %v3434
    %v3501 = vunpack.c.l.b16 %v3435
    %v3502 = vunpack.c.l.b16 %v3436
    %v3503 = vunpack.c.l.b16 %v3437
    %v3504 = vunpack.c.l.b16 %v3438
    %v3505 = vunpack.c.l.b16 %v3439
    %v3506 = vunpack.c.l.b16 %v3440
    %v3507 = vunpack.c.l.b16 %v3441
    %v3508 = vunpack.c.l.b16 %v3442
    %v3509 = vunpack.c.l.b16 %v3443
    %v3510 = vunpack.c.l.b16 %v3444
    %v3511 = vunpack.c.l.b16 %v3445
    %v3512 = vpack.c.b16 %v3481, %v3480
    %v3513 = vpack.c.b16 %v3483, %v3482
    %v3514 = vpack.c.b16 %v3485, %v3484
    %v3515 = vpack.c.b16 %v3487, %v3486
    %v3516 = vpack.c.b16 %v3489, %v3488
    %v3517 = vpack.c.b16 %v3491, %v3490
    %v3518 = vpack.c.b16 %v3493, %v3492
    %v3519 = vpack.c.b16 %v3495, %v3494
    %v3520 = vpack.c.b16 %v3497, %v3496
    %v3521 = vpack.c.b16 %v3499, %v3498
    %v3522 = vpack.c.b16 %v3501, %v3500
    %v3523 = vpack.c.b16 %v3503, %v3502
    %v3524 = vpack.c.b16 %v3505, %v3504
    %v3525 = vpack.c.b16 %v3507, %v3506
    %v3526 = vpack.c.b16 %v3509, %v3508
    %v3527 = vpack.c.b16 %v3511, %v3510
    %3544 = vmatprep.subr.bf16.mxu0 0
    %3545 = vmatpush1.bf16.msra.mxu0 %v3512
    %3546 = vmatprep.subr.bf16.mxu0 0
    %3547 = vmatpush1.bf16.msra.mxu0 %v3513
    %3548 = vmatprep.subr.bf16.mxu0 0
    %3549 = vmatpush1.bf16.msra.mxu0 %v3514
    %3550 = vmatprep.subr.bf16.mxu0 0
    %3551 = vmatpush1.bf16.msra.mxu0 %v3515
    %3552 = vmatprep.subr.bf16.mxu0 0
    %3553 = vmatpush1.bf16.msra.mxu0 %v3516
    %3554 = vmatprep.subr.bf16.mxu0 0
    %3555 = vmatpush1.bf16.msra.mxu0 %v3517
    %3556 = vmatprep.subr.bf16.mxu0 0
    %3557 = vmatpush1.bf16.msra.mxu0 %v3518
    %3558 = vmatprep.subr.bf16.mxu0 0
    %3559 = vmatpush1.bf16.msra.mxu0 %v3519
    %3560 = vmatprep.subr.bf16.mxu0 0
    %3561 = vmatpush1.bf16.msra.mxu0 %v3520
    %3562 = vmatprep.subr.bf16.mxu0 0
    %3563 = vmatpush1.bf16.msra.mxu0 %v3521
    %3564 = vmatprep.subr.bf16.mxu0 0
    %3565 = vmatpush1.bf16.msra.mxu0 %v3522
    %3566 = vmatprep.subr.bf16.mxu0 0
    %3567 = vmatpush1.bf16.msra.mxu0 %v3523
    %3568 = vmatprep.subr.bf16.mxu0 0
    %3569 = vmatpush1.bf16.msra.mxu0 %v3524
    %3570 = vmatprep.subr.bf16.mxu0 0
    %3571 = vmatpush1.bf16.msra.mxu0 %v3525
    %3572 = vmatprep.subr.bf16.mxu0 0
    %3573 = vmatpush1.bf16.msra.mxu0 %v3526
    %3574 = vmatprep.subr.bf16.mxu0 0
    %3575 = vmatpush1.bf16.msra.mxu0 %v3527
    %3576 = vmatprep.mubr.bf16.mxu0 %v3447
    %3577 = vmatmul.mubr.bf16.gmra.mrb[0].mxu0 %v3446
    %v3578 = vpop.f32.mrb[0].mxu0
    %v3579 = vadd.f32 0.0, %v3578
    %v3580 = vpop.f32.mrb[0].mxu0
    %v3581 = vpop.f32.mrb[0].mxu0
    %v3582 = vadd.f32 0.0, %v3581
    %v3583 = vpop.f32.mrb[0].mxu0
    %3584 = vdwg.mxu0
    %v3585 = vadd.f32 %v3214, %v3579
    %v3586 = vadd.f32 %v3215, %v3582
    %v3587 = vld [vmem:[#allocation22] sm:$0x1]
    %v3589 = vlaneseq
    %v3590 = vshrl.u32 %v3589, 7
    %v3591 = vsub.s32 0, %v3590
    %v3592 = vrot.slane %v3587, %v3591
    %v3594 = vadd.f32 %v3585, %v3592
    %v3595 = vadd.f32 %v3586, %v3592
    %s3596 = scalar_lea.vmem [#allocation24], 3
    %v3597 = vld [vmem:[%s3596] sm:$0x1]
    %s3598 = scalar_lea.vmem [#allocation25], 3
    %v3599 = vld [vmem:[%s3598] sm:$0x1]
    %3600 = vadd.xlane.f32.xlu0 %v3594
    %v3601 = vpop.xlane.xlu0 %3600
    %3602 = vadd.xlane.f32.xlu0 %v3595
    %v3603 = vpop.xlane.xlu0 %3602
    %v3604 = vmul.f32 %v3601, %v531
    %v3605 = vmul.f32 %v3603, %v531
    %v3606 = vsub.f32 %v3594, %v3604
    %v3607 = vsub.f32 %v3595, %v3605
    %v3608 = vmul.f32 %v3606, %v3606
    %v3609 = vmul.f32 %v3607, %v3607
    %3610 = vadd.xlane.f32.xlu0 %v3608
    %v3611 = vpop.xlane.xlu0 %3610
    %3612 = vadd.xlane.f32.xlu0 %v3609
    %v3613 = vpop.xlane.xlu0 %3612
    %v3614 = vmul.f32 %v3611, %v531
    %v3615 = vmul.f32 %v3613, %v531
    %v3616 = vadd.f32 %v3614, 1e-05
    %v3617 = vadd.f32 %v3615, 1e-05
    %v3618 = vrsqrt.pop %v3616
    %v3619 = vrsqrt.pop %v3617
    %v3620 = vmul.f32 %v3606, %v3618
    %v3621 = vmul.f32 %v3607, %v3619
    %v3623 = vlaneseq
    %v3624 = vshrl.u32 %v3623, 7
    %v3625 = vsub.s32 0, %v3624
    %v3626 = vrot.slane %v3597, %v3625
    %v3628 = vmul.f32 %v3620, %v3626
    %v3629 = vmul.f32 %v3621, %v3626
    %v3631 = vlaneseq
    %v3632 = vshrl.u32 %v3631, 7
    %v3633 = vsub.s32 0, %v3632
    %v3634 = vrot.slane %v3599, %v3633
    %v3636 = vadd.f32 %v3628, %v3634
    %v3637 = vadd.f32 %v3629, %v3634
    %s3638 = scalar_lea.vmem %s6, 192
    %v3639 = vld [vmem:[%s3638] sm:$0xff]
    %v3640 = vld [vmem:[%s3638 + $0x8] sm:$0xf]
    %v3641 = vld [vmem:[%s3638 + $0xc] sm:$0xff]
    %v3642 = vld [vmem:[%s3638 + $0x14] sm:$0xf]
    %v3643 = vld [vmem:[%s3638 + $0x18] sm:$0xff]
    %v3644 = vld [vmem:[%s3638 + $0x20] sm:$0xf]
    %v3645 = vld [vmem:[%s3638 + $0x24] sm:$0xff]
    %v3646 = vld [vmem:[%s3638 + $0x2c] sm:$0xf]
    %v3647 = vld [vmem:[%s3638 + $0x30] sm:$0xff]
    %v3648 = vld [vmem:[%s3638 + $0x38] sm:$0xf]
    %v3649 = vld [vmem:[%s3638 + $0x3c] sm:$0xff]
    %v3650 = vld [vmem:[%s3638 + $0x44] sm:$0xf]
    %v3651 = vld [vmem:[%s3638 + $0x48] sm:$0xff]
    %v3652 = vld [vmem:[%s3638 + $0x50] sm:$0xf]
    %v3653 = vld [vmem:[%s3638 + $0x54] sm:$0xff]
    %v3654 = vld [vmem:[%s3638 + $0x5c] sm:$0xf]
    %v3655 = vld [vmem:[%s3638 + $0x60] sm:$0xff]
    %v3656 = vld [vmem:[%s3638 + $0x68] sm:$0xf]
    %v3657 = vld [vmem:[%s3638 + $0x6c] sm:$0xff]
    %v3658 = vld [vmem:[%s3638 + $0x74] sm:$0xf]
    %v3659 = vld [vmem:[%s3638 + $0x78] sm:$0xff]
    %v3660 = vld [vmem:[%s3638 + $0x80] sm:$0xf]
    %v3661 = vld [vmem:[%s3638 + $0x84] sm:$0xff]
    %v3662 = vld [vmem:[%s3638 + $0x8c] sm:$0xf]
    %v3663 = vld [vmem:[%s3638 + $0x90] sm:$0xff]
    %v3664 = vld [vmem:[%s3638 + $0x98] sm:$0xf]
    %v3665 = vld [vmem:[%s3638 + $0x9c] sm:$0xff]
    %v3666 = vld [vmem:[%s3638 + $0xa4] sm:$0xf]
    %v3667 = vld [vmem:[%s3638 + $0xa8] sm:$0xff]
    %v3668 = vld [vmem:[%s3638 + $0xb0] sm:$0xf]
    %v3669 = vld [vmem:[%s3638 + $0xb4] sm:$0xff]
    %v3670 = vld [vmem:[%s3638 + $0xbc] sm:$0xf]
    %v3671 = vpack.c.bf16 %v3637, %v3636
    %s3672 = scalar_lea.vmem [#allocation7], 3
    %v3673 = vld [vmem:[%s3672] sm:$0x7]
    %v3675 = vlaneseq
    %v3676 = vshrl.u32 %v3675, 7
    %v3677 = vsub.s32 0, %v3676
    %v3678 = vrot.slane %v3673, %v3677
    %v3679 = vlaneseq
    %v3680 = vshrl.u32 %v3679, 7
    %v3681 = vsub.s32 1, %v3680
    %v3682 = vrot.slane %v3673, %v3681
    %v3683 = vlaneseq
    %v3684 = vshrl.u32 %v3683, 7
    %v3685 = vsub.s32 2, %v3684
    %v3686 = vrot.slane %v3673, %v3685
    %v3722 = vunpack.c.l.b16 %v3639
    %v3723 = vunpack.c.h.b16 %v3639
    %v3724 = vunpack.c.l.b16 %v3640
    %v3725 = vunpack.c.l.b16 %v3641
    %v3726 = vunpack.c.h.b16 %v3641
    %v3727 = vunpack.c.l.b16 %v3642
    %v3728 = vunpack.c.l.b16 %v3643
    %v3729 = vunpack.c.h.b16 %v3643
    %v3730 = vunpack.c.l.b16 %v3644
    %v3731 = vunpack.c.l.b16 %v3645
    %v3732 = vunpack.c.h.b16 %v3645
    %v3733 = vunpack.c.l.b16 %v3646
    %v3734 = vunpack.c.l.b16 %v3647
    %v3735 = vunpack.c.h.b16 %v3647
    %v3736 = vunpack.c.l.b16 %v3648
    %v3737 = vunpack.c.l.b16 %v3649
    %v3738 = vunpack.c.h.b16 %v3649
    %v3739 = vunpack.c.l.b16 %v3650
    %v3740 = vunpack.c.l.b16 %v3651
    %v3741 = vunpack.c.h.b16 %v3651
    %v3742 = vunpack.c.l.b16 %v3652
    %v3743 = vunpack.c.l.b16 %v3653
    %v3744 = vunpack.c.h.b16 %v3653
    %v3745 = vunpack.c.l.b16 %v3654
    %v3746 = vunpack.c.l.b16 %v3655
    %v3747 = vunpack.c.h.b16 %v3655
    %v3748 = vunpack.c.l.b16 %v3656
    %v3749 = vunpack.c.l.b16 %v3657
    %v3750 = vunpack.c.h.b16 %v3657
    %v3751 = vunpack.c.l.b16 %v3658
    %v3752 = vunpack.c.l.b16 %v3659
    %v3753 = vunpack.c.h.b16 %v3659
    %v3754 = vunpack.c.l.b16 %v3660
    %v3755 = vunpack.c.l.b16 %v3661
    %v3756 = vunpack.c.h.b16 %v3661
    %v3757 = vunpack.c.l.b16 %v3662
    %v3758 = vunpack.c.l.b16 %v3663
    %v3759 = vunpack.c.h.b16 %v3663
    %v3760 = vunpack.c.l.b16 %v3664
    %v3761 = vunpack.c.l.b16 %v3665
    %v3762 = vunpack.c.h.b16 %v3665
    %v3763 = vunpack.c.l.b16 %v3666
    %v3764 = vunpack.c.l.b16 %v3667
    %v3765 = vunpack.c.h.b16 %v3667
    %v3766 = vunpack.c.l.b16 %v3668
    %v3767 = vunpack.c.l.b16 %v3669
    %v3768 = vunpack.c.h.b16 %v3669
    %v3769 = vunpack.c.l.b16 %v3670
    %v3770 = vpack.c.b16 %v3725, %v3722
    %v3771 = vpack.c.b16 %v3726, %v3723
    %v3772 = vpack.c.b16 %v3727, %v3724
    %v3773 = vpack.c.b16 %v3731, %v3728
    %v3774 = vpack.c.b16 %v3732, %v3729
    %v3775 = vpack.c.b16 %v3733, %v3730
    %v3776 = vpack.c.b16 %v3737, %v3734
    %v3777 = vpack.c.b16 %v3738, %v3735
    %v3778 = vpack.c.b16 %v3739, %v3736
    %v3779 = vpack.c.b16 %v3743, %v3740
    %v3780 = vpack.c.b16 %v3744, %v3741
    %v3781 = vpack.c.b16 %v3745, %v3742
    %v3782 = vpack.c.b16 %v3749, %v3746
    %v3783 = vpack.c.b16 %v3750, %v3747
    %v3784 = vpack.c.b16 %v3751, %v3748
    %v3785 = vpack.c.b16 %v3755, %v3752
    %v3786 = vpack.c.b16 %v3756, %v3753
    %v3787 = vpack.c.b16 %v3757, %v3754
    %v3788 = vpack.c.b16 %v3761, %v3758
    %v3789 = vpack.c.b16 %v3762, %v3759
    %v3790 = vpack.c.b16 %v3763, %v3760
    %v3791 = vpack.c.b16 %v3767, %v3764
    %v3792 = vpack.c.b16 %v3768, %v3765
    %v3793 = vpack.c.b16 %v3769, %v3766
    %3818 = vmatprep.subr.bf16.mxu0 %v3771
    %3819 = vmatpush1.bf16.msra.mxu0 %v3770
    %3820 = vmatprep.subr.bf16.mxu0 %v3774
    %3821 = vmatpush1.bf16.msra.mxu0 %v3773
    %3822 = vmatprep.subr.bf16.mxu0 %v3777
    %3823 = vmatpush1.bf16.msra.mxu0 %v3776
    %3824 = vmatprep.subr.bf16.mxu0 %v3780
    %3825 = vmatpush1.bf16.msra.mxu0 %v3779
    %3826 = vmatprep.subr.bf16.mxu0 %v3783
    %3827 = vmatpush1.bf16.msra.mxu0 %v3782
    %3828 = vmatprep.subr.bf16.mxu0 %v3786
    %3829 = vmatpush1.bf16.msra.mxu0 %v3785
    %3830 = vmatprep.subr.bf16.mxu0 %v3789
    %3831 = vmatpush1.bf16.msra.mxu0 %v3788
    %3832 = vmatprep.subr.bf16.mxu0 %v3792
    %3833 = vmatpush1.bf16.msra.mxu0 %v3791
    %3834 = vmatprep.subr.bf16.mxu0 0
    %3835 = vmatpush1.bf16.msra.mxu0 0
    %3836 = vmatprep.subr.bf16.mxu0 0
    %3837 = vmatpush1.bf16.msra.mxu0 0
    %3838 = vmatprep.subr.bf16.mxu0 0
    %3839 = vmatpush1.bf16.msra.mxu0 0
    %3840 = vmatprep.subr.bf16.mxu0 0
    %3841 = vmatpush1.bf16.msra.mxu0 0
    %3842 = vmatprep.subr.bf16.mxu0 0
    %3843 = vmatpush1.bf16.msra.mxu0 0
    %3844 = vmatprep.subr.bf16.mxu0 0
    %3845 = vmatpush1.bf16.msra.mxu0 0
    %3846 = vmatprep.subr.bf16.mxu0 0
    %3847 = vmatpush1.bf16.msra.mxu0 0
    %3848 = vmatprep.subr.bf16.mxu0 0
    %3849 = vmatpush1.bf16.msra.mxu0 0
    %3850 = vmatprep.mubr.bf16.mxu0 0
    %3851 = vmatmul.mubr.bf16.gmra.mrb[0].mxu0 %v3671
    %v3852 = vpop.f32.mrb[0].mxu0
    %v3853 = vadd.f32 %v3678, %v3852
    %v3854 = vpop.f32.mrb[0].mxu0
    %v3855 = vadd.f32 %v3682, %v3854
    %v3856 = vpop.f32.mrb[0].mxu0
    %v3857 = vadd.f32 %v3678, %v3856
    %v3858 = vpop.f32.mrb[0].mxu0
    %v3859 = vadd.f32 %v3682, %v3858
    %3860 = vdwg.mxu0
    %3861 = vmatprep.subr.bf16.mxu0 0
    %3862 = vmatpush1.bf16.msra.mxu0 %v3772
    %3863 = vmatprep.subr.bf16.mxu0 0
    %3864 = vmatpush1.bf16.msra.mxu0 %v3775
    %3865 = vmatprep.subr.bf16.mxu0 0
    %3866 = vmatpush1.bf16.msra.mxu0 %v3778
    %3867 = vmatprep.subr.bf16.mxu0 0
    %3868 = vmatpush1.bf16.msra.mxu0 %v3781
    %3869 = vmatprep.subr.bf16.mxu0 0
    %3870 = vmatpush1.bf16.msra.mxu0 %v3784
    %3871 = vmatprep.subr.bf16.mxu0 0
    %3872 = vmatpush1.bf16.msra.mxu0 %v3787
    %3873 = vmatprep.subr.bf16.mxu0 0
    %3874 = vmatpush1.bf16.msra.mxu0 %v3790
    %3875 = vmatprep.subr.bf16.mxu0 0
    %3876 = vmatpush1.bf16.msra.mxu0 %v3793
    %3877 = vmatprep.subr.bf16.mxu0 0
    %3878 = vmatpush1.bf16.msra.mxu0 0
    %3879 = vmatprep.subr.bf16.mxu0 0
    %3880 = vmatpush1.bf16.msra.mxu0 0
    %3881 = vmatprep.subr.bf16.mxu0 0
    %3882 = vmatpush1.bf16.msra.mxu0 0
    %3883 = vmatprep.subr.bf16.mxu0 0
    %3884 = vmatpush1.bf16.msra.mxu0 0
    %3885 = vmatprep.subr.bf16.mxu0 0
    %3886 = vmatpush1.bf16.msra.mxu0 0
    %3887 = vmatprep.subr.bf16.mxu0 0
    %3888 = vmatpush1.bf16.msra.mxu0 0
    %3889 = vmatprep.subr.bf16.mxu0 0
    %3890 = vmatpush1.bf16.msra.mxu0 0
    %3891 = vmatprep.subr.bf16.mxu0 0
    %3892 = vmatpush1.bf16.msra.mxu0 0
    %3893 = vmatprep.mubr.bf16.mxu0 0
    %3894 = vmatmul.mubr.bf16.gmra.mrb[0].mxu0 %v3671
    %v3895 = vpop.f32.mrb[0].mxu0
    %v3896 = vadd.f32 %v3686, %v3895
    %v3897 = vpop.f32.mrb[0].mxu0
    %v3898 = vpop.f32.mrb[0].mxu0
    %v3899 = vadd.f32 %v3686, %v3898
    %v3900 = vpop.f32.mrb[0].mxu0
    %3901 = vdwg.mxu0
    %v3902 = vpack.c.bf16 %v3853, %v3853
    %v3903 = vpack.c.bf16 %v3857, %v3857
    %v3904 = vpack.c.bf16 %v3855, %v3855
    %v3905 = vpack.c.bf16 %v3859, %v3859
    %v3906 = vpack.c.bf16 %v3896, %v3896
    %v3907 = vpack.c.bf16 %v3899, %v3899
    %v3909 = vsel %vm851, %v3902, 0
    %v3912 = vsel %vm851, %v3904, 0
    %3914 = vmatprep.subr.bf16.mxu0 0
    %3915 = vmatpush1.bf16.xpose.msra.mxu0 %v3912
    %3916 = vmatprep.subr.bf16.mxu0 0
    %3917 = vmatpush1.bf16.xpose.msra.mxu0 0
    %3918 = vmatprep.subr.bf16.mxu0 0
    %3919 = vmatpush1.bf16.xpose.msra.mxu0 0
    %3920 = vmatprep.subr.bf16.mxu0 0
    %3921 = vmatpush1.bf16.xpose.msra.mxu0 0
    %3922 = vmatprep.subr.bf16.mxu0 0
    %3923 = vmatpush1.bf16.xpose.msra.mxu0 0
    %3924 = vmatprep.subr.bf16.mxu0 0
    %3925 = vmatpush1.bf16.xpose.msra.mxu0 0
    %3926 = vmatprep.subr.bf16.mxu0 0
    %3927 = vmatpush1.bf16.xpose.msra.mxu0 0
    %3928 = vmatprep.subr.bf16.mxu0 0
    %3929 = vmatpush1.bf16.xpose.msra.mxu0 0
    %3930 = vmatprep.subr.bf16.mxu0 0
    %3931 = vmatpush1.bf16.xpose.msra.mxu0 0
    %3932 = vmatprep.subr.bf16.mxu0 0
    %3933 = vmatpush1.bf16.xpose.msra.mxu0 0
    %3934 = vmatprep.subr.bf16.mxu0 0
    %3935 = vmatpush1.bf16.xpose.msra.mxu0 0
    %3936 = vmatprep.subr.bf16.mxu0 0
    %3937 = vmatpush1.bf16.xpose.msra.mxu0 0
    %3938 = vmatprep.subr.bf16.mxu0 0
    %3939 = vmatpush1.bf16.xpose.msra.mxu0 0
    %3940 = vmatprep.subr.bf16.mxu0 0
    %3941 = vmatpush1.bf16.xpose.msra.mxu0 0
    %3942 = vmatprep.subr.bf16.mxu0 0
    %3943 = vmatpush1.bf16.xpose.msra.mxu0 0
    %3944 = vmatprep.subr.bf16.mxu0 0
    %3945 = vmatpush1.bf16.xpose.msra.mxu0 0
    %3946 = vmatprep.mubr.bf16.mxu0 0
    %3947 = vmatmul.mubr.bf16.gmra.mrb[0].mxu0 %v3909
    %v3948 = vpop.f32.mrb[0].mxu0
    %v3949 = vadd.f32 0.0, %v3948
    %v3950 = vpop.f32.mrb[0].mxu0
    %v3951 = vpop.f32.mrb[0].mxu0
    %v3952 = vpop.f32.mrb[0].mxu0
    %3953 = vdwg.mxu0
    %v3955 = vsel %vm851, %v3903, 0
    %v3958 = vsel %vm851, %v3905, 0
    %3960 = vmatprep.subr.bf16.mxu0 0
    %3961 = vmatpush1.bf16.xpose.msra.mxu0 %v3958
    %3962 = vmatprep.subr.bf16.mxu0 0
    %3963 = vmatpush1.bf16.xpose.msra.mxu0 0
    %3964 = vmatprep.subr.bf16.mxu0 0
    %3965 = vmatpush1.bf16.xpose.msra.mxu0 0
    %3966 = vmatprep.subr.bf16.mxu0 0
    %3967 = vmatpush1.bf16.xpose.msra.mxu0 0
    %3968 = vmatprep.subr.bf16.mxu0 0
    %3969 = vmatpush1.bf16.xpose.msra.mxu0 0
    %3970 = vmatprep.subr.bf16.mxu0 0
    %3971 = vmatpush1.bf16.xpose.msra.mxu0 0
    %3972 = vmatprep.subr.bf16.mxu0 0
    %3973 = vmatpush1.bf16.xpose.msra.mxu0 0
    %3974 = vmatprep.subr.bf16.mxu0 0
    %3975 = vmatpush1.bf16.xpose.msra.mxu0 0
    %3976 = vmatprep.subr.bf16.mxu0 0
    %3977 = vmatpush1.bf16.xpose.msra.mxu0 0
    %3978 = vmatprep.subr.bf16.mxu0 0
    %3979 = vmatpush1.bf16.xpose.msra.mxu0 0
    %3980 = vmatprep.subr.bf16.mxu0 0
    %3981 = vmatpush1.bf16.xpose.msra.mxu0 0
    %3982 = vmatprep.subr.bf16.mxu0 0
    %3983 = vmatpush1.bf16.xpose.msra.mxu0 0
    %3984 = vmatprep.subr.bf16.mxu0 0
    %3985 = vmatpush1.bf16.xpose.msra.mxu0 0
    %3986 = vmatprep.subr.bf16.mxu0 0
    %3987 = vmatpush1.bf16.xpose.msra.mxu0 0
    %3988 = vmatprep.subr.bf16.mxu0 0
    %3989 = vmatpush1.bf16.xpose.msra.mxu0 0
    %3990 = vmatprep.subr.bf16.mxu0 0
    %3991 = vmatpush1.bf16.xpose.msra.mxu0 0
    %3992 = vmatprep.mubr.bf16.mxu0 0
    %3993 = vmatmul.mubr.bf16.gmra.mrb[0].mxu0 %v3955
    %v3994 = vpop.f32.mrb[0].mxu0
    %v3995 = vadd.f32 0.0, %v3994
    %v3996 = vpop.f32.mrb[0].mxu0
    %v3997 = vpop.f32.mrb[0].mxu0
    %v3998 = vpop.f32.mrb[0].mxu0
    %3999 = vdwg.mxu0
    %v4000 = vsel %vm944, %v3949, -inf
    %4001 = vmax.xlane.f32.xlu0 %v4000
    %v4002 = vpop.xlane.xlu0 %4001
    %v4003 = vsel %vm944, %v3995, -inf
    %4004 = vmax.xlane.f32.xlu0 %v4003
    %v4005 = vpop.xlane.xlu0 %4004
    %v4006 = vsub.f32 %v3949, %v4002
    %v4007 = vsub.f32 %v3995, %v4005
    %v4008 = vmul.f32 %v4006, 1.442695
    %v4009 = vpow.pop %v4008
    %v4010 = vmul.f32 %v4007, 1.442695
    %v4011 = vpow.pop %v4010
    %v4012 = vsel %vm944, %v4009, 0.0
    %4013 = vadd.xlane.f32.xlu0 %v4012
    %v4014 = vpop.xlane.xlu0 %4013
    %v4015 = vsel %vm944, %v4011, 0.0
    %4016 = vadd.xlane.f32.xlu0 %v4015
    %v4017 = vpop.xlane.xlu0 %4016
    %v4018 = vrcp.pop %v4014
    %v4019 = vrcp.pop %v4017
    %v4020 = vmul.f32 %v4009, %v4018
    %v4021 = vmul.f32 %v4011, %v4019
    %v4022 = vpack.c.bf16 %v4020, %v4020
    %v4023 = vpack.c.bf16 %v4021, %v4021
    %v4025 = vsel %vm944, %v4022, 0
    %v4028 = vsel %vm972, %v3906, 0
    %4030 = vmatprep.subr.bf16.mxu0 0
    %4031 = vmatpush1.bf16.msra.mxu0 %v4028
    %4032 = vmatprep.subr.bf16.mxu0 0
    %4033 = vmatpush1.bf16.msra.mxu0 0
    %4034 = vmatprep.subr.bf16.mxu0 0
    %4035 = vmatpush1.bf16.msra.mxu0 0
    %4036 = vmatprep.subr.bf16.mxu0 0
    %4037 = vmatpush1.bf16.msra.mxu0 0
    %4038 = vmatprep.subr.bf16.mxu0 0
    %4039 = vmatpush1.bf16.msra.mxu0 0
    %4040 = vmatprep.subr.bf16.mxu0 0
    %4041 = vmatpush1.bf16.msra.mxu0 0
    %4042 = vmatprep.subr.bf16.mxu0 0
    %4043 = vmatpush1.bf16.msra.mxu0 0
    %4044 = vmatprep.subr.bf16.mxu0 0
    %4045 = vmatpush1.bf16.msra.mxu0 0
    %4046 = vmatprep.subr.bf16.mxu0 0
    %4047 = vmatpush1.bf16.msra.mxu0 0
    %4048 = vmatprep.subr.bf16.mxu0 0
    %4049 = vmatpush1.bf16.msra.mxu0 0
    %4050 = vmatprep.subr.bf16.mxu0 0
    %4051 = vmatpush1.bf16.msra.mxu0 0
    %4052 = vmatprep.subr.bf16.mxu0 0
    %4053 = vmatpush1.bf16.msra.mxu0 0
    %4054 = vmatprep.subr.bf16.mxu0 0
    %4055 = vmatpush1.bf16.msra.mxu0 0
    %4056 = vmatprep.subr.bf16.mxu0 0
    %4057 = vmatpush1.bf16.msra.mxu0 0
    %4058 = vmatprep.subr.bf16.mxu0 0
    %4059 = vmatpush1.bf16.msra.mxu0 0
    %4060 = vmatprep.subr.bf16.mxu0 0
    %4061 = vmatpush1.bf16.msra.mxu0 0
    %4062 = vmatprep.mubr.bf16.mxu0 0
    %4063 = vmatmul.mubr.bf16.gmra.mrb[0].mxu0 %v4025
    %v4064 = vpop.f32.mrb[0].mxu0
    %v4065 = vadd.f32 0.0, %v4064
    %v4066 = vpop.f32.mrb[0].mxu0
    %v4067 = vpop.f32.mrb[0].mxu0
    %v4068 = vpop.f32.mrb[0].mxu0
    %4069 = vdwg.mxu0
    %v4071 = vsel %vm944, %v4023, 0
    %v4074 = vsel %vm972, %v3907, 0
    %4076 = vmatprep.subr.bf16.mxu0 0
    %4077 = vmatpush1.bf16.msra.mxu0 %v4074
    %4078 = vmatprep.subr.bf16.mxu0 0
    %4079 = vmatpush1.bf16.msra.mxu0 0
    %4080 = vmatprep.subr.bf16.mxu0 0
    %4081 = vmatpush1.bf16.msra.mxu0 0
    %4082 = vmatprep.subr.bf16.mxu0 0
    %4083 = vmatpush1.bf16.msra.mxu0 0
    %4084 = vmatprep.subr.bf16.mxu0 0
    %4085 = vmatpush1.bf16.msra.mxu0 0
    %4086 = vmatprep.subr.bf16.mxu0 0
    %4087 = vmatpush1.bf16.msra.mxu0 0
    %4088 = vmatprep.subr.bf16.mxu0 0
    %4089 = vmatpush1.bf16.msra.mxu0 0
    %4090 = vmatprep.subr.bf16.mxu0 0
    %4091 = vmatpush1.bf16.msra.mxu0 0
    %4092 = vmatprep.subr.bf16.mxu0 0
    %4093 = vmatpush1.bf16.msra.mxu0 0
    %4094 = vmatprep.subr.bf16.mxu0 0
    %4095 = vmatpush1.bf16.msra.mxu0 0
    %4096 = vmatprep.subr.bf16.mxu0 0
    %4097 = vmatpush1.bf16.msra.mxu0 0
    %4098 = vmatprep.subr.bf16.mxu0 0
    %4099 = vmatpush1.bf16.msra.mxu0 0
    %4100 = vmatprep.subr.bf16.mxu0 0
    %4101 = vmatpush1.bf16.msra.mxu0 0
    %4102 = vmatprep.subr.bf16.mxu0 0
    %4103 = vmatpush1.bf16.msra.mxu0 0
    %4104 = vmatprep.subr.bf16.mxu0 0
    %4105 = vmatpush1.bf16.msra.mxu0 0
    %4106 = vmatprep.subr.bf16.mxu0 0
    %4107 = vmatpush1.bf16.msra.mxu0 0
    %4108 = vmatprep.mubr.bf16.mxu0 0
    %4109 = vmatmul.mubr.bf16.gmra.mrb[0].mxu0 %v4071
    %v4110 = vpop.f32.mrb[0].mxu0
    %v4111 = vadd.f32 0.0, %v4110
    %v4112 = vpop.f32.mrb[0].mxu0
    %v4113 = vpop.f32.mrb[0].mxu0
    %v4114 = vpop.f32.mrb[0].mxu0
    %4115 = vdwg.mxu0
    %4117 = vrot.lane.b32.xlu0 %v3902, 96
    %v4118 = vpop.permute.xlu0 %4117
    %4120 = vrot.lane.b32.xlu0 %v3904, 96
    %v4121 = vpop.permute.xlu0 %4120
    %v4123 = vsel %vm851, %v4118, 0
    %v4126 = vsel %vm851, %v4121, 0
    %4128 = vmatprep.subr.bf16.mxu0 0
    %4129 = vmatpush1.bf16.xpose.msra.mxu0 %v4126
    %4130 = vmatprep.subr.bf16.mxu0 0
    %4131 = vmatpush1.bf16.xpose.msra.mxu0 0
    %4132 = vmatprep.subr.bf16.mxu0 0
    %4133 = vmatpush1.bf16.xpose.msra.mxu0 0
    %4134 = vmatprep.subr.bf16.mxu0 0
    %4135 = vmatpush1.bf16.xpose.msra.mxu0 0
    %4136 = vmatprep.subr.bf16.mxu0 0
    %4137 = vmatpush1.bf16.xpose.msra.mxu0 0
    %4138 = vmatprep.subr.bf16.mxu0 0
    %4139 = vmatpush1.bf16.xpose.msra.mxu0 0
    %4140 = vmatprep.subr.bf16.mxu0 0
    %4141 = vmatpush1.bf16.xpose.msra.mxu0 0
    %4142 = vmatprep.subr.bf16.mxu0 0
    %4143 = vmatpush1.bf16.xpose.msra.mxu0 0
    %4144 = vmatprep.subr.bf16.mxu0 0
    %4145 = vmatpush1.bf16.xpose.msra.mxu0 0
    %4146 = vmatprep.subr.bf16.mxu0 0
    %4147 = vmatpush1.bf16.xpose.msra.mxu0 0
    %4148 = vmatprep.subr.bf16.mxu0 0
    %4149 = vmatpush1.bf16.xpose.msra.mxu0 0
    %4150 = vmatprep.subr.bf16.mxu0 0
    %4151 = vmatpush1.bf16.xpose.msra.mxu0 0
    %4152 = vmatprep.subr.bf16.mxu0 0
    %4153 = vmatpush1.bf16.xpose.msra.mxu0 0
    %4154 = vmatprep.subr.bf16.mxu0 0
    %4155 = vmatpush1.bf16.xpose.msra.mxu0 0
    %4156 = vmatprep.subr.bf16.mxu0 0
    %4157 = vmatpush1.bf16.xpose.msra.mxu0 0
    %4158 = vmatprep.subr.bf16.mxu0 0
    %4159 = vmatpush1.bf16.xpose.msra.mxu0 0
    %4160 = vmatprep.mubr.bf16.mxu0 0
    %4161 = vmatmul.mubr.bf16.gmra.mrb[0].mxu0 %v4123
    %v4162 = vpop.f32.mrb[0].mxu0
    %v4163 = vadd.f32 0.0, %v4162
    %v4164 = vpop.f32.mrb[0].mxu0
    %v4165 = vpop.f32.mrb[0].mxu0
    %v4166 = vpop.f32.mrb[0].mxu0
    %4167 = vdwg.mxu0
    %4169 = vrot.lane.b32.xlu0 %v3903, 96
    %v4170 = vpop.permute.xlu0 %4169
    %4172 = vrot.lane.b32.xlu0 %v3905, 96
    %v4173 = vpop.permute.xlu0 %4172
    %v4175 = vsel %vm851, %v4170, 0
    %v4178 = vsel %vm851, %v4173, 0
    %4180 = vmatprep.subr.bf16.mxu0 0
    %4181 = vmatpush1.bf16.xpose.msra.mxu0 %v4178
    %4182 = vmatprep.subr.bf16.mxu0 0
    %4183 = vmatpush1.bf16.xpose.msra.mxu0 0
    %4184 = vmatprep.subr.bf16.mxu0 0
    %4185 = vmatpush1.bf16.xpose.msra.mxu0 0
    %4186 = vmatprep.subr.bf16.mxu0 0
    %4187 = vmatpush1.bf16.xpose.msra.mxu0 0
    %4188 = vmatprep.subr.bf16.mxu0 0
    %4189 = vmatpush1.bf16.xpose.msra.mxu0 0
    %4190 = vmatprep.subr.bf16.mxu0 0
    %4191 = vmatpush1.bf16.xpose.msra.mxu0 0
    %4192 = vmatprep.subr.bf16.mxu0 0
    %4193 = vmatpush1.bf16.xpose.msra.mxu0 0
    %4194 = vmatprep.subr.bf16.mxu0 0
    %4195 = vmatpush1.bf16.xpose.msra.mxu0 0
    %4196 = vmatprep.subr.bf16.mxu0 0
    %4197 = vmatpush1.bf16.xpose.msra.mxu0 0
    %4198 = vmatprep.subr.bf16.mxu0 0
    %4199 = vmatpush1.bf16.xpose.msra.mxu0 0
    %4200 = vmatprep.subr.bf16.mxu0 0
    %4201 = vmatpush1.bf16.xpose.msra.mxu0 0
    %4202 = vmatprep.subr.bf16.mxu0 0
    %4203 = vmatpush1.bf16.xpose.msra.mxu0 0
    %4204 = vmatprep.subr.bf16.mxu0 0
    %4205 = vmatpush1.bf16.xpose.msra.mxu0 0
    %4206 = vmatprep.subr.bf16.mxu0 0
    %4207 = vmatpush1.bf16.xpose.msra.mxu0 0
    %4208 = vmatprep.subr.bf16.mxu0 0
    %4209 = vmatpush1.bf16.xpose.msra.mxu0 0
    %4210 = vmatprep.subr.bf16.mxu0 0
    %4211 = vmatpush1.bf16.xpose.msra.mxu0 0
    %4212 = vmatprep.mubr.bf16.mxu0 0
    %4213 = vmatmul.mubr.bf16.gmra.mrb[0].mxu0 %v4175
    %v4214 = vpop.f32.mrb[0].mxu0
    %v4215 = vadd.f32 0.0, %v4214
    %v4216 = vpop.f32.mrb[0].mxu0
    %v4217 = vpop.f32.mrb[0].mxu0
    %v4218 = vpop.f32.mrb[0].mxu0
    %4219 = vdwg.mxu0
    %v4220 = vsel %vm944, %v4163, -inf
    %4221 = vmax.xlane.f32.xlu0 %v4220
    %v4222 = vpop.xlane.xlu0 %4221
    %v4223 = vsel %vm944, %v4215, -inf
    %4224 = vmax.xlane.f32.xlu0 %v4223
    %v4225 = vpop.xlane.xlu0 %4224
    %v4226 = vsub.f32 %v4163, %v4222
    %v4227 = vsub.f32 %v4215, %v4225
    %v4228 = vmul.f32 %v4226, 1.442695
    %v4229 = vpow.pop %v4228
    %v4230 = vmul.f32 %v4227, 1.442695
    %v4231 = vpow.pop %v4230
    %v4232 = vsel %vm944, %v4229, 0.0
    %4233 = vadd.xlane.f32.xlu0 %v4232
    %v4234 = vpop.xlane.xlu0 %4233
    %v4235 = vsel %vm944, %v4231, 0.0
    %4236 = vadd.xlane.f32.xlu0 %v4235
    %v4237 = vpop.xlane.xlu0 %4236
    %v4238 = vrcp.pop %v4234
    %v4239 = vrcp.pop %v4237
    %v4240 = vmul.f32 %v4229, %v4238
    %v4241 = vmul.f32 %v4231, %v4239
    %v4242 = vpack.c.bf16 %v4240, %v4240
    %v4243 = vpack.c.bf16 %v4241, %v4241
    %4245 = vrot.lane.b32.xlu0 %v3906, 96
    %v4246 = vpop.permute.xlu0 %4245
    %v4248 = vsel %vm944, %v4242, 0
    %v4251 = vsel %vm972, %v4246, 0
    %4253 = vmatprep.subr.bf16.mxu0 0
    %4254 = vmatpush1.bf16.msra.mxu0 %v4251
    %4255 = vmatprep.subr.bf16.mxu0 0
    %4256 = vmatpush1.bf16.msra.mxu0 0
    %4257 = vmatprep.subr.bf16.mxu0 0
    %4258 = vmatpush1.bf16.msra.mxu0 0
    %4259 = vmatprep.subr.bf16.mxu0 0
    %4260 = vmatpush1.bf16.msra.mxu0 0
    %4261 = vmatprep.subr.bf16.mxu0 0
    %4262 = vmatpush1.bf16.msra.mxu0 0
    %4263 = vmatprep.subr.bf16.mxu0 0
    %4264 = vmatpush1.bf16.msra.mxu0 0
    %4265 = vmatprep.subr.bf16.mxu0 0
    %4266 = vmatpush1.bf16.msra.mxu0 0
    %4267 = vmatprep.subr.bf16.mxu0 0
    %4268 = vmatpush1.bf16.msra.mxu0 0
    %4269 = vmatprep.subr.bf16.mxu0 0
    %4270 = vmatpush1.bf16.msra.mxu0 0
    %4271 = vmatprep.subr.bf16.mxu0 0
    %4272 = vmatpush1.bf16.msra.mxu0 0
    %4273 = vmatprep.subr.bf16.mxu0 0
    %4274 = vmatpush1.bf16.msra.mxu0 0
    %4275 = vmatprep.subr.bf16.mxu0 0
    %4276 = vmatpush1.bf16.msra.mxu0 0
    %4277 = vmatprep.subr.bf16.mxu0 0
    %4278 = vmatpush1.bf16.msra.mxu0 0
    %4279 = vmatprep.subr.bf16.mxu0 0
    %4280 = vmatpush1.bf16.msra.mxu0 0
    %4281 = vmatprep.subr.bf16.mxu0 0
    %4282 = vmatpush1.bf16.msra.mxu0 0
    %4283 = vmatprep.subr.bf16.mxu0 0
    %4284 = vmatpush1.bf16.msra.mxu0 0
    %4285 = vmatprep.mubr.bf16.mxu0 0
    %4286 = vmatmul.mubr.bf16.gmra.mrb[0].mxu0 %v4248
    %v4287 = vpop.f32.mrb[0].mxu0
    %v4288 = vadd.f32 0.0, %v4287
    %v4289 = vpop.f32.mrb[0].mxu0
    %v4290 = vpop.f32.mrb[0].mxu0
    %v4291 = vpop.f32.mrb[0].mxu0
    %4292 = vdwg.mxu0
    %4294 = vrot.lane.b32.xlu0 %v3907, 96
    %v4295 = vpop.permute.xlu0 %4294
    %v4297 = vsel %vm944, %v4243, 0
    %v4300 = vsel %vm972, %v4295, 0
    %4302 = vmatprep.subr.bf16.mxu0 0
    %4303 = vmatpush1.bf16.msra.mxu0 %v4300
    %4304 = vmatprep.subr.bf16.mxu0 0
    %4305 = vmatpush1.bf16.msra.mxu0 0
    %4306 = vmatprep.subr.bf16.mxu0 0
    %4307 = vmatpush1.bf16.msra.mxu0 0
    %4308 = vmatprep.subr.bf16.mxu0 0
    %4309 = vmatpush1.bf16.msra.mxu0 0
    %4310 = vmatprep.subr.bf16.mxu0 0
    %4311 = vmatpush1.bf16.msra.mxu0 0
    %4312 = vmatprep.subr.bf16.mxu0 0
    %4313 = vmatpush1.bf16.msra.mxu0 0
    %4314 = vmatprep.subr.bf16.mxu0 0
    %4315 = vmatpush1.bf16.msra.mxu0 0
    %4316 = vmatprep.subr.bf16.mxu0 0
    %4317 = vmatpush1.bf16.msra.mxu0 0
    %4318 = vmatprep.subr.bf16.mxu0 0
    %4319 = vmatpush1.bf16.msra.mxu0 0
    %4320 = vmatprep.subr.bf16.mxu0 0
    %4321 = vmatpush1.bf16.msra.mxu0 0
    %4322 = vmatprep.subr.bf16.mxu0 0
    %4323 = vmatpush1.bf16.msra.mxu0 0
    %4324 = vmatprep.subr.bf16.mxu0 0
    %4325 = vmatpush1.bf16.msra.mxu0 0
    %4326 = vmatprep.subr.bf16.mxu0 0
    %4327 = vmatpush1.bf16.msra.mxu0 0
    %4328 = vmatprep.subr.bf16.mxu0 0
    %4329 = vmatpush1.bf16.msra.mxu0 0
    %4330 = vmatprep.subr.bf16.mxu0 0
    %4331 = vmatpush1.bf16.msra.mxu0 0
    %4332 = vmatprep.subr.bf16.mxu0 0
    %4333 = vmatpush1.bf16.msra.mxu0 0
    %4334 = vmatprep.mubr.bf16.mxu0 0
    %4335 = vmatmul.mubr.bf16.gmra.mrb[0].mxu0 %v4297
    %v4336 = vpop.f32.mrb[0].mxu0
    %v4337 = vadd.f32 0.0, %v4336
    %v4338 = vpop.f32.mrb[0].mxu0
    %v4339 = vpop.f32.mrb[0].mxu0
    %v4340 = vpop.f32.mrb[0].mxu0
    %4341 = vdwg.mxu0
    %4342 = vrot.lane.b32.xlu0 %v3902, 64
    %v4343 = vpop.permute.xlu0 %4342
    %4344 = vrot.lane.b32.xlu0 %v3904, 64
    %v4345 = vpop.permute.xlu0 %4344
    %v4347 = vsel %vm851, %v4343, 0
    %v4350 = vsel %vm851, %v4345, 0
    %4352 = vmatprep.subr.bf16.mxu0 0
    %4353 = vmatpush1.bf16.xpose.msra.mxu0 %v4350
    %4354 = vmatprep.subr.bf16.mxu0 0
    %4355 = vmatpush1.bf16.xpose.msra.mxu0 0
    %4356 = vmatprep.subr.bf16.mxu0 0
    %4357 = vmatpush1.bf16.xpose.msra.mxu0 0
    %4358 = vmatprep.subr.bf16.mxu0 0
    %4359 = vmatpush1.bf16.xpose.msra.mxu0 0
    %4360 = vmatprep.subr.bf16.mxu0 0
    %4361 = vmatpush1.bf16.xpose.msra.mxu0 0
    %4362 = vmatprep.subr.bf16.mxu0 0
    %4363 = vmatpush1.bf16.xpose.msra.mxu0 0
    %4364 = vmatprep.subr.bf16.mxu0 0
    %4365 = vmatpush1.bf16.xpose.msra.mxu0 0
    %4366 = vmatprep.subr.bf16.mxu0 0
    %4367 = vmatpush1.bf16.xpose.msra.mxu0 0
    %4368 = vmatprep.subr.bf16.mxu0 0
    %4369 = vmatpush1.bf16.xpose.msra.mxu0 0
    %4370 = vmatprep.subr.bf16.mxu0 0
    %4371 = vmatpush1.bf16.xpose.msra.mxu0 0
    %4372 = vmatprep.subr.bf16.mxu0 0
    %4373 = vmatpush1.bf16.xpose.msra.mxu0 0
    %4374 = vmatprep.subr.bf16.mxu0 0
    %4375 = vmatpush1.bf16.xpose.msra.mxu0 0
    %4376 = vmatprep.subr.bf16.mxu0 0
    %4377 = vmatpush1.bf16.xpose.msra.mxu0 0
    %4378 = vmatprep.subr.bf16.mxu0 0
    %4379 = vmatpush1.bf16.xpose.msra.mxu0 0
    %4380 = vmatprep.subr.bf16.mxu0 0
    %4381 = vmatpush1.bf16.xpose.msra.mxu0 0
    %4382 = vmatprep.subr.bf16.mxu0 0
    %4383 = vmatpush1.bf16.xpose.msra.mxu0 0
    %4384 = vmatprep.mubr.bf16.mxu0 0
    %4385 = vmatmul.mubr.bf16.gmra.mrb[0].mxu0 %v4347
    %v4386 = vpop.f32.mrb[0].mxu0
    %v4387 = vadd.f32 0.0, %v4386
    %v4388 = vpop.f32.mrb[0].mxu0
    %v4389 = vpop.f32.mrb[0].mxu0
    %v4390 = vpop.f32.mrb[0].mxu0
    %4391 = vdwg.mxu0
    %4392 = vrot.lane.b32.xlu0 %v3903, 64
    %v4393 = vpop.permute.xlu0 %4392
    %4394 = vrot.lane.b32.xlu0 %v3905, 64
    %v4395 = vpop.permute.xlu0 %4394
    %v4397 = vsel %vm851, %v4393, 0
    %v4400 = vsel %vm851, %v4395, 0
    %4402 = vmatprep.subr.bf16.mxu0 0
    %4403 = vmatpush1.bf16.xpose.msra.mxu0 %v4400
    %4404 = vmatprep.subr.bf16.mxu0 0
    %4405 = vmatpush1.bf16.xpose.msra.mxu0 0
    %4406 = vmatprep.subr.bf16.mxu0 0
    %4407 = vmatpush1.bf16.xpose.msra.mxu0 0
    %4408 = vmatprep.subr.bf16.mxu0 0
    %4409 = vmatpush1.bf16.xpose.msra.mxu0 0
    %4410 = vmatprep.subr.bf16.mxu0 0
    %4411 = vmatpush1.bf16.xpose.msra.mxu0 0
    %4412 = vmatprep.subr.bf16.mxu0 0
    %4413 = vmatpush1.bf16.xpose.msra.mxu0 0
    %4414 = vmatprep.subr.bf16.mxu0 0
    %4415 = vmatpush1.bf16.xpose.msra.mxu0 0
    %4416 = vmatprep.subr.bf16.mxu0 0
    %4417 = vmatpush1.bf16.xpose.msra.mxu0 0
    %4418 = vmatprep.subr.bf16.mxu0 0
    %4419 = vmatpush1.bf16.xpose.msra.mxu0 0
    %4420 = vmatprep.subr.bf16.mxu0 0
    %4421 = vmatpush1.bf16.xpose.msra.mxu0 0
    %4422 = vmatprep.subr.bf16.mxu0 0
    %4423 = vmatpush1.bf16.xpose.msra.mxu0 0
    %4424 = vmatprep.subr.bf16.mxu0 0
    %4425 = vmatpush1.bf16.xpose.msra.mxu0 0
    %4426 = vmatprep.subr.bf16.mxu0 0
    %4427 = vmatpush1.bf16.xpose.msra.mxu0 0
    %4428 = vmatprep.subr.bf16.mxu0 0
    %4429 = vmatpush1.bf16.xpose.msra.mxu0 0
    %4430 = vmatprep.subr.bf16.mxu0 0
    %4431 = vmatpush1.bf16.xpose.msra.mxu0 0
    %4432 = vmatprep.subr.bf16.mxu0 0
    %4433 = vmatpush1.bf16.xpose.msra.mxu0 0
    %4434 = vmatprep.mubr.bf16.mxu0 0
    %4435 = vmatmul.mubr.bf16.gmra.mrb[0].mxu0 %v4397
    %v4436 = vpop.f32.mrb[0].mxu0
    %v4437 = vadd.f32 0.0, %v4436
    %v4438 = vpop.f32.mrb[0].mxu0
    %v4439 = vpop.f32.mrb[0].mxu0
    %v4440 = vpop.f32.mrb[0].mxu0
    %4441 = vdwg.mxu0
    %v4442 = vsel %vm944, %v4387, -inf
    %4443 = vmax.xlane.f32.xlu0 %v4442
    %v4444 = vpop.xlane.xlu0 %4443
    %v4445 = vsel %vm944, %v4437, -inf
    %4446 = vmax.xlane.f32.xlu0 %v4445
    %v4447 = vpop.xlane.xlu0 %4446
    %v4448 = vsub.f32 %v4387, %v4444
    %v4449 = vsub.f32 %v4437, %v4447
    %v4450 = vmul.f32 %v4448, 1.442695
    %v4451 = vpow.pop %v4450
    %v4452 = vmul.f32 %v4449, 1.442695
    %v4453 = vpow.pop %v4452
    %v4454 = vsel %vm944, %v4451, 0.0
    %4455 = vadd.xlane.f32.xlu0 %v4454
    %v4456 = vpop.xlane.xlu0 %4455
    %v4457 = vsel %vm944, %v4453, 0.0
    %4458 = vadd.xlane.f32.xlu0 %v4457
    %v4459 = vpop.xlane.xlu0 %4458
    %v4460 = vrcp.pop %v4456
    %v4461 = vrcp.pop %v4459
    %v4462 = vmul.f32 %v4451, %v4460
    %v4463 = vmul.f32 %v4453, %v4461
    %v4464 = vpack.c.bf16 %v4462, %v4462
    %v4465 = vpack.c.bf16 %v4463, %v4463
    %4466 = vrot.lane.b32.xlu0 %v3906, 64
    %v4467 = vpop.permute.xlu0 %4466
    %v4469 = vsel %vm944, %v4464, 0
    %v4472 = vsel %vm972, %v4467, 0
    %4474 = vmatprep.subr.bf16.mxu0 0
    %4475 = vmatpush1.bf16.msra.mxu0 %v4472
    %4476 = vmatprep.subr.bf16.mxu0 0
    %4477 = vmatpush1.bf16.msra.mxu0 0
    %4478 = vmatprep.subr.bf16.mxu0 0
    %4479 = vmatpush1.bf16.msra.mxu0 0
    %4480 = vmatprep.subr.bf16.mxu0 0
    %4481 = vmatpush1.bf16.msra.mxu0 0
    %4482 = vmatprep.subr.bf16.mxu0 0
    %4483 = vmatpush1.bf16.msra.mxu0 0
    %4484 = vmatprep.subr.bf16.mxu0 0
    %4485 = vmatpush1.bf16.msra.mxu0 0
    %4486 = vmatprep.subr.bf16.mxu0 0
    %4487 = vmatpush1.bf16.msra.mxu0 0
    %4488 = vmatprep.subr.bf16.mxu0 0
    %4489 = vmatpush1.bf16.msra.mxu0 0
    %4490 = vmatprep.subr.bf16.mxu0 0
    %4491 = vmatpush1.bf16.msra.mxu0 0
    %4492 = vmatprep.subr.bf16.mxu0 0
    %4493 = vmatpush1.bf16.msra.mxu0 0
    %4494 = vmatprep.subr.bf16.mxu0 0
    %4495 = vmatpush1.bf16.msra.mxu0 0
    %4496 = vmatprep.subr.bf16.mxu0 0
    %4497 = vmatpush1.bf16.msra.mxu0 0
    %4498 = vmatprep.subr.bf16.mxu0 0
    %4499 = vmatpush1.bf16.msra.mxu0 0
    %4500 = vmatprep.subr.bf16.mxu0 0
    %4501 = vmatpush1.bf16.msra.mxu0 0
    %4502 = vmatprep.subr.bf16.mxu0 0
    %4503 = vmatpush1.bf16.msra.mxu0 0
    %4504 = vmatprep.subr.bf16.mxu0 0
    %4505 = vmatpush1.bf16.msra.mxu0 0
    %4506 = vmatprep.mubr.bf16.mxu0 0
    %4507 = vmatmul.mubr.bf16.gmra.mrb[0].mxu0 %v4469
    %v4508 = vpop.f32.mrb[0].mxu0
    %v4509 = vadd.f32 0.0, %v4508
    %v4510 = vpop.f32.mrb[0].mxu0
    %v4511 = vpop.f32.mrb[0].mxu0
    %v4512 = vpop.f32.mrb[0].mxu0
    %4513 = vdwg.mxu0
    %4514 = vrot.lane.b32.xlu0 %v3907, 64
    %v4515 = vpop.permute.xlu0 %4514
    %v4517 = vsel %vm944, %v4465, 0
    %v4520 = vsel %vm972, %v4515, 0
    %4522 = vmatprep.subr.bf16.mxu0 0
    %4523 = vmatpush1.bf16.msra.mxu0 %v4520
    %4524 = vmatprep.subr.bf16.mxu0 0
    %4525 = vmatpush1.bf16.msra.mxu0 0
    %4526 = vmatprep.subr.bf16.mxu0 0
    %4527 = vmatpush1.bf16.msra.mxu0 0
    %4528 = vmatprep.subr.bf16.mxu0 0
    %4529 = vmatpush1.bf16.msra.mxu0 0
    %4530 = vmatprep.subr.bf16.mxu0 0
    %4531 = vmatpush1.bf16.msra.mxu0 0
    %4532 = vmatprep.subr.bf16.mxu0 0
    %4533 = vmatpush1.bf16.msra.mxu0 0
    %4534 = vmatprep.subr.bf16.mxu0 0
    %4535 = vmatpush1.bf16.msra.mxu0 0
    %4536 = vmatprep.subr.bf16.mxu0 0
    %4537 = vmatpush1.bf16.msra.mxu0 0
    %4538 = vmatprep.subr.bf16.mxu0 0
    %4539 = vmatpush1.bf16.msra.mxu0 0
    %4540 = vmatprep.subr.bf16.mxu0 0
    %4541 = vmatpush1.bf16.msra.mxu0 0
    %4542 = vmatprep.subr.bf16.mxu0 0
    %4543 = vmatpush1.bf16.msra.mxu0 0
    %4544 = vmatprep.subr.bf16.mxu0 0
    %4545 = vmatpush1.bf16.msra.mxu0 0
    %4546 = vmatprep.subr.bf16.mxu0 0
    %4547 = vmatpush1.bf16.msra.mxu0 0
    %4548 = vmatprep.subr.bf16.mxu0 0
    %4549 = vmatpush1.bf16.msra.mxu0 0
    %4550 = vmatprep.subr.bf16.mxu0 0
    %4551 = vmatpush1.bf16.msra.mxu0 0
    %4552 = vmatprep.subr.bf16.mxu0 0
    %4553 = vmatpush1.bf16.msra.mxu0 0
    %4554 = vmatprep.mubr.bf16.mxu0 0
    %4555 = vmatmul.mubr.bf16.gmra.mrb[0].mxu0 %v4517
    %v4556 = vpop.f32.mrb[0].mxu0
    %v4557 = vadd.f32 0.0, %v4556
    %v4558 = vpop.f32.mrb[0].mxu0
    %v4559 = vpop.f32.mrb[0].mxu0
    %v4560 = vpop.f32.mrb[0].mxu0
    %4561 = vdwg.mxu0
    %4562 = vrot.lane.b32.xlu0 %v3902, 32
    %v4563 = vpop.permute.xlu0 %4562
    %4564 = vrot.lane.b32.xlu0 %v3904, 32
    %v4565 = vpop.permute.xlu0 %4564
    %v4567 = vsel %vm851, %v4563, 0
    %v4570 = vsel %vm851, %v4565, 0
    %4572 = vmatprep.subr.bf16.mxu0 0
    %4573 = vmatpush1.bf16.xpose.msra.mxu0 %v4570
    %4574 = vmatprep.subr.bf16.mxu0 0
    %4575 = vmatpush1.bf16.xpose.msra.mxu0 0
    %4576 = vmatprep.subr.bf16.mxu0 0
    %4577 = vmatpush1.bf16.xpose.msra.mxu0 0
    %4578 = vmatprep.subr.bf16.mxu0 0
    %4579 = vmatpush1.bf16.xpose.msra.mxu0 0
    %4580 = vmatprep.subr.bf16.mxu0 0
    %4581 = vmatpush1.bf16.xpose.msra.mxu0 0
    %4582 = vmatprep.subr.bf16.mxu0 0
    %4583 = vmatpush1.bf16.xpose.msra.mxu0 0
    %4584 = vmatprep.subr.bf16.mxu0 0
    %4585 = vmatpush1.bf16.xpose.msra.mxu0 0
    %4586 = vmatprep.subr.bf16.mxu0 0
    %4587 = vmatpush1.bf16.xpose.msra.mxu0 0
    %4588 = vmatprep.subr.bf16.mxu0 0
    %4589 = vmatpush1.bf16.xpose.msra.mxu0 0
    %4590 = vmatprep.subr.bf16.mxu0 0
    %4591 = vmatpush1.bf16.xpose.msra.mxu0 0
    %4592 = vmatprep.subr.bf16.mxu0 0
    %4593 = vmatpush1.bf16.xpose.msra.mxu0 0
    %4594 = vmatprep.subr.bf16.mxu0 0
    %4595 = vmatpush1.bf16.xpose.msra.mxu0 0
    %4596 = vmatprep.subr.bf16.mxu0 0
    %4597 = vmatpush1.bf16.xpose.msra.mxu0 0
    %4598 = vmatprep.subr.bf16.mxu0 0
    %4599 = vmatpush1.bf16.xpose.msra.mxu0 0
    %4600 = vmatprep.subr.bf16.mxu0 0
    %4601 = vmatpush1.bf16.xpose.msra.mxu0 0
    %4602 = vmatprep.subr.bf16.mxu0 0
    %4603 = vmatpush1.bf16.xpose.msra.mxu0 0
    %4604 = vmatprep.mubr.bf16.mxu0 0
    %4605 = vmatmul.mubr.bf16.gmra.mrb[0].mxu0 %v4567
    %v4606 = vpop.f32.mrb[0].mxu0
    %v4607 = vadd.f32 0.0, %v4606
    %v4608 = vpop.f32.mrb[0].mxu0
    %v4609 = vpop.f32.mrb[0].mxu0
    %v4610 = vpop.f32.mrb[0].mxu0
    %4611 = vdwg.mxu0
    %4612 = vrot.lane.b32.xlu0 %v3903, 32
    %v4613 = vpop.permute.xlu0 %4612
    %4614 = vrot.lane.b32.xlu0 %v3905, 32
    %v4615 = vpop.permute.xlu0 %4614
    %v4617 = vsel %vm851, %v4613, 0
    %v4620 = vsel %vm851, %v4615, 0
    %4622 = vmatprep.subr.bf16.mxu0 0
    %4623 = vmatpush1.bf16.xpose.msra.mxu0 %v4620
    %4624 = vmatprep.subr.bf16.mxu0 0
    %4625 = vmatpush1.bf16.xpose.msra.mxu0 0
    %4626 = vmatprep.subr.bf16.mxu0 0
    %4627 = vmatpush1.bf16.xpose.msra.mxu0 0
    %4628 = vmatprep.subr.bf16.mxu0 0
    %4629 = vmatpush1.bf16.xpose.msra.mxu0 0
    %4630 = vmatprep.subr.bf16.mxu0 0
    %4631 = vmatpush1.bf16.xpose.msra.mxu0 0
    %4632 = vmatprep.subr.bf16.mxu0 0
    %4633 = vmatpush1.bf16.xpose.msra.mxu0 0
    %4634 = vmatprep.subr.bf16.mxu0 0
    %4635 = vmatpush1.bf16.xpose.msra.mxu0 0
    %4636 = vmatprep.subr.bf16.mxu0 0
    %4637 = vmatpush1.bf16.xpose.msra.mxu0 0
    %4638 = vmatprep.subr.bf16.mxu0 0
    %4639 = vmatpush1.bf16.xpose.msra.mxu0 0
    %4640 = vmatprep.subr.bf16.mxu0 0
    %4641 = vmatpush1.bf16.xpose.msra.mxu0 0
    %4642 = vmatprep.subr.bf16.mxu0 0
    %4643 = vmatpush1.bf16.xpose.msra.mxu0 0
    %4644 = vmatprep.subr.bf16.mxu0 0
    %4645 = vmatpush1.bf16.xpose.msra.mxu0 0
    %4646 = vmatprep.subr.bf16.mxu0 0
    %4647 = vmatpush1.bf16.xpose.msra.mxu0 0
    %4648 = vmatprep.subr.bf16.mxu0 0
    %4649 = vmatpush1.bf16.xpose.msra.mxu0 0
    %4650 = vmatprep.subr.bf16.mxu0 0
    %4651 = vmatpush1.bf16.xpose.msra.mxu0 0
    %4652 = vmatprep.subr.bf16.mxu0 0
    %4653 = vmatpush1.bf16.xpose.msra.mxu0 0
    %4654 = vmatprep.mubr.bf16.mxu0 0
    %4655 = vmatmul.mubr.bf16.gmra.mrb[0].mxu0 %v4617
    %v4656 = vpop.f32.mrb[0].mxu0
    %v4657 = vadd.f32 0.0, %v4656
    %v4658 = vpop.f32.mrb[0].mxu0
    %v4659 = vpop.f32.mrb[0].mxu0
    %v4660 = vpop.f32.mrb[0].mxu0
    %4661 = vdwg.mxu0
    %v4662 = vsel %vm944, %v4607, -inf
    %4663 = vmax.xlane.f32.xlu0 %v4662
    %v4664 = vpop.xlane.xlu0 %4663
    %v4665 = vsel %vm944, %v4657, -inf
    %4666 = vmax.xlane.f32.xlu0 %v4665
    %v4667 = vpop.xlane.xlu0 %4666
    %v4668 = vsub.f32 %v4607, %v4664
    %v4669 = vsub.f32 %v4657, %v4667
    %v4670 = vmul.f32 %v4668, 1.442695
    %v4671 = vpow.pop %v4670
    %v4672 = vmul.f32 %v4669, 1.442695
    %v4673 = vpow.pop %v4672
    %v4674 = vsel %vm944, %v4671, 0.0
    %4675 = vadd.xlane.f32.xlu0 %v4674
    %v4676 = vpop.xlane.xlu0 %4675
    %v4677 = vsel %vm944, %v4673, 0.0
    %4678 = vadd.xlane.f32.xlu0 %v4677
    %v4679 = vpop.xlane.xlu0 %4678
    %v4680 = vrcp.pop %v4676
    %v4681 = vrcp.pop %v4679
    %v4682 = vmul.f32 %v4671, %v4680
    %v4683 = vmul.f32 %v4673, %v4681
    %v4684 = vpack.c.bf16 %v4682, %v4682
    %v4685 = vpack.c.bf16 %v4683, %v4683
    %4686 = vrot.lane.b32.xlu0 %v3906, 32
    %v4687 = vpop.permute.xlu0 %4686
    %v4689 = vsel %vm944, %v4684, 0
    %v4692 = vsel %vm972, %v4687, 0
    %4694 = vmatprep.subr.bf16.mxu0 0
    %4695 = vmatpush1.bf16.msra.mxu0 %v4692
    %4696 = vmatprep.subr.bf16.mxu0 0
    %4697 = vmatpush1.bf16.msra.mxu0 0
    %4698 = vmatprep.subr.bf16.mxu0 0
    %4699 = vmatpush1.bf16.msra.mxu0 0
    %4700 = vmatprep.subr.bf16.mxu0 0
    %4701 = vmatpush1.bf16.msra.mxu0 0
    %4702 = vmatprep.subr.bf16.mxu0 0
    %4703 = vmatpush1.bf16.msra.mxu0 0
    %4704 = vmatprep.subr.bf16.mxu0 0
    %4705 = vmatpush1.bf16.msra.mxu0 0
    %4706 = vmatprep.subr.bf16.mxu0 0
    %4707 = vmatpush1.bf16.msra.mxu0 0
    %4708 = vmatprep.subr.bf16.mxu0 0
    %4709 = vmatpush1.bf16.msra.mxu0 0
    %4710 = vmatprep.subr.bf16.mxu0 0
    %4711 = vmatpush1.bf16.msra.mxu0 0
    %4712 = vmatprep.subr.bf16.mxu0 0
    %4713 = vmatpush1.bf16.msra.mxu0 0
    %4714 = vmatprep.subr.bf16.mxu0 0
    %4715 = vmatpush1.bf16.msra.mxu0 0
    %4716 = vmatprep.subr.bf16.mxu0 0
    %4717 = vmatpush1.bf16.msra.mxu0 0
    %4718 = vmatprep.subr.bf16.mxu0 0
    %4719 = vmatpush1.bf16.msra.mxu0 0
    %4720 = vmatprep.subr.bf16.mxu0 0
    %4721 = vmatpush1.bf16.msra.mxu0 0
    %4722 = vmatprep.subr.bf16.mxu0 0
    %4723 = vmatpush1.bf16.msra.mxu0 0
    %4724 = vmatprep.subr.bf16.mxu0 0
    %4725 = vmatpush1.bf16.msra.mxu0 0
    %4726 = vmatprep.mubr.bf16.mxu0 0
    %4727 = vmatmul.mubr.bf16.gmra.mrb[0].mxu0 %v4689
    %v4728 = vpop.f32.mrb[0].mxu0
    %v4729 = vadd.f32 0.0, %v4728
    %v4730 = vpop.f32.mrb[0].mxu0
    %v4731 = vpop.f32.mrb[0].mxu0
    %v4732 = vpop.f32.mrb[0].mxu0
    %4733 = vdwg.mxu0
    %4734 = vrot.lane.b32.xlu0 %v3907, 32
    %v4735 = vpop.permute.xlu0 %4734
    %v4737 = vsel %vm944, %v4685, 0
    %v4740 = vsel %vm972, %v4735, 0
    %4742 = vmatprep.subr.bf16.mxu0 0
    %4743 = vmatpush1.bf16.msra.mxu0 %v4740
    %4744 = vmatprep.subr.bf16.mxu0 0
    %4745 = vmatpush1.bf16.msra.mxu0 0
    %4746 = vmatprep.subr.bf16.mxu0 0
    %4747 = vmatpush1.bf16.msra.mxu0 0
    %4748 = vmatprep.subr.bf16.mxu0 0
    %4749 = vmatpush1.bf16.msra.mxu0 0
    %4750 = vmatprep.subr.bf16.mxu0 0
    %4751 = vmatpush1.bf16.msra.mxu0 0
    %4752 = vmatprep.subr.bf16.mxu0 0
    %4753 = vmatpush1.bf16.msra.mxu0 0
    %4754 = vmatprep.subr.bf16.mxu0 0
    %4755 = vmatpush1.bf16.msra.mxu0 0
    %4756 = vmatprep.subr.bf16.mxu0 0
    %4757 = vmatpush1.bf16.msra.mxu0 0
    %4758 = vmatprep.subr.bf16.mxu0 0
    %4759 = vmatpush1.bf16.msra.mxu0 0
    %4760 = vmatprep.subr.bf16.mxu0 0
    %4761 = vmatpush1.bf16.msra.mxu0 0
    %4762 = vmatprep.subr.bf16.mxu0 0
    %4763 = vmatpush1.bf16.msra.mxu0 0
    %4764 = vmatprep.subr.bf16.mxu0 0
    %4765 = vmatpush1.bf16.msra.mxu0 0
    %4766 = vmatprep.subr.bf16.mxu0 0
    %4767 = vmatpush1.bf16.msra.mxu0 0
    %4768 = vmatprep.subr.bf16.mxu0 0
    %4769 = vmatpush1.bf16.msra.mxu0 0
    %4770 = vmatprep.subr.bf16.mxu0 0
    %4771 = vmatpush1.bf16.msra.mxu0 0
    %4772 = vmatprep.subr.bf16.mxu0 0
    %4773 = vmatpush1.bf16.msra.mxu0 0
    %4774 = vmatprep.mubr.bf16.mxu0 0
    %4775 = vmatmul.mubr.bf16.gmra.mrb[0].mxu0 %v4737
    %v4776 = vpop.f32.mrb[0].mxu0
    %v4777 = vadd.f32 0.0, %v4776
    %v4778 = vpop.f32.mrb[0].mxu0
    %v4779 = vpop.f32.mrb[0].mxu0
    %v4780 = vpop.f32.mrb[0].mxu0
    %4781 = vdwg.mxu0
    %4784 = vrot.lane.b32.xlu0 %v4288, 32
    %v4785 = vpop.permute.xlu0 %4784
    %4786 = vrot.lane.b32.xlu0 %v4337, 32
    %v4787 = vpop.permute.xlu0 %4786
    %4792 = vrot.lane.b32.xlu0 %v4509, 64
    %v4793 = vpop.permute.xlu0 %4792
    %4794 = vrot.lane.b32.xlu0 %v4557, 64
    %v4795 = vpop.permute.xlu0 %4794
    %4800 = vrot.lane.b32.xlu0 %v4729, 96
    %v4801 = vpop.permute.xlu0 %4800
    %4802 = vrot.lane.b32.xlu0 %v4777, 96
    %v4803 = vpop.permute.xlu0 %4802
    %v4806 = vsel %vm851, %v4065, %v4785
    %v4807 = vsel %vm851, %v4111, %v4787
    %v4808 = vsel %vm483, %v4806, %v4793
    %v4809 = vsel %vm483, %v4807, %v4795
    %v4810 = vsel %vm1756, %v4808, %v4801
    %v4811 = vsel %vm1756, %v4809, %v4803
    %s4812 = scalar_lea.vmem [#allocation9], 64
    %v4813 = vld [vmem:[%s4812] sm:$0xf]
    %v4814 = vld [vmem:[%s4812 + $0x4] sm:$0xf]
    %v4815 = vld [vmem:[%s4812 + $0x8] sm:$0xf]
    %v4816 = vld [vmem:[%s4812 + $0xc] sm:$0xf]
    %v4817 = vld [vmem:[%s4812 + $0x10] sm:$0xf]
    %v4818 = vld [vmem:[%s4812 + $0x14] sm:$0xf]
    %v4819 = vld [vmem:[%s4812 + $0x18] sm:$0xf]
    %v4820 = vld [vmem:[%s4812 + $0x1c] sm:$0xf]
    %v4821 = vld [vmem:[%s4812 + $0x20] sm:$0xf]
    %v4822 = vld [vmem:[%s4812 + $0x24] sm:$0xf]
    %v4823 = vld [vmem:[%s4812 + $0x28] sm:$0xf]
    %v4824 = vld [vmem:[%s4812 + $0x2c] sm:$0xf]
    %v4825 = vld [vmem:[%s4812 + $0x30] sm:$0xf]
    %v4826 = vld [vmem:[%s4812 + $0x34] sm:$0xf]
    %v4827 = vld [vmem:[%s4812 + $0x38] sm:$0xf]
    %v4828 = vld [vmem:[%s4812 + $0x3c] sm:$0xf]
    %v4829 = vpack.c.bf16 %v4811, %v4810
    %v4846 = vunpack.c.l.b16 %v4813
    %v4847 = vunpack.c.l.b16 %v4814
    %v4848 = vunpack.c.l.b16 %v4815
    %v4849 = vunpack.c.l.b16 %v4816
    %v4850 = vunpack.c.l.b16 %v4817
    %v4851 = vunpack.c.l.b16 %v4818
    %v4852 = vunpack.c.l.b16 %v4819
    %v4853 = vunpack.c.l.b16 %v4820
    %v4854 = vunpack.c.l.b16 %v4821
    %v4855 = vunpack.c.l.b16 %v4822
    %v4856 = vunpack.c.l.b16 %v4823
    %v4857 = vunpack.c.l.b16 %v4824
    %v4858 = vunpack.c.l.b16 %v4825
    %v4859 = vunpack.c.l.b16 %v4826
    %v4860 = vunpack.c.l.b16 %v4827
    %v4861 = vunpack.c.l.b16 %v4828
    %v4862 = vpack.c.b16 %v4847, %v4846
    %v4863 = vpack.c.b16 %v4849, %v4848
    %v4864 = vpack.c.b16 %v4851, %v4850
    %v4865 = vpack.c.b16 %v4853, %v4852
    %v4866 = vpack.c.b16 %v4855, %v4854
    %v4867 = vpack.c.b16 %v4857, %v4856
    %v4868 = vpack.c.b16 %v4859, %v4858
    %v4869 = vpack.c.b16 %v4861, %v4860
    %4878 = vmatprep.subr.bf16.mxu0 0
    %4879 = vmatpush1.bf16.msra.mxu0 %v4862
    %4880 = vmatprep.subr.bf16.mxu0 0
    %4881 = vmatpush1.bf16.msra.mxu0 %v4863
    %4882 = vmatprep.subr.bf16.mxu0 0
    %4883 = vmatpush1.bf16.msra.mxu0 %v4864
    %4884 = vmatprep.subr.bf16.mxu0 0
    %4885 = vmatpush1.bf16.msra.mxu0 %v4865
    %4886 = vmatprep.subr.bf16.mxu0 0
    %4887 = vmatpush1.bf16.msra.mxu0 %v4866
    %4888 = vmatprep.subr.bf16.mxu0 0
    %4889 = vmatpush1.bf16.msra.mxu0 %v4867
    %4890 = vmatprep.subr.bf16.mxu0 0
    %4891 = vmatpush1.bf16.msra.mxu0 %v4868
    %4892 = vmatprep.subr.bf16.mxu0 0
    %4893 = vmatpush1.bf16.msra.mxu0 %v4869
    %4894 = vmatprep.subr.bf16.mxu0 0
    %4895 = vmatpush1.bf16.msra.mxu0 0
    %4896 = vmatprep.subr.bf16.mxu0 0
    %4897 = vmatpush1.bf16.msra.mxu0 0
    %4898 = vmatprep.subr.bf16.mxu0 0
    %4899 = vmatpush1.bf16.msra.mxu0 0
    %4900 = vmatprep.subr.bf16.mxu0 0
    %4901 = vmatpush1.bf16.msra.mxu0 0
    %4902 = vmatprep.subr.bf16.mxu0 0
    %4903 = vmatpush1.bf16.msra.mxu0 0
    %4904 = vmatprep.subr.bf16.mxu0 0
    %4905 = vmatpush1.bf16.msra.mxu0 0
    %4906 = vmatprep.subr.bf16.mxu0 0
    %4907 = vmatpush1.bf16.msra.mxu0 0
    %4908 = vmatprep.subr.bf16.mxu0 0
    %4909 = vmatpush1.bf16.msra.mxu0 0
    %4910 = vmatprep.mubr.bf16.mxu0 0
    %4911 = vmatmul.mubr.bf16.gmra.mrb[0].mxu0 %v4829
    %v4912 = vpop.f32.mrb[0].mxu0
    %v4913 = vadd.f32 0.0, %v4912
    %v4914 = vpop.f32.mrb[0].mxu0
    %v4915 = vpop.f32.mrb[0].mxu0
    %v4916 = vadd.f32 0.0, %v4915
    %v4917 = vpop.f32.mrb[0].mxu0
    %4918 = vdwg.mxu0
    %v4919 = vadd.f32 %v3594, %v4913
    %v4920 = vadd.f32 %v3595, %v4916
    %s4921 = scalar_lea.vmem [#allocation10], 1
    %v4922 = vld [vmem:[%s4921] sm:$0x1]
    %v4924 = vlaneseq
    %v4925 = vshrl.u32 %v4924, 7
    %v4926 = vsub.s32 0, %v4925
    %v4927 = vrot.slane %v4922, %v4926
    %v4929 = vadd.f32 %v4919, %v4927
    %v4930 = vadd.f32 %v4920, %v4927
    %s4931 = scalar_lea.vmem [#allocation24], 4
    %v4932 = vld [vmem:[%s4931] sm:$0x1]
    %s4933 = scalar_lea.vmem [#allocation25], 4
    %v4934 = vld [vmem:[%s4933] sm:$0x1]
    %4935 = vadd.xlane.f32.xlu0 %v4929
    %v4936 = vpop.xlane.xlu0 %4935
    %4937 = vadd.xlane.f32.xlu0 %v4930
    %v4938 = vpop.xlane.xlu0 %4937
    %v4939 = vmul.f32 %v4936, %v531
    %v4940 = vmul.f32 %v4938, %v531
    %v4941 = vsub.f32 %v4929, %v4939
    %v4942 = vsub.f32 %v4930, %v4940
    %v4943 = vmul.f32 %v4941, %v4941
    %v4944 = vmul.f32 %v4942, %v4942
    %4945 = vadd.xlane.f32.xlu0 %v4943
    %v4946 = vpop.xlane.xlu0 %4945
    %4947 = vadd.xlane.f32.xlu0 %v4944
    %v4948 = vpop.xlane.xlu0 %4947
    %v4949 = vmul.f32 %v4946, %v531
    %v4950 = vmul.f32 %v4948, %v531
    %v4951 = vadd.f32 %v4949, 1e-05
    %v4952 = vadd.f32 %v4950, 1e-05
    %v4953 = vrsqrt.pop %v4951
    %v4954 = vrsqrt.pop %v4952
    %v4955 = vmul.f32 %v4941, %v4953
    %v4956 = vmul.f32 %v4942, %v4954
    %v4958 = vlaneseq
    %v4959 = vshrl.u32 %v4958, 7
    %v4960 = vsub.s32 0, %v4959
    %v4961 = vrot.slane %v4932, %v4960
    %v4963 = vmul.f32 %v4955, %v4961
    %v4964 = vmul.f32 %v4956, %v4961
    %v4966 = vlaneseq
    %v4967 = vshrl.u32 %v4966, 7
    %v4968 = vsub.s32 0, %v4967
    %v4969 = vrot.slane %v4934, %v4968
    %v4971 = vadd.f32 %v4963, %v4969
    %v4972 = vadd.f32 %v4964, %v4969
    %s4973 = scalar_lea.vmem [#allocation12], 64
    %v4974 = vld [vmem:[%s4973] sm:$0xf]
    %v4975 = vld [vmem:[%s4973 + $0x4] sm:$0xf]
    %v4976 = vld [vmem:[%s4973 + $0x8] sm:$0xf]
    %v4977 = vld [vmem:[%s4973 + $0xc] sm:$0xf]
    %v4978 = vld [vmem:[%s4973 + $0x10] sm:$0xf]
    %v4979 = vld [vmem:[%s4973 + $0x14] sm:$0xf]
    %v4980 = vld [vmem:[%s4973 + $0x18] sm:$0xf]
    %v4981 = vld [vmem:[%s4973 + $0x1c] sm:$0xf]
    %v4982 = vld [vmem:[%s4973 + $0x20] sm:$0xf]
    %v4983 = vld [vmem:[%s4973 + $0x24] sm:$0xf]
    %v4984 = vld [vmem:[%s4973 + $0x28] sm:$0xf]
    %v4985 = vld [vmem:[%s4973 + $0x2c] sm:$0xf]
    %v4986 = vld [vmem:[%s4973 + $0x30] sm:$0xf]
    %v4987 = vld [vmem:[%s4973 + $0x34] sm:$0xf]
    %v4988 = vld [vmem:[%s4973 + $0x38] sm:$0xf]
    %v4989 = vld [vmem:[%s4973 + $0x3c] sm:$0xf]
    %v4990 = vpack.c.bf16 %v4972, %v4971
    %s4991 = scalar_lea.vmem [#allocation13], 1
    %v4992 = vld [vmem:[%s4991] sm:$0x1]
    %v4994 = vlaneseq
    %v4995 = vshrl.u32 %v4994, 7
    %v4996 = vsub.s32 0, %v4995
    %v4997 = vrot.slane %v4992, %v4996
    %v5015 = vunpack.c.l.b16 %v4974
    %v5016 = vunpack.c.l.b16 %v4975
    %v5017 = vunpack.c.l.b16 %v4976
    %v5018 = vunpack.c.l.b16 %v4977
    %v5019 = vunpack.c.l.b16 %v4978
    %v5020 = vunpack.c.l.b16 %v4979
    %v5021 = vunpack.c.l.b16 %v4980
    %v5022 = vunpack.c.l.b16 %v4981
    %v5023 = vunpack.c.l.b16 %v4982
    %v5024 = vunpack.c.l.b16 %v4983
    %v5025 = vunpack.c.l.b16 %v4984
    %v5026 = vunpack.c.l.b16 %v4985
    %v5027 = vunpack.c.l.b16 %v4986
    %v5028 = vunpack.c.l.b16 %v4987
    %v5029 = vunpack.c.l.b16 %v4988
    %v5030 = vunpack.c.l.b16 %v4989
    %v5031 = vpack.c.b16 %v5016, %v5015
    %v5032 = vpack.c.b16 %v5018, %v5017
    %v5033 = vpack.c.b16 %v5020, %v5019
    %v5034 = vpack.c.b16 %v5022, %v5021
    %v5035 = vpack.c.b16 %v5024, %v5023
    %v5036 = vpack.c.b16 %v5026, %v5025
    %v5037 = vpack.c.b16 %v5028, %v5027
    %v5038 = vpack.c.b16 %v5030, %v5029
    %5047 = vmatprep.subr.bf16.mxu0 0
    %5048 = vmatpush1.bf16.msra.mxu0 %v5031
    %5049 = vmatprep.subr.bf16.mxu0 0
    %5050 = vmatpush1.bf16.msra.mxu0 %v5032
    %5051 = vmatprep.subr.bf16.mxu0 0
    %5052 = vmatpush1.bf16.msra.mxu0 %v5033
    %5053 = vmatprep.subr.bf16.mxu0 0
    %5054 = vmatpush1.bf16.msra.mxu0 %v5034
    %5055 = vmatprep.subr.bf16.mxu0 0
    %5056 = vmatpush1.bf16.msra.mxu0 %v5035
    %5057 = vmatprep.subr.bf16.mxu0 0
    %5058 = vmatpush1.bf16.msra.mxu0 %v5036
    %5059 = vmatprep.subr.bf16.mxu0 0
    %5060 = vmatpush1.bf16.msra.mxu0 %v5037
    %5061 = vmatprep.subr.bf16.mxu0 0
    %5062 = vmatpush1.bf16.msra.mxu0 %v5038
    %5063 = vmatprep.subr.bf16.mxu0 0
    %5064 = vmatpush1.bf16.msra.mxu0 0
    %5065 = vmatprep.subr.bf16.mxu0 0
    %5066 = vmatpush1.bf16.msra.mxu0 0
    %5067 = vmatprep.subr.bf16.mxu0 0
    %5068 = vmatpush1.bf16.msra.mxu0 0
    %5069 = vmatprep.subr.bf16.mxu0 0
    %5070 = vmatpush1.bf16.msra.mxu0 0
    %5071 = vmatprep.subr.bf16.mxu0 0
    %5072 = vmatpush1.bf16.msra.mxu0 0
    %5073 = vmatprep.subr.bf16.mxu0 0
    %5074 = vmatpush1.bf16.msra.mxu0 0
    %5075 = vmatprep.subr.bf16.mxu0 0
    %5076 = vmatpush1.bf16.msra.mxu0 0
    %5077 = vmatprep.subr.bf16.mxu0 0
    %5078 = vmatpush1.bf16.msra.mxu0 0
    %5079 = vmatprep.mubr.bf16.mxu0 0
    %5080 = vmatmul.mubr.bf16.gmra.mrb[0].mxu0 %v4990
    %v5081 = vpop.f32.mrb[0].mxu0
    %v5082 = vadd.f32 %v4997, %v5081
    %v5083 = vpop.f32.mrb[0].mxu0
    %v5084 = vpop.f32.mrb[0].mxu0
    %v5085 = vadd.f32 %v4997, %v5084
    %v5086 = vpop.f32.mrb[0].mxu0
    %5087 = vdwg.mxu0
    %s5088 = scalar_lea.vmem %s12, 128
    %v5089 = vld [vmem:[%s5088] sm:$0xff]
    %v5090 = vld [vmem:[%s5088 + $0x8] sm:$0xff]
    %v5091 = vld [vmem:[%s5088 + $0x10] sm:$0xff]
    %v5092 = vld [vmem:[%s5088 + $0x18] sm:$0xff]
    %v5093 = vld [vmem:[%s5088 + $0x20] sm:$0xff]
    %v5094 = vld [vmem:[%s5088 + $0x28] sm:$0xff]
    %v5095 = vld [vmem:[%s5088 + $0x30] sm:$0xff]
    %v5096 = vld [vmem:[%s5088 + $0x38] sm:$0xff]
    %v5097 = vld [vmem:[%s5088 + $0x40] sm:$0xff]
    %v5098 = vld [vmem:[%s5088 + $0x48] sm:$0xff]
    %v5099 = vld [vmem:[%s5088 + $0x50] sm:$0xff]
    %v5100 = vld [vmem:[%s5088 + $0x58] sm:$0xff]
    %v5101 = vld [vmem:[%s5088 + $0x60] sm:$0xff]
    %v5102 = vld [vmem:[%s5088 + $0x68] sm:$0xff]
    %v5103 = vld [vmem:[%s5088 + $0x70] sm:$0xff]
    %v5104 = vld [vmem:[%s5088 + $0x78] sm:$0xff]
    %s5105 = scalar_lea.vmem [#allocation15], 2
    %v5106 = vld [vmem:[%s5105] sm:$0x3]
    %v5108 = vlaneseq
    %v5109 = vshrl.u32 %v5108, 7
    %v5110 = vsub.s32 0, %v5109
    %v5111 = vrot.slane %v5106, %v5110
    %v5112 = vlaneseq
    %v5113 = vshrl.u32 %v5112, 7
    %v5114 = vsub.s32 1, %v5113
    %v5115 = vrot.slane %v5106, %v5114
    %v5134 = vunpack.c.l.b16 %v5089
    %v5135 = vunpack.c.h.b16 %v5089
    %v5136 = vunpack.c.l.b16 %v5090
    %v5137 = vunpack.c.h.b16 %v5090
    %v5138 = vunpack.c.l.b16 %v5091
    %v5139 = vunpack.c.h.b16 %v5091
    %v5140 = vunpack.c.l.b16 %v5092
    %v5141 = vunpack.c.h.b16 %v5092
    %v5142 = vunpack.c.l.b16 %v5093
    %v5143 = vunpack.c.h.b16 %v5093
    %v5144 = vunpack.c.l.b16 %v5094
    %v5145 = vunpack.c.h.b16 %v5094
    %v5146 = vunpack.c.l.b16 %v5095
    %v5147 = vunpack.c.h.b16 %v5095
    %v5148 = vunpack.c.l.b16 %v5096
    %v5149 = vunpack.c.h.b16 %v5096
    %v5150 = vunpack.c.l.b16 %v5097
    %v5151 = vunpack.c.h.b16 %v5097
    %v5152 = vunpack.c.l.b16 %v5098
    %v5153 = vunpack.c.h.b16 %v5098
    %v5154 = vunpack.c.l.b16 %v5099
    %v5155 = vunpack.c.h.b16 %v5099
    %v5156 = vunpack.c.l.b16 %v5100
    %v5157 = vunpack.c.h.b16 %v5100
    %v5158 = vunpack.c.l.b16 %v5101
    %v5159 = vunpack.c.h.b16 %v5101
    %v5160 = vunpack.c.l.b16 %v5102
    %v5161 = vunpack.c.h.b16 %v5102
    %v5162 = vunpack.c.l.b16 %v5103
    %v5163 = vunpack.c.h.b16 %v5103
    %v5164 = vunpack.c.l.b16 %v5104
    %v5165 = vunpack.c.h.b16 %v5104
    %v5166 = vpack.c.b16 %v5136, %v5134
    %v5167 = vpack.c.b16 %v5137, %v5135
    %v5168 = vpack.c.b16 %v5140, %v5138
    %v5169 = vpack.c.b16 %v5141, %v5139
    %v5170 = vpack.c.b16 %v5144, %v5142
    %v5171 = vpack.c.b16 %v5145, %v5143
    %v5172 = vpack.c.b16 %v5148, %v5146
    %v5173 = vpack.c.b16 %v5149, %v5147
    %v5174 = vpack.c.b16 %v5152, %v5150
    %v5175 = vpack.c.b16 %v5153, %v5151
    %v5176 = vpack.c.b16 %v5156, %v5154
    %v5177 = vpack.c.b16 %v5157, %v5155
    %v5178 = vpack.c.b16 %v5160, %v5158
    %v5179 = vpack.c.b16 %v5161, %v5159
    %v5180 = vpack.c.b16 %v5164, %v5162
    %v5181 = vpack.c.b16 %v5165, %v5163
    %5198 = vmatprep.subr.bf16.mxu0 %v5167
    %5199 = vmatpush1.bf16.msra.mxu0 %v5166
    %5200 = vmatprep.subr.bf16.mxu0 %v5169
    %5201 = vmatpush1.bf16.msra.mxu0 %v5168
    %5202 = vmatprep.subr.bf16.mxu0 %v5171
    %5203 = vmatpush1.bf16.msra.mxu0 %v5170
    %5204 = vmatprep.subr.bf16.mxu0 %v5173
    %5205 = vmatpush1.bf16.msra.mxu0 %v5172
    %5206 = vmatprep.subr.bf16.mxu0 %v5175
    %5207 = vmatpush1.bf16.msra.mxu0 %v5174
    %5208 = vmatprep.subr.bf16.mxu0 %v5177
    %5209 = vmatpush1.bf16.msra.mxu0 %v5176
    %5210 = vmatprep.subr.bf16.mxu0 %v5179
    %5211 = vmatpush1.bf16.msra.mxu0 %v5178
    %5212 = vmatprep.subr.bf16.mxu0 %v5181
    %5213 = vmatpush1.bf16.msra.mxu0 %v5180
    %5214 = vmatprep.subr.bf16.mxu0 0
    %5215 = vmatpush1.bf16.msra.mxu0 0
    %5216 = vmatprep.subr.bf16.mxu0 0
    %5217 = vmatpush1.bf16.msra.mxu0 0
    %5218 = vmatprep.subr.bf16.mxu0 0
    %5219 = vmatpush1.bf16.msra.mxu0 0
    %5220 = vmatprep.subr.bf16.mxu0 0
    %5221 = vmatpush1.bf16.msra.mxu0 0
    %5222 = vmatprep.subr.bf16.mxu0 0
    %5223 = vmatpush1.bf16.msra.mxu0 0
    %5224 = vmatprep.subr.bf16.mxu0 0
    %5225 = vmatpush1.bf16.msra.mxu0 0
    %5226 = vmatprep.subr.bf16.mxu0 0
    %5227 = vmatpush1.bf16.msra.mxu0 0
    %5228 = vmatprep.subr.bf16.mxu0 0
    %5229 = vmatpush1.bf16.msra.mxu0 0
    %5230 = vmatprep.mubr.bf16.mxu0 0
    %5231 = vmatmul.mubr.bf16.gmra.mrb[0].mxu0 %v2047
    %v5232 = vpop.f32.mrb[0].mxu0
    %v5233 = vadd.f32 %v5111, %v5232
    %v5234 = vpop.f32.mrb[0].mxu0
    %v5235 = vadd.f32 %v5115, %v5234
    %v5236 = vpop.f32.mrb[0].mxu0
    %v5237 = vpop.f32.mrb[0].mxu0
    %5238 = vdwg.mxu0
    %v5239 = vpack.c.bf16 %v5082, %v5082
    %v5240 = vpack.c.bf16 %v5085, %v5085
    %v5242 = vcombine.high %v5233, %v5233
    %v5244 = vpack.c.bf16 %v5233, %v5233
    %v5245 = vpack.c.bf16 %v5242, %v5242
    %v5247 = vcombine.high %v5235, %v5235
    %v5249 = vpack.c.bf16 %v5235, %v5235
    %v5250 = vpack.c.bf16 %v5247, %v5247
    %v5252 = vsel %vm851, %v5239, 0
    %v5255 = vsel %vm851, %v5244, 0
    %5257 = vmatprep.subr.bf16.mxu0 0
    %5258 = vmatpush1.bf16.xpose.msra.mxu0 %v5255
    %5259 = vmatprep.subr.bf16.mxu0 0
    %5260 = vmatpush1.bf16.xpose.msra.mxu0 0
    %5261 = vmatprep.subr.bf16.mxu0 0
    %5262 = vmatpush1.bf16.xpose.msra.mxu0 0
    %5263 = vmatprep.subr.bf16.mxu0 0
    %5264 = vmatpush1.bf16.xpose.msra.mxu0 0
    %5265 = vmatprep.subr.bf16.mxu0 0
    %5266 = vmatpush1.bf16.xpose.msra.mxu0 0
    %5267 = vmatprep.subr.bf16.mxu0 0
    %5268 = vmatpush1.bf16.xpose.msra.mxu0 0
    %5269 = vmatprep.subr.bf16.mxu0 0
    %5270 = vmatpush1.bf16.xpose.msra.mxu0 0
    %5271 = vmatprep.subr.bf16.mxu0 0
    %5272 = vmatpush1.bf16.xpose.msra.mxu0 0
    %5273 = vmatprep.subr.bf16.mxu0 0
    %5274 = vmatpush1.bf16.xpose.msra.mxu0 0
    %5275 = vmatprep.subr.bf16.mxu0 0
    %5276 = vmatpush1.bf16.xpose.msra.mxu0 0
    %5277 = vmatprep.subr.bf16.mxu0 0
    %5278 = vmatpush1.bf16.xpose.msra.mxu0 0
    %5279 = vmatprep.subr.bf16.mxu0 0
    %5280 = vmatpush1.bf16.xpose.msra.mxu0 0
    %5281 = vmatprep.subr.bf16.mxu0 0
    %5282 = vmatpush1.bf16.xpose.msra.mxu0 0
    %5283 = vmatprep.subr.bf16.mxu0 0
    %5284 = vmatpush1.bf16.xpose.msra.mxu0 0
    %5285 = vmatprep.subr.bf16.mxu0 0
    %5286 = vmatpush1.bf16.xpose.msra.mxu0 0
    %5287 = vmatprep.subr.bf16.mxu0 0
    %5288 = vmatpush1.bf16.xpose.msra.mxu0 0
    %5289 = vmatprep.mubr.bf16.mxu0 0
    %5290 = vmatmul.mubr.bf16.gmra.mrb[0].mxu0 %v5252
    %v5291 = vpop.f32.mrb[0].mxu0
    %v5292 = vadd.f32 0.0, %v5291
    %v5293 = vpop.f32.mrb[0].mxu0
    %v5294 = vpop.f32.mrb[0].mxu0
    %v5295 = vpop.f32.mrb[0].mxu0
    %5296 = vdwg.mxu0
    %v5298 = vsel %vm851, %v5240, 0
    %v5301 = vsel %vm851, %v5245, 0
    %5303 = vmatprep.subr.bf16.mxu0 0
    %5304 = vmatpush1.bf16.xpose.msra.mxu0 %v5301
    %5305 = vmatprep.subr.bf16.mxu0 0
    %5306 = vmatpush1.bf16.xpose.msra.mxu0 0
    %5307 = vmatprep.subr.bf16.mxu0 0
    %5308 = vmatpush1.bf16.xpose.msra.mxu0 0
    %5309 = vmatprep.subr.bf16.mxu0 0
    %5310 = vmatpush1.bf16.xpose.msra.mxu0 0
    %5311 = vmatprep.subr.bf16.mxu0 0
    %5312 = vmatpush1.bf16.xpose.msra.mxu0 0
    %5313 = vmatprep.subr.bf16.mxu0 0
    %5314 = vmatpush1.bf16.xpose.msra.mxu0 0
    %5315 = vmatprep.subr.bf16.mxu0 0
    %5316 = vmatpush1.bf16.xpose.msra.mxu0 0
    %5317 = vmatprep.subr.bf16.mxu0 0
    %5318 = vmatpush1.bf16.xpose.msra.mxu0 0
    %5319 = vmatprep.subr.bf16.mxu0 0
    %5320 = vmatpush1.bf16.xpose.msra.mxu0 0
    %5321 = vmatprep.subr.bf16.mxu0 0
    %5322 = vmatpush1.bf16.xpose.msra.mxu0 0
    %5323 = vmatprep.subr.bf16.mxu0 0
    %5324 = vmatpush1.bf16.xpose.msra.mxu0 0
    %5325 = vmatprep.subr.bf16.mxu0 0
    %5326 = vmatpush1.bf16.xpose.msra.mxu0 0
    %5327 = vmatprep.subr.bf16.mxu0 0
    %5328 = vmatpush1.bf16.xpose.msra.mxu0 0
    %5329 = vmatprep.subr.bf16.mxu0 0
    %5330 = vmatpush1.bf16.xpose.msra.mxu0 0
    %5331 = vmatprep.subr.bf16.mxu0 0
    %5332 = vmatpush1.bf16.xpose.msra.mxu0 0
    %5333 = vmatprep.subr.bf16.mxu0 0
    %5334 = vmatpush1.bf16.xpose.msra.mxu0 0
    %5335 = vmatprep.mubr.bf16.mxu0 0
    %5336 = vmatmul.mubr.bf16.gmra.mrb[0].mxu0 %v5298
    %v5337 = vpop.f32.mrb[0].mxu0
    %v5338 = vadd.f32 0.0, %v5337
    %v5339 = vpop.f32.mrb[0].mxu0
    %v5340 = vpop.f32.mrb[0].mxu0
    %v5341 = vpop.f32.mrb[0].mxu0
    %5342 = vdwg.mxu0
    %v5343 = vsel %vm2285, %v5292, -inf
    %5344 = vmax.xlane.f32.xlu0 %v5343
    %v5345 = vpop.xlane.xlu0 %5344
    %v5346 = vsel %vm2285, %v5338, -inf
    %5347 = vmax.xlane.f32.xlu0 %v5346
    %v5348 = vpop.xlane.xlu0 %5347
    %v5349 = vsub.f32 %v5292, %v5345
    %v5350 = vsub.f32 %v5338, %v5348
    %v5351 = vmul.f32 %v5349, 1.442695
    %v5352 = vpow.pop %v5351
    %v5353 = vmul.f32 %v5350, 1.442695
    %v5354 = vpow.pop %v5353
    %v5355 = vsel %vm2285, %v5352, 0.0
    %5356 = vadd.xlane.f32.xlu0 %v5355
    %v5357 = vpop.xlane.xlu0 %5356
    %v5358 = vsel %vm2285, %v5354, 0.0
    %5359 = vadd.xlane.f32.xlu0 %v5358
    %v5360 = vpop.xlane.xlu0 %5359
    %v5361 = vrcp.pop %v5357
    %v5362 = vrcp.pop %v5360
    %v5363 = vmul.f32 %v5352, %v5361
    %v5364 = vmul.f32 %v5354, %v5362
    %v5365 = vpack.c.bf16 %v5363, %v5363
    %v5366 = vpack.c.bf16 %v5364, %v5364
    %v5368 = vsel %vm2285, %v5365, 0
    %v5371 = vsel %vm2313, %v5249, 0
    %5373 = vmatprep.subr.bf16.mxu0 0
    %5374 = vmatpush1.bf16.msra.mxu0 %v5371
    %5375 = vmatprep.subr.bf16.mxu0 0
    %5376 = vmatpush1.bf16.msra.mxu0 0
    %5377 = vmatprep.subr.bf16.mxu0 0
    %5378 = vmatpush1.bf16.msra.mxu0 0
    %5379 = vmatprep.subr.bf16.mxu0 0
    %5380 = vmatpush1.bf16.msra.mxu0 0
    %5381 = vmatprep.subr.bf16.mxu0 0
    %5382 = vmatpush1.bf16.msra.mxu0 0
    %5383 = vmatprep.subr.bf16.mxu0 0
    %5384 = vmatpush1.bf16.msra.mxu0 0
    %5385 = vmatprep.subr.bf16.mxu0 0
    %5386 = vmatpush1.bf16.msra.mxu0 0
    %5387 = vmatprep.subr.bf16.mxu0 0
    %5388 = vmatpush1.bf16.msra.mxu0 0
    %5389 = vmatprep.subr.bf16.mxu0 0
    %5390 = vmatpush1.bf16.msra.mxu0 0
    %5391 = vmatprep.subr.bf16.mxu0 0
    %5392 = vmatpush1.bf16.msra.mxu0 0
    %5393 = vmatprep.subr.bf16.mxu0 0
    %5394 = vmatpush1.bf16.msra.mxu0 0
    %5395 = vmatprep.subr.bf16.mxu0 0
    %5396 = vmatpush1.bf16.msra.mxu0 0
    %5397 = vmatprep.subr.bf16.mxu0 0
    %5398 = vmatpush1.bf16.msra.mxu0 0
    %5399 = vmatprep.subr.bf16.mxu0 0
    %5400 = vmatpush1.bf16.msra.mxu0 0
    %5401 = vmatprep.subr.bf16.mxu0 0
    %5402 = vmatpush1.bf16.msra.mxu0 0
    %5403 = vmatprep.subr.bf16.mxu0 0
    %5404 = vmatpush1.bf16.msra.mxu0 0
    %5405 = vmatprep.mubr.bf16.mxu0 0
    %5406 = vmatmul.mubr.bf16.gmra.mrb[0].mxu0 %v5368
    %v5407 = vpop.f32.mrb[0].mxu0
    %v5408 = vadd.f32 0.0, %v5407
    %v5409 = vpop.f32.mrb[0].mxu0
    %v5410 = vpop.f32.mrb[0].mxu0
    %v5411 = vpop.f32.mrb[0].mxu0
    %5412 = vdwg.mxu0
    %v5414 = vsel %vm2285, %v5366, 0
    %v5417 = vsel %vm2313, %v5250, 0
    %5419 = vmatprep.subr.bf16.mxu0 0
    %5420 = vmatpush1.bf16.msra.mxu0 %v5417
    %5421 = vmatprep.subr.bf16.mxu0 0
    %5422 = vmatpush1.bf16.msra.mxu0 0
    %5423 = vmatprep.subr.bf16.mxu0 0
    %5424 = vmatpush1.bf16.msra.mxu0 0
    %5425 = vmatprep.subr.bf16.mxu0 0
    %5426 = vmatpush1.bf16.msra.mxu0 0
    %5427 = vmatprep.subr.bf16.mxu0 0
    %5428 = vmatpush1.bf16.msra.mxu0 0
    %5429 = vmatprep.subr.bf16.mxu0 0
    %5430 = vmatpush1.bf16.msra.mxu0 0
    %5431 = vmatprep.subr.bf16.mxu0 0
    %5432 = vmatpush1.bf16.msra.mxu0 0
    %5433 = vmatprep.subr.bf16.mxu0 0
    %5434 = vmatpush1.bf16.msra.mxu0 0
    %5435 = vmatprep.subr.bf16.mxu0 0
    %5436 = vmatpush1.bf16.msra.mxu0 0
    %5437 = vmatprep.subr.bf16.mxu0 0
    %5438 = vmatpush1.bf16.msra.mxu0 0
    %5439 = vmatprep.subr.bf16.mxu0 0
    %5440 = vmatpush1.bf16.msra.mxu0 0
    %5441 = vmatprep.subr.bf16.mxu0 0
    %5442 = vmatpush1.bf16.msra.mxu0 0
    %5443 = vmatprep.subr.bf16.mxu0 0
    %5444 = vmatpush1.bf16.msra.mxu0 0
    %5445 = vmatprep.subr.bf16.mxu0 0
    %5446 = vmatpush1.bf16.msra.mxu0 0
    %5447 = vmatprep.subr.bf16.mxu0 0
    %5448 = vmatpush1.bf16.msra.mxu0 0
    %5449 = vmatprep.subr.bf16.mxu0 0
    %5450 = vmatpush1.bf16.msra.mxu0 0
    %5451 = vmatprep.mubr.bf16.mxu0 0
    %5452 = vmatmul.mubr.bf16.gmra.mrb[0].mxu0 %v5414
    %v5453 = vpop.f32.mrb[0].mxu0
    %v5454 = vadd.f32 0.0, %v5453
    %v5455 = vpop.f32.mrb[0].mxu0
    %v5456 = vpop.f32.mrb[0].mxu0
    %v5457 = vpop.f32.mrb[0].mxu0
    %5458 = vdwg.mxu0
    %5460 = vrot.lane.b32.xlu0 %v5239, 96
    %v5461 = vpop.permute.xlu0 %5460
    %5463 = vrot.lane.b32.xlu0 %v5244, 96
    %v5464 = vpop.permute.xlu0 %5463
    %v5466 = vsel %vm851, %v5461, 0
    %v5469 = vsel %vm851, %v5464, 0
    %5471 = vmatprep.subr.bf16.mxu0 0
    %5472 = vmatpush1.bf16.xpose.msra.mxu0 %v5469
    %5473 = vmatprep.subr.bf16.mxu0 0
    %5474 = vmatpush1.bf16.xpose.msra.mxu0 0
    %5475 = vmatprep.subr.bf16.mxu0 0
    %5476 = vmatpush1.bf16.xpose.msra.mxu0 0
    %5477 = vmatprep.subr.bf16.mxu0 0
    %5478 = vmatpush1.bf16.xpose.msra.mxu0 0
    %5479 = vmatprep.subr.bf16.mxu0 0
    %5480 = vmatpush1.bf16.xpose.msra.mxu0 0
    %5481 = vmatprep.subr.bf16.mxu0 0
    %5482 = vmatpush1.bf16.xpose.msra.mxu0 0
    %5483 = vmatprep.subr.bf16.mxu0 0
    %5484 = vmatpush1.bf16.xpose.msra.mxu0 0
    %5485 = vmatprep.subr.bf16.mxu0 0
    %5486 = vmatpush1.bf16.xpose.msra.mxu0 0
    %5487 = vmatprep.subr.bf16.mxu0 0
    %5488 = vmatpush1.bf16.xpose.msra.mxu0 0
    %5489 = vmatprep.subr.bf16.mxu0 0
    %5490 = vmatpush1.bf16.xpose.msra.mxu0 0
    %5491 = vmatprep.subr.bf16.mxu0 0
    %5492 = vmatpush1.bf16.xpose.msra.mxu0 0
    %5493 = vmatprep.subr.bf16.mxu0 0
    %5494 = vmatpush1.bf16.xpose.msra.mxu0 0
    %5495 = vmatprep.subr.bf16.mxu0 0
    %5496 = vmatpush1.bf16.xpose.msra.mxu0 0
    %5497 = vmatprep.subr.bf16.mxu0 0
    %5498 = vmatpush1.bf16.xpose.msra.mxu0 0
    %5499 = vmatprep.subr.bf16.mxu0 0
    %5500 = vmatpush1.bf16.xpose.msra.mxu0 0
    %5501 = vmatprep.subr.bf16.mxu0 0
    %5502 = vmatpush1.bf16.xpose.msra.mxu0 0
    %5503 = vmatprep.mubr.bf16.mxu0 0
    %5504 = vmatmul.mubr.bf16.gmra.mrb[0].mxu0 %v5466
    %v5505 = vpop.f32.mrb[0].mxu0
    %v5506 = vadd.f32 0.0, %v5505
    %v5507 = vpop.f32.mrb[0].mxu0
    %v5508 = vpop.f32.mrb[0].mxu0
    %v5509 = vpop.f32.mrb[0].mxu0
    %5510 = vdwg.mxu0
    %5512 = vrot.lane.b32.xlu0 %v5240, 96
    %v5513 = vpop.permute.xlu0 %5512
    %5515 = vrot.lane.b32.xlu0 %v5245, 96
    %v5516 = vpop.permute.xlu0 %5515
    %v5518 = vsel %vm851, %v5513, 0
    %v5521 = vsel %vm851, %v5516, 0
    %5523 = vmatprep.subr.bf16.mxu0 0
    %5524 = vmatpush1.bf16.xpose.msra.mxu0 %v5521
    %5525 = vmatprep.subr.bf16.mxu0 0
    %5526 = vmatpush1.bf16.xpose.msra.mxu0 0
    %5527 = vmatprep.subr.bf16.mxu0 0
    %5528 = vmatpush1.bf16.xpose.msra.mxu0 0
    %5529 = vmatprep.subr.bf16.mxu0 0
    %5530 = vmatpush1.bf16.xpose.msra.mxu0 0
    %5531 = vmatprep.subr.bf16.mxu0 0
    %5532 = vmatpush1.bf16.xpose.msra.mxu0 0
    %5533 = vmatprep.subr.bf16.mxu0 0
    %5534 = vmatpush1.bf16.xpose.msra.mxu0 0
    %5535 = vmatprep.subr.bf16.mxu0 0
    %5536 = vmatpush1.bf16.xpose.msra.mxu0 0
    %5537 = vmatprep.subr.bf16.mxu0 0
    %5538 = vmatpush1.bf16.xpose.msra.mxu0 0
    %5539 = vmatprep.subr.bf16.mxu0 0
    %5540 = vmatpush1.bf16.xpose.msra.mxu0 0
    %5541 = vmatprep.subr.bf16.mxu0 0
    %5542 = vmatpush1.bf16.xpose.msra.mxu0 0
    %5543 = vmatprep.subr.bf16.mxu0 0
    %5544 = vmatpush1.bf16.xpose.msra.mxu0 0
    %5545 = vmatprep.subr.bf16.mxu0 0
    %5546 = vmatpush1.bf16.xpose.msra.mxu0 0
    %5547 = vmatprep.subr.bf16.mxu0 0
    %5548 = vmatpush1.bf16.xpose.msra.mxu0 0
    %5549 = vmatprep.subr.bf16.mxu0 0
    %5550 = vmatpush1.bf16.xpose.msra.mxu0 0
    %5551 = vmatprep.subr.bf16.mxu0 0
    %5552 = vmatpush1.bf16.xpose.msra.mxu0 0
    %5553 = vmatprep.subr.bf16.mxu0 0
    %5554 = vmatpush1.bf16.xpose.msra.mxu0 0
    %5555 = vmatprep.mubr.bf16.mxu0 0
    %5556 = vmatmul.mubr.bf16.gmra.mrb[0].mxu0 %v5518
    %v5557 = vpop.f32.mrb[0].mxu0
    %v5558 = vadd.f32 0.0, %v5557
    %v5559 = vpop.f32.mrb[0].mxu0
    %v5560 = vpop.f32.mrb[0].mxu0
    %v5561 = vpop.f32.mrb[0].mxu0
    %5562 = vdwg.mxu0
    %v5563 = vsel %vm2285, %v5506, -inf
    %5564 = vmax.xlane.f32.xlu0 %v5563
    %v5565 = vpop.xlane.xlu0 %5564
    %v5566 = vsel %vm2285, %v5558, -inf
    %5567 = vmax.xlane.f32.xlu0 %v5566
    %v5568 = vpop.xlane.xlu0 %5567
    %v5569 = vsub.f32 %v5506, %v5565
    %v5570 = vsub.f32 %v5558, %v5568
    %v5571 = vmul.f32 %v5569, 1.442695
    %v5572 = vpow.pop %v5571
    %v5573 = vmul.f32 %v5570, 1.442695
    %v5574 = vpow.pop %v5573
    %v5575 = vsel %vm2285, %v5572, 0.0
    %5576 = vadd.xlane.f32.xlu0 %v5575
    %v5577 = vpop.xlane.xlu0 %5576
    %v5578 = vsel %vm2285, %v5574, 0.0
    %5579 = vadd.xlane.f32.xlu0 %v5578
    %v5580 = vpop.xlane.xlu0 %5579
    %v5581 = vrcp.pop %v5577
    %v5582 = vrcp.pop %v5580
    %v5583 = vmul.f32 %v5572, %v5581
    %v5584 = vmul.f32 %v5574, %v5582
    %v5585 = vpack.c.bf16 %v5583, %v5583
    %v5586 = vpack.c.bf16 %v5584, %v5584
    %5588 = vrot.lane.b32.xlu0 %v5249, 96
    %v5589 = vpop.permute.xlu0 %5588
    %v5591 = vsel %vm2285, %v5585, 0
    %v5594 = vsel %vm2313, %v5589, 0
    %5596 = vmatprep.subr.bf16.mxu0 0
    %5597 = vmatpush1.bf16.msra.mxu0 %v5594
    %5598 = vmatprep.subr.bf16.mxu0 0
    %5599 = vmatpush1.bf16.msra.mxu0 0
    %5600 = vmatprep.subr.bf16.mxu0 0
    %5601 = vmatpush1.bf16.msra.mxu0 0
    %5602 = vmatprep.subr.bf16.mxu0 0
    %5603 = vmatpush1.bf16.msra.mxu0 0
    %5604 = vmatprep.subr.bf16.mxu0 0
    %5605 = vmatpush1.bf16.msra.mxu0 0
    %5606 = vmatprep.subr.bf16.mxu0 0
    %5607 = vmatpush1.bf16.msra.mxu0 0
    %5608 = vmatprep.subr.bf16.mxu0 0
    %5609 = vmatpush1.bf16.msra.mxu0 0
    %5610 = vmatprep.subr.bf16.mxu0 0
    %5611 = vmatpush1.bf16.msra.mxu0 0
    %5612 = vmatprep.subr.bf16.mxu0 0
    %5613 = vmatpush1.bf16.msra.mxu0 0
    %5614 = vmatprep.subr.bf16.mxu0 0
    %5615 = vmatpush1.bf16.msra.mxu0 0
    %5616 = vmatprep.subr.bf16.mxu0 0
    %5617 = vmatpush1.bf16.msra.mxu0 0
    %5618 = vmatprep.subr.bf16.mxu0 0
    %5619 = vmatpush1.bf16.msra.mxu0 0
    %5620 = vmatprep.subr.bf16.mxu0 0
    %5621 = vmatpush1.bf16.msra.mxu0 0
    %5622 = vmatprep.subr.bf16.mxu0 0
    %5623 = vmatpush1.bf16.msra.mxu0 0
    %5624 = vmatprep.subr.bf16.mxu0 0
    %5625 = vmatpush1.bf16.msra.mxu0 0
    %5626 = vmatprep.subr.bf16.mxu0 0
    %5627 = vmatpush1.bf16.msra.mxu0 0
    %5628 = vmatprep.mubr.bf16.mxu0 0
    %5629 = vmatmul.mubr.bf16.gmra.mrb[0].mxu0 %v5591
    %v5630 = vpop.f32.mrb[0].mxu0
    %v5631 = vadd.f32 0.0, %v5630
    %v5632 = vpop.f32.mrb[0].mxu0
    %v5633 = vpop.f32.mrb[0].mxu0
    %v5634 = vpop.f32.mrb[0].mxu0
    %5635 = vdwg.mxu0
    %5637 = vrot.lane.b32.xlu0 %v5250, 96
    %v5638 = vpop.permute.xlu0 %5637
    %v5640 = vsel %vm2285, %v5586, 0
    %v5643 = vsel %vm2313, %v5638, 0
    %5645 = vmatprep.subr.bf16.mxu0 0
    %5646 = vmatpush1.bf16.msra.mxu0 %v5643
    %5647 = vmatprep.subr.bf16.mxu0 0
    %5648 = vmatpush1.bf16.msra.mxu0 0
    %5649 = vmatprep.subr.bf16.mxu0 0
    %5650 = vmatpush1.bf16.msra.mxu0 0
    %5651 = vmatprep.subr.bf16.mxu0 0
    %5652 = vmatpush1.bf16.msra.mxu0 0
    %5653 = vmatprep.subr.bf16.mxu0 0
    %5654 = vmatpush1.bf16.msra.mxu0 0
    %5655 = vmatprep.subr.bf16.mxu0 0
    %5656 = vmatpush1.bf16.msra.mxu0 0
    %5657 = vmatprep.subr.bf16.mxu0 0
    %5658 = vmatpush1.bf16.msra.mxu0 0
    %5659 = vmatprep.subr.bf16.mxu0 0
    %5660 = vmatpush1.bf16.msra.mxu0 0
    %5661 = vmatprep.subr.bf16.mxu0 0
    %5662 = vmatpush1.bf16.msra.mxu0 0
    %5663 = vmatprep.subr.bf16.mxu0 0
    %5664 = vmatpush1.bf16.msra.mxu0 0
    %5665 = vmatprep.subr.bf16.mxu0 0
    %5666 = vmatpush1.bf16.msra.mxu0 0
    %5667 = vmatprep.subr.bf16.mxu0 0
    %5668 = vmatpush1.bf16.msra.mxu0 0
    %5669 = vmatprep.subr.bf16.mxu0 0
    %5670 = vmatpush1.bf16.msra.mxu0 0
    %5671 = vmatprep.subr.bf16.mxu0 0
    %5672 = vmatpush1.bf16.msra.mxu0 0
    %5673 = vmatprep.subr.bf16.mxu0 0
    %5674 = vmatpush1.bf16.msra.mxu0 0
    %5675 = vmatprep.subr.bf16.mxu0 0
    %5676 = vmatpush1.bf16.msra.mxu0 0
    %5677 = vmatprep.mubr.bf16.mxu0 0
    %5678 = vmatmul.mubr.bf16.gmra.mrb[0].mxu0 %v5640
    %v5679 = vpop.f32.mrb[0].mxu0
    %v5680 = vadd.f32 0.0, %v5679
    %v5681 = vpop.f32.mrb[0].mxu0
    %v5682 = vpop.f32.mrb[0].mxu0
    %v5683 = vpop.f32.mrb[0].mxu0
    %5684 = vdwg.mxu0
    %5685 = vrot.lane.b32.xlu0 %v5239, 64
    %v5686 = vpop.permute.xlu0 %5685
    %5687 = vrot.lane.b32.xlu0 %v5244, 64
    %v5688 = vpop.permute.xlu0 %5687
    %v5690 = vsel %vm851, %v5686, 0
    %v5693 = vsel %vm851, %v5688, 0
    %5695 = vmatprep.subr.bf16.mxu0 0
    %5696 = vmatpush1.bf16.xpose.msra.mxu0 %v5693
    %5697 = vmatprep.subr.bf16.mxu0 0
    %5698 = vmatpush1.bf16.xpose.msra.mxu0 0
    %5699 = vmatprep.subr.bf16.mxu0 0
    %5700 = vmatpush1.bf16.xpose.msra.mxu0 0
    %5701 = vmatprep.subr.bf16.mxu0 0
    %5702 = vmatpush1.bf16.xpose.msra.mxu0 0
    %5703 = vmatprep.subr.bf16.mxu0 0
    %5704 = vmatpush1.bf16.xpose.msra.mxu0 0
    %5705 = vmatprep.subr.bf16.mxu0 0
    %5706 = vmatpush1.bf16.xpose.msra.mxu0 0
    %5707 = vmatprep.subr.bf16.mxu0 0
    %5708 = vmatpush1.bf16.xpose.msra.mxu0 0
    %5709 = vmatprep.subr.bf16.mxu0 0
    %5710 = vmatpush1.bf16.xpose.msra.mxu0 0
    %5711 = vmatprep.subr.bf16.mxu0 0
    %5712 = vmatpush1.bf16.xpose.msra.mxu0 0
    %5713 = vmatprep.subr.bf16.mxu0 0
    %5714 = vmatpush1.bf16.xpose.msra.mxu0 0
    %5715 = vmatprep.subr.bf16.mxu0 0
    %5716 = vmatpush1.bf16.xpose.msra.mxu0 0
    %5717 = vmatprep.subr.bf16.mxu0 0
    %5718 = vmatpush1.bf16.xpose.msra.mxu0 0
    %5719 = vmatprep.subr.bf16.mxu0 0
    %5720 = vmatpush1.bf16.xpose.msra.mxu0 0
    %5721 = vmatprep.subr.bf16.mxu0 0
    %5722 = vmatpush1.bf16.xpose.msra.mxu0 0
    %5723 = vmatprep.subr.bf16.mxu0 0
    %5724 = vmatpush1.bf16.xpose.msra.mxu0 0
    %5725 = vmatprep.subr.bf16.mxu0 0
    %5726 = vmatpush1.bf16.xpose.msra.mxu0 0
    %5727 = vmatprep.mubr.bf16.mxu0 0
    %5728 = vmatmul.mubr.bf16.gmra.mrb[0].mxu0 %v5690
    %v5729 = vpop.f32.mrb[0].mxu0
    %v5730 = vadd.f32 0.0, %v5729
    %v5731 = vpop.f32.mrb[0].mxu0
    %v5732 = vpop.f32.mrb[0].mxu0
    %v5733 = vpop.f32.mrb[0].mxu0
    %5734 = vdwg.mxu0
    %5735 = vrot.lane.b32.xlu0 %v5240, 64
    %v5736 = vpop.permute.xlu0 %5735
    %5737 = vrot.lane.b32.xlu0 %v5245, 64
    %v5738 = vpop.permute.xlu0 %5737
    %v5740 = vsel %vm851, %v5736, 0
    %v5743 = vsel %vm851, %v5738, 0
    %5745 = vmatprep.subr.bf16.mxu0 0
    %5746 = vmatpush1.bf16.xpose.msra.mxu0 %v5743
    %5747 = vmatprep.subr.bf16.mxu0 0
    %5748 = vmatpush1.bf16.xpose.msra.mxu0 0
    %5749 = vmatprep.subr.bf16.mxu0 0
    %5750 = vmatpush1.bf16.xpose.msra.mxu0 0
    %5751 = vmatprep.subr.bf16.mxu0 0
    %5752 = vmatpush1.bf16.xpose.msra.mxu0 0
    %5753 = vmatprep.subr.bf16.mxu0 0
    %5754 = vmatpush1.bf16.xpose.msra.mxu0 0
    %5755 = vmatprep.subr.bf16.mxu0 0
    %5756 = vmatpush1.bf16.xpose.msra.mxu0 0
    %5757 = vmatprep.subr.bf16.mxu0 0
    %5758 = vmatpush1.bf16.xpose.msra.mxu0 0
    %5759 = vmatprep.subr.bf16.mxu0 0
    %5760 = vmatpush1.bf16.xpose.msra.mxu0 0
    %5761 = vmatprep.subr.bf16.mxu0 0
    %5762 = vmatpush1.bf16.xpose.msra.mxu0 0
    %5763 = vmatprep.subr.bf16.mxu0 0
    %5764 = vmatpush1.bf16.xpose.msra.mxu0 0
    %5765 = vmatprep.subr.bf16.mxu0 0
    %5766 = vmatpush1.bf16.xpose.msra.mxu0 0
    %5767 = vmatprep.subr.bf16.mxu0 0
    %5768 = vmatpush1.bf16.xpose.msra.mxu0 0
    %5769 = vmatprep.subr.bf16.mxu0 0
    %5770 = vmatpush1.bf16.xpose.msra.mxu0 0
    %5771 = vmatprep.subr.bf16.mxu0 0
    %5772 = vmatpush1.bf16.xpose.msra.mxu0 0
    %5773 = vmatprep.subr.bf16.mxu0 0
    %5774 = vmatpush1.bf16.xpose.msra.mxu0 0
    %5775 = vmatprep.subr.bf16.mxu0 0
    %5776 = vmatpush1.bf16.xpose.msra.mxu0 0
    %5777 = vmatprep.mubr.bf16.mxu0 0
    %5778 = vmatmul.mubr.bf16.gmra.mrb[0].mxu0 %v5740
    %v5779 = vpop.f32.mrb[0].mxu0
    %v5780 = vadd.f32 0.0, %v5779
    %v5781 = vpop.f32.mrb[0].mxu0
    %v5782 = vpop.f32.mrb[0].mxu0
    %v5783 = vpop.f32.mrb[0].mxu0
    %5784 = vdwg.mxu0
    %v5785 = vsel %vm2285, %v5730, -inf
    %5786 = vmax.xlane.f32.xlu0 %v5785
    %v5787 = vpop.xlane.xlu0 %5786
    %v5788 = vsel %vm2285, %v5780, -inf
    %5789 = vmax.xlane.f32.xlu0 %v5788
    %v5790 = vpop.xlane.xlu0 %5789
    %v5791 = vsub.f32 %v5730, %v5787
    %v5792 = vsub.f32 %v5780, %v5790
    %v5793 = vmul.f32 %v5791, 1.442695
    %v5794 = vpow.pop %v5793
    %v5795 = vmul.f32 %v5792, 1.442695
    %v5796 = vpow.pop %v5795
    %v5797 = vsel %vm2285, %v5794, 0.0
    %5798 = vadd.xlane.f32.xlu0 %v5797
    %v5799 = vpop.xlane.xlu0 %5798
    %v5800 = vsel %vm2285, %v5796, 0.0
    %5801 = vadd.xlane.f32.xlu0 %v5800
    %v5802 = vpop.xlane.xlu0 %5801
    %v5803 = vrcp.pop %v5799
    %v5804 = vrcp.pop %v5802
    %v5805 = vmul.f32 %v5794, %v5803
    %v5806 = vmul.f32 %v5796, %v5804
    %v5807 = vpack.c.bf16 %v5805, %v5805
    %v5808 = vpack.c.bf16 %v5806, %v5806
    %5809 = vrot.lane.b32.xlu0 %v5249, 64
    %v5810 = vpop.permute.xlu0 %5809
    %v5812 = vsel %vm2285, %v5807, 0
    %v5815 = vsel %vm2313, %v5810, 0
    %5817 = vmatprep.subr.bf16.mxu0 0
    %5818 = vmatpush1.bf16.msra.mxu0 %v5815
    %5819 = vmatprep.subr.bf16.mxu0 0
    %5820 = vmatpush1.bf16.msra.mxu0 0
    %5821 = vmatprep.subr.bf16.mxu0 0
    %5822 = vmatpush1.bf16.msra.mxu0 0
    %5823 = vmatprep.subr.bf16.mxu0 0
    %5824 = vmatpush1.bf16.msra.mxu0 0
    %5825 = vmatprep.subr.bf16.mxu0 0
    %5826 = vmatpush1.bf16.msra.mxu0 0
    %5827 = vmatprep.subr.bf16.mxu0 0
    %5828 = vmatpush1.bf16.msra.mxu0 0
    %5829 = vmatprep.subr.bf16.mxu0 0
    %5830 = vmatpush1.bf16.msra.mxu0 0
    %5831 = vmatprep.subr.bf16.mxu0 0
    %5832 = vmatpush1.bf16.msra.mxu0 0
    %5833 = vmatprep.subr.bf16.mxu0 0
    %5834 = vmatpush1.bf16.msra.mxu0 0
    %5835 = vmatprep.subr.bf16.mxu0 0
    %5836 = vmatpush1.bf16.msra.mxu0 0
    %5837 = vmatprep.subr.bf16.mxu0 0
    %5838 = vmatpush1.bf16.msra.mxu0 0
    %5839 = vmatprep.subr.bf16.mxu0 0
    %5840 = vmatpush1.bf16.msra.mxu0 0
    %5841 = vmatprep.subr.bf16.mxu0 0
    %5842 = vmatpush1.bf16.msra.mxu0 0
    %5843 = vmatprep.subr.bf16.mxu0 0
    %5844 = vmatpush1.bf16.msra.mxu0 0
    %5845 = vmatprep.subr.bf16.mxu0 0
    %5846 = vmatpush1.bf16.msra.mxu0 0
    %5847 = vmatprep.subr.bf16.mxu0 0
    %5848 = vmatpush1.bf16.msra.mxu0 0
    %5849 = vmatprep.mubr.bf16.mxu0 0
    %5850 = vmatmul.mubr.bf16.gmra.mrb[0].mxu0 %v5812
    %v5851 = vpop.f32.mrb[0].mxu0
    %v5852 = vadd.f32 0.0, %v5851
    %v5853 = vpop.f32.mrb[0].mxu0
    %v5854 = vpop.f32.mrb[0].mxu0
    %v5855 = vpop.f32.mrb[0].mxu0
    %5856 = vdwg.mxu0
    %5857 = vrot.lane.b32.xlu0 %v5250, 64
    %v5858 = vpop.permute.xlu0 %5857
    %v5860 = vsel %vm2285, %v5808, 0
    %v5863 = vsel %vm2313, %v5858, 0
    %5865 = vmatprep.subr.bf16.mxu0 0
    %5866 = vmatpush1.bf16.msra.mxu0 %v5863
    %5867 = vmatprep.subr.bf16.mxu0 0
    %5868 = vmatpush1.bf16.msra.mxu0 0
    %5869 = vmatprep.subr.bf16.mxu0 0
    %5870 = vmatpush1.bf16.msra.mxu0 0
    %5871 = vmatprep.subr.bf16.mxu0 0
    %5872 = vmatpush1.bf16.msra.mxu0 0
    %5873 = vmatprep.subr.bf16.mxu0 0
    %5874 = vmatpush1.bf16.msra.mxu0 0
    %5875 = vmatprep.subr.bf16.mxu0 0
    %5876 = vmatpush1.bf16.msra.mxu0 0
    %5877 = vmatprep.subr.bf16.mxu0 0
    %5878 = vmatpush1.bf16.msra.mxu0 0
    %5879 = vmatprep.subr.bf16.mxu0 0
    %5880 = vmatpush1.bf16.msra.mxu0 0
    %5881 = vmatprep.subr.bf16.mxu0 0
    %5882 = vmatpush1.bf16.msra.mxu0 0
    %5883 = vmatprep.subr.bf16.mxu0 0
    %5884 = vmatpush1.bf16.msra.mxu0 0
    %5885 = vmatprep.subr.bf16.mxu0 0
    %5886 = vmatpush1.bf16.msra.mxu0 0
    %5887 = vmatprep.subr.bf16.mxu0 0
    %5888 = vmatpush1.bf16.msra.mxu0 0
    %5889 = vmatprep.subr.bf16.mxu0 0
    %5890 = vmatpush1.bf16.msra.mxu0 0
    %5891 = vmatprep.subr.bf16.mxu0 0
    %5892 = vmatpush1.bf16.msra.mxu0 0
    %5893 = vmatprep.subr.bf16.mxu0 0
    %5894 = vmatpush1.bf16.msra.mxu0 0
    %5895 = vmatprep.subr.bf16.mxu0 0
    %5896 = vmatpush1.bf16.msra.mxu0 0
    %5897 = vmatprep.mubr.bf16.mxu0 0
    %5898 = vmatmul.mubr.bf16.gmra.mrb[0].mxu0 %v5860
    %v5899 = vpop.f32.mrb[0].mxu0
    %v5900 = vadd.f32 0.0, %v5899
    %v5901 = vpop.f32.mrb[0].mxu0
    %v5902 = vpop.f32.mrb[0].mxu0
    %v5903 = vpop.f32.mrb[0].mxu0
    %5904 = vdwg.mxu0
    %5905 = vrot.lane.b32.xlu0 %v5239, 32
    %v5906 = vpop.permute.xlu0 %5905
    %5907 = vrot.lane.b32.xlu0 %v5244, 32
    %v5908 = vpop.permute.xlu0 %5907
    %v5910 = vsel %vm851, %v5906, 0
    %v5913 = vsel %vm851, %v5908, 0
    %5915 = vmatprep.subr.bf16.mxu0 0
    %5916 = vmatpush1.bf16.xpose.msra.mxu0 %v5913
    %5917 = vmatprep.subr.bf16.mxu0 0
    %5918 = vmatpush1.bf16.xpose.msra.mxu0 0
    %5919 = vmatprep.subr.bf16.mxu0 0
    %5920 = vmatpush1.bf16.xpose.msra.mxu0 0
    %5921 = vmatprep.subr.bf16.mxu0 0
    %5922 = vmatpush1.bf16.xpose.msra.mxu0 0
    %5923 = vmatprep.subr.bf16.mxu0 0
    %5924 = vmatpush1.bf16.xpose.msra.mxu0 0
    %5925 = vmatprep.subr.bf16.mxu0 0
    %5926 = vmatpush1.bf16.xpose.msra.mxu0 0
    %5927 = vmatprep.subr.bf16.mxu0 0
    %5928 = vmatpush1.bf16.xpose.msra.mxu0 0
    %5929 = vmatprep.subr.bf16.mxu0 0
    %5930 = vmatpush1.bf16.xpose.msra.mxu0 0
    %5931 = vmatprep.subr.bf16.mxu0 0
    %5932 = vmatpush1.bf16.xpose.msra.mxu0 0
    %5933 = vmatprep.subr.bf16.mxu0 0
    %5934 = vmatpush1.bf16.xpose.msra.mxu0 0
    %5935 = vmatprep.subr.bf16.mxu0 0
    %5936 = vmatpush1.bf16.xpose.msra.mxu0 0
    %5937 = vmatprep.subr.bf16.mxu0 0
    %5938 = vmatpush1.bf16.xpose.msra.mxu0 0
    %5939 = vmatprep.subr.bf16.mxu0 0
    %5940 = vmatpush1.bf16.xpose.msra.mxu0 0
    %5941 = vmatprep.subr.bf16.mxu0 0
    %5942 = vmatpush1.bf16.xpose.msra.mxu0 0
    %5943 = vmatprep.subr.bf16.mxu0 0
    %5944 = vmatpush1.bf16.xpose.msra.mxu0 0
    %5945 = vmatprep.subr.bf16.mxu0 0
    %5946 = vmatpush1.bf16.xpose.msra.mxu0 0
    %5947 = vmatprep.mubr.bf16.mxu0 0
    %5948 = vmatmul.mubr.bf16.gmra.mrb[0].mxu0 %v5910
    %v5949 = vpop.f32.mrb[0].mxu0
    %v5950 = vadd.f32 0.0, %v5949
    %v5951 = vpop.f32.mrb[0].mxu0
    %v5952 = vpop.f32.mrb[0].mxu0
    %v5953 = vpop.f32.mrb[0].mxu0
    %5954 = vdwg.mxu0
    %5955 = vrot.lane.b32.xlu0 %v5240, 32
    %v5956 = vpop.permute.xlu0 %5955
    %5957 = vrot.lane.b32.xlu0 %v5245, 32
    %v5958 = vpop.permute.xlu0 %5957
    %v5960 = vsel %vm851, %v5956, 0
    %v5963 = vsel %vm851, %v5958, 0
    %5965 = vmatprep.subr.bf16.mxu0 0
    %5966 = vmatpush1.bf16.xpose.msra.mxu0 %v5963
    %5967 = vmatprep.subr.bf16.mxu0 0
    %5968 = vmatpush1.bf16.xpose.msra.mxu0 0
    %5969 = vmatprep.subr.bf16.mxu0 0
    %5970 = vmatpush1.bf16.xpose.msra.mxu0 0
    %5971 = vmatprep.subr.bf16.mxu0 0
    %5972 = vmatpush1.bf16.xpose.msra.mxu0 0
    %5973 = vmatprep.subr.bf16.mxu0 0
    %5974 = vmatpush1.bf16.xpose.msra.mxu0 0
    %5975 = vmatprep.subr.bf16.mxu0 0
    %5976 = vmatpush1.bf16.xpose.msra.mxu0 0
    %5977 = vmatprep.subr.bf16.mxu0 0
    %5978 = vmatpush1.bf16.xpose.msra.mxu0 0
    %5979 = vmatprep.subr.bf16.mxu0 0
    %5980 = vmatpush1.bf16.xpose.msra.mxu0 0
    %5981 = vmatprep.subr.bf16.mxu0 0
    %5982 = vmatpush1.bf16.xpose.msra.mxu0 0
    %5983 = vmatprep.subr.bf16.mxu0 0
    %5984 = vmatpush1.bf16.xpose.msra.mxu0 0
    %5985 = vmatprep.subr.bf16.mxu0 0
    %5986 = vmatpush1.bf16.xpose.msra.mxu0 0
    %5987 = vmatprep.subr.bf16.mxu0 0
    %5988 = vmatpush1.bf16.xpose.msra.mxu0 0
    %5989 = vmatprep.subr.bf16.mxu0 0
    %5990 = vmatpush1.bf16.xpose.msra.mxu0 0
    %5991 = vmatprep.subr.bf16.mxu0 0
    %5992 = vmatpush1.bf16.xpose.msra.mxu0 0
    %5993 = vmatprep.subr.bf16.mxu0 0
    %5994 = vmatpush1.bf16.xpose.msra.mxu0 0
    %5995 = vmatprep.subr.bf16.mxu0 0
    %5996 = vmatpush1.bf16.xpose.msra.mxu0 0
    %5997 = vmatprep.mubr.bf16.mxu0 0
    %5998 = vmatmul.mubr.bf16.gmra.mrb[0].mxu0 %v5960
    %v5999 = vpop.f32.mrb[0].mxu0
    %v6000 = vadd.f32 0.0, %v5999
    %v6001 = vpop.f32.mrb[0].mxu0
    %v6002 = vpop.f32.mrb[0].mxu0
    %v6003 = vpop.f32.mrb[0].mxu0
    %6004 = vdwg.mxu0
    %v6005 = vsel %vm2285, %v5950, -inf
    %6006 = vmax.xlane.f32.xlu0 %v6005
    %v6007 = vpop.xlane.xlu0 %6006
    %v6008 = vsel %vm2285, %v6000, -inf
    %6009 = vmax.xlane.f32.xlu0 %v6008
    %v6010 = vpop.xlane.xlu0 %6009
    %v6011 = vsub.f32 %v5950, %v6007
    %v6012 = vsub.f32 %v6000, %v6010
    %v6013 = vmul.f32 %v6011, 1.442695
    %v6014 = vpow.pop %v6013
    %v6015 = vmul.f32 %v6012, 1.442695
    %v6016 = vpow.pop %v6015
    %v6017 = vsel %vm2285, %v6014, 0.0
    %6018 = vadd.xlane.f32.xlu0 %v6017
    %v6019 = vpop.xlane.xlu0 %6018
    %v6020 = vsel %vm2285, %v6016, 0.0
    %6021 = vadd.xlane.f32.xlu0 %v6020
    %v6022 = vpop.xlane.xlu0 %6021
    %v6023 = vrcp.pop %v6019
    %v6024 = vrcp.pop %v6022
    %v6025 = vmul.f32 %v6014, %v6023
    %v6026 = vmul.f32 %v6016, %v6024
    %v6027 = vpack.c.bf16 %v6025, %v6025
    %v6028 = vpack.c.bf16 %v6026, %v6026
    %6029 = vrot.lane.b32.xlu0 %v5249, 32
    %v6030 = vpop.permute.xlu0 %6029
    %v6032 = vsel %vm2285, %v6027, 0
    %v6035 = vsel %vm2313, %v6030, 0
    %6037 = vmatprep.subr.bf16.mxu0 0
    %6038 = vmatpush1.bf16.msra.mxu0 %v6035
    %6039 = vmatprep.subr.bf16.mxu0 0
    %6040 = vmatpush1.bf16.msra.mxu0 0
    %6041 = vmatprep.subr.bf16.mxu0 0
    %6042 = vmatpush1.bf16.msra.mxu0 0
    %6043 = vmatprep.subr.bf16.mxu0 0
    %6044 = vmatpush1.bf16.msra.mxu0 0
    %6045 = vmatprep.subr.bf16.mxu0 0
    %6046 = vmatpush1.bf16.msra.mxu0 0
    %6047 = vmatprep.subr.bf16.mxu0 0
    %6048 = vmatpush1.bf16.msra.mxu0 0
    %6049 = vmatprep.subr.bf16.mxu0 0
    %6050 = vmatpush1.bf16.msra.mxu0 0
    %6051 = vmatprep.subr.bf16.mxu0 0
    %6052 = vmatpush1.bf16.msra.mxu0 0
    %6053 = vmatprep.subr.bf16.mxu0 0
    %6054 = vmatpush1.bf16.msra.mxu0 0
    %6055 = vmatprep.subr.bf16.mxu0 0
    %6056 = vmatpush1.bf16.msra.mxu0 0
    %6057 = vmatprep.subr.bf16.mxu0 0
    %6058 = vmatpush1.bf16.msra.mxu0 0
    %6059 = vmatprep.subr.bf16.mxu0 0
    %6060 = vmatpush1.bf16.msra.mxu0 0
    %6061 = vmatprep.subr.bf16.mxu0 0
    %6062 = vmatpush1.bf16.msra.mxu0 0
    %6063 = vmatprep.subr.bf16.mxu0 0
    %6064 = vmatpush1.bf16.msra.mxu0 0
    %6065 = vmatprep.subr.bf16.mxu0 0
    %6066 = vmatpush1.bf16.msra.mxu0 0
    %6067 = vmatprep.subr.bf16.mxu0 0
    %6068 = vmatpush1.bf16.msra.mxu0 0
    %6069 = vmatprep.mubr.bf16.mxu0 0
    %6070 = vmatmul.mubr.bf16.gmra.mrb[0].mxu0 %v6032
    %v6071 = vpop.f32.mrb[0].mxu0
    %v6072 = vadd.f32 0.0, %v6071
    %v6073 = vpop.f32.mrb[0].mxu0
    %v6074 = vpop.f32.mrb[0].mxu0
    %v6075 = vpop.f32.mrb[0].mxu0
    %6076 = vdwg.mxu0
    %6077 = vrot.lane.b32.xlu0 %v5250, 32
    %v6078 = vpop.permute.xlu0 %6077
    %v6080 = vsel %vm2285, %v6028, 0
    %v6083 = vsel %vm2313, %v6078, 0
    %6085 = vmatprep.subr.bf16.mxu0 0
    %6086 = vmatpush1.bf16.msra.mxu0 %v6083
    %6087 = vmatprep.subr.bf16.mxu0 0
    %6088 = vmatpush1.bf16.msra.mxu0 0
    %6089 = vmatprep.subr.bf16.mxu0 0
    %6090 = vmatpush1.bf16.msra.mxu0 0
    %6091 = vmatprep.subr.bf16.mxu0 0
    %6092 = vmatpush1.bf16.msra.mxu0 0
    %6093 = vmatprep.subr.bf16.mxu0 0
    %6094 = vmatpush1.bf16.msra.mxu0 0
    %6095 = vmatprep.subr.bf16.mxu0 0
    %6096 = vmatpush1.bf16.msra.mxu0 0
    %6097 = vmatprep.subr.bf16.mxu0 0
    %6098 = vmatpush1.bf16.msra.mxu0 0
    %6099 = vmatprep.subr.bf16.mxu0 0
    %6100 = vmatpush1.bf16.msra.mxu0 0
    %6101 = vmatprep.subr.bf16.mxu0 0
    %6102 = vmatpush1.bf16.msra.mxu0 0
    %6103 = vmatprep.subr.bf16.mxu0 0
    %6104 = vmatpush1.bf16.msra.mxu0 0
    %6105 = vmatprep.subr.bf16.mxu0 0
    %6106 = vmatpush1.bf16.msra.mxu0 0
    %6107 = vmatprep.subr.bf16.mxu0 0
    %6108 = vmatpush1.bf16.msra.mxu0 0
    %6109 = vmatprep.subr.bf16.mxu0 0
    %6110 = vmatpush1.bf16.msra.mxu0 0
    %6111 = vmatprep.subr.bf16.mxu0 0
    %6112 = vmatpush1.bf16.msra.mxu0 0
    %6113 = vmatprep.subr.bf16.mxu0 0
    %6114 = vmatpush1.bf16.msra.mxu0 0
    %6115 = vmatprep.subr.bf16.mxu0 0
    %6116 = vmatpush1.bf16.msra.mxu0 0
    %6117 = vmatprep.mubr.bf16.mxu0 0
    %6118 = vmatmul.mubr.bf16.gmra.mrb[0].mxu0 %v6080
    %v6119 = vpop.f32.mrb[0].mxu0
    %v6120 = vadd.f32 0.0, %v6119
    %v6121 = vpop.f32.mrb[0].mxu0
    %v6122 = vpop.f32.mrb[0].mxu0
    %v6123 = vpop.f32.mrb[0].mxu0
    %6124 = vdwg.mxu0
    %6127 = vrot.lane.b32.xlu0 %v5631, 32
    %v6128 = vpop.permute.xlu0 %6127
    %6129 = vrot.lane.b32.xlu0 %v5680, 32
    %v6130 = vpop.permute.xlu0 %6129
    %6135 = vrot.lane.b32.xlu0 %v5852, 64
    %v6136 = vpop.permute.xlu0 %6135
    %6137 = vrot.lane.b32.xlu0 %v5900, 64
    %v6138 = vpop.permute.xlu0 %6137
    %6143 = vrot.lane.b32.xlu0 %v6072, 96
    %v6144 = vpop.permute.xlu0 %6143
    %6145 = vrot.lane.b32.xlu0 %v6120, 96
    %v6146 = vpop.permute.xlu0 %6145
    %v6149 = vsel %vm851, %v5408, %v6128
    %v6150 = vsel %vm851, %v5454, %v6130
    %v6151 = vsel %vm483, %v6149, %v6136
    %v6152 = vsel %vm483, %v6150, %v6138
    %v6153 = vsel %vm1756, %v6151, %v6144
    %v6154 = vsel %vm1756, %v6152, %v6146
    %s6155 = scalar_lea.vmem [#allocation16], 64
    %v6156 = vld [vmem:[%s6155] sm:$0xf]
    %v6157 = vld [vmem:[%s6155 + $0x4] sm:$0xf]
    %v6158 = vld [vmem:[%s6155 + $0x8] sm:$0xf]
    %v6159 = vld [vmem:[%s6155 + $0xc] sm:$0xf]
    %v6160 = vld [vmem:[%s6155 + $0x10] sm:$0xf]
    %v6161 = vld [vmem:[%s6155 + $0x14] sm:$0xf]
    %v6162 = vld [vmem:[%s6155 + $0x18] sm:$0xf]
    %v6163 = vld [vmem:[%s6155 + $0x1c] sm:$0xf]
    %v6164 = vld [vmem:[%s6155 + $0x20] sm:$0xf]
    %v6165 = vld [vmem:[%s6155 + $0x24] sm:$0xf]
    %v6166 = vld [vmem:[%s6155 + $0x28] sm:$0xf]
    %v6167 = vld [vmem:[%s6155 + $0x2c] sm:$0xf]
    %v6168 = vld [vmem:[%s6155 + $0x30] sm:$0xf]
    %v6169 = vld [vmem:[%s6155 + $0x34] sm:$0xf]
    %v6170 = vld [vmem:[%s6155 + $0x38] sm:$0xf]
    %v6171 = vld [vmem:[%s6155 + $0x3c] sm:$0xf]
    %v6172 = vpack.c.bf16 %v6154, %v6153
    %v6189 = vunpack.c.l.b16 %v6156
    %v6190 = vunpack.c.l.b16 %v6157
    %v6191 = vunpack.c.l.b16 %v6158
    %v6192 = vunpack.c.l.b16 %v6159
    %v6193 = vunpack.c.l.b16 %v6160
    %v6194 = vunpack.c.l.b16 %v6161
    %v6195 = vunpack.c.l.b16 %v6162
    %v6196 = vunpack.c.l.b16 %v6163
    %v6197 = vunpack.c.l.b16 %v6164
    %v6198 = vunpack.c.l.b16 %v6165
    %v6199 = vunpack.c.l.b16 %v6166
    %v6200 = vunpack.c.l.b16 %v6167
    %v6201 = vunpack.c.l.b16 %v6168
    %v6202 = vunpack.c.l.b16 %v6169
    %v6203 = vunpack.c.l.b16 %v6170
    %v6204 = vunpack.c.l.b16 %v6171
    %v6205 = vpack.c.b16 %v6190, %v6189
    %v6206 = vpack.c.b16 %v6192, %v6191
    %v6207 = vpack.c.b16 %v6194, %v6193
    %v6208 = vpack.c.b16 %v6196, %v6195
    %v6209 = vpack.c.b16 %v6198, %v6197
    %v6210 = vpack.c.b16 %v6200, %v6199
    %v6211 = vpack.c.b16 %v6202, %v6201
    %v6212 = vpack.c.b16 %v6204, %v6203
    %6221 = vmatprep.subr.bf16.mxu0 0
    %6222 = vmatpush1.bf16.msra.mxu0 %v6205
    %6223 = vmatprep.subr.bf16.mxu0 0
    %6224 = vmatpush1.bf16.msra.mxu0 %v6206
    %6225 = vmatprep.subr.bf16.mxu0 0
    %6226 = vmatpush1.bf16.msra.mxu0 %v6207
    %6227 = vmatprep.subr.bf16.mxu0 0
    %6228 = vmatpush1.bf16.msra.mxu0 %v6208
    %6229 = vmatprep.subr.bf16.mxu0 0
    %6230 = vmatpush1.bf16.msra.mxu0 %v6209
    %6231 = vmatprep.subr.bf16.mxu0 0
    %6232 = vmatpush1.bf16.msra.mxu0 %v6210
    %6233 = vmatprep.subr.bf16.mxu0 0
    %6234 = vmatpush1.bf16.msra.mxu0 %v6211
    %6235 = vmatprep.subr.bf16.mxu0 0
    %6236 = vmatpush1.bf16.msra.mxu0 %v6212
    %6237 = vmatprep.subr.bf16.mxu0 0
    %6238 = vmatpush1.bf16.msra.mxu0 0
    %6239 = vmatprep.subr.bf16.mxu0 0
    %6240 = vmatpush1.bf16.msra.mxu0 0
    %6241 = vmatprep.subr.bf16.mxu0 0
    %6242 = vmatpush1.bf16.msra.mxu0 0
    %6243 = vmatprep.subr.bf16.mxu0 0
    %6244 = vmatpush1.bf16.msra.mxu0 0
    %6245 = vmatprep.subr.bf16.mxu0 0
    %6246 = vmatpush1.bf16.msra.mxu0 0
    %6247 = vmatprep.subr.bf16.mxu0 0
    %6248 = vmatpush1.bf16.msra.mxu0 0
    %6249 = vmatprep.subr.bf16.mxu0 0
    %6250 = vmatpush1.bf16.msra.mxu0 0
    %6251 = vmatprep.subr.bf16.mxu0 0
    %6252 = vmatpush1.bf16.msra.mxu0 0
    %6253 = vmatprep.mubr.bf16.mxu0 0
    %6254 = vmatmul.mubr.bf16.gmra.mrb[0].mxu0 %v6172
    %v6255 = vpop.f32.mrb[0].mxu0
    %v6256 = vadd.f32 0.0, %v6255
    %v6257 = vpop.f32.mrb[0].mxu0
    %v6258 = vpop.f32.mrb[0].mxu0
    %v6259 = vadd.f32 0.0, %v6258
    %v6260 = vpop.f32.mrb[0].mxu0
    %6261 = vdwg.mxu0
    %v6262 = vadd.f32 %v4929, %v6256
    %v6263 = vadd.f32 %v4930, %v6259
    %s6264 = scalar_lea.vmem [#allocation18], 1
    %v6265 = vld [vmem:[%s6264] sm:$0x1]
    %v6267 = vlaneseq
    %v6268 = vshrl.u32 %v6267, 7
    %v6269 = vsub.s32 0, %v6268
    %v6270 = vrot.slane %v6265, %v6269
    %v6272 = vadd.f32 %v6262, %v6270
    %v6273 = vadd.f32 %v6263, %v6270
    %s6274 = scalar_lea.vmem [#allocation24], 5
    %v6275 = vld [vmem:[%s6274] sm:$0x1]
    %s6276 = scalar_lea.vmem [#allocation25], 5
    %v6277 = vld [vmem:[%s6276] sm:$0x1]
    %6278 = vadd.xlane.f32.xlu0 %v6272
    %v6279 = vpop.xlane.xlu0 %6278
    %6280 = vadd.xlane.f32.xlu0 %v6273
    %v6281 = vpop.xlane.xlu0 %6280
    %v6282 = vmul.f32 %v6279, %v531
    %v6283 = vmul.f32 %v6281, %v531
    %v6284 = vsub.f32 %v6272, %v6282
    %v6285 = vsub.f32 %v6273, %v6283
    %v6286 = vmul.f32 %v6284, %v6284
    %v6287 = vmul.f32 %v6285, %v6285
    %6288 = vadd.xlane.f32.xlu0 %v6286
    %v6289 = vpop.xlane.xlu0 %6288
    %6290 = vadd.xlane.f32.xlu0 %v6287
    %v6291 = vpop.xlane.xlu0 %6290
    %v6292 = vmul.f32 %v6289, %v531
    %v6293 = vmul.f32 %v6291, %v531
    %v6294 = vadd.f32 %v6292, 1e-05
    %v6295 = vadd.f32 %v6293, 1e-05
    %v6296 = vrsqrt.pop %v6294
    %v6297 = vrsqrt.pop %v6295
    %v6298 = vmul.f32 %v6284, %v6296
    %v6299 = vmul.f32 %v6285, %v6297
    %v6301 = vlaneseq
    %v6302 = vshrl.u32 %v6301, 7
    %v6303 = vsub.s32 0, %v6302
    %v6304 = vrot.slane %v6275, %v6303
    %v6306 = vmul.f32 %v6298, %v6304
    %v6307 = vmul.f32 %v6299, %v6304
    %v6309 = vlaneseq
    %v6310 = vshrl.u32 %v6309, 7
    %v6311 = vsub.s32 0, %v6310
    %v6312 = vrot.slane %v6277, %v6311
    %v6314 = vadd.f32 %v6306, %v6312
    %v6315 = vadd.f32 %v6307, %v6312
    %s6316 = scalar_lea.vmem %s16, 128
    %v6317 = vld [vmem:[%s6316] sm:$0xff]
    %v6318 = vld [vmem:[%s6316 + $0x8] sm:$0xff]
    %v6319 = vld [vmem:[%s6316 + $0x10] sm:$0xff]
    %v6320 = vld [vmem:[%s6316 + $0x18] sm:$0xff]
    %v6321 = vld [vmem:[%s6316 + $0x20] sm:$0xff]
    %v6322 = vld [vmem:[%s6316 + $0x28] sm:$0xff]
    %v6323 = vld [vmem:[%s6316 + $0x30] sm:$0xff]
    %v6324 = vld [vmem:[%s6316 + $0x38] sm:$0xff]
    %v6325 = vld [vmem:[%s6316 + $0x40] sm:$0xff]
    %v6326 = vld [vmem:[%s6316 + $0x48] sm:$0xff]
    %v6327 = vld [vmem:[%s6316 + $0x50] sm:$0xff]
    %v6328 = vld [vmem:[%s6316 + $0x58] sm:$0xff]
    %v6329 = vld [vmem:[%s6316 + $0x60] sm:$0xff]
    %v6330 = vld [vmem:[%s6316 + $0x68] sm:$0xff]
    %v6331 = vld [vmem:[%s6316 + $0x70] sm:$0xff]
    %v6332 = vld [vmem:[%s6316 + $0x78] sm:$0xff]
    %v6333 = vpack.c.bf16 %v6315, %v6314
    %s6334 = scalar_lea.vmem [#allocation19], 2
    %v6335 = vld [vmem:[%s6334] sm:$0x3]
    %v6337 = vlaneseq
    %v6338 = vshrl.u32 %v6337, 7
    %v6339 = vsub.s32 0, %v6338
    %v6340 = vrot.slane %v6335, %v6339
    %v6341 = vlaneseq
    %v6342 = vshrl.u32 %v6341, 7
    %v6343 = vsub.s32 1, %v6342
    %v6344 = vrot.slane %v6335, %v6343
    %v6363 = vunpack.c.l.b16 %v6317
    %v6364 = vunpack.c.h.b16 %v6317
    %v6365 = vunpack.c.l.b16 %v6318
    %v6366 = vunpack.c.h.b16 %v6318
    %v6367 = vunpack.c.l.b16 %v6319
    %v6368 = vunpack.c.h.b16 %v6319
    %v6369 = vunpack.c.l.b16 %v6320
    %v6370 = vunpack.c.h.b16 %v6320
    %v6371 = vunpack.c.l.b16 %v6321
    %v6372 = vunpack.c.h.b16 %v6321
    %v6373 = vunpack.c.l.b16 %v6322
    %v6374 = vunpack.c.h.b16 %v6322
    %v6375 = vunpack.c.l.b16 %v6323
    %v6376 = vunpack.c.h.b16 %v6323
    %v6377 = vunpack.c.l.b16 %v6324
    %v6378 = vunpack.c.h.b16 %v6324
    %v6379 = vunpack.c.l.b16 %v6325
    %v6380 = vunpack.c.h.b16 %v6325
    %v6381 = vunpack.c.l.b16 %v6326
    %v6382 = vunpack.c.h.b16 %v6326
    %v6383 = vunpack.c.l.b16 %v6327
    %v6384 = vunpack.c.h.b16 %v6327
    %v6385 = vunpack.c.l.b16 %v6328
    %v6386 = vunpack.c.h.b16 %v6328
    %v6387 = vunpack.c.l.b16 %v6329
    %v6388 = vunpack.c.h.b16 %v6329
    %v6389 = vunpack.c.l.b16 %v6330
    %v6390 = vunpack.c.h.b16 %v6330
    %v6391 = vunpack.c.l.b16 %v6331
    %v6392 = vunpack.c.h.b16 %v6331
    %v6393 = vunpack.c.l.b16 %v6332
    %v6394 = vunpack.c.h.b16 %v6332
    %v6395 = vpack.c.b16 %v6365, %v6363
    %v6396 = vpack.c.b16 %v6366, %v6364
    %v6397 = vpack.c.b16 %v6369, %v6367
    %v6398 = vpack.c.b16 %v6370, %v6368
    %v6399 = vpack.c.b16 %v6373, %v6371
    %v6400 = vpack.c.b16 %v6374, %v6372
    %v6401 = vpack.c.b16 %v6377, %v6375
    %v6402 = vpack.c.b16 %v6378, %v6376
    %v6403 = vpack.c.b16 %v6381, %v6379
    %v6404 = vpack.c.b16 %v6382, %v6380
    %v6405 = vpack.c.b16 %v6385, %v6383
    %v6406 = vpack.c.b16 %v6386, %v6384
    %v6407 = vpack.c.b16 %v6389, %v6387
    %v6408 = vpack.c.b16 %v6390, %v6388
    %v6409 = vpack.c.b16 %v6393, %v6391
    %v6410 = vpack.c.b16 %v6394, %v6392
    %6427 = vmatprep.subr.bf16.mxu0 %v6396
    %6428 = vmatpush1.bf16.msra.mxu0 %v6395
    %6429 = vmatprep.subr.bf16.mxu0 %v6398
    %6430 = vmatpush1.bf16.msra.mxu0 %v6397
    %6431 = vmatprep.subr.bf16.mxu0 %v6400
    %6432 = vmatpush1.bf16.msra.mxu0 %v6399
    %6433 = vmatprep.subr.bf16.mxu0 %v6402
    %6434 = vmatpush1.bf16.msra.mxu0 %v6401
    %6435 = vmatprep.subr.bf16.mxu0 %v6404
    %6436 = vmatpush1.bf16.msra.mxu0 %v6403
    %6437 = vmatprep.subr.bf16.mxu0 %v6406
    %6438 = vmatpush1.bf16.msra.mxu0 %v6405
    %6439 = vmatprep.subr.bf16.mxu0 %v6408
    %6440 = vmatpush1.bf16.msra.mxu0 %v6407
    %6441 = vmatprep.subr.bf16.mxu0 %v6410
    %6442 = vmatpush1.bf16.msra.mxu0 %v6409
    %6443 = vmatprep.subr.bf16.mxu0 0
    %6444 = vmatpush1.bf16.msra.mxu0 0
    %6445 = vmatprep.subr.bf16.mxu0 0
    %6446 = vmatpush1.bf16.msra.mxu0 0
    %6447 = vmatprep.subr.bf16.mxu0 0
    %6448 = vmatpush1.bf16.msra.mxu0 0
    %6449 = vmatprep.subr.bf16.mxu0 0
    %6450 = vmatpush1.bf16.msra.mxu0 0
    %6451 = vmatprep.subr.bf16.mxu0 0
    %6452 = vmatpush1.bf16.msra.mxu0 0
    %6453 = vmatprep.subr.bf16.mxu0 0
    %6454 = vmatpush1.bf16.msra.mxu0 0
    %6455 = vmatprep.subr.bf16.mxu0 0
    %6456 = vmatpush1.bf16.msra.mxu0 0
    %6457 = vmatprep.subr.bf16.mxu0 0
    %6458 = vmatpush1.bf16.msra.mxu0 0
    %6459 = vmatprep.mubr.bf16.mxu0 0
    %6460 = vmatmul.mubr.bf16.gmra.mrb[0].mxu0 %v6333
    %v6461 = vpop.f32.mrb[0].mxu0
    %v6462 = vadd.f32 %v6340, %v6461
    %v6463 = vpop.f32.mrb[0].mxu0
    %v6464 = vadd.f32 %v6344, %v6463
    %v6465 = vpop.f32.mrb[0].mxu0
    %v6466 = vadd.f32 %v6340, %v6465
    %v6467 = vpop.f32.mrb[0].mxu0
    %v6468 = vadd.f32 %v6344, %v6467
    %6469 = vdwg.mxu0
    %v6470 = vmax.f32 %v6462, 0.0
    %v6471 = vmax.f32 %v6464, 0.0
    %v6472 = vmax.f32 %v6466, 0.0
    %v6473 = vmax.f32 %v6468, 0.0
    %s6474 = scalar_lea.vmem [#allocation21], 128
    %v6475 = vld [vmem:[%s6474] sm:$0xf]
    %v6476 = vld [vmem:[%s6474 + $0x4] sm:$0xf]
    %v6477 = vld [vmem:[%s6474 + $0x8] sm:$0xf]
    %v6478 = vld [vmem:[%s6474 + $0xc] sm:$0xf]
    %v6479 = vld [vmem:[%s6474 + $0x10] sm:$0xf]
    %v6480 = vld [vmem:[%s6474 + $0x14] sm:$0xf]
    %v6481 = vld [vmem:[%s6474 + $0x18] sm:$0xf]
    %v6482 = vld [vmem:[%s6474 + $0x1c] sm:$0xf]
    %v6483 = vld [vmem:[%s6474 + $0x20] sm:$0xf]
    %v6484 = vld [vmem:[%s6474 + $0x24] sm:$0xf]
    %v6485 = vld [vmem:[%s6474 + $0x28] sm:$0xf]
    %v6486 = vld [vmem:[%s6474 + $0x2c] sm:$0xf]
    %v6487 = vld [vmem:[%s6474 + $0x30] sm:$0xf]
    %v6488 = vld [vmem:[%s6474 + $0x34] sm:$0xf]
    %v6489 = vld [vmem:[%s6474 + $0x38] sm:$0xf]
    %v6490 = vld [vmem:[%s6474 + $0x3c] sm:$0xf]
    %v6491 = vld [vmem:[%s6474 + $0x40] sm:$0xf]
    %v6492 = vld [vmem:[%s6474 + $0x44] sm:$0xf]
    %v6493 = vld [vmem:[%s6474 + $0x48] sm:$0xf]
    %v6494 = vld [vmem:[%s6474 + $0x4c] sm:$0xf]
    %v6495 = vld [vmem:[%s6474 + $0x50] sm:$0xf]
    %v6496 = vld [vmem:[%s6474 + $0x54] sm:$0xf]
    %v6497 = vld [vmem:[%s6474 + $0x58] sm:$0xf]
    %v6498 = vld [vmem:[%s6474 + $0x5c] sm:$0xf]
    %v6499 = vld [vmem:[%s6474 + $0x60] sm:$0xf]
    %v6500 = vld [vmem:[%s6474 + $0x64] sm:$0xf]
    %v6501 = vld [vmem:[%s6474 + $0x68] sm:$0xf]
    %v6502 = vld [vmem:[%s6474 + $0x6c] sm:$0xf]
    %v6503 = vld [vmem:[%s6474 + $0x70] sm:$0xf]
    %v6504 = vld [vmem:[%s6474 + $0x74] sm:$0xf]
    %v6505 = vld [vmem:[%s6474 + $0x78] sm:$0xf]
    %v6506 = vld [vmem:[%s6474 + $0x7c] sm:$0xf]
    %v6507 = vpack.c.bf16 %v6472, %v6470
    %v6508 = vpack.c.bf16 %v6473, %v6471
    %v6541 = vunpack.c.l.b16 %v6475
    %v6542 = vunpack.c.l.b16 %v6476
    %v6543 = vunpack.c.l.b16 %v6477
    %v6544 = vunpack.c.l.b16 %v6478
    %v6545 = vunpack.c.l.b16 %v6479
    %v6546 = vunpack.c.l.b16 %v6480
    %v6547 = vunpack.c.l.b16 %v6481
    %v6548 = vunpack.c.l.b16 %v6482
    %v6549 = vunpack.c.l.b16 %v6483
    %v6550 = vunpack.c.l.b16 %v6484
    %v6551 = vunpack.c.l.b16 %v6485
    %v6552 = vunpack.c.l.b16 %v6486
    %v6553 = vunpack.c.l.b16 %v6487
    %v6554 = vunpack.c.l.b16 %v6488
    %v6555 = vunpack.c.l.b16 %v6489
    %v6556 = vunpack.c.l.b16 %v6490
    %v6557 = vunpack.c.l.b16 %v6491
    %v6558 = vunpack.c.l.b16 %v6492
    %v6559 = vunpack.c.l.b16 %v6493
    %v6560 = vunpack.c.l.b16 %v6494
    %v6561 = vunpack.c.l.b16 %v6495
    %v6562 = vunpack.c.l.b16 %v6496
    %v6563 = vunpack.c.l.b16 %v6497
    %v6564 = vunpack.c.l.b16 %v6498
    %v6565 = vunpack.c.l.b16 %v6499
    %v6566 = vunpack.c.l.b16 %v6500
    %v6567 = vunpack.c.l.b16 %v6501
    %v6568 = vunpack.c.l.b16 %v6502
    %v6569 = vunpack.c.l.b16 %v6503
    %v6570 = vunpack.c.l.b16 %v6504
    %v6571 = vunpack.c.l.b16 %v6505
    %v6572 = vunpack.c.l.b16 %v6506
    %v6573 = vpack.c.b16 %v6542, %v6541
    %v6574 = vpack.c.b16 %v6544, %v6543
    %v6575 = vpack.c.b16 %v6546, %v6545
    %v6576 = vpack.c.b16 %v6548, %v6547
    %v6577 = vpack.c.b16 %v6550, %v6549
    %v6578 = vpack.c.b16 %v6552, %v6551
    %v6579 = vpack.c.b16 %v6554, %v6553
    %v6580 = vpack.c.b16 %v6556, %v6555
    %v6581 = vpack.c.b16 %v6558, %v6557
    %v6582 = vpack.c.b16 %v6560, %v6559
    %v6583 = vpack.c.b16 %v6562, %v6561
    %v6584 = vpack.c.b16 %v6564, %v6563
    %v6585 = vpack.c.b16 %v6566, %v6565
    %v6586 = vpack.c.b16 %v6568, %v6567
    %v6587 = vpack.c.b16 %v6570, %v6569
    %v6588 = vpack.c.b16 %v6572, %v6571
    %6605 = vmatprep.subr.bf16.mxu0 0
    %6606 = vmatpush1.bf16.msra.mxu0 %v6573
    %6607 = vmatprep.subr.bf16.mxu0 0
    %6608 = vmatpush1.bf16.msra.mxu0 %v6574
    %6609 = vmatprep.subr.bf16.mxu0 0
    %6610 = vmatpush1.bf16.msra.mxu0 %v6575
    %6611 = vmatprep.subr.bf16.mxu0 0
    %6612 = vmatpush1.bf16.msra.mxu0 %v6576
    %6613 = vmatprep.subr.bf16.mxu0 0
    %6614 = vmatpush1.bf16.msra.mxu0 %v6577
    %6615 = vmatprep.subr.bf16.mxu0 0
    %6616 = vmatpush1.bf16.msra.mxu0 %v6578
    %6617 = vmatprep.subr.bf16.mxu0 0
    %6618 = vmatpush1.bf16.msra.mxu0 %v6579
    %6619 = vmatprep.subr.bf16.mxu0 0
    %6620 = vmatpush1.bf16.msra.mxu0 %v6580
    %6621 = vmatprep.subr.bf16.mxu0 0
    %6622 = vmatpush1.bf16.msra.mxu0 %v6581
    %6623 = vmatprep.subr.bf16.mxu0 0
    %6624 = vmatpush1.bf16.msra.mxu0 %v6582
    %6625 = vmatprep.subr.bf16.mxu0 0
    %6626 = vmatpush1.bf16.msra.mxu0 %v6583
    %6627 = vmatprep.subr.bf16.mxu0 0
    %6628 = vmatpush1.bf16.msra.mxu0 %v6584
    %6629 = vmatprep.subr.bf16.mxu0 0
    %6630 = vmatpush1.bf16.msra.mxu0 %v6585
    %6631 = vmatprep.subr.bf16.mxu0 0
    %6632 = vmatpush1.bf16.msra.mxu0 %v6586
    %6633 = vmatprep.subr.bf16.mxu0 0
    %6634 = vmatpush1.bf16.msra.mxu0 %v6587
    %6635 = vmatprep.subr.bf16.mxu0 0
    %6636 = vmatpush1.bf16.msra.mxu0 %v6588
    %6637 = vmatprep.mubr.bf16.mxu0 %v6508
    %6638 = vmatmul.mubr.bf16.gmra.mrb[0].mxu0 %v6507
    %v6639 = vpop.f32.mrb[0].mxu0
    %v6640 = vadd.f32 0.0, %v6639
    %v6641 = vpop.f32.mrb[0].mxu0
    %v6642 = vpop.f32.mrb[0].mxu0
    %v6643 = vadd.f32 0.0, %v6642
    %v6644 = vpop.f32.mrb[0].mxu0
    %6645 = vdwg.mxu0
    %v6646 = vadd.f32 %v6272, %v6640
    %v6647 = vadd.f32 %v6273, %v6643
    %s6648 = scalar_lea.vmem [#allocation22], 1
    %v6649 = vld [vmem:[%s6648] sm:$0x1]
    %v6651 = vlaneseq
    %v6652 = vshrl.u32 %v6651, 7
    %v6653 = vsub.s32 0, %v6652
    %v6654 = vrot.slane %v6649, %v6653
    %v6656 = vadd.f32 %v6646, %v6654
    %v6657 = vadd.f32 %v6647, %v6654
    %v6658 = vld [vmem:[#allocation27] sm:$0x1]
    %v6659 = vld [vmem:[#allocation28] sm:$0x1]
    %6660 = vadd.xlane.f32.xlu0 %v6656
    %v6661 = vpop.xlane.xlu0 %6660
    %6662 = vadd.xlane.f32.xlu0 %v6657
    %v6663 = vpop.xlane.xlu0 %6662
    %v6664 = vmul.f32 %v6661, %v531
    %v6665 = vmul.f32 %v6663, %v531
    %v6666 = vsub.f32 %v6656, %v6664
    %v6667 = vsub.f32 %v6657, %v6665
    %v6668 = vmul.f32 %v6666, %v6666
    %v6669 = vmul.f32 %v6667, %v6667
    %6670 = vadd.xlane.f32.xlu0 %v6668
    %v6671 = vpop.xlane.xlu0 %6670
    %6672 = vadd.xlane.f32.xlu0 %v6669
    %v6673 = vpop.xlane.xlu0 %6672
    %v6674 = vmul.f32 %v6671, %v531
    %v6675 = vmul.f32 %v6673, %v531
    %v6676 = vadd.f32 %v6674, 1e-05
    %v6677 = vadd.f32 %v6675, 1e-05
    %v6678 = vrsqrt.pop %v6676
    %v6679 = vrsqrt.pop %v6677
    %v6680 = vmul.f32 %v6666, %v6678
    %v6681 = vmul.f32 %v6667, %v6679
    %v6683 = vlaneseq
    %v6684 = vshrl.u32 %v6683, 7
    %v6685 = vsub.s32 0, %v6684
    %v6686 = vrot.slane %v6658, %v6685
    %v6688 = vmul.f32 %v6680, %v6686
    %v6689 = vmul.f32 %v6681, %v6686
    %v6691 = vlaneseq
    %v6692 = vshrl.u32 %v6691, 7
    %v6693 = vsub.s32 0, %v6692
    %v6694 = vrot.slane %v6659, %v6693
    %v6696 = vadd.f32 %v6688, %v6694
    %v6697 = vadd.f32 %v6689, %v6694
    %v6698 = vld [vmem:[#allocation30] sm:$0xf]
    %v6699 = vld [vmem:[#allocation30 + $0x4] sm:$0xf]
    %v6700 = vld [vmem:[#allocation30 + $0x8] sm:$0xf]
    %v6701 = vld [vmem:[#allocation30 + $0xc] sm:$0xf]
    %v6702 = vld [vmem:[#allocation30 + $0x10] sm:$0xf]
    %v6703 = vld [vmem:[#allocation30 + $0x14] sm:$0xf]
    %v6704 = vld [vmem:[#allocation30 + $0x18] sm:$0xf]
    %v6705 = vld [vmem:[#allocation30 + $0x1c] sm:$0xf]
    %v6706 = vld [vmem:[#allocation30 + $0x20] sm:$0xf]
    %v6707 = vld [vmem:[#allocation30 + $0x24] sm:$0xf]
    %v6708 = vld [vmem:[#allocation30 + $0x28] sm:$0xf]
    %v6709 = vld [vmem:[#allocation30 + $0x2c] sm:$0xf]
    %v6710 = vld [vmem:[#allocation30 + $0x30] sm:$0xf]
    %v6711 = vld [vmem:[#allocation30 + $0x34] sm:$0xf]
    %v6712 = vld [vmem:[#allocation30 + $0x38] sm:$0xf]
    %v6713 = vld [vmem:[#allocation30 + $0x3c] sm:$0xf]
    %v6714 = vpack.c.bf16 %v6697, %v6696
    %v6715 = vld [vmem:[#allocation31] sm:$0x1]
    %v6717 = vlaneseq
    %v6718 = vshrl.u32 %v6717, 7
    %v6719 = vsub.s32 0, %v6718
    %v6720 = vrot.slane %v6715, %v6719
    %v6738 = vunpack.c.l.b16 %v6698
    %v6739 = vunpack.c.l.b16 %v6699
    %v6740 = vunpack.c.l.b16 %v6700
    %v6741 = vunpack.c.l.b16 %v6701
    %v6742 = vunpack.c.l.b16 %v6702
    %v6743 = vunpack.c.l.b16 %v6703
    %v6744 = vunpack.c.l.b16 %v6704
    %v6745 = vunpack.c.l.b16 %v6705
    %v6746 = vunpack.c.l.b16 %v6706
    %v6747 = vunpack.c.l.b16 %v6707
    %v6748 = vunpack.c.l.b16 %v6708
    %v6749 = vunpack.c.l.b16 %v6709
    %v6750 = vunpack.c.l.b16 %v6710
    %v6751 = vunpack.c.l.b16 %v6711
    %v6752 = vunpack.c.l.b16 %v6712
    %v6753 = vunpack.c.l.b16 %v6713
    %v6754 = vpack.c.b16 %v6739, %v6738
    %v6755 = vpack.c.b16 %v6741, %v6740
    %v6756 = vpack.c.b16 %v6743, %v6742
    %v6757 = vpack.c.b16 %v6745, %v6744
    %v6758 = vpack.c.b16 %v6747, %v6746
    %v6759 = vpack.c.b16 %v6749, %v6748
    %v6760 = vpack.c.b16 %v6751, %v6750
    %v6761 = vpack.c.b16 %v6753, %v6752
    %6770 = vmatprep.subr.bf16.mxu0 0
    %6771 = vmatpush1.bf16.msra.mxu0 %v6754
    %6772 = vmatprep.subr.bf16.mxu0 0
    %6773 = vmatpush1.bf16.msra.mxu0 %v6755
    %6774 = vmatprep.subr.bf16.mxu0 0
    %6775 = vmatpush1.bf16.msra.mxu0 %v6756
    %6776 = vmatprep.subr.bf16.mxu0 0
    %6777 = vmatpush1.bf16.msra.mxu0 %v6757
    %6778 = vmatprep.subr.bf16.mxu0 0
    %6779 = vmatpush1.bf16.msra.mxu0 %v6758
    %6780 = vmatprep.subr.bf16.mxu0 0
    %6781 = vmatpush1.bf16.msra.mxu0 %v6759
    %6782 = vmatprep.subr.bf16.mxu0 0
    %6783 = vmatpush1.bf16.msra.mxu0 %v6760
    %6784 = vmatprep.subr.bf16.mxu0 0
    %6785 = vmatpush1.bf16.msra.mxu0 %v6761
    %6786 = vmatprep.subr.bf16.mxu0 0
    %6787 = vmatpush1.bf16.msra.mxu0 0
    %6788 = vmatprep.subr.bf16.mxu0 0
    %6789 = vmatpush1.bf16.msra.mxu0 0
    %6790 = vmatprep.subr.bf16.mxu0 0
    %6791 = vmatpush1.bf16.msra.mxu0 0
    %6792 = vmatprep.subr.bf16.mxu0 0
    %6793 = vmatpush1.bf16.msra.mxu0 0
    %6794 = vmatprep.subr.bf16.mxu0 0
    %6795 = vmatpush1.bf16.msra.mxu0 0
    %6796 = vmatprep.subr.bf16.mxu0 0
    %6797 = vmatpush1.bf16.msra.mxu0 0
    %6798 = vmatprep.subr.bf16.mxu0 0
    %6799 = vmatpush1.bf16.msra.mxu0 0
    %6800 = vmatprep.subr.bf16.mxu0 0
    %6801 = vmatpush1.bf16.msra.mxu0 0
    %6802 = vmatprep.mubr.bf16.mxu0 0
    %6803 = vmatmul.mubr.bf16.gmra.mrb[0].mxu0 %v6714
    %v6804 = vpop.f32.mrb[0].mxu0
    %v6805 = vadd.f32 %v6720, %v6804
    %v6806 = vpop.f32.mrb[0].mxu0
    %v6807 = vpop.f32.mrb[0].mxu0
    %v6808 = vadd.f32 %v6720, %v6807
    %v6809 = vpop.f32.mrb[0].mxu0
    %6810 = vdwg.mxu0
    %v6811 = vmax.f32 %v6805, 0.0
    %v6812 = vmax.f32 %v6808, 0.0
    %v6813 = vld [vmem:[#allocation33] sm:$0xf]
    %v6814 = vld [vmem:[#allocation33 + $0x4] sm:$0xf]
    %v6815 = vld [vmem:[#allocation33 + $0x8] sm:$0xf]
    %v6816 = vld [vmem:[#allocation33 + $0xc] sm:$0xf]
    %v6817 = vld [vmem:[#allocation33 + $0x10] sm:$0xf]
    %v6818 = vld [vmem:[#allocation33 + $0x14] sm:$0xf]
    %v6819 = vld [vmem:[#allocation33 + $0x18] sm:$0xf]
    %v6820 = vld [vmem:[#allocation33 + $0x1c] sm:$0xf]
    %v6821 = vld [vmem:[#allocation33 + $0x20] sm:$0xf]
    %v6822 = vld [vmem:[#allocation33 + $0x24] sm:$0xf]
    %v6823 = vld [vmem:[#allocation33 + $0x28] sm:$0xf]
    %v6824 = vld [vmem:[#allocation33 + $0x2c] sm:$0xf]
    %v6825 = vld [vmem:[#allocation33 + $0x30] sm:$0xf]
    %v6826 = vld [vmem:[#allocation33 + $0x34] sm:$0xf]
    %v6827 = vld [vmem:[#allocation33 + $0x38] sm:$0xf]
    %v6828 = vld [vmem:[#allocation33 + $0x3c] sm:$0xf]
    %v6829 = vpack.c.bf16 %v6812, %v6811
    %v6830 = vld [vmem:[#allocation34] sm:$0x1]
    %v6832 = vlaneseq
    %v6833 = vshrl.u32 %v6832, 7
    %v6834 = vsub.s32 0, %v6833
    %v6835 = vrot.slane %v6830, %v6834
    %v6853 = vunpack.c.l.b16 %v6813
    %v6854 = vunpack.c.l.b16 %v6814
    %v6855 = vunpack.c.l.b16 %v6815
    %v6856 = vunpack.c.l.b16 %v6816
    %v6857 = vunpack.c.l.b16 %v6817
    %v6858 = vunpack.c.l.b16 %v6818
    %v6859 = vunpack.c.l.b16 %v6819
    %v6860 = vunpack.c.l.b16 %v6820
    %v6861 = vunpack.c.l.b16 %v6821
    %v6862 = vunpack.c.l.b16 %v6822
    %v6863 = vunpack.c.l.b16 %v6823
    %v6864 = vunpack.c.l.b16 %v6824
    %v6865 = vunpack.c.l.b16 %v6825
    %v6866 = vunpack.c.l.b16 %v6826
    %v6867 = vunpack.c.l.b16 %v6827
    %v6868 = vunpack.c.l.b16 %v6828
    %v6869 = vpack.c.b16 %v6854, %v6853
    %v6870 = vpack.c.b16 %v6856, %v6855
    %v6871 = vpack.c.b16 %v6858, %v6857
    %v6872 = vpack.c.b16 %v6860, %v6859
    %v6873 = vpack.c.b16 %v6862, %v6861
    %v6874 = vpack.c.b16 %v6864, %v6863
    %v6875 = vpack.c.b16 %v6866, %v6865
    %v6876 = vpack.c.b16 %v6868, %v6867
    %6885 = vmatprep.subr.bf16.mxu0 0
    %6886 = vmatpush1.bf16.msra.mxu0 %v6869
    %6887 = vmatprep.subr.bf16.mxu0 0
    %6888 = vmatpush1.bf16.msra.mxu0 %v6870
    %6889 = vmatprep.subr.bf16.mxu0 0
    %6890 = vmatpush1.bf16.msra.mxu0 %v6871
    %6891 = vmatprep.subr.bf16.mxu0 0
    %6892 = vmatpush1.bf16.msra.mxu0 %v6872
    %6893 = vmatprep.subr.bf16.mxu0 0
    %6894 = vmatpush1.bf16.msra.mxu0 %v6873
    %6895 = vmatprep.subr.bf16.mxu0 0
    %6896 = vmatpush1.bf16.msra.mxu0 %v6874
    %6897 = vmatprep.subr.bf16.mxu0 0
    %6898 = vmatpush1.bf16.msra.mxu0 %v6875
    %6899 = vmatprep.subr.bf16.mxu0 0
    %6900 = vmatpush1.bf16.msra.mxu0 %v6876
    %6901 = vmatprep.subr.bf16.mxu0 0
    %6902 = vmatpush1.bf16.msra.mxu0 0
    %6903 = vmatprep.subr.bf16.mxu0 0
    %6904 = vmatpush1.bf16.msra.mxu0 0
    %6905 = vmatprep.subr.bf16.mxu0 0
    %6906 = vmatpush1.bf16.msra.mxu0 0
    %6907 = vmatprep.subr.bf16.mxu0 0
    %6908 = vmatpush1.bf16.msra.mxu0 0
    %6909 = vmatprep.subr.bf16.mxu0 0
    %6910 = vmatpush1.bf16.msra.mxu0 0
    %6911 = vmatprep.subr.bf16.mxu0 0
    %6912 = vmatpush1.bf16.msra.mxu0 0
    %6913 = vmatprep.subr.bf16.mxu0 0
    %6914 = vmatpush1.bf16.msra.mxu0 0
    %6915 = vmatprep.subr.bf16.mxu0 0
    %6916 = vmatpush1.bf16.msra.mxu0 0
    %6917 = vmatprep.mubr.bf16.mxu0 0
    %6918 = vmatmul.mubr.bf16.gmra.mrb[0].mxu0 %v6829
    %v6919 = vpop.f32.mrb[0].mxu0
    %v6920 = vadd.f32 %v6835, %v6919
    %v6921 = vpop.f32.mrb[0].mxu0
    %v6922 = vpop.f32.mrb[0].mxu0
    %v6923 = vadd.f32 %v6835, %v6922
    %v6924 = vpop.f32.mrb[0].mxu0
    %6925 = vdwg.mxu0
    %6926 = vst [vmem:[%s28] sm:$0xff] %v6920
    %6927 = vst [vmem:[%s28 + $0x8] sm:$0xff] %v6923
    // Predicated region
    $region202: #{vqa_forward.2} parent=1 // pred_check
      _
    $region203: #{vqa_forward.2} parent=1 // pred_check_branch
      %6929 = sbr.rel (0) target = $region205
    $region204: #{vqa_forward.2} parent=1 // pred_region
      _
    $region205: #{vqa_forward.2} parent=1 // pred_fallthru
      _
    // Predicated region
    $region206: #{vqa_forward.2} parent=1 // pred_check
      _
    $region207: #{vqa_forward.2} parent=1 // pred_check_branch
      %6931 = sbr.rel (0) target = $region209
    $region208: #{vqa_forward.2} parent=1 // pred_region
      _
    $region209: #{vqa_forward.2} parent=1 // pred_fallthru
      _
    %6932 = vsyncpa [#allocation3], 1
    %6933 = vsyncpa [#allocation5], 1
    %6934 = vsyncpa [#allocation8], 1
    %6935 = vsyncpa [#allocation11], 1
    %6936 = vsyncpa [#allocation14], 1
    %6937 = vsyncpa [#allocation17], 1
    %6938 = vsyncpa [#allocation20], 1
    %6939 = vsyncpa [#allocation23], 1
    %6940 = vsyncpa [#allocation26], 1
    %6941 = vsyncpa [#allocation29], 1
    %6942 = vsyncpa [#allocation32], 1
    %6943 = vsyncpa [#allocation35], 1

</llo_original>
